<compile_context>
chip_gen: v6e
topology: v6e:2x2x1
jax: 0.10.0
libtpu: 0.0.40
codegen_flags: <defaults>
</compile_context>

<pallas_src>
import jax
import jax.numpy as jnp
from jax.experimental import pallas as pl
from jax.experimental.pallas import tpu as pltpu


# ----------------------------------------------------------------------------
# In-kernel helpers (operate on VMEM-resident values)
# ----------------------------------------------------------------------------
def _zero_pad_hw(x, d):
    """Zero-pad an (H, W, C) value by d pixels on each spatial side."""
    H, W, C = x.shape
    zr = jnp.zeros((d, W, C), x.dtype)
    xp = jnp.concatenate([zr, x, zr], axis=0)            # (H+2d, W, C)
    zc = jnp.zeros((H + 2 * d, d, C), x.dtype)
    return jnp.concatenate([zc, xp, zc], axis=1)         # (H+2d, W+2d, C)


def _im2col_conv3x3(x, w9, d):
    """3x3 conv, dilation d, 'same' padding, as ONE matmul.

    x:  (H, W, Cin) value in its native dtype
    w9: (9*Cin, Cout) HWIO weight flattened over (kh, kw, Cin)
    returns: f32 accumulator of shape (H*W, Cout)
    """
    H, W, Cin = x.shape
    xp = _zero_pad_hw(x, d)
    cols = [xp[kh * d:kh * d + H, kw * d:kw * d + W, :]
            for kh in range(3) for kw in range(3)]
    lhs = jnp.concatenate(cols, axis=-1).reshape(H * W, 9 * Cin)
    return jax.lax.dot_general(
        lhs, w9,
        dimension_numbers=(((1,), (0,)), ((), ())),
        preferred_element_type=jnp.float32)


def _bn_relu(acc, sb):
    """Folded BatchNorm (scale/bias) + ReLU on an f32 (H*W, Cout) accumulator."""
    return jnp.maximum(acc * sb[0:1, :] + sb[1:2, :], 0.0)


# ----------------------------------------------------------------------------
# Fused RSU2F kernel (one batch row per grid step)
# ----------------------------------------------------------------------------
def _rsu2f_kernel(x_ref,
                  w_in_ref, sb_in_ref,
                  w1_ref, sb1_ref,
                  w2_ref, sb2_ref,
                  w1d2_ref, w1d1_ref, sb1d_ref,
                  o_ref,
                  hxin_ref, hx1_ref):
    x = x_ref[0]                                   # (H, W, Cin), native dtype
    H, W, _ = x.shape

    # hxin = REBNCONV_in(x); kept in VMEM scratch (reused for the residual).
    hxin = _bn_relu(_im2col_conv3x3(x, w_in_ref[...], d=1), sb_in_ref[...])
    hxin_ref[...] = hxin.reshape(H, W, -1).astype(hxin_ref.dtype)

    # hx1 = REBNCONV_1(hxin); kept in VMEM scratch (reused by the decoder).
    hx1 = _bn_relu(_im2col_conv3x3(hxin_ref[...], w1_ref[...], d=1),
                   sb1_ref[...])
    hx1_ref[...] = hx1.reshape(H, W, -1).astype(hx1_ref.dtype)

    # hx2 = REBNCONV_2(hx1), dilation 2 (consumed immediately).
    hx2 = _bn_relu(_im2col_conv3x3(hx1_ref[...], w2_ref[...], d=2),
                   sb2_ref[...]).reshape(H, W, -1).astype(x.dtype)

    # hx1d = REBNCONV_1d(cat(hx2, hx1)): the channel concat is replaced by the
    # split weight halves accumulating into the same f32 accumulator.
    acc = (_im2col_conv3x3(hx2, w1d2_ref[...], d=1)
           + _im2col_conv3x3(hx1_ref[...], w1d1_ref[...], d=1))
    hx1d = _bn_relu(acc, sb1d_ref[...]).reshape(H, W, -1)

    # residual after ReLU, exactly as in PyTorch: return hx1d + hxin
    o_ref[0] = (hx1d + hxin_ref[...].astype(jnp.float32)).astype(o_ref.dtype)


# ----------------------------------------------------------------------------
# Wrapper
# ----------------------------------------------------------------------------
def _flatten_w(w_hwio):
    kh, kw, cin, cout = w_hwio.shape
    return w_hwio.reshape(kh * kw * cin, cout)


def rsu2f_forward(x_nchw, params):
    """RSU2F forward.  x_nchw: (N, C, H, W).  Returns (N, out_ch, H, W)."""
    x = jnp.transpose(x_nchw, (0, 2, 3, 1))                # NCHW -> NHWC
    N, H, W, in_ch = x.shape
    cdt = x.dtype

    p_in, p1, p2, p1d = (params["rebnconvin"], params["rebnconv1"],
                         params["rebnconv2"], params["rebnconv1d"])
    out_ch = p_in["w"].shape[-1]
    mid_ch = p1["w"].shape[-1]

    w_in9 = _flatten_w(p_in["w"])
    w1_9 = _flatten_w(p1["w"])
    w2_9 = _flatten_w(p2["w"])
    # split the decoder weight into the halves applied to hx2 / hx1
    w1d = p1d["w"]                                         # (3, 3, 2*mid, out)
    w1d2_9 = _flatten_w(w1d[:, :, :mid_ch, :])
    w1d1_9 = _flatten_w(w1d[:, :, mid_ch:, :])

    def sb(p):  # packed (2, C): row 0 = scale, row 1 = bias
        return jnp.stack([p["scale"], p["bias"]]).astype(jnp.float32)

    weight_args = [w_in9, sb(p_in), w1_9, sb(p1), w2_9, sb(p2),
                   w1d2_9, w1d1_9, sb(p1d)]

    def full_spec(a):
        return pl.BlockSpec(a.shape, lambda n: (0,) * a.ndim)

    in_specs = ([pl.BlockSpec((1, H, W, in_ch), lambda n: (n, 0, 0, 0))]
                + [full_spec(a) for a in weight_args])

    out = pl.pallas_call(
        _rsu2f_kernel,
        out_shape=jax.ShapeDtypeStruct((N, H, W, out_ch), cdt),
        grid_spec=pltpu.PrefetchScalarGridSpec(
            num_scalar_prefetch=0,
            grid=(N,),
            in_specs=in_specs,
            out_specs=pl.BlockSpec((1, H, W, out_ch), lambda n: (n, 0, 0, 0)),
            scratch_shapes=[pltpu.VMEM((H, W, out_ch), cdt),   # hxin
                            pltpu.VMEM((H, W, mid_ch), cdt)],  # hx1
        ),
        compiler_params=pltpu.CompilerParams(
            dimension_semantics=("parallel",),
            vmem_limit_bytes=48 * 1024 * 1024),
    )(x, *weight_args)

    return jnp.transpose(out, (0, 3, 1, 2))                # NHWC -> NCHW


# ----------------------------------------------------------------------------
# Plain-JAX reference (for a sanity check of the fused kernel)
# ----------------------------------------------------------------------------
def _ref_rebnconv(x_nhwc, p, d):
    y = jax.lax.conv_general_dilated(
        x_nhwc, p["w"], window_strides=(1, 1),
        padding=[(d, d), (d, d)], rhs_dilation=(d, d),
        dimension_numbers=("NHWC", "HWIO", "NHWC"),
        precision=jax.lax.Precision.HIGHEST)
    return jnp.maximum(y * p["scale"] + p["bias"], 0.0)


def rsu2f_reference(x_nchw, params):
    x = jnp.transpose(x_nchw, (0, 2, 3, 1))
    hxin = _ref_rebnconv(x, params["rebnconvin"], 1)
    hx1 = _ref_rebnconv(hxin, params["rebnconv1"], 1)
    hx2 = _ref_rebnconv(hx1, params["rebnconv2"], 2)
    hx1d = _ref_rebnconv(jnp.concatenate([hx2, hx1], axis=-1),
                         params["rebnconv1d"], 1)
    return jnp.transpose(hx1d + hxin, (0, 3, 1, 2))


# ----------------------------------------------------------------------------
# Deterministic parameter init (synthetic; matches PyTorch shapes)
# ----------------------------------------------------------------------------
def _make_rebnconv_params(key, in_ch, out_ch):
    kw, kb, kg, kbeta, km, kv = jax.random.split(key, 6)
    w = jax.random.normal(kw, (3, 3, in_ch, out_ch), jnp.float32) * 0.1  # HWIO
    conv_b = jax.random.normal(kb, (out_ch,), jnp.float32) * 0.1
    gamma = 1.0 + 0.1 * jax.random.normal(kg, (out_ch,), jnp.float32)
    beta = 0.1 * jax.random.normal(kbeta, (out_ch,), jnp.float32)
    run_mean = 0.1 * jax.random.normal(km, (out_ch,), jnp.float32)
    run_var = 1.0 + 0.1 * jax.random.uniform(kv, (out_ch,), jnp.float32)
    eps = 1e-5
    # fold conv bias + BN(running stats) into scale/bias:
    #   bn(conv(x)+b) = (conv(x)+b - mean)/sqrt(var+eps)*gamma + beta
    scale = gamma / jnp.sqrt(run_var + eps)
    bias = (conv_b - run_mean) * scale + beta
    return {"w": w, "scale": scale, "bias": bias}


def make_rsu2f_params(key, in_ch, mid_ch, out_ch):
    k0, k1, k2, k3 = jax.random.split(key, 4)
    return {
        "rebnconvin": _make_rebnconv_params(k0, in_ch, out_ch),
        "rebnconv1": _make_rebnconv_params(k1, out_ch, mid_ch),
        "rebnconv2": _make_rebnconv_params(k2, mid_ch, mid_ch),
        "rebnconv1d": _make_rebnconv_params(k3, mid_ch * 2, out_ch),
    }


# ----------------------------------------------------------------------------
if __name__ == "__main__":
    key = jax.random.PRNGKey(0)
    kx, kp = jax.random.split(key)

    N, IN_CH, MID_CH, OUT_CH, H, W = 2, 4, 8, 4, 16, 16
    x = jax.random.normal(kx, (N, IN_CH, H, W), jnp.float32)   # NCHW like PyTorch
    params = make_rsu2f_params(kp, IN_CH, MID_CH, OUT_CH)

    out = rsu2f_forward(x, params)
    jax.block_until_ready(out)
    assert out.shape == (N, OUT_CH, H, W), out.shape

    ref = rsu2f_reference(x, params)
    assert jnp.allclose(out, ref, atol=5e-3, rtol=5e-3), \
        float(jnp.max(jnp.abs(out - ref)))

    print("KERNEL_OK")
</pallas_src>

<mosaic_0001>
module attributes {stable_mosaic.version = 11 : i64} {
  func.func @_rsu2f_kernel(%arg0: i32, %arg1: memref<1x16x16x4xf32, #tpu.memory_space<vmem>>, %arg2: memref<36x4xf32, #tpu.memory_space<vmem>>, %arg3: memref<2x4xf32, #tpu.memory_space<vmem>>, %arg4: memref<36x8xf32, #tpu.memory_space<vmem>>, %arg5: memref<2x8xf32, #tpu.memory_space<vmem>>, %arg6: memref<72x8xf32, #tpu.memory_space<vmem>>, %arg7: memref<2x8xf32, #tpu.memory_space<vmem>>, %arg8: memref<72x4xf32, #tpu.memory_space<vmem>>, %arg9: memref<72x4xf32, #tpu.memory_space<vmem>>, %arg10: memref<2x4xf32, #tpu.memory_space<vmem>>, %arg11: memref<1x16x16x4xf32, #tpu.memory_space<vmem>>, %arg12: memref<16x16x4xf32, #tpu.memory_space<vmem>>, %arg13: memref<16x16x8xf32, #tpu.memory_space<vmem>>) attributes {dimension_semantics = [#tpu.dimension_semantics<parallel>], iteration_bounds = array<i64: 2>, scalar_prefetch = 0 : i64, scratch_operands = 2 : i64, tpu.core_type = #tpu.core_type<tc>, window_params = [{transform_indices = @transform_0, window_bounds = array<i64: 1, 16, 16, 4>}, {pipeline_mode = #tpu.pipeline_mode<synchronous>, transform_indices = @transform_1, window_bounds = array<i64: 36, 4>}, {pipeline_mode = #tpu.pipeline_mode<synchronous>, transform_indices = @transform_2, window_bounds = array<i64: 2, 4>}, {pipeline_mode = #tpu.pipeline_mode<synchronous>, transform_indices = @transform_3, window_bounds = array<i64: 36, 8>}, {pipeline_mode = #tpu.pipeline_mode<synchronous>, transform_indices = @transform_4, window_bounds = array<i64: 2, 8>}, {pipeline_mode = #tpu.pipeline_mode<synchronous>, transform_indices = @transform_5, window_bounds = array<i64: 72, 8>}, {pipeline_mode = #tpu.pipeline_mode<synchronous>, transform_indices = @transform_6, window_bounds = array<i64: 2, 8>}, {pipeline_mode = #tpu.pipeline_mode<synchronous>, transform_indices = @transform_7, window_bounds = array<i64: 72, 4>}, {pipeline_mode = #tpu.pipeline_mode<synchronous>, transform_indices = @transform_8, window_bounds = array<i64: 72, 4>}, {pipeline_mode = #tpu.pipeline_mode<synchronous>, transform_indices = @transform_9, window_bounds = array<i64: 2, 4>}, {transform_indices = @transform_10, window_bounds = array<i64: 1, 16, 16, 4>}]} {
    %c0 = arith.constant 0 : index
    %c0_0 = arith.constant 0 : index
    %c0_1 = arith.constant 0 : index
    %c0_2 = arith.constant 0 : index
    %0 = vector.load %arg1[%c0, %c0_0, %c0_1, %c0_2] : memref<1x16x16x4xf32, #tpu.memory_space<vmem>>, vector<1x16x16x4xf32>
    %1 = vector.shape_cast %0 : vector<1x16x16x4xf32> to vector<16x16x4xf32>
    %c0_3 = arith.constant 0 : index
    %c0_4 = arith.constant 0 : index
    %2 = vector.load %arg2[%c0_3, %c0_4] : memref<36x4xf32, #tpu.memory_space<vmem>>, vector<36x4xf32>
    %cst = arith.constant 0.000000e+00 : f32
    %3 = vector.broadcast %cst : f32 to vector<1x16x4xf32>
    %4 = tpu.concatenate %3, %1, %3 in 0 : vector<1x16x4xf32>, vector<16x16x4xf32>, vector<1x16x4xf32> -> vector<18x16x4xf32>
    %cst_5 = arith.constant 0.000000e+00 : f32
    %5 = vector.broadcast %cst_5 : f32 to vector<18x1x4xf32>
    %6 = tpu.concatenate %5, %4, %5 in 1 : vector<18x1x4xf32>, vector<18x16x4xf32>, vector<18x1x4xf32> -> vector<18x18x4xf32>
    %7 = vector.extract_strided_slice %6 {offsets = [0, 0, 0], sizes = [16, 16, 4], strides = [1, 1, 1]} : vector<18x18x4xf32> to vector<16x16x4xf32>
    %8 = vector.extract_strided_slice %6 {offsets = [0, 1, 0], sizes = [16, 16, 4], strides = [1, 1, 1]} : vector<18x18x4xf32> to vector<16x16x4xf32>
    %9 = vector.extract_strided_slice %6 {offsets = [0, 2, 0], sizes = [16, 16, 4], strides = [1, 1, 1]} : vector<18x18x4xf32> to vector<16x16x4xf32>
    %10 = vector.extract_strided_slice %6 {offsets = [1, 0, 0], sizes = [16, 16, 4], strides = [1, 1, 1]} : vector<18x18x4xf32> to vector<16x16x4xf32>
    %11 = vector.extract_strided_slice %6 {offsets = [1, 1, 0], sizes = [16, 16, 4], strides = [1, 1, 1]} : vector<18x18x4xf32> to vector<16x16x4xf32>
    %12 = vector.extract_strided_slice %6 {offsets = [1, 2, 0], sizes = [16, 16, 4], strides = [1, 1, 1]} : vector<18x18x4xf32> to vector<16x16x4xf32>
    %13 = vector.extract_strided_slice %6 {offsets = [2, 0, 0], sizes = [16, 16, 4], strides = [1, 1, 1]} : vector<18x18x4xf32> to vector<16x16x4xf32>
    %14 = vector.extract_strided_slice %6 {offsets = [2, 1, 0], sizes = [16, 16, 4], strides = [1, 1, 1]} : vector<18x18x4xf32> to vector<16x16x4xf32>
    %15 = vector.extract_strided_slice %6 {offsets = [2, 2, 0], sizes = [16, 16, 4], strides = [1, 1, 1]} : vector<18x18x4xf32> to vector<16x16x4xf32>
    %16 = tpu.concatenate %7, %8, %9, %10, %11, %12, %13, %14, %15 in 2 : vector<16x16x4xf32>, vector<16x16x4xf32>, vector<16x16x4xf32>, vector<16x16x4xf32>, vector<16x16x4xf32>, vector<16x16x4xf32>, vector<16x16x4xf32>, vector<16x16x4xf32>, vector<16x16x4xf32> -> vector<16x16x36xf32>
    %17 = vector.shape_cast %16 : vector<16x16x36xf32> to vector<256x36xf32>
    %cst_6 = arith.constant dense<0.000000e+00> : vector<256x4xf32>
    %18 = tpu.matmul %17, %2, %cst_6 {dimension_numbers = #tpu.dot_dimension_numbers<[1], [0], [0], [1], [0, 0, 1, 1], [], []>} : vector<256x36xf32>, vector<36x4xf32>, vector<256x4xf32> -> vector<256x4xf32>
    %c0_7 = arith.constant 0 : index
    %c0_8 = arith.constant 0 : index
    %19 = vector.load %arg3[%c0_7, %c0_8] : memref<2x4xf32, #tpu.memory_space<vmem>>, vector<2x4xf32>
    %20 = vector.extract_strided_slice %19 {offsets = [0, 0], sizes = [1, 4], strides = [1, 1]} : vector<2x4xf32> to vector<1x4xf32>
    %21 = vector.broadcast %20 : vector<1x4xf32> to vector<256x4xf32>
    %22 = arith.mulf %18, %21 : vector<256x4xf32>
    %23 = vector.extract_strided_slice %19 {offsets = [1, 0], sizes = [1, 4], strides = [1, 1]} : vector<2x4xf32> to vector<1x4xf32>
    %24 = vector.broadcast %23 : vector<1x4xf32> to vector<256x4xf32>
    %25 = arith.addf %22, %24 : vector<256x4xf32>
    %cst_9 = arith.constant 0.000000e+00 : f32
    %26 = vector.broadcast %cst_9 : f32 to vector<256x4xf32>
    %27 = arith.maximumf %25, %26 : vector<256x4xf32>
    %28 = vector.shape_cast %27 : vector<256x4xf32> to vector<16x16x4xf32>
    %c0_10 = arith.constant 0 : index
    %c0_11 = arith.constant 0 : index
    %c0_12 = arith.constant 0 : index
    %29 = vector.load %arg12[%c0_10, %c0_11, %c0_12] : memref<16x16x4xf32, #tpu.memory_space<vmem>>, vector<16x16x4xf32>
    tpu.vector_store %arg12[%c0_10, %c0_11, %c0_12], %28 {strides = array<i32>} : memref<16x16x4xf32, #tpu.memory_space<vmem>>, vector<16x16x4xf32>,
    %c0_13 = arith.constant 0 : index
    %c0_14 = arith.constant 0 : index
    %c0_15 = arith.constant 0 : index
    %30 = vector.load %arg12[%c0_13, %c0_14, %c0_15] : memref<16x16x4xf32, #tpu.memory_space<vmem>>, vector<16x16x4xf32>
    %c0_16 = arith.constant 0 : index
    %c0_17 = arith.constant 0 : index
    %31 = vector.load %arg4[%c0_16, %c0_17] : memref<36x8xf32, #tpu.memory_space<vmem>>, vector<36x8xf32>
    %cst_18 = arith.constant 0.000000e+00 : f32
    %32 = vector.broadcast %cst_18 : f32 to vector<1x16x4xf32>
    %33 = tpu.concatenate %32, %30, %32 in 0 : vector<1x16x4xf32>, vector<16x16x4xf32>, vector<1x16x4xf32> -> vector<18x16x4xf32>
    %cst_19 = arith.constant 0.000000e+00 : f32
    %34 = vector.broadcast %cst_19 : f32 to vector<18x1x4xf32>
    %35 = tpu.concatenate %34, %33, %34 in 1 : vector<18x1x4xf32>, vector<18x16x4xf32>, vector<18x1x4xf32> -> vector<18x18x4xf32>
    %36 = vector.extract_strided_slice %35 {offsets = [0, 0, 0], sizes = [16, 16, 4], strides = [1, 1, 1]} : vector<18x18x4xf32> to vector<16x16x4xf32>
    %37 = vector.extract_strided_slice %35 {offsets = [0, 1, 0], sizes = [16, 16, 4], strides = [1, 1, 1]} : vector<18x18x4xf32> to vector<16x16x4xf32>
    %38 = vector.extract_strided_slice %35 {offsets = [0, 2, 0], sizes = [16, 16, 4], strides = [1, 1, 1]} : vector<18x18x4xf32> to vector<16x16x4xf32>
    %39 = vector.extract_strided_slice %35 {offsets = [1, 0, 0], sizes = [16, 16, 4], strides = [1, 1, 1]} : vector<18x18x4xf32> to vector<16x16x4xf32>
    %40 = vector.extract_strided_slice %35 {offsets = [1, 1, 0], sizes = [16, 16, 4], strides = [1, 1, 1]} : vector<18x18x4xf32> to vector<16x16x4xf32>
    %41 = vector.extract_strided_slice %35 {offsets = [1, 2, 0], sizes = [16, 16, 4], strides = [1, 1, 1]} : vector<18x18x4xf32> to vector<16x16x4xf32>
    %42 = vector.extract_strided_slice %35 {offsets = [2, 0, 0], sizes = [16, 16, 4], strides = [1, 1, 1]} : vector<18x18x4xf32> to vector<16x16x4xf32>
    %43 = vector.extract_strided_slice %35 {offsets = [2, 1, 0], sizes = [16, 16, 4], strides = [1, 1, 1]} : vector<18x18x4xf32> to vector<16x16x4xf32>
    %44 = vector.extract_strided_slice %35 {offsets = [2, 2, 0], sizes = [16, 16, 4], strides = [1, 1, 1]} : vector<18x18x4xf32> to vector<16x16x4xf32>
    %45 = tpu.concatenate %36, %37, %38, %39, %40, %41, %42, %43, %44 in 2 : vector<16x16x4xf32>, vector<16x16x4xf32>, vector<16x16x4xf32>, vector<16x16x4xf32>, vector<16x16x4xf32>, vector<16x16x4xf32>, vector<16x16x4xf32>, vector<16x16x4xf32>, vector<16x16x4xf32> -> vector<16x16x36xf32>
    %46 = vector.shape_cast %45 : vector<16x16x36xf32> to vector<256x36xf32>
    %cst_20 = arith.constant dense<0.000000e+00> : vector<256x8xf32>
    %47 = tpu.matmul %46, %31, %cst_20 {dimension_numbers = #tpu.dot_dimension_numbers<[1], [0], [0], [1], [0, 0, 1, 1], [], []>} : vector<256x36xf32>, vector<36x8xf32>, vector<256x8xf32> -> vector<256x8xf32>
    %c0_21 = arith.constant 0 : index
    %c0_22 = arith.constant 0 : index
    %48 = vector.load %arg5[%c0_21, %c0_22] : memref<2x8xf32, #tpu.memory_space<vmem>>, vector<2x8xf32>
    %49 = vector.extract_strided_slice %48 {offsets = [0, 0], sizes = [1, 8], strides = [1, 1]} : vector<2x8xf32> to vector<1x8xf32>
    %50 = vector.broadcast %49 : vector<1x8xf32> to vector<256x8xf32>
    %51 = arith.mulf %47, %50 : vector<256x8xf32>
    %52 = vector.extract_strided_slice %48 {offsets = [1, 0], sizes = [1, 8], strides = [1, 1]} : vector<2x8xf32> to vector<1x8xf32>
    %53 = vector.broadcast %52 : vector<1x8xf32> to vector<256x8xf32>
    %54 = arith.addf %51, %53 : vector<256x8xf32>
    %cst_23 = arith.constant 0.000000e+00 : f32
    %55 = vector.broadcast %cst_23 : f32 to vector<256x8xf32>
    %56 = arith.maximumf %54, %55 : vector<256x8xf32>
    %57 = vector.shape_cast %56 : vector<256x8xf32> to vector<16x16x8xf32>
    %c0_24 = arith.constant 0 : index
    %c0_25 = arith.constant 0 : index
    %c0_26 = arith.constant 0 : index
    %58 = vector.load %arg13[%c0_24, %c0_25, %c0_26] : memref<16x16x8xf32, #tpu.memory_space<vmem>>, vector<16x16x8xf32>
    tpu.vector_store %arg13[%c0_24, %c0_25, %c0_26], %57 {strides = array<i32>} : memref<16x16x8xf32, #tpu.memory_space<vmem>>, vector<16x16x8xf32>,
    %c0_27 = arith.constant 0 : index
    %c0_28 = arith.constant 0 : index
    %c0_29 = arith.constant 0 : index
    %59 = vector.load %arg13[%c0_27, %c0_28, %c0_29] : memref<16x16x8xf32, #tpu.memory_space<vmem>>, vector<16x16x8xf32>
    %c0_30 = arith.constant 0 : index
    %c0_31 = arith.constant 0 : index
    %60 = vector.load %arg6[%c0_30, %c0_31] : memref<72x8xf32, #tpu.memory_space<vmem>>, vector<72x8xf32>
    %cst_32 = arith.constant 0.000000e+00 : f32
    %61 = vector.broadcast %cst_32 : f32 to vector<2x16x8xf32>
    %62 = tpu.concatenate %61, %59, %61 in 0 : vector<2x16x8xf32>, vector<16x16x8xf32>, vector<2x16x8xf32> -> vector<20x16x8xf32>
    %cst_33 = arith.constant 0.000000e+00 : f32
    %63 = vector.broadcast %cst_33 : f32 to vector<20x2x8xf32>
    %64 = tpu.concatenate %63, %62, %63 in 1 : vector<20x2x8xf32>, vector<20x16x8xf32>, vector<20x2x8xf32> -> vector<20x20x8xf32>
    %65 = vector.extract_strided_slice %64 {offsets = [0, 0, 0], sizes = [16, 16, 8], strides = [1, 1, 1]} : vector<20x20x8xf32> to vector<16x16x8xf32>
    %66 = vector.extract_strided_slice %64 {offsets = [0, 2, 0], sizes = [16, 16, 8], strides = [1, 1, 1]} : vector<20x20x8xf32> to vector<16x16x8xf32>
    %67 = vector.extract_strided_slice %64 {offsets = [0, 4, 0], sizes = [16, 16, 8], strides = [1, 1, 1]} : vector<20x20x8xf32> to vector<16x16x8xf32>
    %68 = vector.extract_strided_slice %64 {offsets = [2, 0, 0], sizes = [16, 16, 8], strides = [1, 1, 1]} : vector<20x20x8xf32> to vector<16x16x8xf32>
    %69 = vector.extract_strided_slice %64 {offsets = [2, 2, 0], sizes = [16, 16, 8], strides = [1, 1, 1]} : vector<20x20x8xf32> to vector<16x16x8xf32>
    %70 = vector.extract_strided_slice %64 {offsets = [2, 4, 0], sizes = [16, 16, 8], strides = [1, 1, 1]} : vector<20x20x8xf32> to vector<16x16x8xf32>
    %71 = vector.extract_strided_slice %64 {offsets = [4, 0, 0], sizes = [16, 16, 8], strides = [1, 1, 1]} : vector<20x20x8xf32> to vector<16x16x8xf32>
    %72 = vector.extract_strided_slice %64 {offsets = [4, 2, 0], sizes = [16, 16, 8], strides = [1, 1, 1]} : vector<20x20x8xf32> to vector<16x16x8xf32>
    %73 = vector.extract_strided_slice %64 {offsets = [4, 4, 0], sizes = [16, 16, 8], strides = [1, 1, 1]} : vector<20x20x8xf32> to vector<16x16x8xf32>
    %74 = tpu.concatenate %65, %66, %67, %68, %69, %70, %71, %72, %73 in 2 : vector<16x16x8xf32>, vector<16x16x8xf32>, vector<16x16x8xf32>, vector<16x16x8xf32>, vector<16x16x8xf32>, vector<16x16x8xf32>, vector<16x16x8xf32>, vector<16x16x8xf32>, vector<16x16x8xf32> -> vector<16x16x72xf32>
    %75 = vector.shape_cast %74 : vector<16x16x72xf32> to vector<256x72xf32>
    %cst_34 = arith.constant dense<0.000000e+00> : vector<256x8xf32>
    %76 = tpu.matmul %75, %60, %cst_34 {dimension_numbers = #tpu.dot_dimension_numbers<[1], [0], [0], [1], [0, 0, 1, 1], [], []>} : vector<256x72xf32>, vector<72x8xf32>, vector<256x8xf32> -> vector<256x8xf32>
    %c0_35 = arith.constant 0 : index
    %c0_36 = arith.constant 0 : index
    %77 = vector.load %arg7[%c0_35, %c0_36] : memref<2x8xf32, #tpu.memory_space<vmem>>, vector<2x8xf32>
    %78 = vector.extract_strided_slice %77 {offsets = [0, 0], sizes = [1, 8], strides = [1, 1]} : vector<2x8xf32> to vector<1x8xf32>
    %79 = vector.broadcast %78 : vector<1x8xf32> to vector<256x8xf32>
    %80 = arith.mulf %76, %79 : vector<256x8xf32>
    %81 = vector.extract_strided_slice %77 {offsets = [1, 0], sizes = [1, 8], strides = [1, 1]} : vector<2x8xf32> to vector<1x8xf32>
    %82 = vector.broadcast %81 : vector<1x8xf32> to vector<256x8xf32>
    %83 = arith.addf %80, %82 : vector<256x8xf32>
    %cst_37 = arith.constant 0.000000e+00 : f32
    %84 = vector.broadcast %cst_37 : f32 to vector<256x8xf32>
    %85 = arith.maximumf %83, %84 : vector<256x8xf32>
    %86 = vector.shape_cast %85 : vector<256x8xf32> to vector<16x16x8xf32>
    %c0_38 = arith.constant 0 : index
    %c0_39 = arith.constant 0 : index
    %87 = vector.load %arg8[%c0_38, %c0_39] : memref<72x4xf32, #tpu.memory_space<vmem>>, vector<72x4xf32>
    %cst_40 = arith.constant 0.000000e+00 : f32
    %88 = vector.broadcast %cst_40 : f32 to vector<1x16x8xf32>
    %89 = tpu.concatenate %88, %86, %88 in 0 : vector<1x16x8xf32>, vector<16x16x8xf32>, vector<1x16x8xf32> -> vector<18x16x8xf32>
    %cst_41 = arith.constant 0.000000e+00 : f32
    %90 = vector.broadcast %cst_41 : f32 to vector<18x1x8xf32>
    %91 = tpu.concatenate %90, %89, %90 in 1 : vector<18x1x8xf32>, vector<18x16x8xf32>, vector<18x1x8xf32> -> vector<18x18x8xf32>
    %92 = vector.extract_strided_slice %91 {offsets = [0, 0, 0], sizes = [16, 16, 8], strides = [1, 1, 1]} : vector<18x18x8xf32> to vector<16x16x8xf32>
    %93 = vector.extract_strided_slice %91 {offsets = [0, 1, 0], sizes = [16, 16, 8], strides = [1, 1, 1]} : vector<18x18x8xf32> to vector<16x16x8xf32>
    %94 = vector.extract_strided_slice %91 {offsets = [0, 2, 0], sizes = [16, 16, 8], strides = [1, 1, 1]} : vector<18x18x8xf32> to vector<16x16x8xf32>
    %95 = vector.extract_strided_slice %91 {offsets = [1, 0, 0], sizes = [16, 16, 8], strides = [1, 1, 1]} : vector<18x18x8xf32> to vector<16x16x8xf32>
    %96 = vector.extract_strided_slice %91 {offsets = [1, 1, 0], sizes = [16, 16, 8], strides = [1, 1, 1]} : vector<18x18x8xf32> to vector<16x16x8xf32>
    %97 = vector.extract_strided_slice %91 {offsets = [1, 2, 0], sizes = [16, 16, 8], strides = [1, 1, 1]} : vector<18x18x8xf32> to vector<16x16x8xf32>
    %98 = vector.extract_strided_slice %91 {offsets = [2, 0, 0], sizes = [16, 16, 8], strides = [1, 1, 1]} : vector<18x18x8xf32> to vector<16x16x8xf32>
    %99 = vector.extract_strided_slice %91 {offsets = [2, 1, 0], sizes = [16, 16, 8], strides = [1, 1, 1]} : vector<18x18x8xf32> to vector<16x16x8xf32>
    %100 = vector.extract_strided_slice %91 {offsets = [2, 2, 0], sizes = [16, 16, 8], strides = [1, 1, 1]} : vector<18x18x8xf32> to vector<16x16x8xf32>
    %101 = tpu.concatenate %92, %93, %94, %95, %96, %97, %98, %99, %100 in 2 : vector<16x16x8xf32>, vector<16x16x8xf32>, vector<16x16x8xf32>, vector<16x16x8xf32>, vector<16x16x8xf32>, vector<16x16x8xf32>, vector<16x16x8xf32>, vector<16x16x8xf32>, vector<16x16x8xf32> -> vector<16x16x72xf32>
    %102 = vector.shape_cast %101 : vector<16x16x72xf32> to vector<256x72xf32>
    %cst_42 = arith.constant dense<0.000000e+00> : vector<256x4xf32>
    %103 = tpu.matmul %102, %87, %cst_42 {dimension_numbers = #tpu.dot_dimension_numbers<[1], [0], [0], [1], [0, 0, 1, 1], [], []>} : vector<256x72xf32>, vector<72x4xf32>, vector<256x4xf32> -> vector<256x4xf32>
    %c0_43 = arith.constant 0 : index
    %c0_44 = arith.constant 0 : index
    %c0_45 = arith.constant 0 : index
    %104 = vector.load %arg13[%c0_43, %c0_44, %c0_45] : memref<16x16x8xf32, #tpu.memory_space<vmem>>, vector<16x16x8xf32>
    %c0_46 = arith.constant 0 : index
    %c0_47 = arith.constant 0 : index
    %105 = vector.load %arg9[%c0_46, %c0_47] : memref<72x4xf32, #tpu.memory_space<vmem>>, vector<72x4xf32>
    %cst_48 = arith.constant 0.000000e+00 : f32
    %106 = vector.broadcast %cst_48 : f32 to vector<1x16x8xf32>
    %107 = tpu.concatenate %106, %104, %106 in 0 : vector<1x16x8xf32>, vector<16x16x8xf32>, vector<1x16x8xf32> -> vector<18x16x8xf32>
    %cst_49 = arith.constant 0.000000e+00 : f32
    %108 = vector.broadcast %cst_49 : f32 to vector<18x1x8xf32>
    %109 = tpu.concatenate %108, %107, %108 in 1 : vector<18x1x8xf32>, vector<18x16x8xf32>, vector<18x1x8xf32> -> vector<18x18x8xf32>
    %110 = vector.extract_strided_slice %109 {offsets = [0, 0, 0], sizes = [16, 16, 8], strides = [1, 1, 1]} : vector<18x18x8xf32> to vector<16x16x8xf32>
    %111 = vector.extract_strided_slice %109 {offsets = [0, 1, 0], sizes = [16, 16, 8], strides = [1, 1, 1]} : vector<18x18x8xf32> to vector<16x16x8xf32>
    %112 = vector.extract_strided_slice %109 {offsets = [0, 2, 0], sizes = [16, 16, 8], strides = [1, 1, 1]} : vector<18x18x8xf32> to vector<16x16x8xf32>
    %113 = vector.extract_strided_slice %109 {offsets = [1, 0, 0], sizes = [16, 16, 8], strides = [1, 1, 1]} : vector<18x18x8xf32> to vector<16x16x8xf32>
    %114 = vector.extract_strided_slice %109 {offsets = [1, 1, 0], sizes = [16, 16, 8], strides = [1, 1, 1]} : vector<18x18x8xf32> to vector<16x16x8xf32>
    %115 = vector.extract_strided_slice %109 {offsets = [1, 2, 0], sizes = [16, 16, 8], strides = [1, 1, 1]} : vector<18x18x8xf32> to vector<16x16x8xf32>
    %116 = vector.extract_strided_slice %109 {offsets = [2, 0, 0], sizes = [16, 16, 8], strides = [1, 1, 1]} : vector<18x18x8xf32> to vector<16x16x8xf32>
    %117 = vector.extract_strided_slice %109 {offsets = [2, 1, 0], sizes = [16, 16, 8], strides = [1, 1, 1]} : vector<18x18x8xf32> to vector<16x16x8xf32>
    %118 = vector.extract_strided_slice %109 {offsets = [2, 2, 0], sizes = [16, 16, 8], strides = [1, 1, 1]} : vector<18x18x8xf32> to vector<16x16x8xf32>
    %119 = tpu.concatenate %110, %111, %112, %113, %114, %115, %116, %117, %118 in 2 : vector<16x16x8xf32>, vector<16x16x8xf32>, vector<16x16x8xf32>, vector<16x16x8xf32>, vector<16x16x8xf32>, vector<16x16x8xf32>, vector<16x16x8xf32>, vector<16x16x8xf32>, vector<16x16x8xf32> -> vector<16x16x72xf32>
    %120 = vector.shape_cast %119 : vector<16x16x72xf32> to vector<256x72xf32>
    %cst_50 = arith.constant dense<0.000000e+00> : vector<256x4xf32>
    %121 = tpu.matmul %120, %105, %cst_50 {dimension_numbers = #tpu.dot_dimension_numbers<[1], [0], [0], [1], [0, 0, 1, 1], [], []>} : vector<256x72xf32>, vector<72x4xf32>, vector<256x4xf32> -> vector<256x4xf32>
    %122 = arith.addf %103, %121 : vector<256x4xf32>
    %c0_51 = arith.constant 0 : index
    %c0_52 = arith.constant 0 : index
    %123 = vector.load %arg10[%c0_51, %c0_52] : memref<2x4xf32, #tpu.memory_space<vmem>>, vector<2x4xf32>
    %124 = vector.extract_strided_slice %123 {offsets = [0, 0], sizes = [1, 4], strides = [1, 1]} : vector<2x4xf32> to vector<1x4xf32>
    %125 = vector.broadcast %124 : vector<1x4xf32> to vector<256x4xf32>
    %126 = arith.mulf %122, %125 : vector<256x4xf32>
    %127 = vector.extract_strided_slice %123 {offsets = [1, 0], sizes = [1, 4], strides = [1, 1]} : vector<2x4xf32> to vector<1x4xf32>
    %128 = vector.broadcast %127 : vector<1x4xf32> to vector<256x4xf32>
    %129 = arith.addf %126, %128 : vector<256x4xf32>
    %cst_53 = arith.constant 0.000000e+00 : f32
    %130 = vector.broadcast %cst_53 : f32 to vector<256x4xf32>
    %131 = arith.maximumf %129, %130 : vector<256x4xf32>
    %132 = vector.shape_cast %131 : vector<256x4xf32> to vector<16x16x4xf32>
    %c0_54 = arith.constant 0 : index
    %c0_55 = arith.constant 0 : index
    %c0_56 = arith.constant 0 : index
    %133 = vector.load %arg12[%c0_54, %c0_55, %c0_56] : memref<16x16x4xf32, #tpu.memory_space<vmem>>, vector<16x16x4xf32>
    %134 = arith.addf %132, %133 : vector<16x16x4xf32>
    %c0_57 = arith.constant 0 : index
    %c0_58 = arith.constant 0 : index
    %c0_59 = arith.constant 0 : index
    %c0_60 = arith.constant 0 : index
    %135 = vector.load %arg11[%c0_57, %c0_58, %c0_59, %c0_60] : memref<1x16x16x4xf32, #tpu.memory_space<vmem>>, vector<1x16x16x4xf32>
    %136 = vector.shape_cast %135 : vector<1x16x16x4xf32> to vector<16x16x4xf32>
    %137 = vector.shape_cast %134 : vector<16x16x4xf32> to vector<1x16x16x4xf32>
    tpu.vector_store %arg11[%c0_57, %c0_58, %c0_59, %c0_60], %137 {strides = array<i32>} : memref<1x16x16x4xf32, #tpu.memory_space<vmem>>, vector<1x16x16x4xf32>,
    return
  }
  func.func @transform_0(%arg0: i32) -> (i32, i32, i32, i32) {
    %c0_i32 = arith.constant 0 : i32
    %c0_i32_0 = arith.constant 0 : i32
    %c0_i32_1 = arith.constant 0 : i32
    %c0_i32_2 = arith.constant 0 : i32
    return %arg0, %c0_i32, %c0_i32_0, %c0_i32_1 : i32, i32, i32, i32
  }
  func.func @transform_1(%arg0: i32) -> (i32, i32) {
    %c0_i32 = arith.constant 0 : i32
    %c0_i32_0 = arith.constant 0 : i32
    %c0_i32_1 = arith.constant 0 : i32
    return %c0_i32, %c0_i32_0 : i32, i32
  }
  func.func @transform_2(%arg0: i32) -> (i32, i32) {
    %c0_i32 = arith.constant 0 : i32
    %c0_i32_0 = arith.constant 0 : i32
    %c0_i32_1 = arith.constant 0 : i32
    return %c0_i32, %c0_i32_0 : i32, i32
  }
  func.func @transform_3(%arg0: i32) -> (i32, i32) {
    %c0_i32 = arith.constant 0 : i32
    %c0_i32_0 = arith.constant 0 : i32
    %c0_i32_1 = arith.constant 0 : i32
    return %c0_i32, %c0_i32_0 : i32, i32
  }
  func.func @transform_4(%arg0: i32) -> (i32, i32) {
    %c0_i32 = arith.constant 0 : i32
    %c0_i32_0 = arith.constant 0 : i32
    %c0_i32_1 = arith.constant 0 : i32
    return %c0_i32, %c0_i32_0 : i32, i32
  }
  func.func @transform_5(%arg0: i32) -> (i32, i32) {
    %c0_i32 = arith.constant 0 : i32
    %c0_i32_0 = arith.constant 0 : i32
    %c0_i32_1 = arith.constant 0 : i32
    return %c0_i32, %c0_i32_0 : i32, i32
  }
  func.func @transform_6(%arg0: i32) -> (i32, i32) {
    %c0_i32 = arith.constant 0 : i32
    %c0_i32_0 = arith.constant 0 : i32
    %c0_i32_1 = arith.constant 0 : i32
    return %c0_i32, %c0_i32_0 : i32, i32
  }
  func.func @transform_7(%arg0: i32) -> (i32, i32) {
    %c0_i32 = arith.constant 0 : i32
    %c0_i32_0 = arith.constant 0 : i32
    %c0_i32_1 = arith.constant 0 : i32
    return %c0_i32, %c0_i32_0 : i32, i32
  }
  func.func @transform_8(%arg0: i32) -> (i32, i32) {
    %c0_i32 = arith.constant 0 : i32
    %c0_i32_0 = arith.constant 0 : i32
    %c0_i32_1 = arith.constant 0 : i32
    return %c0_i32, %c0_i32_0 : i32, i32
  }
  func.func @transform_9(%arg0: i32) -> (i32, i32) {
    %c0_i32 = arith.constant 0 : i32
    %c0_i32_0 = arith.constant 0 : i32
    %c0_i32_1 = arith.constant 0 : i32
    return %c0_i32, %c0_i32_0 : i32, i32
  }
  func.func @transform_10(%arg0: i32) -> (i32, i32, i32, i32) {
    %c0_i32 = arith.constant 0 : i32
    %c0_i32_0 = arith.constant 0 : i32
    %c0_i32_1 = arith.constant 0 : i32
    %c0_i32_2 = arith.constant 0 : i32
    return %arg0, %c0_i32, %c0_i32_0, %c0_i32_1 : i32, i32, i32, i32
  }
}

</mosaic_0001>

<llo_original>
// kernel: tpu_custom_call.1
$region0: #{tpu_custom_call.1}
  #allocation0 [shape = 'u32[]', space=smem, size = 0x4, offset = 0x4, fixed_abs, tag = 'smem constant byte address 0x4 - core index']
  #allocation1 [shape = 'u32[144,128]{1,0:T(1,128)}', space=vmem, size = 0x12000, scoped, tag = 'internal scratch']
  #allocation2 [shape = 'f32[16,16,4]{2,1,0:T(8,128)}', space=vmem, size = 0x20000, scoped, tag = 'scratch operand']
  #allocation3 [shape = 'f32[16,16,8]{2,1,0:T(8,128)}', space=vmem, size = 0x20000, scoped, tag = 'scratch operand']
  %s0 = inlined_call_operand.vmem [shape: f32[2,16,16,4], index: 0, kind: input, shape index: {}]
  %s1 = inlined_call_operand.vmem [shape: f32[36,4], index: 1, kind: input, shape index: {}]
  %s2 = inlined_call_operand.vmem [shape: f32[2,4], index: 2, kind: input, shape index: {}]
  %s3 = inlined_call_operand.vmem [shape: f32[36,8], index: 3, kind: input, shape index: {}]
  %s4 = inlined_call_operand.vmem [shape: f32[2,8], index: 4, kind: input, shape index: {}]
  %s5 = inlined_call_operand.vmem [shape: f32[72,8], index: 5, kind: input, shape index: {}]
  %s6 = inlined_call_operand.vmem [shape: f32[2,8], index: 6, kind: input, shape index: {}]
  %s7 = inlined_call_operand.vmem [shape: f32[72,4], index: 7, kind: input, shape index: {}]
  %s8 = inlined_call_operand.vmem [shape: f32[72,4], index: 8, kind: input, shape index: {}]
  %s9 = inlined_call_operand.vmem [shape: f32[2,4], index: 9, kind: input, shape index: {}]
  %s10 = inlined_call_operand.vmem [shape: f32[2,16,16,4], index: 10, kind: output, shape index: {}]
  %s11 = sld [smem:[#allocation0]]
  $region73: #{tpu_custom_call.1} parent=0
    _
  %s13 = ssub.s32 1, %s11
  %s14 = scalar_select 0, %s13, %s11
  loop: start=0, step=1, limit=4
  $region2: #{tpu_custom_call.1} parent=0 // loop_pre_header
    _
  $region3: #{tpu_custom_call.1} parent=0 // loop_header
    %s16 = sphi 0, %s20
    %p17 = scmp.ge.s32.totalorder %s16, 4
    %s26 = sphi 0, %s28
    %s29 = sphi 0, %s26
    %s30 = sphi 0, %s29
    %s46 = sphi 0, %s30
    %s50 = sphi 0, %s50
    %s52 = sphi 0, %s50
    %s53 = sphi 0, %s52
    %s67 = sphi 0, %s53
    %s71 = sphi 0, %s71
    %s73 = sphi 0, %s71
    %s74 = sphi 0, %s73
    %s88 = sphi 0, %s74
    %s92 = sphi 0, %s92
    %s94 = sphi 0, %s92
    %s95 = sphi 0, %s94
    %s109 = sphi 0, %s95
    %s113 = sphi 0, %s113
    %s115 = sphi 0, %s113
    %s116 = sphi 0, %s115
    %s130 = sphi 0, %s116
    %s134 = sphi 0, %s134
    %s136 = sphi 0, %s134
    %s137 = sphi 0, %s136
    %s151 = sphi 0, %s137
    %s155 = sphi 0, %s155
    %s157 = sphi 0, %s155
    %s158 = sphi 0, %s157
    %s172 = sphi 0, %s158
    %s176 = sphi 0, %s176
    %s178 = sphi 0, %s176
    %s179 = sphi 0, %s178
    %s193 = sphi 0, %s179
    %s197 = sphi 0, %s197
    %s199 = sphi 0, %s197
    %s200 = sphi 0, %s199
    %s214 = sphi 0, %s200
    %s218 = sphi 0, %s218
    %s220 = sphi 0, %s218
    %s221 = sphi 0, %s220
    %s235 = sphi 0, %s221
    %s241 = sphi 0, %s243
    %s244 = sphi 0, %s241
    %s245 = sphi 0, %s244
    %s261 = sphi 0, %s245
  $region4: #{tpu_custom_call.1} parent=0 // loop_header_branch
    %19 = sbr.rel (%p17) target = $region8
  $region5: #{tpu_custom_call.1} parent=0 // loop_body
    %s21 = ssub.s32 %s16, 1
    %s22 = ssub.s32 %s16, 2
    %s23 = sadd.s32 %s16, 1
    %s24 = ssub.s32 %s16, %s23
    %p25 = scmp.eq.s32.totalorder %s24, 0
    %s27 = sadd.s32 %s26, 1
    %s28 = scalar_select %p25, %s26, %s27
    %p31 = pneg %p25
    %p32 = scmp.eq.s32.totalorder %s16, 1
    %p33 = por %p31, %p32
    %p34 = scmp.ne.s32.totalorder %s26, %s29
    %p35 = scmp.eq.s32.totalorder %s16, 0
    %p36 = por %p34, %p35
    %p37 = scmp.ne.s32.totalorder %s26, %s29
    %p38 = scmp.eq.s32.totalorder %s21, 1
    %p39 = por %p37, %p38
    %p40 = scmp.ne.s32.totalorder %s29, %s30
    %p41 = scmp.eq.s32.totalorder %s21, 0
    %p42 = por %p40, %p41
    %p43 = scmp.ne.s32.totalorder %s29, %s30
    %p44 = scmp.eq.s32.totalorder %s22, 1
    %p45 = por %p43, %p44
    %p47 = scmp.ne.s32.totalorder %s30, %s46
    %p48 = scmp.eq.s32.totalorder %s22, 0
    %p49 = por %p47, %p48
    %s51 = sadd.s32 %s50, 1
    %p54 = scmp.eq.s32.totalorder %s16, 1
    %p55 = scmp.ne.s32.totalorder %s50, %s52
    %p56 = scmp.eq.s32.totalorder %s16, 0
    %p57 = por %p55, %p56
    %p58 = scmp.ne.s32.totalorder %s50, %s52
    %p59 = scmp.eq.s32.totalorder %s21, 1
    %p60 = por %p58, %p59
    %p61 = scmp.ne.s32.totalorder %s52, %s53
    %p62 = scmp.eq.s32.totalorder %s21, 0
    %p63 = por %p61, %p62
    %p64 = scmp.ne.s32.totalorder %s52, %s53
    %p65 = scmp.eq.s32.totalorder %s22, 1
    %p66 = por %p64, %p65
    %p68 = scmp.ne.s32.totalorder %s53, %s67
    %p69 = scmp.eq.s32.totalorder %s22, 0
    %p70 = por %p68, %p69
    %s72 = sadd.s32 %s71, 1
    %p75 = scmp.eq.s32.totalorder %s16, 1
    %p76 = scmp.ne.s32.totalorder %s71, %s73
    %p77 = scmp.eq.s32.totalorder %s16, 0
    %p78 = por %p76, %p77
    %p79 = scmp.ne.s32.totalorder %s71, %s73
    %p80 = scmp.eq.s32.totalorder %s21, 1
    %p81 = por %p79, %p80
    %p82 = scmp.ne.s32.totalorder %s73, %s74
    %p83 = scmp.eq.s32.totalorder %s21, 0
    %p84 = por %p82, %p83
    %p85 = scmp.ne.s32.totalorder %s73, %s74
    %p86 = scmp.eq.s32.totalorder %s22, 1
    %p87 = por %p85, %p86
    %p89 = scmp.ne.s32.totalorder %s74, %s88
    %p90 = scmp.eq.s32.totalorder %s22, 0
    %p91 = por %p89, %p90
    %s93 = sadd.s32 %s92, 1
    %p96 = scmp.eq.s32.totalorder %s16, 1
    %p97 = scmp.ne.s32.totalorder %s92, %s94
    %p98 = scmp.eq.s32.totalorder %s16, 0
    %p99 = por %p97, %p98
    %p100 = scmp.ne.s32.totalorder %s92, %s94
    %p101 = scmp.eq.s32.totalorder %s21, 1
    %p102 = por %p100, %p101
    %p103 = scmp.ne.s32.totalorder %s94, %s95
    %p104 = scmp.eq.s32.totalorder %s21, 0
    %p105 = por %p103, %p104
    %p106 = scmp.ne.s32.totalorder %s94, %s95
    %p107 = scmp.eq.s32.totalorder %s22, 1
    %p108 = por %p106, %p107
    %p110 = scmp.ne.s32.totalorder %s95, %s109
    %p111 = scmp.eq.s32.totalorder %s22, 0
    %p112 = por %p110, %p111
    %s114 = sadd.s32 %s113, 1
    %p117 = scmp.eq.s32.totalorder %s16, 1
    %p118 = scmp.ne.s32.totalorder %s113, %s115
    %p119 = scmp.eq.s32.totalorder %s16, 0
    %p120 = por %p118, %p119
    %p121 = scmp.ne.s32.totalorder %s113, %s115
    %p122 = scmp.eq.s32.totalorder %s21, 1
    %p123 = por %p121, %p122
    %p124 = scmp.ne.s32.totalorder %s115, %s116
    %p125 = scmp.eq.s32.totalorder %s21, 0
    %p126 = por %p124, %p125
    %p127 = scmp.ne.s32.totalorder %s115, %s116
    %p128 = scmp.eq.s32.totalorder %s22, 1
    %p129 = por %p127, %p128
    %p131 = scmp.ne.s32.totalorder %s116, %s130
    %p132 = scmp.eq.s32.totalorder %s22, 0
    %p133 = por %p131, %p132
    %s135 = sadd.s32 %s134, 1
    %p138 = scmp.eq.s32.totalorder %s16, 1
    %p139 = scmp.ne.s32.totalorder %s134, %s136
    %p140 = scmp.eq.s32.totalorder %s16, 0
    %p141 = por %p139, %p140
    %p142 = scmp.ne.s32.totalorder %s134, %s136
    %p143 = scmp.eq.s32.totalorder %s21, 1
    %p144 = por %p142, %p143
    %p145 = scmp.ne.s32.totalorder %s136, %s137
    %p146 = scmp.eq.s32.totalorder %s21, 0
    %p147 = por %p145, %p146
    %p148 = scmp.ne.s32.totalorder %s136, %s137
    %p149 = scmp.eq.s32.totalorder %s22, 1
    %p150 = por %p148, %p149
    %p152 = scmp.ne.s32.totalorder %s137, %s151
    %p153 = scmp.eq.s32.totalorder %s22, 0
    %p154 = por %p152, %p153
    %s156 = sadd.s32 %s155, 1
    %p159 = scmp.eq.s32.totalorder %s16, 1
    %p160 = scmp.ne.s32.totalorder %s155, %s157
    %p161 = scmp.eq.s32.totalorder %s16, 0
    %p162 = por %p160, %p161
    %p163 = scmp.ne.s32.totalorder %s155, %s157
    %p164 = scmp.eq.s32.totalorder %s21, 1
    %p165 = por %p163, %p164
    %p166 = scmp.ne.s32.totalorder %s157, %s158
    %p167 = scmp.eq.s32.totalorder %s21, 0
    %p168 = por %p166, %p167
    %p169 = scmp.ne.s32.totalorder %s157, %s158
    %p170 = scmp.eq.s32.totalorder %s22, 1
    %p171 = por %p169, %p170
    %p173 = scmp.ne.s32.totalorder %s158, %s172
    %p174 = scmp.eq.s32.totalorder %s22, 0
    %p175 = por %p173, %p174
    %s177 = sadd.s32 %s176, 1
    %p180 = scmp.eq.s32.totalorder %s16, 1
    %p181 = scmp.ne.s32.totalorder %s176, %s178
    %p182 = scmp.eq.s32.totalorder %s16, 0
    %p183 = por %p181, %p182
    %p184 = scmp.ne.s32.totalorder %s176, %s178
    %p185 = scmp.eq.s32.totalorder %s21, 1
    %p186 = por %p184, %p185
    %p187 = scmp.ne.s32.totalorder %s178, %s179
    %p188 = scmp.eq.s32.totalorder %s21, 0
    %p189 = por %p187, %p188
    %p190 = scmp.ne.s32.totalorder %s178, %s179
    %p191 = scmp.eq.s32.totalorder %s22, 1
    %p192 = por %p190, %p191
    %p194 = scmp.ne.s32.totalorder %s179, %s193
    %p195 = scmp.eq.s32.totalorder %s22, 0
    %p196 = por %p194, %p195
    %s198 = sadd.s32 %s197, 1
    %p201 = scmp.eq.s32.totalorder %s16, 1
    %p202 = scmp.ne.s32.totalorder %s197, %s199
    %p203 = scmp.eq.s32.totalorder %s16, 0
    %p204 = por %p202, %p203
    %p205 = scmp.ne.s32.totalorder %s197, %s199
    %p206 = scmp.eq.s32.totalorder %s21, 1
    %p207 = por %p205, %p206
    %p208 = scmp.ne.s32.totalorder %s199, %s200
    %p209 = scmp.eq.s32.totalorder %s21, 0
    %p210 = por %p208, %p209
    %p211 = scmp.ne.s32.totalorder %s199, %s200
    %p212 = scmp.eq.s32.totalorder %s22, 1
    %p213 = por %p211, %p212
    %p215 = scmp.ne.s32.totalorder %s200, %s214
    %p216 = scmp.eq.s32.totalorder %s22, 0
    %p217 = por %p215, %p216
    %s219 = sadd.s32 %s218, 1
    %p222 = scmp.eq.s32.totalorder %s16, 1
    %p223 = scmp.ne.s32.totalorder %s218, %s220
    %p224 = scmp.eq.s32.totalorder %s16, 0
    %p225 = por %p223, %p224
    %p226 = scmp.ne.s32.totalorder %s218, %s220
    %p227 = scmp.eq.s32.totalorder %s21, 1
    %p228 = por %p226, %p227
    %p229 = scmp.ne.s32.totalorder %s220, %s221
    %p230 = scmp.eq.s32.totalorder %s21, 0
    %p231 = por %p229, %p230
    %p232 = scmp.ne.s32.totalorder %s220, %s221
    %p233 = scmp.eq.s32.totalorder %s22, 1
    %p234 = por %p232, %p233
    %p236 = scmp.ne.s32.totalorder %s221, %s235
    %p237 = scmp.eq.s32.totalorder %s22, 0
    %p238 = por %p236, %p237
    %s239 = ssub.s32 %s16, %s23
    %p240 = scmp.eq.s32.totalorder %s239, 0
    %s242 = sadd.s32 %s241, 1
    %s243 = scalar_select %p240, %s241, %s242
    %p246 = pneg %p240
    %p247 = scmp.eq.s32.totalorder %s16, 1
    %p248 = por %p246, %p247
    %p249 = scmp.ne.s32.totalorder %s241, %s244
    %p250 = scmp.eq.s32.totalorder %s16, 0
    %p251 = por %p249, %p250
    %p252 = scmp.ne.s32.totalorder %s241, %s244
    %p253 = scmp.eq.s32.totalorder %s21, 1
    %p254 = por %p252, %p253
    %p255 = scmp.ne.s32.totalorder %s244, %s245
    %p256 = scmp.eq.s32.totalorder %s21, 0
    %p257 = por %p255, %p256
    %p258 = scmp.ne.s32.totalorder %s244, %s245
    %p259 = scmp.eq.s32.totalorder %s22, 1
    %p260 = por %p258, %p259
    %p262 = scmp.ne.s32.totalorder %s245, %s261
    %p263 = scmp.eq.s32.totalorder %s22, 0
    %p264 = por %p262, %p263
    %p265 = scmp.le.s32.totalorder 1, %s16
    %p266 = scmp.lt.s32.totalorder %s16, 3
    %p267 = pnand %p265, %p266
    %p268 = pneg %p267
    // Predicated region
    $region9: #{tpu_custom_call.1} parent=5 // pred_check
      _
    $region10: #{tpu_custom_call.1} parent=5 // pred_check_branch
      %270 = sbr.rel (%p267) target = $region12
    $region11: #{tpu_custom_call.1} parent=5 // pred_region
      %s271 = ssub.s32 %s16, 1
      // Predicated region
      $region13: #{tpu_custom_call.1} parent=11 // pred_check
        %p272 = pneg %p63
      $region14: #{tpu_custom_call.1} parent=11 // pred_check_branch
        %274 = sbr.rel (%p272) target = $region16
      $region15: #{tpu_custom_call.1} parent=11 // pred_region
        _
      $region16: #{tpu_custom_call.1} parent=11 // pred_fallthru
        _
      // Predicated region
      $region17: #{tpu_custom_call.1} parent=11 // pred_check
        %p275 = pneg %p84
      $region18: #{tpu_custom_call.1} parent=11 // pred_check_branch
        %277 = sbr.rel (%p275) target = $region20
      $region19: #{tpu_custom_call.1} parent=11 // pred_region
        _
      $region20: #{tpu_custom_call.1} parent=11 // pred_fallthru
        _
      // Predicated region
      $region21: #{tpu_custom_call.1} parent=11 // pred_check
        %p278 = pneg %p105
      $region22: #{tpu_custom_call.1} parent=11 // pred_check_branch
        %280 = sbr.rel (%p278) target = $region24
      $region23: #{tpu_custom_call.1} parent=11 // pred_region
        _
      $region24: #{tpu_custom_call.1} parent=11 // pred_fallthru
        _
      // Predicated region
      $region25: #{tpu_custom_call.1} parent=11 // pred_check
        %p281 = pneg %p126
      $region26: #{tpu_custom_call.1} parent=11 // pred_check_branch
        %283 = sbr.rel (%p281) target = $region28
      $region27: #{tpu_custom_call.1} parent=11 // pred_region
        _
      $region28: #{tpu_custom_call.1} parent=11 // pred_fallthru
        _
      // Predicated region
      $region29: #{tpu_custom_call.1} parent=11 // pred_check
        %p284 = pneg %p147
      $region30: #{tpu_custom_call.1} parent=11 // pred_check_branch
        %286 = sbr.rel (%p284) target = $region32
      $region31: #{tpu_custom_call.1} parent=11 // pred_region
        _
      $region32: #{tpu_custom_call.1} parent=11 // pred_fallthru
        _
      // Predicated region
      $region33: #{tpu_custom_call.1} parent=11 // pred_check
        %p287 = pneg %p168
      $region34: #{tpu_custom_call.1} parent=11 // pred_check_branch
        %289 = sbr.rel (%p287) target = $region36
      $region35: #{tpu_custom_call.1} parent=11 // pred_region
        _
      $region36: #{tpu_custom_call.1} parent=11 // pred_fallthru
        _
      // Predicated region
      $region37: #{tpu_custom_call.1} parent=11 // pred_check
        %p290 = pneg %p189
      $region38: #{tpu_custom_call.1} parent=11 // pred_check_branch
        %292 = sbr.rel (%p290) target = $region40
      $region39: #{tpu_custom_call.1} parent=11 // pred_region
        _
      $region40: #{tpu_custom_call.1} parent=11 // pred_fallthru
        _
      // Predicated region
      $region41: #{tpu_custom_call.1} parent=11 // pred_check
        %p293 = pneg %p210
      $region42: #{tpu_custom_call.1} parent=11 // pred_check_branch
        %295 = sbr.rel (%p293) target = $region44
      $region43: #{tpu_custom_call.1} parent=11 // pred_region
        _
      $region44: #{tpu_custom_call.1} parent=11 // pred_fallthru
        _
      // Predicated region
      $region45: #{tpu_custom_call.1} parent=11 // pred_check
        %p296 = pneg %p231
      $region46: #{tpu_custom_call.1} parent=11 // pred_check_branch
        %298 = sbr.rel (%p296) target = $region48
      $region47: #{tpu_custom_call.1} parent=11 // pred_region
        _
      $region48: #{tpu_custom_call.1} parent=11 // pred_fallthru
        _
    $region12: #{tpu_custom_call.1} parent=5 // pred_fallthru
      _
    %p299 = scmp.lt.s32.totalorder %s16, 2
    // Predicated region
    $region49: #{tpu_custom_call.1} parent=5 // pred_check
      %p300 = pneg %p299
    $region50: #{tpu_custom_call.1} parent=5 // pred_check_branch
      %302 = sbr.rel (%p300) target = $region52
    $region51: #{tpu_custom_call.1} parent=5 // pred_region
      // Predicated region
      $region53: #{tpu_custom_call.1} parent=51 // pred_check
        %p303 = pneg %p36
      $region54: #{tpu_custom_call.1} parent=51 // pred_check_branch
        %305 = sbr.rel (%p303) target = $region56
      $region55: #{tpu_custom_call.1} parent=51 // pred_region
        %p306 = scmp.lt.s32.totalorder %s16, 1
        %s307 = scalar_select %p306, %s16, 1
        %s308 = smul.addr %s307, 32
        %s309 = smul.addr %s308, 8
        %s310 = scalar_lea.vmem %s0, %s309
      $region56: #{tpu_custom_call.1} parent=51 // pred_fallthru
        _
    $region52: #{tpu_custom_call.1} parent=5 // pred_fallthru
      _
    %p311 = scmp.le.s32.totalorder 1, %s16
    %p312 = scmp.lt.s32.totalorder %s16, 3
    %p313 = pnand %p311, %p312
    %p314 = pneg %p313
    // Predicated region
    $region57: #{tpu_custom_call.1} parent=5 // pred_check
      _
    $region58: #{tpu_custom_call.1} parent=5 // pred_check_branch
      %316 = sbr.rel (%p313) target = $region60
    $region59: #{tpu_custom_call.1} parent=5 // pred_region
      %s317 = ssub.s32 %s16, 1
      %p318 = scmp.lt.s32.totalorder %s21, 1
      %s319 = scalar_select %p318, %s21, 1
      %s320 = smul.addr %s319, 32
      %s321 = smul.addr %s320, 8
      %s322 = scalar_lea.vmem %s0, %s321
      %p323 = pneg %p42
      %p324 = pneg %p39
      %p325 = pneg %p63
      %p326 = pneg %p60
      %p327 = pneg %p84
      %p328 = pneg %p81
      %p329 = pneg %p105
      %p330 = pneg %p102
      %p331 = pneg %p126
      %p332 = pneg %p123
      %p333 = pneg %p147
      %p334 = pneg %p144
      %p335 = pneg %p168
      %p336 = pneg %p165
      %p337 = pneg %p189
      %p338 = pneg %p186
      %p339 = pneg %p210
      %p340 = pneg %p207
      %p341 = pneg %p231
      %p342 = pneg %p228
      %p343 = pneg %p257
      %p344 = pneg %p254
      %p345 = scmp.lt.s32.totalorder %s21, 1
      %s346 = scalar_select %p345, %s21, 1
      %s347 = smul.addr %s346, 32
      %s348 = smul.addr %s347, 8
      %s349 = scalar_lea.vmem %s10, %s348
      %p350 = scmp.lt.s32.totalorder %s21, 1
      %s351 = scalar_select %p350, %s21, 1
      %s352 = smul.addr %s351, 32
      %s353 = smul.addr %s352, 8
      %s354 = scalar_lea.vmem %s0, %s353
      %p355 = scmp.lt.s32.totalorder %s21, 1
      %s356 = scalar_select %p355, %s21, 1
      %s357 = smul.addr %s356, 32
      %s358 = smul.addr %s357, 8
      %s359 = scalar_lea.vmem %s10, %s358
      %v360 = vld [vmem:[%s354] sm:$0xff]
      %v361 = vld [vmem:[%s354 + $0x8] sm:$0xff]
      %v362 = vld [vmem:[%s354 + $0x10] sm:$0xff]
      %v363 = vld [vmem:[%s354 + $0x18] sm:$0xff]
      %v364 = vld [vmem:[%s354 + $0x20] sm:$0xff]
      %v365 = vld [vmem:[%s354 + $0x28] sm:$0xff]
      %v366 = vld [vmem:[%s354 + $0x30] sm:$0xff]
      %v367 = vld [vmem:[%s354 + $0x38] sm:$0xff]
      %v368 = vld [vmem:[%s354 + $0x40] sm:$0xff]
      %v369 = vld [vmem:[%s354 + $0x48] sm:$0xff]
      %v370 = vld [vmem:[%s354 + $0x50] sm:$0xff]
      %v371 = vld [vmem:[%s354 + $0x58] sm:$0xff]
      %v372 = vld [vmem:[%s354 + $0x60] sm:$0xff]
      %v373 = vld [vmem:[%s354 + $0x68] sm:$0xff]
      %v374 = vld [vmem:[%s354 + $0x70] sm:$0xff]
      %v375 = vld [vmem:[%s354 + $0x78] sm:$0xff]
      %v376 = vld [vmem:[%s354 + $0x80] sm:$0xff]
      %v377 = vld [vmem:[%s354 + $0x88] sm:$0xff]
      %v378 = vld [vmem:[%s354 + $0x90] sm:$0xff]
      %v379 = vld [vmem:[%s354 + $0x98] sm:$0xff]
      %v380 = vld [vmem:[%s354 + $0xa0] sm:$0xff]
      %v381 = vld [vmem:[%s354 + $0xa8] sm:$0xff]
      %v382 = vld [vmem:[%s354 + $0xb0] sm:$0xff]
      %v383 = vld [vmem:[%s354 + $0xb8] sm:$0xff]
      %v384 = vld [vmem:[%s354 + $0xc0] sm:$0xff]
      %v385 = vld [vmem:[%s354 + $0xc8] sm:$0xff]
      %v386 = vld [vmem:[%s354 + $0xd0] sm:$0xff]
      %v387 = vld [vmem:[%s354 + $0xd8] sm:$0xff]
      %v388 = vld [vmem:[%s354 + $0xe0] sm:$0xff]
      %v389 = vld [vmem:[%s354 + $0xe8] sm:$0xff]
      %v390 = vld [vmem:[%s354 + $0xf0] sm:$0xff]
      %v391 = vld [vmem:[%s354 + $0xf8] sm:$0xff]
      %v392 = vld [vmem:[%s1] sm:$0xff]
      %v393 = vld [vmem:[%s1 + $0x8] sm:$0xff]
      %v394 = vld [vmem:[%s1 + $0x10] sm:$0xff]
      %v395 = vld [vmem:[%s1 + $0x18] sm:$0xff]
      %v396 = vld [vmem:[%s1 + $0x20] sm:$0xf]
      %vm430 = vcmask 1040384
      %v431 = vrot.slane 0.0, 7
      %v432 = vsel %vm430, %v431, %v431
      %v433 = vrot.slane %v360, 7
      %v434 = vrot.slane %v361, 7
      %v435 = vsel %vm430, %v433, %v434
      %v436 = vrot.slane %v362, 7
      %v437 = vrot.slane %v363, 7
      %v438 = vsel %vm430, %v436, %v437
      %v439 = vrot.slane %v364, 7
      %v440 = vrot.slane %v365, 7
      %v441 = vsel %vm430, %v439, %v440
      %v442 = vrot.slane %v366, 7
      %v443 = vrot.slane %v367, 7
      %v444 = vsel %vm430, %v442, %v443
      %v445 = vrot.slane %v368, 7
      %v446 = vrot.slane %v369, 7
      %v447 = vsel %vm430, %v445, %v446
      %v448 = vrot.slane %v370, 7
      %v449 = vrot.slane %v371, 7
      %v450 = vsel %vm430, %v448, %v449
      %v451 = vrot.slane %v372, 7
      %v452 = vrot.slane %v373, 7
      %v453 = vsel %vm430, %v451, %v452
      %v454 = vrot.slane %v374, 7
      %v455 = vrot.slane %v375, 7
      %v456 = vsel %vm430, %v454, %v455
      %v457 = vrot.slane %v376, 7
      %v458 = vrot.slane %v377, 7
      %v459 = vsel %vm430, %v457, %v458
      %v460 = vrot.slane %v378, 7
      %v461 = vrot.slane %v379, 7
      %v462 = vsel %vm430, %v460, %v461
      %v463 = vrot.slane %v380, 7
      %v464 = vrot.slane %v381, 7
      %v465 = vsel %vm430, %v463, %v464
      %v466 = vrot.slane %v382, 7
      %v467 = vrot.slane %v383, 7
      %v468 = vsel %vm430, %v466, %v467
      %v469 = vrot.slane %v384, 7
      %v470 = vrot.slane %v385, 7
      %v471 = vsel %vm430, %v469, %v470
      %v472 = vrot.slane %v386, 7
      %v473 = vrot.slane %v387, 7
      %v474 = vsel %vm430, %v472, %v473
      %v475 = vrot.slane %v388, 7
      %v476 = vrot.slane %v389, 7
      %v477 = vsel %vm430, %v475, %v476
      %v478 = vrot.slane %v390, 7
      %v479 = vrot.slane %v391, 7
      %v480 = vsel %vm430, %v478, %v479
      %v530 = vsel %vm430, 0.0, %v431
      %v531 = vsel %vm430, 0.0, %v433
      %v532 = vsel %vm430, 0.0, %v436
      %v533 = vsel %vm430, 0.0, %v439
      %v534 = vsel %vm430, 0.0, %v442
      %v535 = vsel %vm430, 0.0, %v445
      %v536 = vsel %vm430, 0.0, %v448
      %v537 = vsel %vm430, 0.0, %v451
      %v538 = vsel %vm430, 0.0, %v454
      %v539 = vsel %vm430, 0.0, %v457
      %v540 = vsel %vm430, 0.0, %v460
      %v541 = vsel %vm430, 0.0, %v463
      %v542 = vsel %vm430, 0.0, %v466
      %v543 = vsel %vm430, 0.0, %v469
      %v544 = vsel %vm430, 0.0, %v472
      %v545 = vsel %vm430, 0.0, %v475
      %v546 = vsel %vm430, 0.0, %v478
      %v547 = vsel %vm430, %v431, 0.0
      %v548 = vsel %vm430, %v434, 0.0
      %v549 = vsel %vm430, %v437, 0.0
      %v550 = vsel %vm430, %v440, 0.0
      %v551 = vsel %vm430, %v443, 0.0
      %v552 = vsel %vm430, %v446, 0.0
      %v553 = vsel %vm430, %v449, 0.0
      %v554 = vsel %vm430, %v452, 0.0
      %v555 = vsel %vm430, %v455, 0.0
      %v556 = vsel %vm430, %v458, 0.0
      %v557 = vsel %vm430, %v461, 0.0
      %v558 = vsel %vm430, %v464, 0.0
      %v559 = vsel %vm430, %v467, 0.0
      %v560 = vsel %vm430, %v470, 0.0
      %v561 = vsel %vm430, %v473, 0.0
      %v562 = vsel %vm430, %v476, 0.0
      %v563 = vsel %vm430, %v479, 0.0
      %vm596 = vcmask 1046528
      %v597 = vrot.slane %v530, 1
      %v598 = vrot.slane %v432, 1
      %v599 = vsel %vm596, %v597, %v598
      %v600 = vrot.slane %v547, 1
      %v601 = vsel %vm596, %v598, %v600
      %v602 = vrot.slane %v531, 1
      %v603 = vrot.slane %v435, 1
      %v604 = vsel %vm596, %v602, %v603
      %v605 = vrot.slane %v548, 1
      %v606 = vsel %vm596, %v603, %v605
      %v607 = vrot.slane %v532, 1
      %v608 = vrot.slane %v438, 1
      %v609 = vsel %vm596, %v607, %v608
      %v610 = vrot.slane %v549, 1
      %v611 = vsel %vm596, %v608, %v610
      %v612 = vrot.slane %v533, 1
      %v613 = vrot.slane %v441, 1
      %v614 = vsel %vm596, %v612, %v613
      %v615 = vrot.slane %v550, 1
      %v616 = vsel %vm596, %v613, %v615
      %v617 = vrot.slane %v534, 1
      %v618 = vrot.slane %v444, 1
      %v619 = vsel %vm596, %v617, %v618
      %v620 = vrot.slane %v551, 1
      %v621 = vsel %vm596, %v618, %v620
      %v622 = vrot.slane %v535, 1
      %v623 = vrot.slane %v447, 1
      %v624 = vsel %vm596, %v622, %v623
      %v625 = vrot.slane %v552, 1
      %v626 = vsel %vm596, %v623, %v625
      %v627 = vrot.slane %v536, 1
      %v628 = vrot.slane %v450, 1
      %v629 = vsel %vm596, %v627, %v628
      %v630 = vrot.slane %v553, 1
      %v631 = vsel %vm596, %v628, %v630
      %v632 = vrot.slane %v537, 1
      %v633 = vrot.slane %v453, 1
      %v634 = vsel %vm596, %v632, %v633
      %v635 = vrot.slane %v554, 1
      %v636 = vsel %vm596, %v633, %v635
      %v637 = vrot.slane %v538, 1
      %v638 = vrot.slane %v456, 1
      %v639 = vsel %vm596, %v637, %v638
      %v640 = vrot.slane %v555, 1
      %v641 = vsel %vm596, %v638, %v640
      %v642 = vrot.slane %v539, 1
      %v643 = vrot.slane %v459, 1
      %v644 = vsel %vm596, %v642, %v643
      %v645 = vrot.slane %v556, 1
      %v646 = vsel %vm596, %v643, %v645
      %v647 = vrot.slane %v540, 1
      %v648 = vrot.slane %v462, 1
      %v649 = vsel %vm596, %v647, %v648
      %v650 = vrot.slane %v557, 1
      %v651 = vsel %vm596, %v648, %v650
      %v652 = vrot.slane %v541, 1
      %v653 = vrot.slane %v465, 1
      %v654 = vsel %vm596, %v652, %v653
      %v655 = vrot.slane %v558, 1
      %v656 = vsel %vm596, %v653, %v655
      %v657 = vrot.slane %v542, 1
      %v658 = vrot.slane %v468, 1
      %v659 = vsel %vm596, %v657, %v658
      %v660 = vrot.slane %v559, 1
      %v661 = vsel %vm596, %v658, %v660
      %v662 = vrot.slane %v543, 1
      %v663 = vrot.slane %v471, 1
      %v664 = vsel %vm596, %v662, %v663
      %v665 = vrot.slane %v560, 1
      %v666 = vsel %vm596, %v663, %v665
      %v667 = vrot.slane %v544, 1
      %v668 = vrot.slane %v474, 1
      %v669 = vsel %vm596, %v667, %v668
      %v670 = vrot.slane %v561, 1
      %v671 = vsel %vm596, %v668, %v670
      %v672 = vrot.slane %v545, 1
      %v673 = vrot.slane %v477, 1
      %v674 = vsel %vm596, %v672, %v673
      %v675 = vrot.slane %v562, 1
      %v676 = vsel %vm596, %v673, %v675
      %677 = vrot.lane.b32.xlu0 %v599, 4
      %v678 = vpop.permute.xlu0 %677
      %679 = vrot.lane.b32.xlu0 %v601, 4
      %v680 = vpop.permute.xlu0 %679
      %681 = vrot.lane.b32.xlu0 %v604, 4
      %v682 = vpop.permute.xlu0 %681
      %683 = vrot.lane.b32.xlu0 %v606, 4
      %v684 = vpop.permute.xlu0 %683
      %685 = vrot.lane.b32.xlu0 %v609, 4
      %v686 = vpop.permute.xlu0 %685
      %687 = vrot.lane.b32.xlu0 %v611, 4
      %v688 = vpop.permute.xlu0 %687
      %689 = vrot.lane.b32.xlu0 %v614, 4
      %v690 = vpop.permute.xlu0 %689
      %691 = vrot.lane.b32.xlu0 %v616, 4
      %v692 = vpop.permute.xlu0 %691
      %693 = vrot.lane.b32.xlu0 %v619, 4
      %v694 = vpop.permute.xlu0 %693
      %695 = vrot.lane.b32.xlu0 %v621, 4
      %v696 = vpop.permute.xlu0 %695
      %697 = vrot.lane.b32.xlu0 %v624, 4
      %v698 = vpop.permute.xlu0 %697
      %699 = vrot.lane.b32.xlu0 %v626, 4
      %v700 = vpop.permute.xlu0 %699
      %701 = vrot.lane.b32.xlu0 %v629, 4
      %v702 = vpop.permute.xlu0 %701
      %703 = vrot.lane.b32.xlu0 %v631, 4
      %v704 = vpop.permute.xlu0 %703
      %705 = vrot.lane.b32.xlu0 %v634, 4
      %v706 = vpop.permute.xlu0 %705
      %707 = vrot.lane.b32.xlu0 %v636, 4
      %v708 = vpop.permute.xlu0 %707
      %709 = vrot.lane.b32.xlu0 %v639, 4
      %v710 = vpop.permute.xlu0 %709
      %711 = vrot.lane.b32.xlu0 %v641, 4
      %v712 = vpop.permute.xlu0 %711
      %713 = vrot.lane.b32.xlu0 %v644, 4
      %v714 = vpop.permute.xlu0 %713
      %715 = vrot.lane.b32.xlu0 %v646, 4
      %v716 = vpop.permute.xlu0 %715
      %717 = vrot.lane.b32.xlu0 %v649, 4
      %v718 = vpop.permute.xlu0 %717
      %719 = vrot.lane.b32.xlu0 %v651, 4
      %v720 = vpop.permute.xlu0 %719
      %721 = vrot.lane.b32.xlu0 %v654, 4
      %v722 = vpop.permute.xlu0 %721
      %723 = vrot.lane.b32.xlu0 %v656, 4
      %v724 = vpop.permute.xlu0 %723
      %725 = vrot.lane.b32.xlu0 %v659, 4
      %v726 = vpop.permute.xlu0 %725
      %727 = vrot.lane.b32.xlu0 %v661, 4
      %v728 = vpop.permute.xlu0 %727
      %729 = vrot.lane.b32.xlu0 %v664, 4
      %v730 = vpop.permute.xlu0 %729
      %731 = vrot.lane.b32.xlu0 %v666, 4
      %v732 = vpop.permute.xlu0 %731
      %733 = vrot.lane.b32.xlu0 %v669, 4
      %v734 = vpop.permute.xlu0 %733
      %735 = vrot.lane.b32.xlu0 %v671, 4
      %v736 = vpop.permute.xlu0 %735
      %737 = vrot.lane.b32.xlu0 %v674, 4
      %v738 = vpop.permute.xlu0 %737
      %739 = vrot.lane.b32.xlu0 %v676, 4
      %v740 = vpop.permute.xlu0 %739
      %vm773 = vcmask 1045504
      %v774 = vrot.slane %v530, 2
      %v775 = vrot.slane %v432, 2
      %v776 = vsel %vm773, %v774, %v775
      %v777 = vrot.slane %v547, 2
      %v778 = vsel %vm773, %v775, %v777
      %v779 = vrot.slane %v531, 2
      %v780 = vrot.slane %v435, 2
      %v781 = vsel %vm773, %v779, %v780
      %v782 = vrot.slane %v548, 2
      %v783 = vsel %vm773, %v780, %v782
      %v784 = vrot.slane %v532, 2
      %v785 = vrot.slane %v438, 2
      %v786 = vsel %vm773, %v784, %v785
      %v787 = vrot.slane %v549, 2
      %v788 = vsel %vm773, %v785, %v787
      %v789 = vrot.slane %v533, 2
      %v790 = vrot.slane %v441, 2
      %v791 = vsel %vm773, %v789, %v790
      %v792 = vrot.slane %v550, 2
      %v793 = vsel %vm773, %v790, %v792
      %v794 = vrot.slane %v534, 2
      %v795 = vrot.slane %v444, 2
      %v796 = vsel %vm773, %v794, %v795
      %v797 = vrot.slane %v551, 2
      %v798 = vsel %vm773, %v795, %v797
      %v799 = vrot.slane %v535, 2
      %v800 = vrot.slane %v447, 2
      %v801 = vsel %vm773, %v799, %v800
      %v802 = vrot.slane %v552, 2
      %v803 = vsel %vm773, %v800, %v802
      %v804 = vrot.slane %v536, 2
      %v805 = vrot.slane %v450, 2
      %v806 = vsel %vm773, %v804, %v805
      %v807 = vrot.slane %v553, 2
      %v808 = vsel %vm773, %v805, %v807
      %v809 = vrot.slane %v537, 2
      %v810 = vrot.slane %v453, 2
      %v811 = vsel %vm773, %v809, %v810
      %v812 = vrot.slane %v554, 2
      %v813 = vsel %vm773, %v810, %v812
      %v814 = vrot.slane %v538, 2
      %v815 = vrot.slane %v456, 2
      %v816 = vsel %vm773, %v814, %v815
      %v817 = vrot.slane %v555, 2
      %v818 = vsel %vm773, %v815, %v817
      %v819 = vrot.slane %v539, 2
      %v820 = vrot.slane %v459, 2
      %v821 = vsel %vm773, %v819, %v820
      %v822 = vrot.slane %v556, 2
      %v823 = vsel %vm773, %v820, %v822
      %v824 = vrot.slane %v540, 2
      %v825 = vrot.slane %v462, 2
      %v826 = vsel %vm773, %v824, %v825
      %v827 = vrot.slane %v557, 2
      %v828 = vsel %vm773, %v825, %v827
      %v829 = vrot.slane %v541, 2
      %v830 = vrot.slane %v465, 2
      %v831 = vsel %vm773, %v829, %v830
      %v832 = vrot.slane %v558, 2
      %v833 = vsel %vm773, %v830, %v832
      %v834 = vrot.slane %v542, 2
      %v835 = vrot.slane %v468, 2
      %v836 = vsel %vm773, %v834, %v835
      %v837 = vrot.slane %v559, 2
      %v838 = vsel %vm773, %v835, %v837
      %v839 = vrot.slane %v543, 2
      %v840 = vrot.slane %v471, 2
      %v841 = vsel %vm773, %v839, %v840
      %v842 = vrot.slane %v560, 2
      %v843 = vsel %vm773, %v840, %v842
      %v844 = vrot.slane %v544, 2
      %v845 = vrot.slane %v474, 2
      %v846 = vsel %vm773, %v844, %v845
      %v847 = vrot.slane %v561, 2
      %v848 = vsel %vm773, %v845, %v847
      %v849 = vrot.slane %v545, 2
      %v850 = vrot.slane %v477, 2
      %v851 = vsel %vm773, %v849, %v850
      %v852 = vrot.slane %v562, 2
      %v853 = vsel %vm773, %v850, %v852
      %854 = vrot.lane.b32.xlu0 %v776, 8
      %v855 = vpop.permute.xlu0 %854
      %856 = vrot.lane.b32.xlu0 %v778, 8
      %v857 = vpop.permute.xlu0 %856
      %858 = vrot.lane.b32.xlu0 %v781, 8
      %v859 = vpop.permute.xlu0 %858
      %860 = vrot.lane.b32.xlu0 %v783, 8
      %v861 = vpop.permute.xlu0 %860
      %862 = vrot.lane.b32.xlu0 %v786, 8
      %v863 = vpop.permute.xlu0 %862
      %864 = vrot.lane.b32.xlu0 %v788, 8
      %v865 = vpop.permute.xlu0 %864
      %866 = vrot.lane.b32.xlu0 %v791, 8
      %v867 = vpop.permute.xlu0 %866
      %868 = vrot.lane.b32.xlu0 %v793, 8
      %v869 = vpop.permute.xlu0 %868
      %870 = vrot.lane.b32.xlu0 %v796, 8
      %v871 = vpop.permute.xlu0 %870
      %872 = vrot.lane.b32.xlu0 %v798, 8
      %v873 = vpop.permute.xlu0 %872
      %874 = vrot.lane.b32.xlu0 %v801, 8
      %v875 = vpop.permute.xlu0 %874
      %876 = vrot.lane.b32.xlu0 %v803, 8
      %v877 = vpop.permute.xlu0 %876
      %878 = vrot.lane.b32.xlu0 %v806, 8
      %v879 = vpop.permute.xlu0 %878
      %880 = vrot.lane.b32.xlu0 %v808, 8
      %v881 = vpop.permute.xlu0 %880
      %882 = vrot.lane.b32.xlu0 %v811, 8
      %v883 = vpop.permute.xlu0 %882
      %884 = vrot.lane.b32.xlu0 %v813, 8
      %v885 = vpop.permute.xlu0 %884
      %886 = vrot.lane.b32.xlu0 %v816, 8
      %v887 = vpop.permute.xlu0 %886
      %888 = vrot.lane.b32.xlu0 %v818, 8
      %v889 = vpop.permute.xlu0 %888
      %890 = vrot.lane.b32.xlu0 %v821, 8
      %v891 = vpop.permute.xlu0 %890
      %892 = vrot.lane.b32.xlu0 %v823, 8
      %v893 = vpop.permute.xlu0 %892
      %894 = vrot.lane.b32.xlu0 %v826, 8
      %v895 = vpop.permute.xlu0 %894
      %896 = vrot.lane.b32.xlu0 %v828, 8
      %v897 = vpop.permute.xlu0 %896
      %898 = vrot.lane.b32.xlu0 %v831, 8
      %v899 = vpop.permute.xlu0 %898
      %900 = vrot.lane.b32.xlu0 %v833, 8
      %v901 = vpop.permute.xlu0 %900
      %902 = vrot.lane.b32.xlu0 %v836, 8
      %v903 = vpop.permute.xlu0 %902
      %904 = vrot.lane.b32.xlu0 %v838, 8
      %v905 = vpop.permute.xlu0 %904
      %906 = vrot.lane.b32.xlu0 %v841, 8
      %v907 = vpop.permute.xlu0 %906
      %908 = vrot.lane.b32.xlu0 %v843, 8
      %v909 = vpop.permute.xlu0 %908
      %910 = vrot.lane.b32.xlu0 %v846, 8
      %v911 = vpop.permute.xlu0 %910
      %912 = vrot.lane.b32.xlu0 %v848, 8
      %v913 = vpop.permute.xlu0 %912
      %914 = vrot.lane.b32.xlu0 %v851, 8
      %v915 = vpop.permute.xlu0 %914
      %916 = vrot.lane.b32.xlu0 %v853, 8
      %v917 = vpop.permute.xlu0 %916
      %951 = vrot.lane.b32.xlu0 %v531, 12
      %v952 = vpop.permute.xlu0 %951
      %953 = vrot.lane.b32.xlu0 %v435, 12
      %v954 = vpop.permute.xlu0 %953
      %955 = vrot.lane.b32.xlu0 %v532, 12
      %v956 = vpop.permute.xlu0 %955
      %957 = vrot.lane.b32.xlu0 %v438, 12
      %v958 = vpop.permute.xlu0 %957
      %959 = vrot.lane.b32.xlu0 %v533, 12
      %v960 = vpop.permute.xlu0 %959
      %961 = vrot.lane.b32.xlu0 %v441, 12
      %v962 = vpop.permute.xlu0 %961
      %963 = vrot.lane.b32.xlu0 %v534, 12
      %v964 = vpop.permute.xlu0 %963
      %965 = vrot.lane.b32.xlu0 %v444, 12
      %v966 = vpop.permute.xlu0 %965
      %967 = vrot.lane.b32.xlu0 %v535, 12
      %v968 = vpop.permute.xlu0 %967
      %969 = vrot.lane.b32.xlu0 %v447, 12
      %v970 = vpop.permute.xlu0 %969
      %971 = vrot.lane.b32.xlu0 %v536, 12
      %v972 = vpop.permute.xlu0 %971
      %973 = vrot.lane.b32.xlu0 %v450, 12
      %v974 = vpop.permute.xlu0 %973
      %975 = vrot.lane.b32.xlu0 %v537, 12
      %v976 = vpop.permute.xlu0 %975
      %977 = vrot.lane.b32.xlu0 %v453, 12
      %v978 = vpop.permute.xlu0 %977
      %979 = vrot.lane.b32.xlu0 %v538, 12
      %v980 = vpop.permute.xlu0 %979
      %981 = vrot.lane.b32.xlu0 %v456, 12
      %v982 = vpop.permute.xlu0 %981
      %983 = vrot.lane.b32.xlu0 %v539, 12
      %v984 = vpop.permute.xlu0 %983
      %985 = vrot.lane.b32.xlu0 %v459, 12
      %v986 = vpop.permute.xlu0 %985
      %987 = vrot.lane.b32.xlu0 %v540, 12
      %v988 = vpop.permute.xlu0 %987
      %989 = vrot.lane.b32.xlu0 %v462, 12
      %v990 = vpop.permute.xlu0 %989
      %991 = vrot.lane.b32.xlu0 %v541, 12
      %v992 = vpop.permute.xlu0 %991
      %993 = vrot.lane.b32.xlu0 %v465, 12
      %v994 = vpop.permute.xlu0 %993
      %995 = vrot.lane.b32.xlu0 %v542, 12
      %v996 = vpop.permute.xlu0 %995
      %997 = vrot.lane.b32.xlu0 %v468, 12
      %v998 = vpop.permute.xlu0 %997
      %999 = vrot.lane.b32.xlu0 %v543, 12
      %v1000 = vpop.permute.xlu0 %999
      %1001 = vrot.lane.b32.xlu0 %v471, 12
      %v1002 = vpop.permute.xlu0 %1001
      %1003 = vrot.lane.b32.xlu0 %v544, 12
      %v1004 = vpop.permute.xlu0 %1003
      %1005 = vrot.lane.b32.xlu0 %v474, 12
      %v1006 = vpop.permute.xlu0 %1005
      %1007 = vrot.lane.b32.xlu0 %v545, 12
      %v1008 = vpop.permute.xlu0 %1007
      %1009 = vrot.lane.b32.xlu0 %v477, 12
      %v1010 = vpop.permute.xlu0 %1009
      %1011 = vrot.lane.b32.xlu0 %v546, 12
      %v1012 = vpop.permute.xlu0 %1011
      %1013 = vrot.lane.b32.xlu0 %v480, 12
      %v1014 = vpop.permute.xlu0 %1013
      %v1048 = vrot.slane %v546, 1
      %v1049 = vrot.slane %v480, 1
      %v1050 = vsel %vm596, %v1048, %v1049
      %v1051 = vrot.slane %v563, 1
      %v1052 = vsel %vm596, %v1049, %v1051
      %1053 = vrot.lane.b32.xlu0 %v604, 16
      %v1054 = vpop.permute.xlu0 %1053
      %1055 = vrot.lane.b32.xlu0 %v606, 16
      %v1056 = vpop.permute.xlu0 %1055
      %1057 = vrot.lane.b32.xlu0 %v609, 16
      %v1058 = vpop.permute.xlu0 %1057
      %1059 = vrot.lane.b32.xlu0 %v611, 16
      %v1060 = vpop.permute.xlu0 %1059
      %1061 = vrot.lane.b32.xlu0 %v614, 16
      %v1062 = vpop.permute.xlu0 %1061
      %1063 = vrot.lane.b32.xlu0 %v616, 16
      %v1064 = vpop.permute.xlu0 %1063
      %1065 = vrot.lane.b32.xlu0 %v619, 16
      %v1066 = vpop.permute.xlu0 %1065
      %1067 = vrot.lane.b32.xlu0 %v621, 16
      %v1068 = vpop.permute.xlu0 %1067
      %1069 = vrot.lane.b32.xlu0 %v624, 16
      %v1070 = vpop.permute.xlu0 %1069
      %1071 = vrot.lane.b32.xlu0 %v626, 16
      %v1072 = vpop.permute.xlu0 %1071
      %1073 = vrot.lane.b32.xlu0 %v629, 16
      %v1074 = vpop.permute.xlu0 %1073
      %1075 = vrot.lane.b32.xlu0 %v631, 16
      %v1076 = vpop.permute.xlu0 %1075
      %1077 = vrot.lane.b32.xlu0 %v634, 16
      %v1078 = vpop.permute.xlu0 %1077
      %1079 = vrot.lane.b32.xlu0 %v636, 16
      %v1080 = vpop.permute.xlu0 %1079
      %1081 = vrot.lane.b32.xlu0 %v639, 16
      %v1082 = vpop.permute.xlu0 %1081
      %1083 = vrot.lane.b32.xlu0 %v641, 16
      %v1084 = vpop.permute.xlu0 %1083
      %1085 = vrot.lane.b32.xlu0 %v644, 16
      %v1086 = vpop.permute.xlu0 %1085
      %1087 = vrot.lane.b32.xlu0 %v646, 16
      %v1088 = vpop.permute.xlu0 %1087
      %1089 = vrot.lane.b32.xlu0 %v649, 16
      %v1090 = vpop.permute.xlu0 %1089
      %1091 = vrot.lane.b32.xlu0 %v651, 16
      %v1092 = vpop.permute.xlu0 %1091
      %1093 = vrot.lane.b32.xlu0 %v654, 16
      %v1094 = vpop.permute.xlu0 %1093
      %1095 = vrot.lane.b32.xlu0 %v656, 16
      %v1096 = vpop.permute.xlu0 %1095
      %1097 = vrot.lane.b32.xlu0 %v659, 16
      %v1098 = vpop.permute.xlu0 %1097
      %1099 = vrot.lane.b32.xlu0 %v661, 16
      %v1100 = vpop.permute.xlu0 %1099
      %1101 = vrot.lane.b32.xlu0 %v664, 16
      %v1102 = vpop.permute.xlu0 %1101
      %1103 = vrot.lane.b32.xlu0 %v666, 16
      %v1104 = vpop.permute.xlu0 %1103
      %1105 = vrot.lane.b32.xlu0 %v669, 16
      %v1106 = vpop.permute.xlu0 %1105
      %1107 = vrot.lane.b32.xlu0 %v671, 16
      %v1108 = vpop.permute.xlu0 %1107
      %1109 = vrot.lane.b32.xlu0 %v674, 16
      %v1110 = vpop.permute.xlu0 %1109
      %1111 = vrot.lane.b32.xlu0 %v676, 16
      %v1112 = vpop.permute.xlu0 %1111
      %1113 = vrot.lane.b32.xlu0 %v1050, 16
      %v1114 = vpop.permute.xlu0 %1113
      %1115 = vrot.lane.b32.xlu0 %v1052, 16
      %v1116 = vpop.permute.xlu0 %1115
      %v1149 = vrot.slane %v546, 2
      %v1150 = vrot.slane %v480, 2
      %v1151 = vsel %vm773, %v1149, %v1150
      %v1152 = vrot.slane %v563, 2
      %v1153 = vsel %vm773, %v1150, %v1152
      %1154 = vrot.lane.b32.xlu0 %v781, 20
      %v1155 = vpop.permute.xlu0 %1154
      %1156 = vrot.lane.b32.xlu0 %v783, 20
      %v1157 = vpop.permute.xlu0 %1156
      %1158 = vrot.lane.b32.xlu0 %v786, 20
      %v1159 = vpop.permute.xlu0 %1158
      %1160 = vrot.lane.b32.xlu0 %v788, 20
      %v1161 = vpop.permute.xlu0 %1160
      %1162 = vrot.lane.b32.xlu0 %v791, 20
      %v1163 = vpop.permute.xlu0 %1162
      %1164 = vrot.lane.b32.xlu0 %v793, 20
      %v1165 = vpop.permute.xlu0 %1164
      %1166 = vrot.lane.b32.xlu0 %v796, 20
      %v1167 = vpop.permute.xlu0 %1166
      %1168 = vrot.lane.b32.xlu0 %v798, 20
      %v1169 = vpop.permute.xlu0 %1168
      %1170 = vrot.lane.b32.xlu0 %v801, 20
      %v1171 = vpop.permute.xlu0 %1170
      %1172 = vrot.lane.b32.xlu0 %v803, 20
      %v1173 = vpop.permute.xlu0 %1172
      %1174 = vrot.lane.b32.xlu0 %v806, 20
      %v1175 = vpop.permute.xlu0 %1174
      %1176 = vrot.lane.b32.xlu0 %v808, 20
      %v1177 = vpop.permute.xlu0 %1176
      %1178 = vrot.lane.b32.xlu0 %v811, 20
      %v1179 = vpop.permute.xlu0 %1178
      %1180 = vrot.lane.b32.xlu0 %v813, 20
      %v1181 = vpop.permute.xlu0 %1180
      %1182 = vrot.lane.b32.xlu0 %v816, 20
      %v1183 = vpop.permute.xlu0 %1182
      %1184 = vrot.lane.b32.xlu0 %v818, 20
      %v1185 = vpop.permute.xlu0 %1184
      %1186 = vrot.lane.b32.xlu0 %v821, 20
      %v1187 = vpop.permute.xlu0 %1186
      %1188 = vrot.lane.b32.xlu0 %v823, 20
      %v1189 = vpop.permute.xlu0 %1188
      %1190 = vrot.lane.b32.xlu0 %v826, 20
      %v1191 = vpop.permute.xlu0 %1190
      %1192 = vrot.lane.b32.xlu0 %v828, 20
      %v1193 = vpop.permute.xlu0 %1192
      %1194 = vrot.lane.b32.xlu0 %v831, 20
      %v1195 = vpop.permute.xlu0 %1194
      %1196 = vrot.lane.b32.xlu0 %v833, 20
      %v1197 = vpop.permute.xlu0 %1196
      %1198 = vrot.lane.b32.xlu0 %v836, 20
      %v1199 = vpop.permute.xlu0 %1198
      %1200 = vrot.lane.b32.xlu0 %v838, 20
      %v1201 = vpop.permute.xlu0 %1200
      %1202 = vrot.lane.b32.xlu0 %v841, 20
      %v1203 = vpop.permute.xlu0 %1202
      %1204 = vrot.lane.b32.xlu0 %v843, 20
      %v1205 = vpop.permute.xlu0 %1204
      %1206 = vrot.lane.b32.xlu0 %v846, 20
      %v1207 = vpop.permute.xlu0 %1206
      %1208 = vrot.lane.b32.xlu0 %v848, 20
      %v1209 = vpop.permute.xlu0 %1208
      %1210 = vrot.lane.b32.xlu0 %v851, 20
      %v1211 = vpop.permute.xlu0 %1210
      %1212 = vrot.lane.b32.xlu0 %v853, 20
      %v1213 = vpop.permute.xlu0 %1212
      %1214 = vrot.lane.b32.xlu0 %v1151, 20
      %v1215 = vpop.permute.xlu0 %1214
      %1216 = vrot.lane.b32.xlu0 %v1153, 20
      %v1217 = vpop.permute.xlu0 %1216
      %1250 = vrot.lane.b32.xlu0 %v532, 24
      %v1251 = vpop.permute.xlu0 %1250
      %1252 = vrot.lane.b32.xlu0 %v438, 24
      %v1253 = vpop.permute.xlu0 %1252
      %1254 = vrot.lane.b32.xlu0 %v533, 24
      %v1255 = vpop.permute.xlu0 %1254
      %1256 = vrot.lane.b32.xlu0 %v441, 24
      %v1257 = vpop.permute.xlu0 %1256
      %1258 = vrot.lane.b32.xlu0 %v534, 24
      %v1259 = vpop.permute.xlu0 %1258
      %1260 = vrot.lane.b32.xlu0 %v444, 24
      %v1261 = vpop.permute.xlu0 %1260
      %1262 = vrot.lane.b32.xlu0 %v535, 24
      %v1263 = vpop.permute.xlu0 %1262
      %1264 = vrot.lane.b32.xlu0 %v447, 24
      %v1265 = vpop.permute.xlu0 %1264
      %1266 = vrot.lane.b32.xlu0 %v536, 24
      %v1267 = vpop.permute.xlu0 %1266
      %1268 = vrot.lane.b32.xlu0 %v450, 24
      %v1269 = vpop.permute.xlu0 %1268
      %1270 = vrot.lane.b32.xlu0 %v537, 24
      %v1271 = vpop.permute.xlu0 %1270
      %1272 = vrot.lane.b32.xlu0 %v453, 24
      %v1273 = vpop.permute.xlu0 %1272
      %1274 = vrot.lane.b32.xlu0 %v538, 24
      %v1275 = vpop.permute.xlu0 %1274
      %1276 = vrot.lane.b32.xlu0 %v456, 24
      %v1277 = vpop.permute.xlu0 %1276
      %1278 = vrot.lane.b32.xlu0 %v539, 24
      %v1279 = vpop.permute.xlu0 %1278
      %1280 = vrot.lane.b32.xlu0 %v459, 24
      %v1281 = vpop.permute.xlu0 %1280
      %1282 = vrot.lane.b32.xlu0 %v540, 24
      %v1283 = vpop.permute.xlu0 %1282
      %1284 = vrot.lane.b32.xlu0 %v462, 24
      %v1285 = vpop.permute.xlu0 %1284
      %1286 = vrot.lane.b32.xlu0 %v541, 24
      %v1287 = vpop.permute.xlu0 %1286
      %1288 = vrot.lane.b32.xlu0 %v465, 24
      %v1289 = vpop.permute.xlu0 %1288
      %1290 = vrot.lane.b32.xlu0 %v542, 24
      %v1291 = vpop.permute.xlu0 %1290
      %1292 = vrot.lane.b32.xlu0 %v468, 24
      %v1293 = vpop.permute.xlu0 %1292
      %1294 = vrot.lane.b32.xlu0 %v543, 24
      %v1295 = vpop.permute.xlu0 %1294
      %1296 = vrot.lane.b32.xlu0 %v471, 24
      %v1297 = vpop.permute.xlu0 %1296
      %1298 = vrot.lane.b32.xlu0 %v544, 24
      %v1299 = vpop.permute.xlu0 %1298
      %1300 = vrot.lane.b32.xlu0 %v474, 24
      %v1301 = vpop.permute.xlu0 %1300
      %1302 = vrot.lane.b32.xlu0 %v545, 24
      %v1303 = vpop.permute.xlu0 %1302
      %1304 = vrot.lane.b32.xlu0 %v477, 24
      %v1305 = vpop.permute.xlu0 %1304
      %1306 = vrot.lane.b32.xlu0 %v546, 24
      %v1307 = vpop.permute.xlu0 %1306
      %1308 = vrot.lane.b32.xlu0 %v480, 24
      %v1309 = vpop.permute.xlu0 %1308
      %1310 = vrot.lane.b32.xlu0 %v530, 24
      %v1311 = vpop.permute.xlu0 %1310
      %1312 = vrot.lane.b32.xlu0 %v432, 24
      %v1313 = vpop.permute.xlu0 %1312
      %1346 = vrot.lane.b32.xlu0 %v609, 28
      %v1347 = vpop.permute.xlu0 %1346
      %1348 = vrot.lane.b32.xlu0 %v611, 28
      %v1349 = vpop.permute.xlu0 %1348
      %1350 = vrot.lane.b32.xlu0 %v614, 28
      %v1351 = vpop.permute.xlu0 %1350
      %1352 = vrot.lane.b32.xlu0 %v616, 28
      %v1353 = vpop.permute.xlu0 %1352
      %1354 = vrot.lane.b32.xlu0 %v619, 28
      %v1355 = vpop.permute.xlu0 %1354
      %1356 = vrot.lane.b32.xlu0 %v621, 28
      %v1357 = vpop.permute.xlu0 %1356
      %1358 = vrot.lane.b32.xlu0 %v624, 28
      %v1359 = vpop.permute.xlu0 %1358
      %1360 = vrot.lane.b32.xlu0 %v626, 28
      %v1361 = vpop.permute.xlu0 %1360
      %1362 = vrot.lane.b32.xlu0 %v629, 28
      %v1363 = vpop.permute.xlu0 %1362
      %1364 = vrot.lane.b32.xlu0 %v631, 28
      %v1365 = vpop.permute.xlu0 %1364
      %1366 = vrot.lane.b32.xlu0 %v634, 28
      %v1367 = vpop.permute.xlu0 %1366
      %1368 = vrot.lane.b32.xlu0 %v636, 28
      %v1369 = vpop.permute.xlu0 %1368
      %1370 = vrot.lane.b32.xlu0 %v639, 28
      %v1371 = vpop.permute.xlu0 %1370
      %1372 = vrot.lane.b32.xlu0 %v641, 28
      %v1373 = vpop.permute.xlu0 %1372
      %1374 = vrot.lane.b32.xlu0 %v644, 28
      %v1375 = vpop.permute.xlu0 %1374
      %1376 = vrot.lane.b32.xlu0 %v646, 28
      %v1377 = vpop.permute.xlu0 %1376
      %1378 = vrot.lane.b32.xlu0 %v649, 28
      %v1379 = vpop.permute.xlu0 %1378
      %1380 = vrot.lane.b32.xlu0 %v651, 28
      %v1381 = vpop.permute.xlu0 %1380
      %1382 = vrot.lane.b32.xlu0 %v654, 28
      %v1383 = vpop.permute.xlu0 %1382
      %1384 = vrot.lane.b32.xlu0 %v656, 28
      %v1385 = vpop.permute.xlu0 %1384
      %1386 = vrot.lane.b32.xlu0 %v659, 28
      %v1387 = vpop.permute.xlu0 %1386
      %1388 = vrot.lane.b32.xlu0 %v661, 28
      %v1389 = vpop.permute.xlu0 %1388
      %1390 = vrot.lane.b32.xlu0 %v664, 28
      %v1391 = vpop.permute.xlu0 %1390
      %1392 = vrot.lane.b32.xlu0 %v666, 28
      %v1393 = vpop.permute.xlu0 %1392
      %1394 = vrot.lane.b32.xlu0 %v669, 28
      %v1395 = vpop.permute.xlu0 %1394
      %1396 = vrot.lane.b32.xlu0 %v671, 28
      %v1397 = vpop.permute.xlu0 %1396
      %1398 = vrot.lane.b32.xlu0 %v674, 28
      %v1399 = vpop.permute.xlu0 %1398
      %1400 = vrot.lane.b32.xlu0 %v676, 28
      %v1401 = vpop.permute.xlu0 %1400
      %1402 = vrot.lane.b32.xlu0 %v1050, 28
      %v1403 = vpop.permute.xlu0 %1402
      %1404 = vrot.lane.b32.xlu0 %v1052, 28
      %v1405 = vpop.permute.xlu0 %1404
      %1406 = vrot.lane.b32.xlu0 %v599, 28
      %v1407 = vpop.permute.xlu0 %1406
      %1408 = vrot.lane.b32.xlu0 %v601, 28
      %v1409 = vpop.permute.xlu0 %1408
      %1442 = vrot.lane.b32.xlu0 %v786, 32
      %v1443 = vpop.permute.xlu0 %1442
      %1444 = vrot.lane.b32.xlu0 %v788, 32
      %v1445 = vpop.permute.xlu0 %1444
      %1446 = vrot.lane.b32.xlu0 %v791, 32
      %v1447 = vpop.permute.xlu0 %1446
      %1448 = vrot.lane.b32.xlu0 %v793, 32
      %v1449 = vpop.permute.xlu0 %1448
      %1450 = vrot.lane.b32.xlu0 %v796, 32
      %v1451 = vpop.permute.xlu0 %1450
      %1452 = vrot.lane.b32.xlu0 %v798, 32
      %v1453 = vpop.permute.xlu0 %1452
      %1454 = vrot.lane.b32.xlu0 %v801, 32
      %v1455 = vpop.permute.xlu0 %1454
      %1456 = vrot.lane.b32.xlu0 %v803, 32
      %v1457 = vpop.permute.xlu0 %1456
      %1458 = vrot.lane.b32.xlu0 %v806, 32
      %v1459 = vpop.permute.xlu0 %1458
      %1460 = vrot.lane.b32.xlu0 %v808, 32
      %v1461 = vpop.permute.xlu0 %1460
      %1462 = vrot.lane.b32.xlu0 %v811, 32
      %v1463 = vpop.permute.xlu0 %1462
      %1464 = vrot.lane.b32.xlu0 %v813, 32
      %v1465 = vpop.permute.xlu0 %1464
      %1466 = vrot.lane.b32.xlu0 %v816, 32
      %v1467 = vpop.permute.xlu0 %1466
      %1468 = vrot.lane.b32.xlu0 %v818, 32
      %v1469 = vpop.permute.xlu0 %1468
      %1470 = vrot.lane.b32.xlu0 %v821, 32
      %v1471 = vpop.permute.xlu0 %1470
      %1472 = vrot.lane.b32.xlu0 %v823, 32
      %v1473 = vpop.permute.xlu0 %1472
      %1474 = vrot.lane.b32.xlu0 %v826, 32
      %v1475 = vpop.permute.xlu0 %1474
      %1476 = vrot.lane.b32.xlu0 %v828, 32
      %v1477 = vpop.permute.xlu0 %1476
      %1478 = vrot.lane.b32.xlu0 %v831, 32
      %v1479 = vpop.permute.xlu0 %1478
      %1480 = vrot.lane.b32.xlu0 %v833, 32
      %v1481 = vpop.permute.xlu0 %1480
      %1482 = vrot.lane.b32.xlu0 %v836, 32
      %v1483 = vpop.permute.xlu0 %1482
      %1484 = vrot.lane.b32.xlu0 %v838, 32
      %v1485 = vpop.permute.xlu0 %1484
      %1486 = vrot.lane.b32.xlu0 %v841, 32
      %v1487 = vpop.permute.xlu0 %1486
      %1488 = vrot.lane.b32.xlu0 %v843, 32
      %v1489 = vpop.permute.xlu0 %1488
      %1490 = vrot.lane.b32.xlu0 %v846, 32
      %v1491 = vpop.permute.xlu0 %1490
      %1492 = vrot.lane.b32.xlu0 %v848, 32
      %v1493 = vpop.permute.xlu0 %1492
      %1494 = vrot.lane.b32.xlu0 %v851, 32
      %v1495 = vpop.permute.xlu0 %1494
      %1496 = vrot.lane.b32.xlu0 %v853, 32
      %v1497 = vpop.permute.xlu0 %1496
      %1498 = vrot.lane.b32.xlu0 %v1151, 32
      %v1499 = vpop.permute.xlu0 %1498
      %1500 = vrot.lane.b32.xlu0 %v1153, 32
      %v1501 = vpop.permute.xlu0 %1500
      %1502 = vrot.lane.b32.xlu0 %v776, 32
      %v1503 = vpop.permute.xlu0 %1502
      %1504 = vrot.lane.b32.xlu0 %v778, 32
      %v1505 = vpop.permute.xlu0 %1504
      %vm1538 = vcmask 31744
      %v1539 = vsel %vm1538, %v530, %v678
      %v1540 = vsel %vm1538, %v432, %v680
      %v1541 = vsel %vm1538, %v531, %v682
      %v1542 = vsel %vm1538, %v435, %v684
      %v1543 = vsel %vm1538, %v532, %v686
      %v1544 = vsel %vm1538, %v438, %v688
      %v1545 = vsel %vm1538, %v533, %v690
      %v1546 = vsel %vm1538, %v441, %v692
      %v1547 = vsel %vm1538, %v534, %v694
      %v1548 = vsel %vm1538, %v444, %v696
      %v1549 = vsel %vm1538, %v535, %v698
      %v1550 = vsel %vm1538, %v447, %v700
      %v1551 = vsel %vm1538, %v536, %v702
      %v1552 = vsel %vm1538, %v450, %v704
      %v1553 = vsel %vm1538, %v537, %v706
      %v1554 = vsel %vm1538, %v453, %v708
      %v1555 = vsel %vm1538, %v538, %v710
      %v1556 = vsel %vm1538, %v456, %v712
      %v1557 = vsel %vm1538, %v539, %v714
      %v1558 = vsel %vm1538, %v459, %v716
      %v1559 = vsel %vm1538, %v540, %v718
      %v1560 = vsel %vm1538, %v462, %v720
      %v1561 = vsel %vm1538, %v541, %v722
      %v1562 = vsel %vm1538, %v465, %v724
      %v1563 = vsel %vm1538, %v542, %v726
      %v1564 = vsel %vm1538, %v468, %v728
      %v1565 = vsel %vm1538, %v543, %v730
      %v1566 = vsel %vm1538, %v471, %v732
      %v1567 = vsel %vm1538, %v544, %v734
      %v1568 = vsel %vm1538, %v474, %v736
      %v1569 = vsel %vm1538, %v545, %v738
      %v1570 = vsel %vm1538, %v477, %v740
      %vm1571 = vcmask 64512
      %v1572 = vsel %vm1571, %v1539, %v855
      %v1573 = vsel %vm1571, %v1540, %v857
      %v1574 = vsel %vm1571, %v1541, %v859
      %v1575 = vsel %vm1571, %v1542, %v861
      %v1576 = vsel %vm1571, %v1543, %v863
      %v1577 = vsel %vm1571, %v1544, %v865
      %v1578 = vsel %vm1571, %v1545, %v867
      %v1579 = vsel %vm1571, %v1546, %v869
      %v1580 = vsel %vm1571, %v1547, %v871
      %v1581 = vsel %vm1571, %v1548, %v873
      %v1582 = vsel %vm1571, %v1549, %v875
      %v1583 = vsel %vm1571, %v1550, %v877
      %v1584 = vsel %vm1571, %v1551, %v879
      %v1585 = vsel %vm1571, %v1552, %v881
      %v1586 = vsel %vm1571, %v1553, %v883
      %v1587 = vsel %vm1571, %v1554, %v885
      %v1588 = vsel %vm1571, %v1555, %v887
      %v1589 = vsel %vm1571, %v1556, %v889
      %v1590 = vsel %vm1571, %v1557, %v891
      %v1591 = vsel %vm1571, %v1558, %v893
      %v1592 = vsel %vm1571, %v1559, %v895
      %v1593 = vsel %vm1571, %v1560, %v897
      %v1594 = vsel %vm1571, %v1561, %v899
      %v1595 = vsel %vm1571, %v1562, %v901
      %v1596 = vsel %vm1571, %v1563, %v903
      %v1597 = vsel %vm1571, %v1564, %v905
      %v1598 = vsel %vm1571, %v1565, %v907
      %v1599 = vsel %vm1571, %v1566, %v909
      %v1600 = vsel %vm1571, %v1567, %v911
      %v1601 = vsel %vm1571, %v1568, %v913
      %v1602 = vsel %vm1571, %v1569, %v915
      %v1603 = vsel %vm1571, %v1570, %v917
      %vm1604 = vcmask 97280
      %v1605 = vsel %vm1604, %v1572, %v952
      %v1606 = vsel %vm1604, %v1573, %v954
      %v1607 = vsel %vm1604, %v1574, %v956
      %v1608 = vsel %vm1604, %v1575, %v958
      %v1609 = vsel %vm1604, %v1576, %v960
      %v1610 = vsel %vm1604, %v1577, %v962
      %v1611 = vsel %vm1604, %v1578, %v964
      %v1612 = vsel %vm1604, %v1579, %v966
      %v1613 = vsel %vm1604, %v1580, %v968
      %v1614 = vsel %vm1604, %v1581, %v970
      %v1615 = vsel %vm1604, %v1582, %v972
      %v1616 = vsel %vm1604, %v1583, %v974
      %v1617 = vsel %vm1604, %v1584, %v976
      %v1618 = vsel %vm1604, %v1585, %v978
      %v1619 = vsel %vm1604, %v1586, %v980
      %v1620 = vsel %vm1604, %v1587, %v982
      %v1621 = vsel %vm1604, %v1588, %v984
      %v1622 = vsel %vm1604, %v1589, %v986
      %v1623 = vsel %vm1604, %v1590, %v988
      %v1624 = vsel %vm1604, %v1591, %v990
      %v1625 = vsel %vm1604, %v1592, %v992
      %v1626 = vsel %vm1604, %v1593, %v994
      %v1627 = vsel %vm1604, %v1594, %v996
      %v1628 = vsel %vm1604, %v1595, %v998
      %v1629 = vsel %vm1604, %v1596, %v1000
      %v1630 = vsel %vm1604, %v1597, %v1002
      %v1631 = vsel %vm1604, %v1598, %v1004
      %v1632 = vsel %vm1604, %v1599, %v1006
      %v1633 = vsel %vm1604, %v1600, %v1008
      %v1634 = vsel %vm1604, %v1601, %v1010
      %v1635 = vsel %vm1604, %v1602, %v1012
      %v1636 = vsel %vm1604, %v1603, %v1014
      %vm1637 = vcmask 130048
      %v1638 = vsel %vm1637, %v1605, %v1054
      %v1639 = vsel %vm1637, %v1606, %v1056
      %v1640 = vsel %vm1637, %v1607, %v1058
      %v1641 = vsel %vm1637, %v1608, %v1060
      %v1642 = vsel %vm1637, %v1609, %v1062
      %v1643 = vsel %vm1637, %v1610, %v1064
      %v1644 = vsel %vm1637, %v1611, %v1066
      %v1645 = vsel %vm1637, %v1612, %v1068
      %v1646 = vsel %vm1637, %v1613, %v1070
      %v1647 = vsel %vm1637, %v1614, %v1072
      %v1648 = vsel %vm1637, %v1615, %v1074
      %v1649 = vsel %vm1637, %v1616, %v1076
      %v1650 = vsel %vm1637, %v1617, %v1078
      %v1651 = vsel %vm1637, %v1618, %v1080
      %v1652 = vsel %vm1637, %v1619, %v1082
      %v1653 = vsel %vm1637, %v1620, %v1084
      %v1654 = vsel %vm1637, %v1621, %v1086
      %v1655 = vsel %vm1637, %v1622, %v1088
      %v1656 = vsel %vm1637, %v1623, %v1090
      %v1657 = vsel %vm1637, %v1624, %v1092
      %v1658 = vsel %vm1637, %v1625, %v1094
      %v1659 = vsel %vm1637, %v1626, %v1096
      %v1660 = vsel %vm1637, %v1627, %v1098
      %v1661 = vsel %vm1637, %v1628, %v1100
      %v1662 = vsel %vm1637, %v1629, %v1102
      %v1663 = vsel %vm1637, %v1630, %v1104
      %v1664 = vsel %vm1637, %v1631, %v1106
      %v1665 = vsel %vm1637, %v1632, %v1108
      %v1666 = vsel %vm1637, %v1633, %v1110
      %v1667 = vsel %vm1637, %v1634, %v1112
      %v1668 = vsel %vm1637, %v1635, %v1114
      %v1669 = vsel %vm1637, %v1636, %v1116
      %vm1670 = vcmask 162816
      %v1671 = vsel %vm1670, %v1638, %v1155
      %v1672 = vsel %vm1670, %v1639, %v1157
      %v1673 = vsel %vm1670, %v1640, %v1159
      %v1674 = vsel %vm1670, %v1641, %v1161
      %v1675 = vsel %vm1670, %v1642, %v1163
      %v1676 = vsel %vm1670, %v1643, %v1165
      %v1677 = vsel %vm1670, %v1644, %v1167
      %v1678 = vsel %vm1670, %v1645, %v1169
      %v1679 = vsel %vm1670, %v1646, %v1171
      %v1680 = vsel %vm1670, %v1647, %v1173
      %v1681 = vsel %vm1670, %v1648, %v1175
      %v1682 = vsel %vm1670, %v1649, %v1177
      %v1683 = vsel %vm1670, %v1650, %v1179
      %v1684 = vsel %vm1670, %v1651, %v1181
      %v1685 = vsel %vm1670, %v1652, %v1183
      %v1686 = vsel %vm1670, %v1653, %v1185
      %v1687 = vsel %vm1670, %v1654, %v1187
      %v1688 = vsel %vm1670, %v1655, %v1189
      %v1689 = vsel %vm1670, %v1656, %v1191
      %v1690 = vsel %vm1670, %v1657, %v1193
      %v1691 = vsel %vm1670, %v1658, %v1195
      %v1692 = vsel %vm1670, %v1659, %v1197
      %v1693 = vsel %vm1670, %v1660, %v1199
      %v1694 = vsel %vm1670, %v1661, %v1201
      %v1695 = vsel %vm1670, %v1662, %v1203
      %v1696 = vsel %vm1670, %v1663, %v1205
      %v1697 = vsel %vm1670, %v1664, %v1207
      %v1698 = vsel %vm1670, %v1665, %v1209
      %v1699 = vsel %vm1670, %v1666, %v1211
      %v1700 = vsel %vm1670, %v1667, %v1213
      %v1701 = vsel %vm1670, %v1668, %v1215
      %v1702 = vsel %vm1670, %v1669, %v1217
      %vm1703 = vcmask 195584
      %v1704 = vsel %vm1703, %v1671, %v1251
      %v1705 = vsel %vm1703, %v1672, %v1253
      %v1706 = vsel %vm1703, %v1673, %v1255
      %v1707 = vsel %vm1703, %v1674, %v1257
      %v1708 = vsel %vm1703, %v1675, %v1259
      %v1709 = vsel %vm1703, %v1676, %v1261
      %v1710 = vsel %vm1703, %v1677, %v1263
      %v1711 = vsel %vm1703, %v1678, %v1265
      %v1712 = vsel %vm1703, %v1679, %v1267
      %v1713 = vsel %vm1703, %v1680, %v1269
      %v1714 = vsel %vm1703, %v1681, %v1271
      %v1715 = vsel %vm1703, %v1682, %v1273
      %v1716 = vsel %vm1703, %v1683, %v1275
      %v1717 = vsel %vm1703, %v1684, %v1277
      %v1718 = vsel %vm1703, %v1685, %v1279
      %v1719 = vsel %vm1703, %v1686, %v1281
      %v1720 = vsel %vm1703, %v1687, %v1283
      %v1721 = vsel %vm1703, %v1688, %v1285
      %v1722 = vsel %vm1703, %v1689, %v1287
      %v1723 = vsel %vm1703, %v1690, %v1289
      %v1724 = vsel %vm1703, %v1691, %v1291
      %v1725 = vsel %vm1703, %v1692, %v1293
      %v1726 = vsel %vm1703, %v1693, %v1295
      %v1727 = vsel %vm1703, %v1694, %v1297
      %v1728 = vsel %vm1703, %v1695, %v1299
      %v1729 = vsel %vm1703, %v1696, %v1301
      %v1730 = vsel %vm1703, %v1697, %v1303
      %v1731 = vsel %vm1703, %v1698, %v1305
      %v1732 = vsel %vm1703, %v1699, %v1307
      %v1733 = vsel %vm1703, %v1700, %v1309
      %v1734 = vsel %vm1703, %v1701, %v1311
      %v1735 = vsel %vm1703, %v1702, %v1313
      %vm1736 = vcmask 228352
      %v1737 = vsel %vm1736, %v1704, %v1347
      %v1738 = vsel %vm1736, %v1705, %v1349
      %v1739 = vsel %vm1736, %v1706, %v1351
      %v1740 = vsel %vm1736, %v1707, %v1353
      %v1741 = vsel %vm1736, %v1708, %v1355
      %v1742 = vsel %vm1736, %v1709, %v1357
      %v1743 = vsel %vm1736, %v1710, %v1359
      %v1744 = vsel %vm1736, %v1711, %v1361
      %v1745 = vsel %vm1736, %v1712, %v1363
      %v1746 = vsel %vm1736, %v1713, %v1365
      %v1747 = vsel %vm1736, %v1714, %v1367
      %v1748 = vsel %vm1736, %v1715, %v1369
      %v1749 = vsel %vm1736, %v1716, %v1371
      %v1750 = vsel %vm1736, %v1717, %v1373
      %v1751 = vsel %vm1736, %v1718, %v1375
      %v1752 = vsel %vm1736, %v1719, %v1377
      %v1753 = vsel %vm1736, %v1720, %v1379
      %v1754 = vsel %vm1736, %v1721, %v1381
      %v1755 = vsel %vm1736, %v1722, %v1383
      %v1756 = vsel %vm1736, %v1723, %v1385
      %v1757 = vsel %vm1736, %v1724, %v1387
      %v1758 = vsel %vm1736, %v1725, %v1389
      %v1759 = vsel %vm1736, %v1726, %v1391
      %v1760 = vsel %vm1736, %v1727, %v1393
      %v1761 = vsel %vm1736, %v1728, %v1395
      %v1762 = vsel %vm1736, %v1729, %v1397
      %v1763 = vsel %vm1736, %v1730, %v1399
      %v1764 = vsel %vm1736, %v1731, %v1401
      %v1765 = vsel %vm1736, %v1732, %v1403
      %v1766 = vsel %vm1736, %v1733, %v1405
      %v1767 = vsel %vm1736, %v1734, %v1407
      %v1768 = vsel %vm1736, %v1735, %v1409
      %vm1769 = vcmask 261120
      %v1770 = vsel %vm1769, %v1737, %v1443
      %v1771 = vsel %vm1769, %v1738, %v1445
      %v1772 = vsel %vm1769, %v1739, %v1447
      %v1773 = vsel %vm1769, %v1740, %v1449
      %v1774 = vsel %vm1769, %v1741, %v1451
      %v1775 = vsel %vm1769, %v1742, %v1453
      %v1776 = vsel %vm1769, %v1743, %v1455
      %v1777 = vsel %vm1769, %v1744, %v1457
      %v1778 = vsel %vm1769, %v1745, %v1459
      %v1779 = vsel %vm1769, %v1746, %v1461
      %v1780 = vsel %vm1769, %v1747, %v1463
      %v1781 = vsel %vm1769, %v1748, %v1465
      %v1782 = vsel %vm1769, %v1749, %v1467
      %v1783 = vsel %vm1769, %v1750, %v1469
      %v1784 = vsel %vm1769, %v1751, %v1471
      %v1785 = vsel %vm1769, %v1752, %v1473
      %v1786 = vsel %vm1769, %v1753, %v1475
      %v1787 = vsel %vm1769, %v1754, %v1477
      %v1788 = vsel %vm1769, %v1755, %v1479
      %v1789 = vsel %vm1769, %v1756, %v1481
      %v1790 = vsel %vm1769, %v1757, %v1483
      %v1791 = vsel %vm1769, %v1758, %v1485
      %v1792 = vsel %vm1769, %v1759, %v1487
      %v1793 = vsel %vm1769, %v1760, %v1489
      %v1794 = vsel %vm1769, %v1761, %v1491
      %v1795 = vsel %vm1769, %v1762, %v1493
      %v1796 = vsel %vm1769, %v1763, %v1495
      %v1797 = vsel %vm1769, %v1764, %v1497
      %v1798 = vsel %vm1769, %v1765, %v1499
      %v1799 = vsel %vm1769, %v1766, %v1501
      %v1800 = vsel %vm1769, %v1767, %v1503
      %v1801 = vsel %vm1769, %v1768, %v1505
      %vm1802 = vcmask 293888
      %v1804 = vsel %vm1802, %v1770, 0
      %v1807 = vsel %vm1802, %v1771, 0
      %v1810 = vsel %vm1802, %v1772, 0
      %v1813 = vsel %vm1802, %v1773, 0
      %v1816 = vsel %vm1802, %v1774, 0
      %v1819 = vsel %vm1802, %v1775, 0
      %v1822 = vsel %vm1802, %v1776, 0
      %v1825 = vsel %vm1802, %v1777, 0
      %v1828 = vsel %vm1802, %v1778, 0
      %v1831 = vsel %vm1802, %v1779, 0
      %v1834 = vsel %vm1802, %v1780, 0
      %v1837 = vsel %vm1802, %v1781, 0
      %v1840 = vsel %vm1802, %v1782, 0
      %v1843 = vsel %vm1802, %v1783, 0
      %v1846 = vsel %vm1802, %v1784, 0
      %v1849 = vsel %vm1802, %v1785, 0
      %v1852 = vsel %vm1802, %v1786, 0
      %v1855 = vsel %vm1802, %v1787, 0
      %v1858 = vsel %vm1802, %v1788, 0
      %v1861 = vsel %vm1802, %v1789, 0
      %v1864 = vsel %vm1802, %v1790, 0
      %v1867 = vsel %vm1802, %v1791, 0
      %v1870 = vsel %vm1802, %v1792, 0
      %v1873 = vsel %vm1802, %v1793, 0
      %v1876 = vsel %vm1802, %v1794, 0
      %v1879 = vsel %vm1802, %v1795, 0
      %v1882 = vsel %vm1802, %v1796, 0
      %v1885 = vsel %vm1802, %v1797, 0
      %v1888 = vsel %vm1802, %v1798, 0
      %v1891 = vsel %vm1802, %v1799, 0
      %v1894 = vsel %vm1802, %v1800, 0
      %v1897 = vsel %vm1802, %v1801, 0
      %vm1899 = vcmask 1043456
      %v1901 = vsel %vm1899, %v396, 0
      %1903 = vmatprep.subr.mxu0 0.0
      %1904 = vmatpush1.msra.mxu0 0.0
      %1905 = vmatprep.subr.mxu0 0.0
      %1906 = vmatpush1.msra.mxu0 0.0
      %1907 = vmatprep.subr.mxu0 0.0
      %1908 = vmatpush1.msra.mxu0 0.0
      %1909 = vmatprep.subr.mxu0 0.0
      %1910 = vmatpush1.msra.mxu0 0.0
      %1911 = vmatprep.subr.mxu0 0.0
      %1912 = vmatpush1.msra.mxu0 0.0
      %1913 = vmatprep.subr.mxu0 0.0
      %1914 = vmatpush1.msra.mxu0 0.0
      %1915 = vmatprep.subr.mxu0 0.0
      %1916 = vmatpush1.msra.mxu0 0.0
      %1917 = vmatprep.subr.mxu0 0.0
      %1918 = vmatpush1.msra.mxu0 0.0
      %1919 = vmatprep.subr.mxu0 0.0
      %1920 = vmatpush1.msra.mxu0 0.0
      %1921 = vmatprep.subr.mxu0 0.0
      %1922 = vmatpush1.msra.mxu0 0.0
      %1923 = vmatprep.subr.mxu0 0.0
      %1924 = vmatpush1.msra.mxu0 0.0
      %1925 = vmatprep.subr.mxu0 0.0
      %1926 = vmatpush1.msra.mxu0 %v1901
      %1927 = vmatprep.subr.mxu0 0.0
      %1928 = vmatpush1.msra.mxu0 %v395
      %1929 = vmatprep.subr.mxu0 0.0
      %1930 = vmatpush1.msra.mxu0 %v394
      %1931 = vmatprep.subr.mxu0 0.0
      %1932 = vmatpush1.msra.mxu0 %v393
      %1933 = vmatprep.subr.mxu0 0.0
      %1934 = vmatpush1.msra.mxu0 %v392
      %1935 = vmatprep.subr.mxu0 0.0
      %1936 = vmatpush2.msra.mxu0 0.0
      %1937 = vmatprep.subr.mxu0 0.0
      %1938 = vmatpush2.msra.mxu0 0.0
      %1939 = vmatprep.subr.mxu0 0.0
      %1940 = vmatpush2.msra.mxu0 0.0
      %1941 = vmatprep.subr.mxu0 0.0
      %1942 = vmatpush2.msra.mxu0 0.0
      %1943 = vmatprep.subr.mxu0 0.0
      %1944 = vmatpush2.msra.mxu0 0.0
      %1945 = vmatprep.subr.mxu0 0.0
      %1946 = vmatpush2.msra.mxu0 0.0
      %1947 = vmatprep.subr.mxu0 0.0
      %1948 = vmatpush2.msra.mxu0 0.0
      %1949 = vmatprep.subr.mxu0 0.0
      %1950 = vmatpush2.msra.mxu0 0.0
      %1951 = vmatprep.subr.mxu0 0.0
      %1952 = vmatpush2.msra.mxu0 0.0
      %1953 = vmatprep.subr.mxu0 0.0
      %1954 = vmatpush2.msra.mxu0 0.0
      %1955 = vmatprep.subr.mxu0 0.0
      %1956 = vmatpush2.msra.mxu0 0.0
      %1957 = vmatprep.subr.mxu0 0.0
      %1958 = vmatpush2.msra.mxu0 0.0
      %1959 = vmatprep.subr.mxu0 0.0
      %1960 = vmatpush2.msra.mxu0 0.0
      %1961 = vmatprep.subr.mxu0 0.0
      %1962 = vmatpush2.msra.mxu0 0.0
      %1963 = vmatprep.subr.mxu0 0.0
      %1964 = vmatpush2.msra.mxu0 0.0
      %1965 = vmatprep.subr.mxu0 0.0
      %1966 = vmatpush2.msra.mxu0 0.0
      %1967 = vmatprep.mubr.f32.mxu0 0.0
      %1968 = vmatmul.mubr.f32.gmra.mxu0 %v1804
      %v1969 = vpop.f32.mrf.mxu0
      %v1970 = vadd.f32 0.0, %v1969
      %v1971 = vpop.f32.mrf.mxu0
      %1972 = vmatprep.mubr.f32.mxu0 0.0
      %1973 = vmatmul.mubr.f32.gmra.mxu0 %v1807
      %v1974 = vpop.f32.mrf.mxu0
      %v1975 = vadd.f32 0.0, %v1974
      %v1976 = vpop.f32.mrf.mxu0
      %1977 = vmatprep.mubr.f32.mxu0 0.0
      %1978 = vmatmul.mubr.f32.gmra.mxu0 %v1810
      %v1979 = vpop.f32.mrf.mxu0
      %v1980 = vadd.f32 0.0, %v1979
      %v1981 = vpop.f32.mrf.mxu0
      %1982 = vmatprep.mubr.f32.mxu0 0.0
      %1983 = vmatmul.mubr.f32.gmra.mxu0 %v1813
      %v1984 = vpop.f32.mrf.mxu0
      %v1985 = vadd.f32 0.0, %v1984
      %v1986 = vpop.f32.mrf.mxu0
      %1987 = vmatprep.mubr.f32.mxu0 0.0
      %1988 = vmatmul.mubr.f32.gmra.mxu0 %v1816
      %v1989 = vpop.f32.mrf.mxu0
      %v1990 = vadd.f32 0.0, %v1989
      %v1991 = vpop.f32.mrf.mxu0
      %1992 = vmatprep.mubr.f32.mxu0 0.0
      %1993 = vmatmul.mubr.f32.gmra.mxu0 %v1819
      %v1994 = vpop.f32.mrf.mxu0
      %v1995 = vadd.f32 0.0, %v1994
      %v1996 = vpop.f32.mrf.mxu0
      %1997 = vmatprep.mubr.f32.mxu0 0.0
      %1998 = vmatmul.mubr.f32.gmra.mxu0 %v1822
      %v1999 = vpop.f32.mrf.mxu0
      %v2000 = vadd.f32 0.0, %v1999
      %v2001 = vpop.f32.mrf.mxu0
      %2002 = vmatprep.mubr.f32.mxu0 0.0
      %2003 = vmatmul.mubr.f32.gmra.mxu0 %v1825
      %v2004 = vpop.f32.mrf.mxu0
      %v2005 = vadd.f32 0.0, %v2004
      %v2006 = vpop.f32.mrf.mxu0
      %2007 = vmatprep.mubr.f32.mxu0 0.0
      %2008 = vmatmul.mubr.f32.gmra.mxu0 %v1828
      %v2009 = vpop.f32.mrf.mxu0
      %v2010 = vadd.f32 0.0, %v2009
      %v2011 = vpop.f32.mrf.mxu0
      %2012 = vmatprep.mubr.f32.mxu0 0.0
      %2013 = vmatmul.mubr.f32.gmra.mxu0 %v1831
      %v2014 = vpop.f32.mrf.mxu0
      %v2015 = vadd.f32 0.0, %v2014
      %v2016 = vpop.f32.mrf.mxu0
      %2017 = vmatprep.mubr.f32.mxu0 0.0
      %2018 = vmatmul.mubr.f32.gmra.mxu0 %v1834
      %v2019 = vpop.f32.mrf.mxu0
      %v2020 = vadd.f32 0.0, %v2019
      %v2021 = vpop.f32.mrf.mxu0
      %2022 = vmatprep.mubr.f32.mxu0 0.0
      %2023 = vmatmul.mubr.f32.gmra.mxu0 %v1837
      %v2024 = vpop.f32.mrf.mxu0
      %v2025 = vadd.f32 0.0, %v2024
      %v2026 = vpop.f32.mrf.mxu0
      %2027 = vmatprep.mubr.f32.mxu0 0.0
      %2028 = vmatmul.mubr.f32.gmra.mxu0 %v1840
      %v2029 = vpop.f32.mrf.mxu0
      %v2030 = vadd.f32 0.0, %v2029
      %v2031 = vpop.f32.mrf.mxu0
      %2032 = vmatprep.mubr.f32.mxu0 0.0
      %2033 = vmatmul.mubr.f32.gmra.mxu0 %v1843
      %v2034 = vpop.f32.mrf.mxu0
      %v2035 = vadd.f32 0.0, %v2034
      %v2036 = vpop.f32.mrf.mxu0
      %2037 = vmatprep.mubr.f32.mxu0 0.0
      %2038 = vmatmul.mubr.f32.gmra.mxu0 %v1846
      %v2039 = vpop.f32.mrf.mxu0
      %v2040 = vadd.f32 0.0, %v2039
      %v2041 = vpop.f32.mrf.mxu0
      %2042 = vmatprep.mubr.f32.mxu0 0.0
      %2043 = vmatmul.mubr.f32.gmra.mxu0 %v1849
      %v2044 = vpop.f32.mrf.mxu0
      %v2045 = vadd.f32 0.0, %v2044
      %v2046 = vpop.f32.mrf.mxu0
      %2047 = vmatprep.mubr.f32.mxu0 0.0
      %2048 = vmatmul.mubr.f32.gmra.mxu0 %v1852
      %v2049 = vpop.f32.mrf.mxu0
      %v2050 = vadd.f32 0.0, %v2049
      %v2051 = vpop.f32.mrf.mxu0
      %2052 = vmatprep.mubr.f32.mxu0 0.0
      %2053 = vmatmul.mubr.f32.gmra.mxu0 %v1855
      %v2054 = vpop.f32.mrf.mxu0
      %v2055 = vadd.f32 0.0, %v2054
      %v2056 = vpop.f32.mrf.mxu0
      %2057 = vmatprep.mubr.f32.mxu0 0.0
      %2058 = vmatmul.mubr.f32.gmra.mxu0 %v1858
      %v2059 = vpop.f32.mrf.mxu0
      %v2060 = vadd.f32 0.0, %v2059
      %v2061 = vpop.f32.mrf.mxu0
      %2062 = vmatprep.mubr.f32.mxu0 0.0
      %2063 = vmatmul.mubr.f32.gmra.mxu0 %v1861
      %v2064 = vpop.f32.mrf.mxu0
      %v2065 = vadd.f32 0.0, %v2064
      %v2066 = vpop.f32.mrf.mxu0
      %2067 = vmatprep.mubr.f32.mxu0 0.0
      %2068 = vmatmul.mubr.f32.gmra.mxu0 %v1864
      %v2069 = vpop.f32.mrf.mxu0
      %v2070 = vadd.f32 0.0, %v2069
      %v2071 = vpop.f32.mrf.mxu0
      %2072 = vmatprep.mubr.f32.mxu0 0.0
      %2073 = vmatmul.mubr.f32.gmra.mxu0 %v1867
      %v2074 = vpop.f32.mrf.mxu0
      %v2075 = vadd.f32 0.0, %v2074
      %v2076 = vpop.f32.mrf.mxu0
      %2077 = vmatprep.mubr.f32.mxu0 0.0
      %2078 = vmatmul.mubr.f32.gmra.mxu0 %v1870
      %v2079 = vpop.f32.mrf.mxu0
      %v2080 = vadd.f32 0.0, %v2079
      %v2081 = vpop.f32.mrf.mxu0
      %2082 = vmatprep.mubr.f32.mxu0 0.0
      %2083 = vmatmul.mubr.f32.gmra.mxu0 %v1873
      %v2084 = vpop.f32.mrf.mxu0
      %v2085 = vadd.f32 0.0, %v2084
      %v2086 = vpop.f32.mrf.mxu0
      %2087 = vmatprep.mubr.f32.mxu0 0.0
      %2088 = vmatmul.mubr.f32.gmra.mxu0 %v1876
      %v2089 = vpop.f32.mrf.mxu0
      %v2090 = vadd.f32 0.0, %v2089
      %v2091 = vpop.f32.mrf.mxu0
      %2092 = vmatprep.mubr.f32.mxu0 0.0
      %2093 = vmatmul.mubr.f32.gmra.mxu0 %v1879
      %v2094 = vpop.f32.mrf.mxu0
      %v2095 = vadd.f32 0.0, %v2094
      %v2096 = vpop.f32.mrf.mxu0
      %2097 = vmatprep.mubr.f32.mxu0 0.0
      %2098 = vmatmul.mubr.f32.gmra.mxu0 %v1882
      %v2099 = vpop.f32.mrf.mxu0
      %v2100 = vadd.f32 0.0, %v2099
      %v2101 = vpop.f32.mrf.mxu0
      %2102 = vmatprep.mubr.f32.mxu0 0.0
      %2103 = vmatmul.mubr.f32.gmra.mxu0 %v1885
      %v2104 = vpop.f32.mrf.mxu0
      %v2105 = vadd.f32 0.0, %v2104
      %v2106 = vpop.f32.mrf.mxu0
      %2107 = vmatprep.mubr.f32.mxu0 0.0
      %2108 = vmatmul.mubr.f32.gmra.mxu0 %v1888
      %v2109 = vpop.f32.mrf.mxu0
      %v2110 = vadd.f32 0.0, %v2109
      %v2111 = vpop.f32.mrf.mxu0
      %2112 = vmatprep.mubr.f32.mxu0 0.0
      %2113 = vmatmul.mubr.f32.gmra.mxu0 %v1891
      %v2114 = vpop.f32.mrf.mxu0
      %v2115 = vadd.f32 0.0, %v2114
      %v2116 = vpop.f32.mrf.mxu0
      %2117 = vmatprep.mubr.f32.mxu0 0.0
      %2118 = vmatmul.mubr.f32.gmra.mxu0 %v1894
      %v2119 = vpop.f32.mrf.mxu0
      %v2120 = vadd.f32 0.0, %v2119
      %v2121 = vpop.f32.mrf.mxu0
      %2122 = vmatprep.mubr.f32.mxu0 0.0
      %2123 = vmatmul.mubr.f32.gmra.mxu0 %v1897
      %v2124 = vpop.f32.mrf.mxu0
      %v2125 = vadd.f32 0.0, %v2124
      %v2126 = vpop.f32.mrf.mxu0
      %2127 = vdwg.mxu0
      %v2128 = vld [vmem:[%s2] sm:$0x3]
      %v2129 = vlaneseq
      %v2130 = vshrl.u32 %v2129, 7
      %v2131 = vsub.s32 0, %v2130
      %v2132 = vrot.slane %v2128, %v2131
      %v2133 = vmul.f32 %v1970, %v2132
      %v2134 = vmul.f32 %v1975, %v2132
      %v2135 = vmul.f32 %v1980, %v2132
      %v2136 = vmul.f32 %v1985, %v2132
      %v2137 = vmul.f32 %v1990, %v2132
      %v2138 = vmul.f32 %v1995, %v2132
      %v2139 = vmul.f32 %v2000, %v2132
      %v2140 = vmul.f32 %v2005, %v2132
      %v2141 = vmul.f32 %v2010, %v2132
      %v2142 = vmul.f32 %v2015, %v2132
      %v2143 = vmul.f32 %v2020, %v2132
      %v2144 = vmul.f32 %v2025, %v2132
      %v2145 = vmul.f32 %v2030, %v2132
      %v2146 = vmul.f32 %v2035, %v2132
      %v2147 = vmul.f32 %v2040, %v2132
      %v2148 = vmul.f32 %v2045, %v2132
      %v2149 = vmul.f32 %v2050, %v2132
      %v2150 = vmul.f32 %v2055, %v2132
      %v2151 = vmul.f32 %v2060, %v2132
      %v2152 = vmul.f32 %v2065, %v2132
      %v2153 = vmul.f32 %v2070, %v2132
      %v2154 = vmul.f32 %v2075, %v2132
      %v2155 = vmul.f32 %v2080, %v2132
      %v2156 = vmul.f32 %v2085, %v2132
      %v2157 = vmul.f32 %v2090, %v2132
      %v2158 = vmul.f32 %v2095, %v2132
      %v2159 = vmul.f32 %v2100, %v2132
      %v2160 = vmul.f32 %v2105, %v2132
      %v2161 = vmul.f32 %v2110, %v2132
      %v2162 = vmul.f32 %v2115, %v2132
      %v2163 = vmul.f32 %v2120, %v2132
      %v2164 = vmul.f32 %v2125, %v2132
      %v2165 = vlaneseq
      %v2166 = vshrl.u32 %v2165, 7
      %v2167 = vsub.s32 1, %v2166
      %v2168 = vrot.slane %v2128, %v2167
      %v2169 = vadd.f32 %v2133, %v2168
      %v2170 = vadd.f32 %v2134, %v2168
      %v2171 = vadd.f32 %v2135, %v2168
      %v2172 = vadd.f32 %v2136, %v2168
      %v2173 = vadd.f32 %v2137, %v2168
      %v2174 = vadd.f32 %v2138, %v2168
      %v2175 = vadd.f32 %v2139, %v2168
      %v2176 = vadd.f32 %v2140, %v2168
      %v2177 = vadd.f32 %v2141, %v2168
      %v2178 = vadd.f32 %v2142, %v2168
      %v2179 = vadd.f32 %v2143, %v2168
      %v2180 = vadd.f32 %v2144, %v2168
      %v2181 = vadd.f32 %v2145, %v2168
      %v2182 = vadd.f32 %v2146, %v2168
      %v2183 = vadd.f32 %v2147, %v2168
      %v2184 = vadd.f32 %v2148, %v2168
      %v2185 = vadd.f32 %v2149, %v2168
      %v2186 = vadd.f32 %v2150, %v2168
      %v2187 = vadd.f32 %v2151, %v2168
      %v2188 = vadd.f32 %v2152, %v2168
      %v2189 = vadd.f32 %v2153, %v2168
      %v2190 = vadd.f32 %v2154, %v2168
      %v2191 = vadd.f32 %v2155, %v2168
      %v2192 = vadd.f32 %v2156, %v2168
      %v2193 = vadd.f32 %v2157, %v2168
      %v2194 = vadd.f32 %v2158, %v2168
      %v2195 = vadd.f32 %v2159, %v2168
      %v2196 = vadd.f32 %v2160, %v2168
      %v2197 = vadd.f32 %v2161, %v2168
      %v2198 = vadd.f32 %v2162, %v2168
      %v2199 = vadd.f32 %v2163, %v2168
      %v2200 = vadd.f32 %v2164, %v2168
      %v2201 = vmax.f32 %v2169, 0.0
      %v2202 = vmax.f32 %v2170, 0.0
      %v2203 = vmax.f32 %v2171, 0.0
      %v2204 = vmax.f32 %v2172, 0.0
      %v2205 = vmax.f32 %v2173, 0.0
      %v2206 = vmax.f32 %v2174, 0.0
      %v2207 = vmax.f32 %v2175, 0.0
      %v2208 = vmax.f32 %v2176, 0.0
      %v2209 = vmax.f32 %v2177, 0.0
      %v2210 = vmax.f32 %v2178, 0.0
      %v2211 = vmax.f32 %v2179, 0.0
      %v2212 = vmax.f32 %v2180, 0.0
      %v2213 = vmax.f32 %v2181, 0.0
      %v2214 = vmax.f32 %v2182, 0.0
      %v2215 = vmax.f32 %v2183, 0.0
      %v2216 = vmax.f32 %v2184, 0.0
      %v2217 = vmax.f32 %v2185, 0.0
      %v2218 = vmax.f32 %v2186, 0.0
      %v2219 = vmax.f32 %v2187, 0.0
      %v2220 = vmax.f32 %v2188, 0.0
      %v2221 = vmax.f32 %v2189, 0.0
      %v2222 = vmax.f32 %v2190, 0.0
      %v2223 = vmax.f32 %v2191, 0.0
      %v2224 = vmax.f32 %v2192, 0.0
      %v2225 = vmax.f32 %v2193, 0.0
      %v2226 = vmax.f32 %v2194, 0.0
      %v2227 = vmax.f32 %v2195, 0.0
      %v2228 = vmax.f32 %v2196, 0.0
      %v2229 = vmax.f32 %v2197, 0.0
      %v2230 = vmax.f32 %v2198, 0.0
      %v2231 = vmax.f32 %v2199, 0.0
      %v2232 = vmax.f32 %v2200, 0.0
      %2233 = vst.msk [vmem:[#allocation2] sm:$0xff] %vm1538, %v2201
      %2234 = vst.msk [vmem:[#allocation2 + $0x8] sm:$0xff] %vm1538, %v2202
      %2235 = vst.msk [vmem:[#allocation2 + $0x10] sm:$0xff] %vm1538, %v2203
      %2236 = vst.msk [vmem:[#allocation2 + $0x18] sm:$0xff] %vm1538, %v2204
      %2237 = vst.msk [vmem:[#allocation2 + $0x20] sm:$0xff] %vm1538, %v2205
      %2238 = vst.msk [vmem:[#allocation2 + $0x28] sm:$0xff] %vm1538, %v2206
      %2239 = vst.msk [vmem:[#allocation2 + $0x30] sm:$0xff] %vm1538, %v2207
      %2240 = vst.msk [vmem:[#allocation2 + $0x38] sm:$0xff] %vm1538, %v2208
      %2241 = vst.msk [vmem:[#allocation2 + $0x40] sm:$0xff] %vm1538, %v2209
      %2242 = vst.msk [vmem:[#allocation2 + $0x48] sm:$0xff] %vm1538, %v2210
      %2243 = vst.msk [vmem:[#allocation2 + $0x50] sm:$0xff] %vm1538, %v2211
      %2244 = vst.msk [vmem:[#allocation2 + $0x58] sm:$0xff] %vm1538, %v2212
      %2245 = vst.msk [vmem:[#allocation2 + $0x60] sm:$0xff] %vm1538, %v2213
      %2246 = vst.msk [vmem:[#allocation2 + $0x68] sm:$0xff] %vm1538, %v2214
      %2247 = vst.msk [vmem:[#allocation2 + $0x70] sm:$0xff] %vm1538, %v2215
      %2248 = vst.msk [vmem:[#allocation2 + $0x78] sm:$0xff] %vm1538, %v2216
      %2249 = vst.msk [vmem:[#allocation2 + $0x80] sm:$0xff] %vm1538, %v2217
      %2250 = vst.msk [vmem:[#allocation2 + $0x88] sm:$0xff] %vm1538, %v2218
      %2251 = vst.msk [vmem:[#allocation2 + $0x90] sm:$0xff] %vm1538, %v2219
      %2252 = vst.msk [vmem:[#allocation2 + $0x98] sm:$0xff] %vm1538, %v2220
      %2253 = vst.msk [vmem:[#allocation2 + $0xa0] sm:$0xff] %vm1538, %v2221
      %2254 = vst.msk [vmem:[#allocation2 + $0xa8] sm:$0xff] %vm1538, %v2222
      %2255 = vst.msk [vmem:[#allocation2 + $0xb0] sm:$0xff] %vm1538, %v2223
      %2256 = vst.msk [vmem:[#allocation2 + $0xb8] sm:$0xff] %vm1538, %v2224
      %2257 = vst.msk [vmem:[#allocation2 + $0xc0] sm:$0xff] %vm1538, %v2225
      %2258 = vst.msk [vmem:[#allocation2 + $0xc8] sm:$0xff] %vm1538, %v2226
      %2259 = vst.msk [vmem:[#allocation2 + $0xd0] sm:$0xff] %vm1538, %v2227
      %2260 = vst.msk [vmem:[#allocation2 + $0xd8] sm:$0xff] %vm1538, %v2228
      %2261 = vst.msk [vmem:[#allocation2 + $0xe0] sm:$0xff] %vm1538, %v2229
      %2262 = vst.msk [vmem:[#allocation2 + $0xe8] sm:$0xff] %vm1538, %v2230
      %2263 = vst.msk [vmem:[#allocation2 + $0xf0] sm:$0xff] %vm1538, %v2231
      %2264 = vst.msk [vmem:[#allocation2 + $0xf8] sm:$0xff] %vm1538, %v2232
      %v2265 = vld [vmem:[#allocation2] sm:$0xff]
      %v2266 = vld [vmem:[#allocation2 + $0x8] sm:$0xff]
      %v2267 = vld [vmem:[#allocation2 + $0x10] sm:$0xff]
      %v2268 = vld [vmem:[#allocation2 + $0x18] sm:$0xff]
      %v2269 = vld [vmem:[#allocation2 + $0x20] sm:$0xff]
      %v2270 = vld [vmem:[#allocation2 + $0x28] sm:$0xff]
      %v2271 = vld [vmem:[#allocation2 + $0x30] sm:$0xff]
      %v2272 = vld [vmem:[#allocation2 + $0x38] sm:$0xff]
      %v2273 = vld [vmem:[#allocation2 + $0x40] sm:$0xff]
      %v2274 = vld [vmem:[#allocation2 + $0x48] sm:$0xff]
      %v2275 = vld [vmem:[#allocation2 + $0x50] sm:$0xff]
      %v2276 = vld [vmem:[#allocation2 + $0x58] sm:$0xff]
      %v2277 = vld [vmem:[#allocation2 + $0x60] sm:$0xff]
      %v2278 = vld [vmem:[#allocation2 + $0x68] sm:$0xff]
      %v2279 = vld [vmem:[#allocation2 + $0x70] sm:$0xff]
      %v2280 = vld [vmem:[#allocation2 + $0x78] sm:$0xff]
      %v2281 = vld [vmem:[#allocation2 + $0x80] sm:$0xff]
      %v2282 = vld [vmem:[#allocation2 + $0x88] sm:$0xff]
      %v2283 = vld [vmem:[#allocation2 + $0x90] sm:$0xff]
      %v2284 = vld [vmem:[#allocation2 + $0x98] sm:$0xff]
      %v2285 = vld [vmem:[#allocation2 + $0xa0] sm:$0xff]
      %v2286 = vld [vmem:[#allocation2 + $0xa8] sm:$0xff]
      %v2287 = vld [vmem:[#allocation2 + $0xb0] sm:$0xff]
      %v2288 = vld [vmem:[#allocation2 + $0xb8] sm:$0xff]
      %v2289 = vld [vmem:[#allocation2 + $0xc0] sm:$0xff]
      %v2290 = vld [vmem:[#allocation2 + $0xc8] sm:$0xff]
      %v2291 = vld [vmem:[#allocation2 + $0xd0] sm:$0xff]
      %v2292 = vld [vmem:[#allocation2 + $0xd8] sm:$0xff]
      %v2293 = vld [vmem:[#allocation2 + $0xe0] sm:$0xff]
      %v2294 = vld [vmem:[#allocation2 + $0xe8] sm:$0xff]
      %v2295 = vld [vmem:[#allocation2 + $0xf0] sm:$0xff]
      %v2296 = vld [vmem:[#allocation2 + $0xf8] sm:$0xff]
      %v2297 = vld [vmem:[%s3] sm:$0xff]
      %v2298 = vld [vmem:[%s3 + $0x8] sm:$0xff]
      %v2299 = vld [vmem:[%s3 + $0x10] sm:$0xff]
      %v2300 = vld [vmem:[%s3 + $0x18] sm:$0xff]
      %v2301 = vld [vmem:[%s3 + $0x20] sm:$0xf]
      %v2334 = vrot.slane %v2265, 7
      %v2335 = vrot.slane %v2266, 7
      %v2336 = vsel %vm430, %v2334, %v2335
      %v2337 = vrot.slane %v2267, 7
      %v2338 = vrot.slane %v2268, 7
      %v2339 = vsel %vm430, %v2337, %v2338
      %v2340 = vrot.slane %v2269, 7
      %v2341 = vrot.slane %v2270, 7
      %v2342 = vsel %vm430, %v2340, %v2341
      %v2343 = vrot.slane %v2271, 7
      %v2344 = vrot.slane %v2272, 7
      %v2345 = vsel %vm430, %v2343, %v2344
      %v2346 = vrot.slane %v2273, 7
      %v2347 = vrot.slane %v2274, 7
      %v2348 = vsel %vm430, %v2346, %v2347
      %v2349 = vrot.slane %v2275, 7
      %v2350 = vrot.slane %v2276, 7
      %v2351 = vsel %vm430, %v2349, %v2350
      %v2352 = vrot.slane %v2277, 7
      %v2353 = vrot.slane %v2278, 7
      %v2354 = vsel %vm430, %v2352, %v2353
      %v2355 = vrot.slane %v2279, 7
      %v2356 = vrot.slane %v2280, 7
      %v2357 = vsel %vm430, %v2355, %v2356
      %v2358 = vrot.slane %v2281, 7
      %v2359 = vrot.slane %v2282, 7
      %v2360 = vsel %vm430, %v2358, %v2359
      %v2361 = vrot.slane %v2283, 7
      %v2362 = vrot.slane %v2284, 7
      %v2363 = vsel %vm430, %v2361, %v2362
      %v2364 = vrot.slane %v2285, 7
      %v2365 = vrot.slane %v2286, 7
      %v2366 = vsel %vm430, %v2364, %v2365
      %v2367 = vrot.slane %v2287, 7
      %v2368 = vrot.slane %v2288, 7
      %v2369 = vsel %vm430, %v2367, %v2368
      %v2370 = vrot.slane %v2289, 7
      %v2371 = vrot.slane %v2290, 7
      %v2372 = vsel %vm430, %v2370, %v2371
      %v2373 = vrot.slane %v2291, 7
      %v2374 = vrot.slane %v2292, 7
      %v2375 = vsel %vm430, %v2373, %v2374
      %v2376 = vrot.slane %v2293, 7
      %v2377 = vrot.slane %v2294, 7
      %v2378 = vsel %vm430, %v2376, %v2377
      %v2379 = vrot.slane %v2295, 7
      %v2380 = vrot.slane %v2296, 7
      %v2381 = vsel %vm430, %v2379, %v2380
      %v2429 = vsel %vm430, 0.0, %v2334
      %v2430 = vsel %vm430, 0.0, %v2337
      %v2431 = vsel %vm430, 0.0, %v2340
      %v2432 = vsel %vm430, 0.0, %v2343
      %v2433 = vsel %vm430, 0.0, %v2346
      %v2434 = vsel %vm430, 0.0, %v2349
      %v2435 = vsel %vm430, 0.0, %v2352
      %v2436 = vsel %vm430, 0.0, %v2355
      %v2437 = vsel %vm430, 0.0, %v2358
      %v2438 = vsel %vm430, 0.0, %v2361
      %v2439 = vsel %vm430, 0.0, %v2364
      %v2440 = vsel %vm430, 0.0, %v2367
      %v2441 = vsel %vm430, 0.0, %v2370
      %v2442 = vsel %vm430, 0.0, %v2373
      %v2443 = vsel %vm430, 0.0, %v2376
      %v2444 = vsel %vm430, 0.0, %v2379
      %v2445 = vsel %vm430, %v2335, 0.0
      %v2446 = vsel %vm430, %v2338, 0.0
      %v2447 = vsel %vm430, %v2341, 0.0
      %v2448 = vsel %vm430, %v2344, 0.0
      %v2449 = vsel %vm430, %v2347, 0.0
      %v2450 = vsel %vm430, %v2350, 0.0
      %v2451 = vsel %vm430, %v2353, 0.0
      %v2452 = vsel %vm430, %v2356, 0.0
      %v2453 = vsel %vm430, %v2359, 0.0
      %v2454 = vsel %vm430, %v2362, 0.0
      %v2455 = vsel %vm430, %v2365, 0.0
      %v2456 = vsel %vm430, %v2368, 0.0
      %v2457 = vsel %vm430, %v2371, 0.0
      %v2458 = vsel %vm430, %v2374, 0.0
      %v2459 = vsel %vm430, %v2377, 0.0
      %v2460 = vsel %vm430, %v2380, 0.0
      %v2491 = vrot.slane %v2429, 1
      %v2492 = vrot.slane %v2336, 1
      %v2493 = vsel %vm596, %v2491, %v2492
      %v2494 = vrot.slane %v2445, 1
      %v2495 = vsel %vm596, %v2492, %v2494
      %v2496 = vrot.slane %v2430, 1
      %v2497 = vrot.slane %v2339, 1
      %v2498 = vsel %vm596, %v2496, %v2497
      %v2499 = vrot.slane %v2446, 1
      %v2500 = vsel %vm596, %v2497, %v2499
      %v2501 = vrot.slane %v2431, 1
      %v2502 = vrot.slane %v2342, 1
      %v2503 = vsel %vm596, %v2501, %v2502
      %v2504 = vrot.slane %v2447, 1
      %v2505 = vsel %vm596, %v2502, %v2504
      %v2506 = vrot.slane %v2432, 1
      %v2507 = vrot.slane %v2345, 1
      %v2508 = vsel %vm596, %v2506, %v2507
      %v2509 = vrot.slane %v2448, 1
      %v2510 = vsel %vm596, %v2507, %v2509
      %v2511 = vrot.slane %v2433, 1
      %v2512 = vrot.slane %v2348, 1
      %v2513 = vsel %vm596, %v2511, %v2512
      %v2514 = vrot.slane %v2449, 1
      %v2515 = vsel %vm596, %v2512, %v2514
      %v2516 = vrot.slane %v2434, 1
      %v2517 = vrot.slane %v2351, 1
      %v2518 = vsel %vm596, %v2516, %v2517
      %v2519 = vrot.slane %v2450, 1
      %v2520 = vsel %vm596, %v2517, %v2519
      %v2521 = vrot.slane %v2435, 1
      %v2522 = vrot.slane %v2354, 1
      %v2523 = vsel %vm596, %v2521, %v2522
      %v2524 = vrot.slane %v2451, 1
      %v2525 = vsel %vm596, %v2522, %v2524
      %v2526 = vrot.slane %v2436, 1
      %v2527 = vrot.slane %v2357, 1
      %v2528 = vsel %vm596, %v2526, %v2527
      %v2529 = vrot.slane %v2452, 1
      %v2530 = vsel %vm596, %v2527, %v2529
      %v2531 = vrot.slane %v2437, 1
      %v2532 = vrot.slane %v2360, 1
      %v2533 = vsel %vm596, %v2531, %v2532
      %v2534 = vrot.slane %v2453, 1
      %v2535 = vsel %vm596, %v2532, %v2534
      %v2536 = vrot.slane %v2438, 1
      %v2537 = vrot.slane %v2363, 1
      %v2538 = vsel %vm596, %v2536, %v2537
      %v2539 = vrot.slane %v2454, 1
      %v2540 = vsel %vm596, %v2537, %v2539
      %v2541 = vrot.slane %v2439, 1
      %v2542 = vrot.slane %v2366, 1
      %v2543 = vsel %vm596, %v2541, %v2542
      %v2544 = vrot.slane %v2455, 1
      %v2545 = vsel %vm596, %v2542, %v2544
      %v2546 = vrot.slane %v2440, 1
      %v2547 = vrot.slane %v2369, 1
      %v2548 = vsel %vm596, %v2546, %v2547
      %v2549 = vrot.slane %v2456, 1
      %v2550 = vsel %vm596, %v2547, %v2549
      %v2551 = vrot.slane %v2441, 1
      %v2552 = vrot.slane %v2372, 1
      %v2553 = vsel %vm596, %v2551, %v2552
      %v2554 = vrot.slane %v2457, 1
      %v2555 = vsel %vm596, %v2552, %v2554
      %v2556 = vrot.slane %v2442, 1
      %v2557 = vrot.slane %v2375, 1
      %v2558 = vsel %vm596, %v2556, %v2557
      %v2559 = vrot.slane %v2458, 1
      %v2560 = vsel %vm596, %v2557, %v2559
      %v2561 = vrot.slane %v2443, 1
      %v2562 = vrot.slane %v2378, 1
      %v2563 = vsel %vm596, %v2561, %v2562
      %v2564 = vrot.slane %v2459, 1
      %v2565 = vsel %vm596, %v2562, %v2564
      %2566 = vrot.lane.b32.xlu0 %v2493, 4
      %v2567 = vpop.permute.xlu0 %2566
      %2568 = vrot.lane.b32.xlu0 %v2495, 4
      %v2569 = vpop.permute.xlu0 %2568
      %2570 = vrot.lane.b32.xlu0 %v2498, 4
      %v2571 = vpop.permute.xlu0 %2570
      %2572 = vrot.lane.b32.xlu0 %v2500, 4
      %v2573 = vpop.permute.xlu0 %2572
      %2574 = vrot.lane.b32.xlu0 %v2503, 4
      %v2575 = vpop.permute.xlu0 %2574
      %2576 = vrot.lane.b32.xlu0 %v2505, 4
      %v2577 = vpop.permute.xlu0 %2576
      %2578 = vrot.lane.b32.xlu0 %v2508, 4
      %v2579 = vpop.permute.xlu0 %2578
      %2580 = vrot.lane.b32.xlu0 %v2510, 4
      %v2581 = vpop.permute.xlu0 %2580
      %2582 = vrot.lane.b32.xlu0 %v2513, 4
      %v2583 = vpop.permute.xlu0 %2582
      %2584 = vrot.lane.b32.xlu0 %v2515, 4
      %v2585 = vpop.permute.xlu0 %2584
      %2586 = vrot.lane.b32.xlu0 %v2518, 4
      %v2587 = vpop.permute.xlu0 %2586
      %2588 = vrot.lane.b32.xlu0 %v2520, 4
      %v2589 = vpop.permute.xlu0 %2588
      %2590 = vrot.lane.b32.xlu0 %v2523, 4
      %v2591 = vpop.permute.xlu0 %2590
      %2592 = vrot.lane.b32.xlu0 %v2525, 4
      %v2593 = vpop.permute.xlu0 %2592
      %2594 = vrot.lane.b32.xlu0 %v2528, 4
      %v2595 = vpop.permute.xlu0 %2594
      %2596 = vrot.lane.b32.xlu0 %v2530, 4
      %v2597 = vpop.permute.xlu0 %2596
      %2598 = vrot.lane.b32.xlu0 %v2533, 4
      %v2599 = vpop.permute.xlu0 %2598
      %2600 = vrot.lane.b32.xlu0 %v2535, 4
      %v2601 = vpop.permute.xlu0 %2600
      %2602 = vrot.lane.b32.xlu0 %v2538, 4
      %v2603 = vpop.permute.xlu0 %2602
      %2604 = vrot.lane.b32.xlu0 %v2540, 4
      %v2605 = vpop.permute.xlu0 %2604
      %2606 = vrot.lane.b32.xlu0 %v2543, 4
      %v2607 = vpop.permute.xlu0 %2606
      %2608 = vrot.lane.b32.xlu0 %v2545, 4
      %v2609 = vpop.permute.xlu0 %2608
      %2610 = vrot.lane.b32.xlu0 %v2548, 4
      %v2611 = vpop.permute.xlu0 %2610
      %2612 = vrot.lane.b32.xlu0 %v2550, 4
      %v2613 = vpop.permute.xlu0 %2612
      %2614 = vrot.lane.b32.xlu0 %v2553, 4
      %v2615 = vpop.permute.xlu0 %2614
      %2616 = vrot.lane.b32.xlu0 %v2555, 4
      %v2617 = vpop.permute.xlu0 %2616
      %2618 = vrot.lane.b32.xlu0 %v2558, 4
      %v2619 = vpop.permute.xlu0 %2618
      %2620 = vrot.lane.b32.xlu0 %v2560, 4
      %v2621 = vpop.permute.xlu0 %2620
      %2622 = vrot.lane.b32.xlu0 %v2563, 4
      %v2623 = vpop.permute.xlu0 %2622
      %2624 = vrot.lane.b32.xlu0 %v2565, 4
      %v2625 = vpop.permute.xlu0 %2624
      %v2656 = vrot.slane %v2429, 2
      %v2657 = vrot.slane %v2336, 2
      %v2658 = vsel %vm773, %v2656, %v2657
      %v2659 = vrot.slane %v2445, 2
      %v2660 = vsel %vm773, %v2657, %v2659
      %v2661 = vrot.slane %v2430, 2
      %v2662 = vrot.slane %v2339, 2
      %v2663 = vsel %vm773, %v2661, %v2662
      %v2664 = vrot.slane %v2446, 2
      %v2665 = vsel %vm773, %v2662, %v2664
      %v2666 = vrot.slane %v2431, 2
      %v2667 = vrot.slane %v2342, 2
      %v2668 = vsel %vm773, %v2666, %v2667
      %v2669 = vrot.slane %v2447, 2
      %v2670 = vsel %vm773, %v2667, %v2669
      %v2671 = vrot.slane %v2432, 2
      %v2672 = vrot.slane %v2345, 2
      %v2673 = vsel %vm773, %v2671, %v2672
      %v2674 = vrot.slane %v2448, 2
      %v2675 = vsel %vm773, %v2672, %v2674
      %v2676 = vrot.slane %v2433, 2
      %v2677 = vrot.slane %v2348, 2
      %v2678 = vsel %vm773, %v2676, %v2677
      %v2679 = vrot.slane %v2449, 2
      %v2680 = vsel %vm773, %v2677, %v2679
      %v2681 = vrot.slane %v2434, 2
      %v2682 = vrot.slane %v2351, 2
      %v2683 = vsel %vm773, %v2681, %v2682
      %v2684 = vrot.slane %v2450, 2
      %v2685 = vsel %vm773, %v2682, %v2684
      %v2686 = vrot.slane %v2435, 2
      %v2687 = vrot.slane %v2354, 2
      %v2688 = vsel %vm773, %v2686, %v2687
      %v2689 = vrot.slane %v2451, 2
      %v2690 = vsel %vm773, %v2687, %v2689
      %v2691 = vrot.slane %v2436, 2
      %v2692 = vrot.slane %v2357, 2
      %v2693 = vsel %vm773, %v2691, %v2692
      %v2694 = vrot.slane %v2452, 2
      %v2695 = vsel %vm773, %v2692, %v2694
      %v2696 = vrot.slane %v2437, 2
      %v2697 = vrot.slane %v2360, 2
      %v2698 = vsel %vm773, %v2696, %v2697
      %v2699 = vrot.slane %v2453, 2
      %v2700 = vsel %vm773, %v2697, %v2699
      %v2701 = vrot.slane %v2438, 2
      %v2702 = vrot.slane %v2363, 2
      %v2703 = vsel %vm773, %v2701, %v2702
      %v2704 = vrot.slane %v2454, 2
      %v2705 = vsel %vm773, %v2702, %v2704
      %v2706 = vrot.slane %v2439, 2
      %v2707 = vrot.slane %v2366, 2
      %v2708 = vsel %vm773, %v2706, %v2707
      %v2709 = vrot.slane %v2455, 2
      %v2710 = vsel %vm773, %v2707, %v2709
      %v2711 = vrot.slane %v2440, 2
      %v2712 = vrot.slane %v2369, 2
      %v2713 = vsel %vm773, %v2711, %v2712
      %v2714 = vrot.slane %v2456, 2
      %v2715 = vsel %vm773, %v2712, %v2714
      %v2716 = vrot.slane %v2441, 2
      %v2717 = vrot.slane %v2372, 2
      %v2718 = vsel %vm773, %v2716, %v2717
      %v2719 = vrot.slane %v2457, 2
      %v2720 = vsel %vm773, %v2717, %v2719
      %v2721 = vrot.slane %v2442, 2
      %v2722 = vrot.slane %v2375, 2
      %v2723 = vsel %vm773, %v2721, %v2722
      %v2724 = vrot.slane %v2458, 2
      %v2725 = vsel %vm773, %v2722, %v2724
      %v2726 = vrot.slane %v2443, 2
      %v2727 = vrot.slane %v2378, 2
      %v2728 = vsel %vm773, %v2726, %v2727
      %v2729 = vrot.slane %v2459, 2
      %v2730 = vsel %vm773, %v2727, %v2729
      %2731 = vrot.lane.b32.xlu0 %v2658, 8
      %v2732 = vpop.permute.xlu0 %2731
      %2733 = vrot.lane.b32.xlu0 %v2660, 8
      %v2734 = vpop.permute.xlu0 %2733
      %2735 = vrot.lane.b32.xlu0 %v2663, 8
      %v2736 = vpop.permute.xlu0 %2735
      %2737 = vrot.lane.b32.xlu0 %v2665, 8
      %v2738 = vpop.permute.xlu0 %2737
      %2739 = vrot.lane.b32.xlu0 %v2668, 8
      %v2740 = vpop.permute.xlu0 %2739
      %2741 = vrot.lane.b32.xlu0 %v2670, 8
      %v2742 = vpop.permute.xlu0 %2741
      %2743 = vrot.lane.b32.xlu0 %v2673, 8
      %v2744 = vpop.permute.xlu0 %2743
      %2745 = vrot.lane.b32.xlu0 %v2675, 8
      %v2746 = vpop.permute.xlu0 %2745
      %2747 = vrot.lane.b32.xlu0 %v2678, 8
      %v2748 = vpop.permute.xlu0 %2747
      %2749 = vrot.lane.b32.xlu0 %v2680, 8
      %v2750 = vpop.permute.xlu0 %2749
      %2751 = vrot.lane.b32.xlu0 %v2683, 8
      %v2752 = vpop.permute.xlu0 %2751
      %2753 = vrot.lane.b32.xlu0 %v2685, 8
      %v2754 = vpop.permute.xlu0 %2753
      %2755 = vrot.lane.b32.xlu0 %v2688, 8
      %v2756 = vpop.permute.xlu0 %2755
      %2757 = vrot.lane.b32.xlu0 %v2690, 8
      %v2758 = vpop.permute.xlu0 %2757
      %2759 = vrot.lane.b32.xlu0 %v2693, 8
      %v2760 = vpop.permute.xlu0 %2759
      %2761 = vrot.lane.b32.xlu0 %v2695, 8
      %v2762 = vpop.permute.xlu0 %2761
      %2763 = vrot.lane.b32.xlu0 %v2698, 8
      %v2764 = vpop.permute.xlu0 %2763
      %2765 = vrot.lane.b32.xlu0 %v2700, 8
      %v2766 = vpop.permute.xlu0 %2765
      %2767 = vrot.lane.b32.xlu0 %v2703, 8
      %v2768 = vpop.permute.xlu0 %2767
      %2769 = vrot.lane.b32.xlu0 %v2705, 8
      %v2770 = vpop.permute.xlu0 %2769
      %2771 = vrot.lane.b32.xlu0 %v2708, 8
      %v2772 = vpop.permute.xlu0 %2771
      %2773 = vrot.lane.b32.xlu0 %v2710, 8
      %v2774 = vpop.permute.xlu0 %2773
      %2775 = vrot.lane.b32.xlu0 %v2713, 8
      %v2776 = vpop.permute.xlu0 %2775
      %2777 = vrot.lane.b32.xlu0 %v2715, 8
      %v2778 = vpop.permute.xlu0 %2777
      %2779 = vrot.lane.b32.xlu0 %v2718, 8
      %v2780 = vpop.permute.xlu0 %2779
      %2781 = vrot.lane.b32.xlu0 %v2720, 8
      %v2782 = vpop.permute.xlu0 %2781
      %2783 = vrot.lane.b32.xlu0 %v2723, 8
      %v2784 = vpop.permute.xlu0 %2783
      %2785 = vrot.lane.b32.xlu0 %v2725, 8
      %v2786 = vpop.permute.xlu0 %2785
      %2787 = vrot.lane.b32.xlu0 %v2728, 8
      %v2788 = vpop.permute.xlu0 %2787
      %2789 = vrot.lane.b32.xlu0 %v2730, 8
      %v2790 = vpop.permute.xlu0 %2789
      %2822 = vrot.lane.b32.xlu0 %v2429, 12
      %v2823 = vpop.permute.xlu0 %2822
      %2824 = vrot.lane.b32.xlu0 %v2336, 12
      %v2825 = vpop.permute.xlu0 %2824
      %2826 = vrot.lane.b32.xlu0 %v2430, 12
      %v2827 = vpop.permute.xlu0 %2826
      %2828 = vrot.lane.b32.xlu0 %v2339, 12
      %v2829 = vpop.permute.xlu0 %2828
      %2830 = vrot.lane.b32.xlu0 %v2431, 12
      %v2831 = vpop.permute.xlu0 %2830
      %2832 = vrot.lane.b32.xlu0 %v2342, 12
      %v2833 = vpop.permute.xlu0 %2832
      %2834 = vrot.lane.b32.xlu0 %v2432, 12
      %v2835 = vpop.permute.xlu0 %2834
      %2836 = vrot.lane.b32.xlu0 %v2345, 12
      %v2837 = vpop.permute.xlu0 %2836
      %2838 = vrot.lane.b32.xlu0 %v2433, 12
      %v2839 = vpop.permute.xlu0 %2838
      %2840 = vrot.lane.b32.xlu0 %v2348, 12
      %v2841 = vpop.permute.xlu0 %2840
      %2842 = vrot.lane.b32.xlu0 %v2434, 12
      %v2843 = vpop.permute.xlu0 %2842
      %2844 = vrot.lane.b32.xlu0 %v2351, 12
      %v2845 = vpop.permute.xlu0 %2844
      %2846 = vrot.lane.b32.xlu0 %v2435, 12
      %v2847 = vpop.permute.xlu0 %2846
      %2848 = vrot.lane.b32.xlu0 %v2354, 12
      %v2849 = vpop.permute.xlu0 %2848
      %2850 = vrot.lane.b32.xlu0 %v2436, 12
      %v2851 = vpop.permute.xlu0 %2850
      %2852 = vrot.lane.b32.xlu0 %v2357, 12
      %v2853 = vpop.permute.xlu0 %2852
      %2854 = vrot.lane.b32.xlu0 %v2437, 12
      %v2855 = vpop.permute.xlu0 %2854
      %2856 = vrot.lane.b32.xlu0 %v2360, 12
      %v2857 = vpop.permute.xlu0 %2856
      %2858 = vrot.lane.b32.xlu0 %v2438, 12
      %v2859 = vpop.permute.xlu0 %2858
      %2860 = vrot.lane.b32.xlu0 %v2363, 12
      %v2861 = vpop.permute.xlu0 %2860
      %2862 = vrot.lane.b32.xlu0 %v2439, 12
      %v2863 = vpop.permute.xlu0 %2862
      %2864 = vrot.lane.b32.xlu0 %v2366, 12
      %v2865 = vpop.permute.xlu0 %2864
      %2866 = vrot.lane.b32.xlu0 %v2440, 12
      %v2867 = vpop.permute.xlu0 %2866
      %2868 = vrot.lane.b32.xlu0 %v2369, 12
      %v2869 = vpop.permute.xlu0 %2868
      %2870 = vrot.lane.b32.xlu0 %v2441, 12
      %v2871 = vpop.permute.xlu0 %2870
      %2872 = vrot.lane.b32.xlu0 %v2372, 12
      %v2873 = vpop.permute.xlu0 %2872
      %2874 = vrot.lane.b32.xlu0 %v2442, 12
      %v2875 = vpop.permute.xlu0 %2874
      %2876 = vrot.lane.b32.xlu0 %v2375, 12
      %v2877 = vpop.permute.xlu0 %2876
      %2878 = vrot.lane.b32.xlu0 %v2443, 12
      %v2879 = vpop.permute.xlu0 %2878
      %2880 = vrot.lane.b32.xlu0 %v2378, 12
      %v2881 = vpop.permute.xlu0 %2880
      %2882 = vrot.lane.b32.xlu0 %v2444, 12
      %v2883 = vpop.permute.xlu0 %2882
      %2884 = vrot.lane.b32.xlu0 %v2381, 12
      %v2885 = vpop.permute.xlu0 %2884
      %v2919 = vrot.slane %v2444, 1
      %v2920 = vrot.slane %v2381, 1
      %v2921 = vsel %vm596, %v2919, %v2920
      %v2922 = vrot.slane %v2460, 1
      %v2923 = vsel %vm596, %v2920, %v2922
      %2924 = vrot.lane.b32.xlu0 %v2493, 16
      %v2925 = vpop.permute.xlu0 %2924
      %2926 = vrot.lane.b32.xlu0 %v2495, 16
      %v2927 = vpop.permute.xlu0 %2926
      %2928 = vrot.lane.b32.xlu0 %v2498, 16
      %v2929 = vpop.permute.xlu0 %2928
      %2930 = vrot.lane.b32.xlu0 %v2500, 16
      %v2931 = vpop.permute.xlu0 %2930
      %2932 = vrot.lane.b32.xlu0 %v2503, 16
      %v2933 = vpop.permute.xlu0 %2932
      %2934 = vrot.lane.b32.xlu0 %v2505, 16
      %v2935 = vpop.permute.xlu0 %2934
      %2936 = vrot.lane.b32.xlu0 %v2508, 16
      %v2937 = vpop.permute.xlu0 %2936
      %2938 = vrot.lane.b32.xlu0 %v2510, 16
      %v2939 = vpop.permute.xlu0 %2938
      %2940 = vrot.lane.b32.xlu0 %v2513, 16
      %v2941 = vpop.permute.xlu0 %2940
      %2942 = vrot.lane.b32.xlu0 %v2515, 16
      %v2943 = vpop.permute.xlu0 %2942
      %2944 = vrot.lane.b32.xlu0 %v2518, 16
      %v2945 = vpop.permute.xlu0 %2944
      %2946 = vrot.lane.b32.xlu0 %v2520, 16
      %v2947 = vpop.permute.xlu0 %2946
      %2948 = vrot.lane.b32.xlu0 %v2523, 16
      %v2949 = vpop.permute.xlu0 %2948
      %2950 = vrot.lane.b32.xlu0 %v2525, 16
      %v2951 = vpop.permute.xlu0 %2950
      %2952 = vrot.lane.b32.xlu0 %v2528, 16
      %v2953 = vpop.permute.xlu0 %2952
      %2954 = vrot.lane.b32.xlu0 %v2530, 16
      %v2955 = vpop.permute.xlu0 %2954
      %2956 = vrot.lane.b32.xlu0 %v2533, 16
      %v2957 = vpop.permute.xlu0 %2956
      %2958 = vrot.lane.b32.xlu0 %v2535, 16
      %v2959 = vpop.permute.xlu0 %2958
      %2960 = vrot.lane.b32.xlu0 %v2538, 16
      %v2961 = vpop.permute.xlu0 %2960
      %2962 = vrot.lane.b32.xlu0 %v2540, 16
      %v2963 = vpop.permute.xlu0 %2962
      %2964 = vrot.lane.b32.xlu0 %v2543, 16
      %v2965 = vpop.permute.xlu0 %2964
      %2966 = vrot.lane.b32.xlu0 %v2545, 16
      %v2967 = vpop.permute.xlu0 %2966
      %2968 = vrot.lane.b32.xlu0 %v2548, 16
      %v2969 = vpop.permute.xlu0 %2968
      %2970 = vrot.lane.b32.xlu0 %v2550, 16
      %v2971 = vpop.permute.xlu0 %2970
      %2972 = vrot.lane.b32.xlu0 %v2553, 16
      %v2973 = vpop.permute.xlu0 %2972
      %2974 = vrot.lane.b32.xlu0 %v2555, 16
      %v2975 = vpop.permute.xlu0 %2974
      %2976 = vrot.lane.b32.xlu0 %v2558, 16
      %v2977 = vpop.permute.xlu0 %2976
      %2978 = vrot.lane.b32.xlu0 %v2560, 16
      %v2979 = vpop.permute.xlu0 %2978
      %2980 = vrot.lane.b32.xlu0 %v2563, 16
      %v2981 = vpop.permute.xlu0 %2980
      %2982 = vrot.lane.b32.xlu0 %v2565, 16
      %v2983 = vpop.permute.xlu0 %2982
      %2984 = vrot.lane.b32.xlu0 %v2921, 16
      %v2985 = vpop.permute.xlu0 %2984
      %2986 = vrot.lane.b32.xlu0 %v2923, 16
      %v2987 = vpop.permute.xlu0 %2986
      %v3020 = vrot.slane %v2444, 2
      %v3021 = vrot.slane %v2381, 2
      %v3022 = vsel %vm773, %v3020, %v3021
      %v3023 = vrot.slane %v2460, 2
      %v3024 = vsel %vm773, %v3021, %v3023
      %3025 = vrot.lane.b32.xlu0 %v2658, 20
      %v3026 = vpop.permute.xlu0 %3025
      %3027 = vrot.lane.b32.xlu0 %v2660, 20
      %v3028 = vpop.permute.xlu0 %3027
      %3029 = vrot.lane.b32.xlu0 %v2663, 20
      %v3030 = vpop.permute.xlu0 %3029
      %3031 = vrot.lane.b32.xlu0 %v2665, 20
      %v3032 = vpop.permute.xlu0 %3031
      %3033 = vrot.lane.b32.xlu0 %v2668, 20
      %v3034 = vpop.permute.xlu0 %3033
      %3035 = vrot.lane.b32.xlu0 %v2670, 20
      %v3036 = vpop.permute.xlu0 %3035
      %3037 = vrot.lane.b32.xlu0 %v2673, 20
      %v3038 = vpop.permute.xlu0 %3037
      %3039 = vrot.lane.b32.xlu0 %v2675, 20
      %v3040 = vpop.permute.xlu0 %3039
      %3041 = vrot.lane.b32.xlu0 %v2678, 20
      %v3042 = vpop.permute.xlu0 %3041
      %3043 = vrot.lane.b32.xlu0 %v2680, 20
      %v3044 = vpop.permute.xlu0 %3043
      %3045 = vrot.lane.b32.xlu0 %v2683, 20
      %v3046 = vpop.permute.xlu0 %3045
      %3047 = vrot.lane.b32.xlu0 %v2685, 20
      %v3048 = vpop.permute.xlu0 %3047
      %3049 = vrot.lane.b32.xlu0 %v2688, 20
      %v3050 = vpop.permute.xlu0 %3049
      %3051 = vrot.lane.b32.xlu0 %v2690, 20
      %v3052 = vpop.permute.xlu0 %3051
      %3053 = vrot.lane.b32.xlu0 %v2693, 20
      %v3054 = vpop.permute.xlu0 %3053
      %3055 = vrot.lane.b32.xlu0 %v2695, 20
      %v3056 = vpop.permute.xlu0 %3055
      %3057 = vrot.lane.b32.xlu0 %v2698, 20
      %v3058 = vpop.permute.xlu0 %3057
      %3059 = vrot.lane.b32.xlu0 %v2700, 20
      %v3060 = vpop.permute.xlu0 %3059
      %3061 = vrot.lane.b32.xlu0 %v2703, 20
      %v3062 = vpop.permute.xlu0 %3061
      %3063 = vrot.lane.b32.xlu0 %v2705, 20
      %v3064 = vpop.permute.xlu0 %3063
      %3065 = vrot.lane.b32.xlu0 %v2708, 20
      %v3066 = vpop.permute.xlu0 %3065
      %3067 = vrot.lane.b32.xlu0 %v2710, 20
      %v3068 = vpop.permute.xlu0 %3067
      %3069 = vrot.lane.b32.xlu0 %v2713, 20
      %v3070 = vpop.permute.xlu0 %3069
      %3071 = vrot.lane.b32.xlu0 %v2715, 20
      %v3072 = vpop.permute.xlu0 %3071
      %3073 = vrot.lane.b32.xlu0 %v2718, 20
      %v3074 = vpop.permute.xlu0 %3073
      %3075 = vrot.lane.b32.xlu0 %v2720, 20
      %v3076 = vpop.permute.xlu0 %3075
      %3077 = vrot.lane.b32.xlu0 %v2723, 20
      %v3078 = vpop.permute.xlu0 %3077
      %3079 = vrot.lane.b32.xlu0 %v2725, 20
      %v3080 = vpop.permute.xlu0 %3079
      %3081 = vrot.lane.b32.xlu0 %v2728, 20
      %v3082 = vpop.permute.xlu0 %3081
      %3083 = vrot.lane.b32.xlu0 %v2730, 20
      %v3084 = vpop.permute.xlu0 %3083
      %3085 = vrot.lane.b32.xlu0 %v3022, 20
      %v3086 = vpop.permute.xlu0 %3085
      %3087 = vrot.lane.b32.xlu0 %v3024, 20
      %v3088 = vpop.permute.xlu0 %3087
      %3121 = vrot.lane.b32.xlu0 %v2430, 24
      %v3122 = vpop.permute.xlu0 %3121
      %3123 = vrot.lane.b32.xlu0 %v2339, 24
      %v3124 = vpop.permute.xlu0 %3123
      %3125 = vrot.lane.b32.xlu0 %v2431, 24
      %v3126 = vpop.permute.xlu0 %3125
      %3127 = vrot.lane.b32.xlu0 %v2342, 24
      %v3128 = vpop.permute.xlu0 %3127
      %3129 = vrot.lane.b32.xlu0 %v2432, 24
      %v3130 = vpop.permute.xlu0 %3129
      %3131 = vrot.lane.b32.xlu0 %v2345, 24
      %v3132 = vpop.permute.xlu0 %3131
      %3133 = vrot.lane.b32.xlu0 %v2433, 24
      %v3134 = vpop.permute.xlu0 %3133
      %3135 = vrot.lane.b32.xlu0 %v2348, 24
      %v3136 = vpop.permute.xlu0 %3135
      %3137 = vrot.lane.b32.xlu0 %v2434, 24
      %v3138 = vpop.permute.xlu0 %3137
      %3139 = vrot.lane.b32.xlu0 %v2351, 24
      %v3140 = vpop.permute.xlu0 %3139
      %3141 = vrot.lane.b32.xlu0 %v2435, 24
      %v3142 = vpop.permute.xlu0 %3141
      %3143 = vrot.lane.b32.xlu0 %v2354, 24
      %v3144 = vpop.permute.xlu0 %3143
      %3145 = vrot.lane.b32.xlu0 %v2436, 24
      %v3146 = vpop.permute.xlu0 %3145
      %3147 = vrot.lane.b32.xlu0 %v2357, 24
      %v3148 = vpop.permute.xlu0 %3147
      %3149 = vrot.lane.b32.xlu0 %v2437, 24
      %v3150 = vpop.permute.xlu0 %3149
      %3151 = vrot.lane.b32.xlu0 %v2360, 24
      %v3152 = vpop.permute.xlu0 %3151
      %3153 = vrot.lane.b32.xlu0 %v2438, 24
      %v3154 = vpop.permute.xlu0 %3153
      %3155 = vrot.lane.b32.xlu0 %v2363, 24
      %v3156 = vpop.permute.xlu0 %3155
      %3157 = vrot.lane.b32.xlu0 %v2439, 24
      %v3158 = vpop.permute.xlu0 %3157
      %3159 = vrot.lane.b32.xlu0 %v2366, 24
      %v3160 = vpop.permute.xlu0 %3159
      %3161 = vrot.lane.b32.xlu0 %v2440, 24
      %v3162 = vpop.permute.xlu0 %3161
      %3163 = vrot.lane.b32.xlu0 %v2369, 24
      %v3164 = vpop.permute.xlu0 %3163
      %3165 = vrot.lane.b32.xlu0 %v2441, 24
      %v3166 = vpop.permute.xlu0 %3165
      %3167 = vrot.lane.b32.xlu0 %v2372, 24
      %v3168 = vpop.permute.xlu0 %3167
      %3169 = vrot.lane.b32.xlu0 %v2442, 24
      %v3170 = vpop.permute.xlu0 %3169
      %3171 = vrot.lane.b32.xlu0 %v2375, 24
      %v3172 = vpop.permute.xlu0 %3171
      %3173 = vrot.lane.b32.xlu0 %v2443, 24
      %v3174 = vpop.permute.xlu0 %3173
      %3175 = vrot.lane.b32.xlu0 %v2378, 24
      %v3176 = vpop.permute.xlu0 %3175
      %3177 = vrot.lane.b32.xlu0 %v2444, 24
      %v3178 = vpop.permute.xlu0 %3177
      %3179 = vrot.lane.b32.xlu0 %v2381, 24
      %v3180 = vpop.permute.xlu0 %3179
      %3211 = vrot.lane.b32.xlu0 %v2498, 28
      %v3212 = vpop.permute.xlu0 %3211
      %3213 = vrot.lane.b32.xlu0 %v2500, 28
      %v3214 = vpop.permute.xlu0 %3213
      %3215 = vrot.lane.b32.xlu0 %v2503, 28
      %v3216 = vpop.permute.xlu0 %3215
      %3217 = vrot.lane.b32.xlu0 %v2505, 28
      %v3218 = vpop.permute.xlu0 %3217
      %3219 = vrot.lane.b32.xlu0 %v2508, 28
      %v3220 = vpop.permute.xlu0 %3219
      %3221 = vrot.lane.b32.xlu0 %v2510, 28
      %v3222 = vpop.permute.xlu0 %3221
      %3223 = vrot.lane.b32.xlu0 %v2513, 28
      %v3224 = vpop.permute.xlu0 %3223
      %3225 = vrot.lane.b32.xlu0 %v2515, 28
      %v3226 = vpop.permute.xlu0 %3225
      %3227 = vrot.lane.b32.xlu0 %v2518, 28
      %v3228 = vpop.permute.xlu0 %3227
      %3229 = vrot.lane.b32.xlu0 %v2520, 28
      %v3230 = vpop.permute.xlu0 %3229
      %3231 = vrot.lane.b32.xlu0 %v2523, 28
      %v3232 = vpop.permute.xlu0 %3231
      %3233 = vrot.lane.b32.xlu0 %v2525, 28
      %v3234 = vpop.permute.xlu0 %3233
      %3235 = vrot.lane.b32.xlu0 %v2528, 28
      %v3236 = vpop.permute.xlu0 %3235
      %3237 = vrot.lane.b32.xlu0 %v2530, 28
      %v3238 = vpop.permute.xlu0 %3237
      %3239 = vrot.lane.b32.xlu0 %v2533, 28
      %v3240 = vpop.permute.xlu0 %3239
      %3241 = vrot.lane.b32.xlu0 %v2535, 28
      %v3242 = vpop.permute.xlu0 %3241
      %3243 = vrot.lane.b32.xlu0 %v2538, 28
      %v3244 = vpop.permute.xlu0 %3243
      %3245 = vrot.lane.b32.xlu0 %v2540, 28
      %v3246 = vpop.permute.xlu0 %3245
      %3247 = vrot.lane.b32.xlu0 %v2543, 28
      %v3248 = vpop.permute.xlu0 %3247
      %3249 = vrot.lane.b32.xlu0 %v2545, 28
      %v3250 = vpop.permute.xlu0 %3249
      %3251 = vrot.lane.b32.xlu0 %v2548, 28
      %v3252 = vpop.permute.xlu0 %3251
      %3253 = vrot.lane.b32.xlu0 %v2550, 28
      %v3254 = vpop.permute.xlu0 %3253
      %3255 = vrot.lane.b32.xlu0 %v2553, 28
      %v3256 = vpop.permute.xlu0 %3255
      %3257 = vrot.lane.b32.xlu0 %v2555, 28
      %v3258 = vpop.permute.xlu0 %3257
      %3259 = vrot.lane.b32.xlu0 %v2558, 28
      %v3260 = vpop.permute.xlu0 %3259
      %3261 = vrot.lane.b32.xlu0 %v2560, 28
      %v3262 = vpop.permute.xlu0 %3261
      %3263 = vrot.lane.b32.xlu0 %v2563, 28
      %v3264 = vpop.permute.xlu0 %3263
      %3265 = vrot.lane.b32.xlu0 %v2565, 28
      %v3266 = vpop.permute.xlu0 %3265
      %3267 = vrot.lane.b32.xlu0 %v2921, 28
      %v3268 = vpop.permute.xlu0 %3267
      %3269 = vrot.lane.b32.xlu0 %v2923, 28
      %v3270 = vpop.permute.xlu0 %3269
      %3301 = vrot.lane.b32.xlu0 %v2663, 32
      %v3302 = vpop.permute.xlu0 %3301
      %3303 = vrot.lane.b32.xlu0 %v2665, 32
      %v3304 = vpop.permute.xlu0 %3303
      %3305 = vrot.lane.b32.xlu0 %v2668, 32
      %v3306 = vpop.permute.xlu0 %3305
      %3307 = vrot.lane.b32.xlu0 %v2670, 32
      %v3308 = vpop.permute.xlu0 %3307
      %3309 = vrot.lane.b32.xlu0 %v2673, 32
      %v3310 = vpop.permute.xlu0 %3309
      %3311 = vrot.lane.b32.xlu0 %v2675, 32
      %v3312 = vpop.permute.xlu0 %3311
      %3313 = vrot.lane.b32.xlu0 %v2678, 32
      %v3314 = vpop.permute.xlu0 %3313
      %3315 = vrot.lane.b32.xlu0 %v2680, 32
      %v3316 = vpop.permute.xlu0 %3315
      %3317 = vrot.lane.b32.xlu0 %v2683, 32
      %v3318 = vpop.permute.xlu0 %3317
      %3319 = vrot.lane.b32.xlu0 %v2685, 32
      %v3320 = vpop.permute.xlu0 %3319
      %3321 = vrot.lane.b32.xlu0 %v2688, 32
      %v3322 = vpop.permute.xlu0 %3321
      %3323 = vrot.lane.b32.xlu0 %v2690, 32
      %v3324 = vpop.permute.xlu0 %3323
      %3325 = vrot.lane.b32.xlu0 %v2693, 32
      %v3326 = vpop.permute.xlu0 %3325
      %3327 = vrot.lane.b32.xlu0 %v2695, 32
      %v3328 = vpop.permute.xlu0 %3327
      %3329 = vrot.lane.b32.xlu0 %v2698, 32
      %v3330 = vpop.permute.xlu0 %3329
      %3331 = vrot.lane.b32.xlu0 %v2700, 32
      %v3332 = vpop.permute.xlu0 %3331
      %3333 = vrot.lane.b32.xlu0 %v2703, 32
      %v3334 = vpop.permute.xlu0 %3333
      %3335 = vrot.lane.b32.xlu0 %v2705, 32
      %v3336 = vpop.permute.xlu0 %3335
      %3337 = vrot.lane.b32.xlu0 %v2708, 32
      %v3338 = vpop.permute.xlu0 %3337
      %3339 = vrot.lane.b32.xlu0 %v2710, 32
      %v3340 = vpop.permute.xlu0 %3339
      %3341 = vrot.lane.b32.xlu0 %v2713, 32
      %v3342 = vpop.permute.xlu0 %3341
      %3343 = vrot.lane.b32.xlu0 %v2715, 32
      %v3344 = vpop.permute.xlu0 %3343
      %3345 = vrot.lane.b32.xlu0 %v2718, 32
      %v3346 = vpop.permute.xlu0 %3345
      %3347 = vrot.lane.b32.xlu0 %v2720, 32
      %v3348 = vpop.permute.xlu0 %3347
      %3349 = vrot.lane.b32.xlu0 %v2723, 32
      %v3350 = vpop.permute.xlu0 %3349
      %3351 = vrot.lane.b32.xlu0 %v2725, 32
      %v3352 = vpop.permute.xlu0 %3351
      %3353 = vrot.lane.b32.xlu0 %v2728, 32
      %v3354 = vpop.permute.xlu0 %3353
      %3355 = vrot.lane.b32.xlu0 %v2730, 32
      %v3356 = vpop.permute.xlu0 %3355
      %3357 = vrot.lane.b32.xlu0 %v3022, 32
      %v3358 = vpop.permute.xlu0 %3357
      %3359 = vrot.lane.b32.xlu0 %v3024, 32
      %v3360 = vpop.permute.xlu0 %3359
      %v3391 = vsel %vm1538, %v2429, %v2567
      %v3392 = vsel %vm1538, %v2336, %v2569
      %v3393 = vsel %vm1538, %v2430, %v2571
      %v3394 = vsel %vm1538, %v2339, %v2573
      %v3395 = vsel %vm1538, %v2431, %v2575
      %v3396 = vsel %vm1538, %v2342, %v2577
      %v3397 = vsel %vm1538, %v2432, %v2579
      %v3398 = vsel %vm1538, %v2345, %v2581
      %v3399 = vsel %vm1538, %v2433, %v2583
      %v3400 = vsel %vm1538, %v2348, %v2585
      %v3401 = vsel %vm1538, %v2434, %v2587
      %v3402 = vsel %vm1538, %v2351, %v2589
      %v3403 = vsel %vm1538, %v2435, %v2591
      %v3404 = vsel %vm1538, %v2354, %v2593
      %v3405 = vsel %vm1538, %v2436, %v2595
      %v3406 = vsel %vm1538, %v2357, %v2597
      %v3407 = vsel %vm1538, %v2437, %v2599
      %v3408 = vsel %vm1538, %v2360, %v2601
      %v3409 = vsel %vm1538, %v2438, %v2603
      %v3410 = vsel %vm1538, %v2363, %v2605
      %v3411 = vsel %vm1538, %v2439, %v2607
      %v3412 = vsel %vm1538, %v2366, %v2609
      %v3413 = vsel %vm1538, %v2440, %v2611
      %v3414 = vsel %vm1538, %v2369, %v2613
      %v3415 = vsel %vm1538, %v2441, %v2615
      %v3416 = vsel %vm1538, %v2372, %v2617
      %v3417 = vsel %vm1538, %v2442, %v2619
      %v3418 = vsel %vm1538, %v2375, %v2621
      %v3419 = vsel %vm1538, %v2443, %v2623
      %v3420 = vsel %vm1538, %v2378, %v2625
      %v3421 = vsel %vm1571, %v3391, %v2732
      %v3422 = vsel %vm1571, %v3392, %v2734
      %v3423 = vsel %vm1571, %v3393, %v2736
      %v3424 = vsel %vm1571, %v3394, %v2738
      %v3425 = vsel %vm1571, %v3395, %v2740
      %v3426 = vsel %vm1571, %v3396, %v2742
      %v3427 = vsel %vm1571, %v3397, %v2744
      %v3428 = vsel %vm1571, %v3398, %v2746
      %v3429 = vsel %vm1571, %v3399, %v2748
      %v3430 = vsel %vm1571, %v3400, %v2750
      %v3431 = vsel %vm1571, %v3401, %v2752
      %v3432 = vsel %vm1571, %v3402, %v2754
      %v3433 = vsel %vm1571, %v3403, %v2756
      %v3434 = vsel %vm1571, %v3404, %v2758
      %v3435 = vsel %vm1571, %v3405, %v2760
      %v3436 = vsel %vm1571, %v3406, %v2762
      %v3437 = vsel %vm1571, %v3407, %v2764
      %v3438 = vsel %vm1571, %v3408, %v2766
      %v3439 = vsel %vm1571, %v3409, %v2768
      %v3440 = vsel %vm1571, %v3410, %v2770
      %v3441 = vsel %vm1571, %v3411, %v2772
      %v3442 = vsel %vm1571, %v3412, %v2774
      %v3443 = vsel %vm1571, %v3413, %v2776
      %v3444 = vsel %vm1571, %v3414, %v2778
      %v3445 = vsel %vm1571, %v3415, %v2780
      %v3446 = vsel %vm1571, %v3416, %v2782
      %v3447 = vsel %vm1571, %v3417, %v2784
      %v3448 = vsel %vm1571, %v3418, %v2786
      %v3449 = vsel %vm1571, %v3419, %v2788
      %v3450 = vsel %vm1571, %v3420, %v2790
      %v3451 = vsel %vm1604, %v1572, %v2823
      %v3452 = vsel %vm1604, %v1573, %v2825
      %v3453 = vsel %vm1604, %v3421, %v2827
      %v3454 = vsel %vm1604, %v3422, %v2829
      %v3455 = vsel %vm1604, %v3423, %v2831
      %v3456 = vsel %vm1604, %v3424, %v2833
      %v3457 = vsel %vm1604, %v3425, %v2835
      %v3458 = vsel %vm1604, %v3426, %v2837
      %v3459 = vsel %vm1604, %v3427, %v2839
      %v3460 = vsel %vm1604, %v3428, %v2841
      %v3461 = vsel %vm1604, %v3429, %v2843
      %v3462 = vsel %vm1604, %v3430, %v2845
      %v3463 = vsel %vm1604, %v3431, %v2847
      %v3464 = vsel %vm1604, %v3432, %v2849
      %v3465 = vsel %vm1604, %v3433, %v2851
      %v3466 = vsel %vm1604, %v3434, %v2853
      %v3467 = vsel %vm1604, %v3435, %v2855
      %v3468 = vsel %vm1604, %v3436, %v2857
      %v3469 = vsel %vm1604, %v3437, %v2859
      %v3470 = vsel %vm1604, %v3438, %v2861
      %v3471 = vsel %vm1604, %v3439, %v2863
      %v3472 = vsel %vm1604, %v3440, %v2865
      %v3473 = vsel %vm1604, %v3441, %v2867
      %v3474 = vsel %vm1604, %v3442, %v2869
      %v3475 = vsel %vm1604, %v3443, %v2871
      %v3476 = vsel %vm1604, %v3444, %v2873
      %v3477 = vsel %vm1604, %v3445, %v2875
      %v3478 = vsel %vm1604, %v3446, %v2877
      %v3479 = vsel %vm1604, %v3447, %v2879
      %v3480 = vsel %vm1604, %v3448, %v2881
      %v3481 = vsel %vm1604, %v3449, %v2883
      %v3482 = vsel %vm1604, %v3450, %v2885
      %v3483 = vsel %vm1637, %v3451, %v2925
      %v3484 = vsel %vm1637, %v3452, %v2927
      %v3485 = vsel %vm1637, %v3453, %v2929
      %v3486 = vsel %vm1637, %v3454, %v2931
      %v3487 = vsel %vm1637, %v3455, %v2933
      %v3488 = vsel %vm1637, %v3456, %v2935
      %v3489 = vsel %vm1637, %v3457, %v2937
      %v3490 = vsel %vm1637, %v3458, %v2939
      %v3491 = vsel %vm1637, %v3459, %v2941
      %v3492 = vsel %vm1637, %v3460, %v2943
      %v3493 = vsel %vm1637, %v3461, %v2945
      %v3494 = vsel %vm1637, %v3462, %v2947
      %v3495 = vsel %vm1637, %v3463, %v2949
      %v3496 = vsel %vm1637, %v3464, %v2951
      %v3497 = vsel %vm1637, %v3465, %v2953
      %v3498 = vsel %vm1637, %v3466, %v2955
      %v3499 = vsel %vm1637, %v3467, %v2957
      %v3500 = vsel %vm1637, %v3468, %v2959
      %v3501 = vsel %vm1637, %v3469, %v2961
      %v3502 = vsel %vm1637, %v3470, %v2963
      %v3503 = vsel %vm1637, %v3471, %v2965
      %v3504 = vsel %vm1637, %v3472, %v2967
      %v3505 = vsel %vm1637, %v3473, %v2969
      %v3506 = vsel %vm1637, %v3474, %v2971
      %v3507 = vsel %vm1637, %v3475, %v2973
      %v3508 = vsel %vm1637, %v3476, %v2975
      %v3509 = vsel %vm1637, %v3477, %v2977
      %v3510 = vsel %vm1637, %v3478, %v2979
      %v3511 = vsel %vm1637, %v3479, %v2981
      %v3512 = vsel %vm1637, %v3480, %v2983
      %v3513 = vsel %vm1637, %v3481, %v2985
      %v3514 = vsel %vm1637, %v3482, %v2987
      %v3515 = vsel %vm1670, %v3483, %v3026
      %v3516 = vsel %vm1670, %v3484, %v3028
      %v3517 = vsel %vm1670, %v3485, %v3030
      %v3518 = vsel %vm1670, %v3486, %v3032
      %v3519 = vsel %vm1670, %v3487, %v3034
      %v3520 = vsel %vm1670, %v3488, %v3036
      %v3521 = vsel %vm1670, %v3489, %v3038
      %v3522 = vsel %vm1670, %v3490, %v3040
      %v3523 = vsel %vm1670, %v3491, %v3042
      %v3524 = vsel %vm1670, %v3492, %v3044
      %v3525 = vsel %vm1670, %v3493, %v3046
      %v3526 = vsel %vm1670, %v3494, %v3048
      %v3527 = vsel %vm1670, %v3495, %v3050
      %v3528 = vsel %vm1670, %v3496, %v3052
      %v3529 = vsel %vm1670, %v3497, %v3054
      %v3530 = vsel %vm1670, %v3498, %v3056
      %v3531 = vsel %vm1670, %v3499, %v3058
      %v3532 = vsel %vm1670, %v3500, %v3060
      %v3533 = vsel %vm1670, %v3501, %v3062
      %v3534 = vsel %vm1670, %v3502, %v3064
      %v3535 = vsel %vm1670, %v3503, %v3066
      %v3536 = vsel %vm1670, %v3504, %v3068
      %v3537 = vsel %vm1670, %v3505, %v3070
      %v3538 = vsel %vm1670, %v3506, %v3072
      %v3539 = vsel %vm1670, %v3507, %v3074
      %v3540 = vsel %vm1670, %v3508, %v3076
      %v3541 = vsel %vm1670, %v3509, %v3078
      %v3542 = vsel %vm1670, %v3510, %v3080
      %v3543 = vsel %vm1670, %v3511, %v3082
      %v3544 = vsel %vm1670, %v3512, %v3084
      %v3545 = vsel %vm1670, %v3513, %v3086
      %v3546 = vsel %vm1670, %v3514, %v3088
      %v3547 = vsel %vm1703, %v3515, %v3122
      %v3548 = vsel %vm1703, %v3516, %v3124
      %v3549 = vsel %vm1703, %v3517, %v3126
      %v3550 = vsel %vm1703, %v3518, %v3128
      %v3551 = vsel %vm1703, %v3519, %v3130
      %v3552 = vsel %vm1703, %v3520, %v3132
      %v3553 = vsel %vm1703, %v3521, %v3134
      %v3554 = vsel %vm1703, %v3522, %v3136
      %v3555 = vsel %vm1703, %v3523, %v3138
      %v3556 = vsel %vm1703, %v3524, %v3140
      %v3557 = vsel %vm1703, %v3525, %v3142
      %v3558 = vsel %vm1703, %v3526, %v3144
      %v3559 = vsel %vm1703, %v3527, %v3146
      %v3560 = vsel %vm1703, %v3528, %v3148
      %v3561 = vsel %vm1703, %v3529, %v3150
      %v3562 = vsel %vm1703, %v3530, %v3152
      %v3563 = vsel %vm1703, %v3531, %v3154
      %v3564 = vsel %vm1703, %v3532, %v3156
      %v3565 = vsel %vm1703, %v3533, %v3158
      %v3566 = vsel %vm1703, %v3534, %v3160
      %v3567 = vsel %vm1703, %v3535, %v3162
      %v3568 = vsel %vm1703, %v3536, %v3164
      %v3569 = vsel %vm1703, %v3537, %v3166
      %v3570 = vsel %vm1703, %v3538, %v3168
      %v3571 = vsel %vm1703, %v3539, %v3170
      %v3572 = vsel %vm1703, %v3540, %v3172
      %v3573 = vsel %vm1703, %v3541, %v3174
      %v3574 = vsel %vm1703, %v3542, %v3176
      %v3575 = vsel %vm1703, %v3543, %v3178
      %v3576 = vsel %vm1703, %v3544, %v3180
      %v3577 = vsel %vm1703, %v3545, %v1311
      %v3578 = vsel %vm1703, %v3546, %v1313
      %v3579 = vsel %vm1736, %v3547, %v3212
      %v3580 = vsel %vm1736, %v3548, %v3214
      %v3581 = vsel %vm1736, %v3549, %v3216
      %v3582 = vsel %vm1736, %v3550, %v3218
      %v3583 = vsel %vm1736, %v3551, %v3220
      %v3584 = vsel %vm1736, %v3552, %v3222
      %v3585 = vsel %vm1736, %v3553, %v3224
      %v3586 = vsel %vm1736, %v3554, %v3226
      %v3587 = vsel %vm1736, %v3555, %v3228
      %v3588 = vsel %vm1736, %v3556, %v3230
      %v3589 = vsel %vm1736, %v3557, %v3232
      %v3590 = vsel %vm1736, %v3558, %v3234
      %v3591 = vsel %vm1736, %v3559, %v3236
      %v3592 = vsel %vm1736, %v3560, %v3238
      %v3593 = vsel %vm1736, %v3561, %v3240
      %v3594 = vsel %vm1736, %v3562, %v3242
      %v3595 = vsel %vm1736, %v3563, %v3244
      %v3596 = vsel %vm1736, %v3564, %v3246
      %v3597 = vsel %vm1736, %v3565, %v3248
      %v3598 = vsel %vm1736, %v3566, %v3250
      %v3599 = vsel %vm1736, %v3567, %v3252
      %v3600 = vsel %vm1736, %v3568, %v3254
      %v3601 = vsel %vm1736, %v3569, %v3256
      %v3602 = vsel %vm1736, %v3570, %v3258
      %v3603 = vsel %vm1736, %v3571, %v3260
      %v3604 = vsel %vm1736, %v3572, %v3262
      %v3605 = vsel %vm1736, %v3573, %v3264
      %v3606 = vsel %vm1736, %v3574, %v3266
      %v3607 = vsel %vm1736, %v3575, %v3268
      %v3608 = vsel %vm1736, %v3576, %v3270
      %v3609 = vsel %vm1736, %v3577, %v1407
      %v3610 = vsel %vm1736, %v3578, %v1409
      %v3611 = vsel %vm1769, %v3579, %v3302
      %v3612 = vsel %vm1769, %v3580, %v3304
      %v3613 = vsel %vm1769, %v3581, %v3306
      %v3614 = vsel %vm1769, %v3582, %v3308
      %v3615 = vsel %vm1769, %v3583, %v3310
      %v3616 = vsel %vm1769, %v3584, %v3312
      %v3617 = vsel %vm1769, %v3585, %v3314
      %v3618 = vsel %vm1769, %v3586, %v3316
      %v3619 = vsel %vm1769, %v3587, %v3318
      %v3620 = vsel %vm1769, %v3588, %v3320
      %v3621 = vsel %vm1769, %v3589, %v3322
      %v3622 = vsel %vm1769, %v3590, %v3324
      %v3623 = vsel %vm1769, %v3591, %v3326
      %v3624 = vsel %vm1769, %v3592, %v3328
      %v3625 = vsel %vm1769, %v3593, %v3330
      %v3626 = vsel %vm1769, %v3594, %v3332
      %v3627 = vsel %vm1769, %v3595, %v3334
      %v3628 = vsel %vm1769, %v3596, %v3336
      %v3629 = vsel %vm1769, %v3597, %v3338
      %v3630 = vsel %vm1769, %v3598, %v3340
      %v3631 = vsel %vm1769, %v3599, %v3342
      %v3632 = vsel %vm1769, %v3600, %v3344
      %v3633 = vsel %vm1769, %v3601, %v3346
      %v3634 = vsel %vm1769, %v3602, %v3348
      %v3635 = vsel %vm1769, %v3603, %v3350
      %v3636 = vsel %vm1769, %v3604, %v3352
      %v3637 = vsel %vm1769, %v3605, %v3354
      %v3638 = vsel %vm1769, %v3606, %v3356
      %v3639 = vsel %vm1769, %v3607, %v3358
      %v3640 = vsel %vm1769, %v3608, %v3360
      %v3641 = vsel %vm1769, %v3609, %v1503
      %v3642 = vsel %vm1769, %v3610, %v1505
      %v3644 = vsel %vm1802, %v3611, 0
      %v3647 = vsel %vm1802, %v3612, 0
      %v3650 = vsel %vm1802, %v3613, 0
      %v3653 = vsel %vm1802, %v3614, 0
      %v3656 = vsel %vm1802, %v3615, 0
      %v3659 = vsel %vm1802, %v3616, 0
      %v3662 = vsel %vm1802, %v3617, 0
      %v3665 = vsel %vm1802, %v3618, 0
      %v3668 = vsel %vm1802, %v3619, 0
      %v3671 = vsel %vm1802, %v3620, 0
      %v3674 = vsel %vm1802, %v3621, 0
      %v3677 = vsel %vm1802, %v3622, 0
      %v3680 = vsel %vm1802, %v3623, 0
      %v3683 = vsel %vm1802, %v3624, 0
      %v3686 = vsel %vm1802, %v3625, 0
      %v3689 = vsel %vm1802, %v3626, 0
      %v3692 = vsel %vm1802, %v3627, 0
      %v3695 = vsel %vm1802, %v3628, 0
      %v3698 = vsel %vm1802, %v3629, 0
      %v3701 = vsel %vm1802, %v3630, 0
      %v3704 = vsel %vm1802, %v3631, 0
      %v3707 = vsel %vm1802, %v3632, 0
      %v3710 = vsel %vm1802, %v3633, 0
      %v3713 = vsel %vm1802, %v3634, 0
      %v3716 = vsel %vm1802, %v3635, 0
      %v3719 = vsel %vm1802, %v3636, 0
      %v3722 = vsel %vm1802, %v3637, 0
      %v3725 = vsel %vm1802, %v3638, 0
      %v3728 = vsel %vm1802, %v3639, 0
      %v3731 = vsel %vm1802, %v3640, 0
      %v3734 = vsel %vm1802, %v3641, 0
      %v3737 = vsel %vm1802, %v3642, 0
      %v3740 = vsel %vm1899, %v2301, 0
      %3742 = vmatprep.subr.mxu0 0.0
      %3743 = vmatpush1.msra.mxu0 0.0
      %3744 = vmatprep.subr.mxu0 0.0
      %3745 = vmatpush1.msra.mxu0 0.0
      %3746 = vmatprep.subr.mxu0 0.0
      %3747 = vmatpush1.msra.mxu0 0.0
      %3748 = vmatprep.subr.mxu0 0.0
      %3749 = vmatpush1.msra.mxu0 0.0
      %3750 = vmatprep.subr.mxu0 0.0
      %3751 = vmatpush1.msra.mxu0 0.0
      %3752 = vmatprep.subr.mxu0 0.0
      %3753 = vmatpush1.msra.mxu0 0.0
      %3754 = vmatprep.subr.mxu0 0.0
      %3755 = vmatpush1.msra.mxu0 0.0
      %3756 = vmatprep.subr.mxu0 0.0
      %3757 = vmatpush1.msra.mxu0 0.0
      %3758 = vmatprep.subr.mxu0 0.0
      %3759 = vmatpush1.msra.mxu0 0.0
      %3760 = vmatprep.subr.mxu0 0.0
      %3761 = vmatpush1.msra.mxu0 0.0
      %3762 = vmatprep.subr.mxu0 0.0
      %3763 = vmatpush1.msra.mxu0 0.0
      %3764 = vmatprep.subr.mxu0 0.0
      %3765 = vmatpush1.msra.mxu0 %v3740
      %3766 = vmatprep.subr.mxu0 0.0
      %3767 = vmatpush1.msra.mxu0 %v2300
      %3768 = vmatprep.subr.mxu0 0.0
      %3769 = vmatpush1.msra.mxu0 %v2299
      %3770 = vmatprep.subr.mxu0 0.0
      %3771 = vmatpush1.msra.mxu0 %v2298
      %3772 = vmatprep.subr.mxu0 0.0
      %3773 = vmatpush1.msra.mxu0 %v2297
      %3774 = vmatprep.subr.mxu0 0.0
      %3775 = vmatpush2.msra.mxu0 0.0
      %3776 = vmatprep.subr.mxu0 0.0
      %3777 = vmatpush2.msra.mxu0 0.0
      %3778 = vmatprep.subr.mxu0 0.0
      %3779 = vmatpush2.msra.mxu0 0.0
      %3780 = vmatprep.subr.mxu0 0.0
      %3781 = vmatpush2.msra.mxu0 0.0
      %3782 = vmatprep.subr.mxu0 0.0
      %3783 = vmatpush2.msra.mxu0 0.0
      %3784 = vmatprep.subr.mxu0 0.0
      %3785 = vmatpush2.msra.mxu0 0.0
      %3786 = vmatprep.subr.mxu0 0.0
      %3787 = vmatpush2.msra.mxu0 0.0
      %3788 = vmatprep.subr.mxu0 0.0
      %3789 = vmatpush2.msra.mxu0 0.0
      %3790 = vmatprep.subr.mxu0 0.0
      %3791 = vmatpush2.msra.mxu0 0.0
      %3792 = vmatprep.subr.mxu0 0.0
      %3793 = vmatpush2.msra.mxu0 0.0
      %3794 = vmatprep.subr.mxu0 0.0
      %3795 = vmatpush2.msra.mxu0 0.0
      %3796 = vmatprep.subr.mxu0 0.0
      %3797 = vmatpush2.msra.mxu0 0.0
      %3798 = vmatprep.subr.mxu0 0.0
      %3799 = vmatpush2.msra.mxu0 0.0
      %3800 = vmatprep.subr.mxu0 0.0
      %3801 = vmatpush2.msra.mxu0 0.0
      %3802 = vmatprep.subr.mxu0 0.0
      %3803 = vmatpush2.msra.mxu0 0.0
      %3804 = vmatprep.subr.mxu0 0.0
      %3805 = vmatpush2.msra.mxu0 0.0
      %3806 = vmatprep.mubr.f32.mxu0 0.0
      %3807 = vmatmul.mubr.f32.gmra.mxu0 %v3644
      %v3808 = vpop.f32.mrf.mxu0
      %v3809 = vadd.f32 0.0, %v3808
      %v3810 = vpop.f32.mrf.mxu0
      %3811 = vmatprep.mubr.f32.mxu0 0.0
      %3812 = vmatmul.mubr.f32.gmra.mxu0 %v3647
      %v3813 = vpop.f32.mrf.mxu0
      %v3814 = vadd.f32 0.0, %v3813
      %v3815 = vpop.f32.mrf.mxu0
      %3816 = vmatprep.mubr.f32.mxu0 0.0
      %3817 = vmatmul.mubr.f32.gmra.mxu0 %v3650
      %v3818 = vpop.f32.mrf.mxu0
      %v3819 = vadd.f32 0.0, %v3818
      %v3820 = vpop.f32.mrf.mxu0
      %3821 = vmatprep.mubr.f32.mxu0 0.0
      %3822 = vmatmul.mubr.f32.gmra.mxu0 %v3653
      %v3823 = vpop.f32.mrf.mxu0
      %v3824 = vadd.f32 0.0, %v3823
      %v3825 = vpop.f32.mrf.mxu0
      %3826 = vmatprep.mubr.f32.mxu0 0.0
      %3827 = vmatmul.mubr.f32.gmra.mxu0 %v3656
      %v3828 = vpop.f32.mrf.mxu0
      %v3829 = vadd.f32 0.0, %v3828
      %v3830 = vpop.f32.mrf.mxu0
      %3831 = vmatprep.mubr.f32.mxu0 0.0
      %3832 = vmatmul.mubr.f32.gmra.mxu0 %v3659
      %v3833 = vpop.f32.mrf.mxu0
      %v3834 = vadd.f32 0.0, %v3833
      %v3835 = vpop.f32.mrf.mxu0
      %3836 = vmatprep.mubr.f32.mxu0 0.0
      %3837 = vmatmul.mubr.f32.gmra.mxu0 %v3662
      %v3838 = vpop.f32.mrf.mxu0
      %v3839 = vadd.f32 0.0, %v3838
      %v3840 = vpop.f32.mrf.mxu0
      %3841 = vmatprep.mubr.f32.mxu0 0.0
      %3842 = vmatmul.mubr.f32.gmra.mxu0 %v3665
      %v3843 = vpop.f32.mrf.mxu0
      %v3844 = vadd.f32 0.0, %v3843
      %v3845 = vpop.f32.mrf.mxu0
      %3846 = vmatprep.mubr.f32.mxu0 0.0
      %3847 = vmatmul.mubr.f32.gmra.mxu0 %v3668
      %v3848 = vpop.f32.mrf.mxu0
      %v3849 = vadd.f32 0.0, %v3848
      %v3850 = vpop.f32.mrf.mxu0
      %3851 = vmatprep.mubr.f32.mxu0 0.0
      %3852 = vmatmul.mubr.f32.gmra.mxu0 %v3671
      %v3853 = vpop.f32.mrf.mxu0
      %v3854 = vadd.f32 0.0, %v3853
      %v3855 = vpop.f32.mrf.mxu0
      %3856 = vmatprep.mubr.f32.mxu0 0.0
      %3857 = vmatmul.mubr.f32.gmra.mxu0 %v3674
      %v3858 = vpop.f32.mrf.mxu0
      %v3859 = vadd.f32 0.0, %v3858
      %v3860 = vpop.f32.mrf.mxu0
      %3861 = vmatprep.mubr.f32.mxu0 0.0
      %3862 = vmatmul.mubr.f32.gmra.mxu0 %v3677
      %v3863 = vpop.f32.mrf.mxu0
      %v3864 = vadd.f32 0.0, %v3863
      %v3865 = vpop.f32.mrf.mxu0
      %3866 = vmatprep.mubr.f32.mxu0 0.0
      %3867 = vmatmul.mubr.f32.gmra.mxu0 %v3680
      %v3868 = vpop.f32.mrf.mxu0
      %v3869 = vadd.f32 0.0, %v3868
      %v3870 = vpop.f32.mrf.mxu0
      %3871 = vmatprep.mubr.f32.mxu0 0.0
      %3872 = vmatmul.mubr.f32.gmra.mxu0 %v3683
      %v3873 = vpop.f32.mrf.mxu0
      %v3874 = vadd.f32 0.0, %v3873
      %v3875 = vpop.f32.mrf.mxu0
      %3876 = vmatprep.mubr.f32.mxu0 0.0
      %3877 = vmatmul.mubr.f32.gmra.mxu0 %v3686
      %v3878 = vpop.f32.mrf.mxu0
      %v3879 = vadd.f32 0.0, %v3878
      %v3880 = vpop.f32.mrf.mxu0
      %3881 = vmatprep.mubr.f32.mxu0 0.0
      %3882 = vmatmul.mubr.f32.gmra.mxu0 %v3689
      %v3883 = vpop.f32.mrf.mxu0
      %v3884 = vadd.f32 0.0, %v3883
      %v3885 = vpop.f32.mrf.mxu0
      %3886 = vmatprep.mubr.f32.mxu0 0.0
      %3887 = vmatmul.mubr.f32.gmra.mxu0 %v3692
      %v3888 = vpop.f32.mrf.mxu0
      %v3889 = vadd.f32 0.0, %v3888
      %v3890 = vpop.f32.mrf.mxu0
      %3891 = vmatprep.mubr.f32.mxu0 0.0
      %3892 = vmatmul.mubr.f32.gmra.mxu0 %v3695
      %v3893 = vpop.f32.mrf.mxu0
      %v3894 = vadd.f32 0.0, %v3893
      %v3895 = vpop.f32.mrf.mxu0
      %3896 = vmatprep.mubr.f32.mxu0 0.0
      %3897 = vmatmul.mubr.f32.gmra.mxu0 %v3698
      %v3898 = vpop.f32.mrf.mxu0
      %v3899 = vadd.f32 0.0, %v3898
      %v3900 = vpop.f32.mrf.mxu0
      %3901 = vmatprep.mubr.f32.mxu0 0.0
      %3902 = vmatmul.mubr.f32.gmra.mxu0 %v3701
      %v3903 = vpop.f32.mrf.mxu0
      %v3904 = vadd.f32 0.0, %v3903
      %v3905 = vpop.f32.mrf.mxu0
      %3906 = vmatprep.mubr.f32.mxu0 0.0
      %3907 = vmatmul.mubr.f32.gmra.mxu0 %v3704
      %v3908 = vpop.f32.mrf.mxu0
      %v3909 = vadd.f32 0.0, %v3908
      %v3910 = vpop.f32.mrf.mxu0
      %3911 = vmatprep.mubr.f32.mxu0 0.0
      %3912 = vmatmul.mubr.f32.gmra.mxu0 %v3707
      %v3913 = vpop.f32.mrf.mxu0
      %v3914 = vadd.f32 0.0, %v3913
      %v3915 = vpop.f32.mrf.mxu0
      %3916 = vmatprep.mubr.f32.mxu0 0.0
      %3917 = vmatmul.mubr.f32.gmra.mxu0 %v3710
      %v3918 = vpop.f32.mrf.mxu0
      %v3919 = vadd.f32 0.0, %v3918
      %v3920 = vpop.f32.mrf.mxu0
      %3921 = vmatprep.mubr.f32.mxu0 0.0
      %3922 = vmatmul.mubr.f32.gmra.mxu0 %v3713
      %v3923 = vpop.f32.mrf.mxu0
      %v3924 = vadd.f32 0.0, %v3923
      %v3925 = vpop.f32.mrf.mxu0
      %3926 = vmatprep.mubr.f32.mxu0 0.0
      %3927 = vmatmul.mubr.f32.gmra.mxu0 %v3716
      %v3928 = vpop.f32.mrf.mxu0
      %v3929 = vadd.f32 0.0, %v3928
      %v3930 = vpop.f32.mrf.mxu0
      %3931 = vmatprep.mubr.f32.mxu0 0.0
      %3932 = vmatmul.mubr.f32.gmra.mxu0 %v3719
      %v3933 = vpop.f32.mrf.mxu0
      %v3934 = vadd.f32 0.0, %v3933
      %v3935 = vpop.f32.mrf.mxu0
      %3936 = vmatprep.mubr.f32.mxu0 0.0
      %3937 = vmatmul.mubr.f32.gmra.mxu0 %v3722
      %v3938 = vpop.f32.mrf.mxu0
      %v3939 = vadd.f32 0.0, %v3938
      %v3940 = vpop.f32.mrf.mxu0
      %3941 = vmatprep.mubr.f32.mxu0 0.0
      %3942 = vmatmul.mubr.f32.gmra.mxu0 %v3725
      %v3943 = vpop.f32.mrf.mxu0
      %v3944 = vadd.f32 0.0, %v3943
      %v3945 = vpop.f32.mrf.mxu0
      %3946 = vmatprep.mubr.f32.mxu0 0.0
      %3947 = vmatmul.mubr.f32.gmra.mxu0 %v3728
      %v3948 = vpop.f32.mrf.mxu0
      %v3949 = vadd.f32 0.0, %v3948
      %v3950 = vpop.f32.mrf.mxu0
      %3951 = vmatprep.mubr.f32.mxu0 0.0
      %3952 = vmatmul.mubr.f32.gmra.mxu0 %v3731
      %v3953 = vpop.f32.mrf.mxu0
      %v3954 = vadd.f32 0.0, %v3953
      %v3955 = vpop.f32.mrf.mxu0
      %3956 = vmatprep.mubr.f32.mxu0 0.0
      %3957 = vmatmul.mubr.f32.gmra.mxu0 %v3734
      %v3958 = vpop.f32.mrf.mxu0
      %v3959 = vadd.f32 0.0, %v3958
      %v3960 = vpop.f32.mrf.mxu0
      %3961 = vmatprep.mubr.f32.mxu0 0.0
      %3962 = vmatmul.mubr.f32.gmra.mxu0 %v3737
      %v3963 = vpop.f32.mrf.mxu0
      %v3964 = vadd.f32 0.0, %v3963
      %v3965 = vpop.f32.mrf.mxu0
      %3966 = vdwg.mxu0
      %v3967 = vld [vmem:[%s4] sm:$0x3]
      %v3968 = vlaneseq
      %v3969 = vshrl.u32 %v3968, 7
      %v3970 = vsub.s32 0, %v3969
      %v3971 = vrot.slane %v3967, %v3970
      %v3972 = vmul.f32 %v3809, %v3971
      %v3973 = vmul.f32 %v3814, %v3971
      %v3974 = vmul.f32 %v3819, %v3971
      %v3975 = vmul.f32 %v3824, %v3971
      %v3976 = vmul.f32 %v3829, %v3971
      %v3977 = vmul.f32 %v3834, %v3971
      %v3978 = vmul.f32 %v3839, %v3971
      %v3979 = vmul.f32 %v3844, %v3971
      %v3980 = vmul.f32 %v3849, %v3971
      %v3981 = vmul.f32 %v3854, %v3971
      %v3982 = vmul.f32 %v3859, %v3971
      %v3983 = vmul.f32 %v3864, %v3971
      %v3984 = vmul.f32 %v3869, %v3971
      %v3985 = vmul.f32 %v3874, %v3971
      %v3986 = vmul.f32 %v3879, %v3971
      %v3987 = vmul.f32 %v3884, %v3971
      %v3988 = vmul.f32 %v3889, %v3971
      %v3989 = vmul.f32 %v3894, %v3971
      %v3990 = vmul.f32 %v3899, %v3971
      %v3991 = vmul.f32 %v3904, %v3971
      %v3992 = vmul.f32 %v3909, %v3971
      %v3993 = vmul.f32 %v3914, %v3971
      %v3994 = vmul.f32 %v3919, %v3971
      %v3995 = vmul.f32 %v3924, %v3971
      %v3996 = vmul.f32 %v3929, %v3971
      %v3997 = vmul.f32 %v3934, %v3971
      %v3998 = vmul.f32 %v3939, %v3971
      %v3999 = vmul.f32 %v3944, %v3971
      %v4000 = vmul.f32 %v3949, %v3971
      %v4001 = vmul.f32 %v3954, %v3971
      %v4002 = vmul.f32 %v3959, %v3971
      %v4003 = vmul.f32 %v3964, %v3971
      %v4004 = vlaneseq
      %v4005 = vshrl.u32 %v4004, 7
      %v4006 = vsub.s32 1, %v4005
      %v4007 = vrot.slane %v3967, %v4006
      %v4008 = vadd.f32 %v3972, %v4007
      %v4009 = vadd.f32 %v3973, %v4007
      %v4010 = vadd.f32 %v3974, %v4007
      %v4011 = vadd.f32 %v3975, %v4007
      %v4012 = vadd.f32 %v3976, %v4007
      %v4013 = vadd.f32 %v3977, %v4007
      %v4014 = vadd.f32 %v3978, %v4007
      %v4015 = vadd.f32 %v3979, %v4007
      %v4016 = vadd.f32 %v3980, %v4007
      %v4017 = vadd.f32 %v3981, %v4007
      %v4018 = vadd.f32 %v3982, %v4007
      %v4019 = vadd.f32 %v3983, %v4007
      %v4020 = vadd.f32 %v3984, %v4007
      %v4021 = vadd.f32 %v3985, %v4007
      %v4022 = vadd.f32 %v3986, %v4007
      %v4023 = vadd.f32 %v3987, %v4007
      %v4024 = vadd.f32 %v3988, %v4007
      %v4025 = vadd.f32 %v3989, %v4007
      %v4026 = vadd.f32 %v3990, %v4007
      %v4027 = vadd.f32 %v3991, %v4007
      %v4028 = vadd.f32 %v3992, %v4007
      %v4029 = vadd.f32 %v3993, %v4007
      %v4030 = vadd.f32 %v3994, %v4007
      %v4031 = vadd.f32 %v3995, %v4007
      %v4032 = vadd.f32 %v3996, %v4007
      %v4033 = vadd.f32 %v3997, %v4007
      %v4034 = vadd.f32 %v3998, %v4007
      %v4035 = vadd.f32 %v3999, %v4007
      %v4036 = vadd.f32 %v4000, %v4007
      %v4037 = vadd.f32 %v4001, %v4007
      %v4038 = vadd.f32 %v4002, %v4007
      %v4039 = vadd.f32 %v4003, %v4007
      %v4040 = vmax.f32 %v4008, 0.0
      %v4041 = vmax.f32 %v4009, 0.0
      %v4042 = vmax.f32 %v4010, 0.0
      %v4043 = vmax.f32 %v4011, 0.0
      %v4044 = vmax.f32 %v4012, 0.0
      %v4045 = vmax.f32 %v4013, 0.0
      %v4046 = vmax.f32 %v4014, 0.0
      %v4047 = vmax.f32 %v4015, 0.0
      %v4048 = vmax.f32 %v4016, 0.0
      %v4049 = vmax.f32 %v4017, 0.0
      %v4050 = vmax.f32 %v4018, 0.0
      %v4051 = vmax.f32 %v4019, 0.0
      %v4052 = vmax.f32 %v4020, 0.0
      %v4053 = vmax.f32 %v4021, 0.0
      %v4054 = vmax.f32 %v4022, 0.0
      %v4055 = vmax.f32 %v4023, 0.0
      %v4056 = vmax.f32 %v4024, 0.0
      %v4057 = vmax.f32 %v4025, 0.0
      %v4058 = vmax.f32 %v4026, 0.0
      %v4059 = vmax.f32 %v4027, 0.0
      %v4060 = vmax.f32 %v4028, 0.0
      %v4061 = vmax.f32 %v4029, 0.0
      %v4062 = vmax.f32 %v4030, 0.0
      %v4063 = vmax.f32 %v4031, 0.0
      %v4064 = vmax.f32 %v4032, 0.0
      %v4065 = vmax.f32 %v4033, 0.0
      %v4066 = vmax.f32 %v4034, 0.0
      %v4067 = vmax.f32 %v4035, 0.0
      %v4068 = vmax.f32 %v4036, 0.0
      %v4069 = vmax.f32 %v4037, 0.0
      %v4070 = vmax.f32 %v4038, 0.0
      %v4071 = vmax.f32 %v4039, 0.0
      %4072 = vst.msk [vmem:[#allocation3] sm:$0xff] %vm1571, %v4040
      %4073 = vst.msk [vmem:[#allocation3 + $0x8] sm:$0xff] %vm1571, %v4041
      %4074 = vst.msk [vmem:[#allocation3 + $0x10] sm:$0xff] %vm1571, %v4042
      %4075 = vst.msk [vmem:[#allocation3 + $0x18] sm:$0xff] %vm1571, %v4043
      %4076 = vst.msk [vmem:[#allocation3 + $0x20] sm:$0xff] %vm1571, %v4044
      %4077 = vst.msk [vmem:[#allocation3 + $0x28] sm:$0xff] %vm1571, %v4045
      %4078 = vst.msk [vmem:[#allocation3 + $0x30] sm:$0xff] %vm1571, %v4046
      %4079 = vst.msk [vmem:[#allocation3 + $0x38] sm:$0xff] %vm1571, %v4047
      %4080 = vst.msk [vmem:[#allocation3 + $0x40] sm:$0xff] %vm1571, %v4048
      %4081 = vst.msk [vmem:[#allocation3 + $0x48] sm:$0xff] %vm1571, %v4049
      %4082 = vst.msk [vmem:[#allocation3 + $0x50] sm:$0xff] %vm1571, %v4050
      %4083 = vst.msk [vmem:[#allocation3 + $0x58] sm:$0xff] %vm1571, %v4051
      %4084 = vst.msk [vmem:[#allocation3 + $0x60] sm:$0xff] %vm1571, %v4052
      %4085 = vst.msk [vmem:[#allocation3 + $0x68] sm:$0xff] %vm1571, %v4053
      %4086 = vst.msk [vmem:[#allocation3 + $0x70] sm:$0xff] %vm1571, %v4054
      %4087 = vst.msk [vmem:[#allocation3 + $0x78] sm:$0xff] %vm1571, %v4055
      %4088 = vst.msk [vmem:[#allocation3 + $0x80] sm:$0xff] %vm1571, %v4056
      %4089 = vst.msk [vmem:[#allocation3 + $0x88] sm:$0xff] %vm1571, %v4057
      %4090 = vst.msk [vmem:[#allocation3 + $0x90] sm:$0xff] %vm1571, %v4058
      %4091 = vst.msk [vmem:[#allocation3 + $0x98] sm:$0xff] %vm1571, %v4059
      %4092 = vst.msk [vmem:[#allocation3 + $0xa0] sm:$0xff] %vm1571, %v4060
      %4093 = vst.msk [vmem:[#allocation3 + $0xa8] sm:$0xff] %vm1571, %v4061
      %4094 = vst.msk [vmem:[#allocation3 + $0xb0] sm:$0xff] %vm1571, %v4062
      %4095 = vst.msk [vmem:[#allocation3 + $0xb8] sm:$0xff] %vm1571, %v4063
      %4096 = vst.msk [vmem:[#allocation3 + $0xc0] sm:$0xff] %vm1571, %v4064
      %4097 = vst.msk [vmem:[#allocation3 + $0xc8] sm:$0xff] %vm1571, %v4065
      %4098 = vst.msk [vmem:[#allocation3 + $0xd0] sm:$0xff] %vm1571, %v4066
      %4099 = vst.msk [vmem:[#allocation3 + $0xd8] sm:$0xff] %vm1571, %v4067
      %4100 = vst.msk [vmem:[#allocation3 + $0xe0] sm:$0xff] %vm1571, %v4068
      %4101 = vst.msk [vmem:[#allocation3 + $0xe8] sm:$0xff] %vm1571, %v4069
      %4102 = vst.msk [vmem:[#allocation3 + $0xf0] sm:$0xff] %vm1571, %v4070
      %4103 = vst.msk [vmem:[#allocation3 + $0xf8] sm:$0xff] %vm1571, %v4071
      %v4104 = vld [vmem:[#allocation3] sm:$0xff]
      %v4105 = vld [vmem:[#allocation3 + $0x8] sm:$0xff]
      %v4106 = vld [vmem:[#allocation3 + $0x10] sm:$0xff]
      %v4107 = vld [vmem:[#allocation3 + $0x18] sm:$0xff]
      %v4108 = vld [vmem:[#allocation3 + $0x20] sm:$0xff]
      %v4109 = vld [vmem:[#allocation3 + $0x28] sm:$0xff]
      %v4110 = vld [vmem:[#allocation3 + $0x30] sm:$0xff]
      %v4111 = vld [vmem:[#allocation3 + $0x38] sm:$0xff]
      %v4112 = vld [vmem:[#allocation3 + $0x40] sm:$0xff]
      %v4113 = vld [vmem:[#allocation3 + $0x48] sm:$0xff]
      %v4114 = vld [vmem:[#allocation3 + $0x50] sm:$0xff]
      %v4115 = vld [vmem:[#allocation3 + $0x58] sm:$0xff]
      %v4116 = vld [vmem:[#allocation3 + $0x60] sm:$0xff]
      %v4117 = vld [vmem:[#allocation3 + $0x68] sm:$0xff]
      %v4118 = vld [vmem:[#allocation3 + $0x70] sm:$0xff]
      %v4119 = vld [vmem:[#allocation3 + $0x78] sm:$0xff]
      %v4120 = vld [vmem:[#allocation3 + $0x80] sm:$0xff]
      %v4121 = vld [vmem:[#allocation3 + $0x88] sm:$0xff]
      %v4122 = vld [vmem:[#allocation3 + $0x90] sm:$0xff]
      %v4123 = vld [vmem:[#allocation3 + $0x98] sm:$0xff]
      %v4124 = vld [vmem:[#allocation3 + $0xa0] sm:$0xff]
      %v4125 = vld [vmem:[#allocation3 + $0xa8] sm:$0xff]
      %v4126 = vld [vmem:[#allocation3 + $0xb0] sm:$0xff]
      %v4127 = vld [vmem:[#allocation3 + $0xb8] sm:$0xff]
      %v4128 = vld [vmem:[#allocation3 + $0xc0] sm:$0xff]
      %v4129 = vld [vmem:[#allocation3 + $0xc8] sm:$0xff]
      %v4130 = vld [vmem:[#allocation3 + $0xd0] sm:$0xff]
      %v4131 = vld [vmem:[#allocation3 + $0xd8] sm:$0xff]
      %v4132 = vld [vmem:[#allocation3 + $0xe0] sm:$0xff]
      %v4133 = vld [vmem:[#allocation3 + $0xe8] sm:$0xff]
      %v4134 = vld [vmem:[#allocation3 + $0xf0] sm:$0xff]
      %v4135 = vld [vmem:[#allocation3 + $0xf8] sm:$0xff]
      %v4136 = vld [vmem:[%s5] sm:$0xff]
      %v4137 = vld [vmem:[%s5 + $0x8] sm:$0xff]
      %v4138 = vld [vmem:[%s5 + $0x10] sm:$0xff]
      %v4139 = vld [vmem:[%s5 + $0x18] sm:$0xff]
      %v4140 = vld [vmem:[%s5 + $0x20] sm:$0xff]
      %v4141 = vld [vmem:[%s5 + $0x28] sm:$0xff]
      %v4142 = vld [vmem:[%s5 + $0x30] sm:$0xff]
      %v4143 = vld [vmem:[%s5 + $0x38] sm:$0xff]
      %v4144 = vld [vmem:[%s5 + $0x40] sm:$0xff]
      %vm4177 = vcmask 1041408
      %v4178 = vrot.slane 0.0, 6
      %v4179 = vsel %vm4177, %v4178, %v4178
      %v4180 = vrot.slane %v4104, 6
      %v4181 = vrot.slane %v4105, 6
      %v4182 = vsel %vm4177, %v4180, %v4181
      %v4183 = vrot.slane %v4106, 6
      %v4184 = vrot.slane %v4107, 6
      %v4185 = vsel %vm4177, %v4183, %v4184
      %v4186 = vrot.slane %v4108, 6
      %v4187 = vrot.slane %v4109, 6
      %v4188 = vsel %vm4177, %v4186, %v4187
      %v4189 = vrot.slane %v4110, 6
      %v4190 = vrot.slane %v4111, 6
      %v4191 = vsel %vm4177, %v4189, %v4190
      %v4192 = vrot.slane %v4112, 6
      %v4193 = vrot.slane %v4113, 6
      %v4194 = vsel %vm4177, %v4192, %v4193
      %v4195 = vrot.slane %v4114, 6
      %v4196 = vrot.slane %v4115, 6
      %v4197 = vsel %vm4177, %v4195, %v4196
      %v4198 = vrot.slane %v4116, 6
      %v4199 = vrot.slane %v4117, 6
      %v4200 = vsel %vm4177, %v4198, %v4199
      %v4201 = vrot.slane %v4118, 6
      %v4202 = vrot.slane %v4119, 6
      %v4203 = vsel %vm4177, %v4201, %v4202
      %v4204 = vrot.slane %v4120, 6
      %v4205 = vrot.slane %v4121, 6
      %v4206 = vsel %vm4177, %v4204, %v4205
      %v4207 = vrot.slane %v4122, 6
      %v4208 = vrot.slane %v4123, 6
      %v4209 = vsel %vm4177, %v4207, %v4208
      %v4210 = vrot.slane %v4124, 6
      %v4211 = vrot.slane %v4125, 6
      %v4212 = vsel %vm4177, %v4210, %v4211
      %v4213 = vrot.slane %v4126, 6
      %v4214 = vrot.slane %v4127, 6
      %v4215 = vsel %vm4177, %v4213, %v4214
      %v4216 = vrot.slane %v4128, 6
      %v4217 = vrot.slane %v4129, 6
      %v4218 = vsel %vm4177, %v4216, %v4217
      %v4219 = vrot.slane %v4130, 6
      %v4220 = vrot.slane %v4131, 6
      %v4221 = vsel %vm4177, %v4219, %v4220
      %v4222 = vrot.slane %v4132, 6
      %v4223 = vrot.slane %v4133, 6
      %v4224 = vsel %vm4177, %v4222, %v4223
      %v4225 = vrot.slane %v4134, 6
      %v4226 = vrot.slane %v4135, 6
      %v4227 = vsel %vm4177, %v4225, %v4226
      %v4276 = vsel %vm4177, 0.0, %v4178
      %v4277 = vsel %vm4177, 0.0, %v4180
      %v4278 = vsel %vm4177, 0.0, %v4183
      %v4279 = vsel %vm4177, 0.0, %v4186
      %v4280 = vsel %vm4177, 0.0, %v4189
      %v4281 = vsel %vm4177, 0.0, %v4192
      %v4282 = vsel %vm4177, 0.0, %v4195
      %v4283 = vsel %vm4177, 0.0, %v4198
      %v4284 = vsel %vm4177, 0.0, %v4201
      %v4285 = vsel %vm4177, 0.0, %v4204
      %v4286 = vsel %vm4177, 0.0, %v4207
      %v4287 = vsel %vm4177, 0.0, %v4210
      %v4288 = vsel %vm4177, 0.0, %v4213
      %v4289 = vsel %vm4177, 0.0, %v4216
      %v4290 = vsel %vm4177, 0.0, %v4219
      %v4291 = vsel %vm4177, 0.0, %v4222
      %v4292 = vsel %vm4177, 0.0, %v4225
      %v4293 = vsel %vm4177, %v4178, 0.0
      %v4294 = vsel %vm4177, %v4181, 0.0
      %v4295 = vsel %vm4177, %v4184, 0.0
      %v4296 = vsel %vm4177, %v4187, 0.0
      %v4297 = vsel %vm4177, %v4190, 0.0
      %v4298 = vsel %vm4177, %v4193, 0.0
      %v4299 = vsel %vm4177, %v4196, 0.0
      %v4300 = vsel %vm4177, %v4199, 0.0
      %v4301 = vsel %vm4177, %v4202, 0.0
      %v4302 = vsel %vm4177, %v4205, 0.0
      %v4303 = vsel %vm4177, %v4208, 0.0
      %v4304 = vsel %vm4177, %v4211, 0.0
      %v4305 = vsel %vm4177, %v4214, 0.0
      %v4306 = vsel %vm4177, %v4217, 0.0
      %v4307 = vsel %vm4177, %v4220, 0.0
      %v4308 = vsel %vm4177, %v4223, 0.0
      %v4309 = vsel %vm4177, %v4226, 0.0
      %v4340 = vrot.slane %v4276, 2
      %v4341 = vrot.slane %v4179, 2
      %v4342 = vsel %vm773, %v4340, %v4341
      %v4343 = vrot.slane %v4293, 2
      %v4344 = vsel %vm773, %v4341, %v4343
      %v4345 = vrot.slane %v4277, 2
      %v4346 = vrot.slane %v4182, 2
      %v4347 = vsel %vm773, %v4345, %v4346
      %v4348 = vrot.slane %v4294, 2
      %v4349 = vsel %vm773, %v4346, %v4348
      %v4350 = vrot.slane %v4278, 2
      %v4351 = vrot.slane %v4185, 2
      %v4352 = vsel %vm773, %v4350, %v4351
      %v4353 = vrot.slane %v4295, 2
      %v4354 = vsel %vm773, %v4351, %v4353
      %v4355 = vrot.slane %v4279, 2
      %v4356 = vrot.slane %v4188, 2
      %v4357 = vsel %vm773, %v4355, %v4356
      %v4358 = vrot.slane %v4296, 2
      %v4359 = vsel %vm773, %v4356, %v4358
      %v4360 = vrot.slane %v4280, 2
      %v4361 = vrot.slane %v4191, 2
      %v4362 = vsel %vm773, %v4360, %v4361
      %v4363 = vrot.slane %v4297, 2
      %v4364 = vsel %vm773, %v4361, %v4363
      %v4365 = vrot.slane %v4281, 2
      %v4366 = vrot.slane %v4194, 2
      %v4367 = vsel %vm773, %v4365, %v4366
      %v4368 = vrot.slane %v4298, 2
      %v4369 = vsel %vm773, %v4366, %v4368
      %v4370 = vrot.slane %v4282, 2
      %v4371 = vrot.slane %v4197, 2
      %v4372 = vsel %vm773, %v4370, %v4371
      %v4373 = vrot.slane %v4299, 2
      %v4374 = vsel %vm773, %v4371, %v4373
      %v4375 = vrot.slane %v4283, 2
      %v4376 = vrot.slane %v4200, 2
      %v4377 = vsel %vm773, %v4375, %v4376
      %v4378 = vrot.slane %v4300, 2
      %v4379 = vsel %vm773, %v4376, %v4378
      %v4380 = vrot.slane %v4284, 2
      %v4381 = vrot.slane %v4203, 2
      %v4382 = vsel %vm773, %v4380, %v4381
      %v4383 = vrot.slane %v4301, 2
      %v4384 = vsel %vm773, %v4381, %v4383
      %v4385 = vrot.slane %v4285, 2
      %v4386 = vrot.slane %v4206, 2
      %v4387 = vsel %vm773, %v4385, %v4386
      %v4388 = vrot.slane %v4302, 2
      %v4389 = vsel %vm773, %v4386, %v4388
      %v4390 = vrot.slane %v4286, 2
      %v4391 = vrot.slane %v4209, 2
      %v4392 = vsel %vm773, %v4390, %v4391
      %v4393 = vrot.slane %v4303, 2
      %v4394 = vsel %vm773, %v4391, %v4393
      %v4395 = vrot.slane %v4287, 2
      %v4396 = vrot.slane %v4212, 2
      %v4397 = vsel %vm773, %v4395, %v4396
      %v4398 = vrot.slane %v4304, 2
      %v4399 = vsel %vm773, %v4396, %v4398
      %v4400 = vrot.slane %v4288, 2
      %v4401 = vrot.slane %v4215, 2
      %v4402 = vsel %vm773, %v4400, %v4401
      %v4403 = vrot.slane %v4305, 2
      %v4404 = vsel %vm773, %v4401, %v4403
      %v4405 = vrot.slane %v4289, 2
      %v4406 = vrot.slane %v4218, 2
      %v4407 = vsel %vm773, %v4405, %v4406
      %v4408 = vrot.slane %v4306, 2
      %v4409 = vsel %vm773, %v4406, %v4408
      %v4410 = vrot.slane %v4290, 2
      %v4411 = vrot.slane %v4221, 2
      %v4412 = vsel %vm773, %v4410, %v4411
      %v4413 = vrot.slane %v4307, 2
      %v4414 = vsel %vm773, %v4411, %v4413
      %4415 = vrot.lane.b32.xlu0 %v4342, 8
      %v4416 = vpop.permute.xlu0 %4415
      %4417 = vrot.lane.b32.xlu0 %v4344, 8
      %v4418 = vpop.permute.xlu0 %4417
      %4419 = vrot.lane.b32.xlu0 %v4347, 8
      %v4420 = vpop.permute.xlu0 %4419
      %4421 = vrot.lane.b32.xlu0 %v4349, 8
      %v4422 = vpop.permute.xlu0 %4421
      %4423 = vrot.lane.b32.xlu0 %v4352, 8
      %v4424 = vpop.permute.xlu0 %4423
      %4425 = vrot.lane.b32.xlu0 %v4354, 8
      %v4426 = vpop.permute.xlu0 %4425
      %4427 = vrot.lane.b32.xlu0 %v4357, 8
      %v4428 = vpop.permute.xlu0 %4427
      %4429 = vrot.lane.b32.xlu0 %v4359, 8
      %v4430 = vpop.permute.xlu0 %4429
      %4431 = vrot.lane.b32.xlu0 %v4362, 8
      %v4432 = vpop.permute.xlu0 %4431
      %4433 = vrot.lane.b32.xlu0 %v4364, 8
      %v4434 = vpop.permute.xlu0 %4433
      %4435 = vrot.lane.b32.xlu0 %v4367, 8
      %v4436 = vpop.permute.xlu0 %4435
      %4437 = vrot.lane.b32.xlu0 %v4369, 8
      %v4438 = vpop.permute.xlu0 %4437
      %4439 = vrot.lane.b32.xlu0 %v4372, 8
      %v4440 = vpop.permute.xlu0 %4439
      %4441 = vrot.lane.b32.xlu0 %v4374, 8
      %v4442 = vpop.permute.xlu0 %4441
      %4443 = vrot.lane.b32.xlu0 %v4377, 8
      %v4444 = vpop.permute.xlu0 %4443
      %4445 = vrot.lane.b32.xlu0 %v4379, 8
      %v4446 = vpop.permute.xlu0 %4445
      %4447 = vrot.lane.b32.xlu0 %v4382, 8
      %v4448 = vpop.permute.xlu0 %4447
      %4449 = vrot.lane.b32.xlu0 %v4384, 8
      %v4450 = vpop.permute.xlu0 %4449
      %4451 = vrot.lane.b32.xlu0 %v4387, 8
      %v4452 = vpop.permute.xlu0 %4451
      %4453 = vrot.lane.b32.xlu0 %v4389, 8
      %v4454 = vpop.permute.xlu0 %4453
      %4455 = vrot.lane.b32.xlu0 %v4392, 8
      %v4456 = vpop.permute.xlu0 %4455
      %4457 = vrot.lane.b32.xlu0 %v4394, 8
      %v4458 = vpop.permute.xlu0 %4457
      %4459 = vrot.lane.b32.xlu0 %v4397, 8
      %v4460 = vpop.permute.xlu0 %4459
      %4461 = vrot.lane.b32.xlu0 %v4399, 8
      %v4462 = vpop.permute.xlu0 %4461
      %4463 = vrot.lane.b32.xlu0 %v4402, 8
      %v4464 = vpop.permute.xlu0 %4463
      %4465 = vrot.lane.b32.xlu0 %v4404, 8
      %v4466 = vpop.permute.xlu0 %4465
      %4467 = vrot.lane.b32.xlu0 %v4407, 8
      %v4468 = vpop.permute.xlu0 %4467
      %4469 = vrot.lane.b32.xlu0 %v4409, 8
      %v4470 = vpop.permute.xlu0 %4469
      %4471 = vrot.lane.b32.xlu0 %v4412, 8
      %v4472 = vpop.permute.xlu0 %4471
      %4473 = vrot.lane.b32.xlu0 %v4414, 8
      %v4474 = vpop.permute.xlu0 %4473
      %v4505 = vrot.slane %v4276, 4
      %v4506 = vrot.slane %v4179, 4
      %v4507 = vsel %vm1899, %v4505, %v4506
      %v4508 = vrot.slane %v4293, 4
      %v4509 = vsel %vm1899, %v4506, %v4508
      %v4510 = vrot.slane %v4277, 4
      %v4511 = vrot.slane %v4182, 4
      %v4512 = vsel %vm1899, %v4510, %v4511
      %v4513 = vrot.slane %v4294, 4
      %v4514 = vsel %vm1899, %v4511, %v4513
      %v4515 = vrot.slane %v4278, 4
      %v4516 = vrot.slane %v4185, 4
      %v4517 = vsel %vm1899, %v4515, %v4516
      %v4518 = vrot.slane %v4295, 4
      %v4519 = vsel %vm1899, %v4516, %v4518
      %v4520 = vrot.slane %v4279, 4
      %v4521 = vrot.slane %v4188, 4
      %v4522 = vsel %vm1899, %v4520, %v4521
      %v4523 = vrot.slane %v4296, 4
      %v4524 = vsel %vm1899, %v4521, %v4523
      %v4525 = vrot.slane %v4280, 4
      %v4526 = vrot.slane %v4191, 4
      %v4527 = vsel %vm1899, %v4525, %v4526
      %v4528 = vrot.slane %v4297, 4
      %v4529 = vsel %vm1899, %v4526, %v4528
      %v4530 = vrot.slane %v4281, 4
      %v4531 = vrot.slane %v4194, 4
      %v4532 = vsel %vm1899, %v4530, %v4531
      %v4533 = vrot.slane %v4298, 4
      %v4534 = vsel %vm1899, %v4531, %v4533
      %v4535 = vrot.slane %v4282, 4
      %v4536 = vrot.slane %v4197, 4
      %v4537 = vsel %vm1899, %v4535, %v4536
      %v4538 = vrot.slane %v4299, 4
      %v4539 = vsel %vm1899, %v4536, %v4538
      %v4540 = vrot.slane %v4283, 4
      %v4541 = vrot.slane %v4200, 4
      %v4542 = vsel %vm1899, %v4540, %v4541
      %v4543 = vrot.slane %v4300, 4
      %v4544 = vsel %vm1899, %v4541, %v4543
      %v4545 = vrot.slane %v4284, 4
      %v4546 = vrot.slane %v4203, 4
      %v4547 = vsel %vm1899, %v4545, %v4546
      %v4548 = vrot.slane %v4301, 4
      %v4549 = vsel %vm1899, %v4546, %v4548
      %v4550 = vrot.slane %v4285, 4
      %v4551 = vrot.slane %v4206, 4
      %v4552 = vsel %vm1899, %v4550, %v4551
      %v4553 = vrot.slane %v4302, 4
      %v4554 = vsel %vm1899, %v4551, %v4553
      %v4555 = vrot.slane %v4286, 4
      %v4556 = vrot.slane %v4209, 4
      %v4557 = vsel %vm1899, %v4555, %v4556
      %v4558 = vrot.slane %v4303, 4
      %v4559 = vsel %vm1899, %v4556, %v4558
      %v4560 = vrot.slane %v4287, 4
      %v4561 = vrot.slane %v4212, 4
      %v4562 = vsel %vm1899, %v4560, %v4561
      %v4563 = vrot.slane %v4304, 4
      %v4564 = vsel %vm1899, %v4561, %v4563
      %v4565 = vrot.slane %v4288, 4
      %v4566 = vrot.slane %v4215, 4
      %v4567 = vsel %vm1899, %v4565, %v4566
      %v4568 = vrot.slane %v4305, 4
      %v4569 = vsel %vm1899, %v4566, %v4568
      %v4570 = vrot.slane %v4289, 4
      %v4571 = vrot.slane %v4218, 4
      %v4572 = vsel %vm1899, %v4570, %v4571
      %v4573 = vrot.slane %v4306, 4
      %v4574 = vsel %vm1899, %v4571, %v4573
      %v4575 = vrot.slane %v4290, 4
      %v4576 = vrot.slane %v4221, 4
      %v4577 = vsel %vm1899, %v4575, %v4576
      %v4578 = vrot.slane %v4307, 4
      %v4579 = vsel %vm1899, %v4576, %v4578
      %4580 = vrot.lane.b32.xlu0 %v4507, 16
      %v4581 = vpop.permute.xlu0 %4580
      %4582 = vrot.lane.b32.xlu0 %v4509, 16
      %v4583 = vpop.permute.xlu0 %4582
      %4584 = vrot.lane.b32.xlu0 %v4512, 16
      %v4585 = vpop.permute.xlu0 %4584
      %4586 = vrot.lane.b32.xlu0 %v4514, 16
      %v4587 = vpop.permute.xlu0 %4586
      %4588 = vrot.lane.b32.xlu0 %v4517, 16
      %v4589 = vpop.permute.xlu0 %4588
      %4590 = vrot.lane.b32.xlu0 %v4519, 16
      %v4591 = vpop.permute.xlu0 %4590
      %4592 = vrot.lane.b32.xlu0 %v4522, 16
      %v4593 = vpop.permute.xlu0 %4592
      %4594 = vrot.lane.b32.xlu0 %v4524, 16
      %v4595 = vpop.permute.xlu0 %4594
      %4596 = vrot.lane.b32.xlu0 %v4527, 16
      %v4597 = vpop.permute.xlu0 %4596
      %4598 = vrot.lane.b32.xlu0 %v4529, 16
      %v4599 = vpop.permute.xlu0 %4598
      %4600 = vrot.lane.b32.xlu0 %v4532, 16
      %v4601 = vpop.permute.xlu0 %4600
      %4602 = vrot.lane.b32.xlu0 %v4534, 16
      %v4603 = vpop.permute.xlu0 %4602
      %4604 = vrot.lane.b32.xlu0 %v4537, 16
      %v4605 = vpop.permute.xlu0 %4604
      %4606 = vrot.lane.b32.xlu0 %v4539, 16
      %v4607 = vpop.permute.xlu0 %4606
      %4608 = vrot.lane.b32.xlu0 %v4542, 16
      %v4609 = vpop.permute.xlu0 %4608
      %4610 = vrot.lane.b32.xlu0 %v4544, 16
      %v4611 = vpop.permute.xlu0 %4610
      %4612 = vrot.lane.b32.xlu0 %v4547, 16
      %v4613 = vpop.permute.xlu0 %4612
      %4614 = vrot.lane.b32.xlu0 %v4549, 16
      %v4615 = vpop.permute.xlu0 %4614
      %4616 = vrot.lane.b32.xlu0 %v4552, 16
      %v4617 = vpop.permute.xlu0 %4616
      %4618 = vrot.lane.b32.xlu0 %v4554, 16
      %v4619 = vpop.permute.xlu0 %4618
      %4620 = vrot.lane.b32.xlu0 %v4557, 16
      %v4621 = vpop.permute.xlu0 %4620
      %4622 = vrot.lane.b32.xlu0 %v4559, 16
      %v4623 = vpop.permute.xlu0 %4622
      %4624 = vrot.lane.b32.xlu0 %v4562, 16
      %v4625 = vpop.permute.xlu0 %4624
      %4626 = vrot.lane.b32.xlu0 %v4564, 16
      %v4627 = vpop.permute.xlu0 %4626
      %4628 = vrot.lane.b32.xlu0 %v4567, 16
      %v4629 = vpop.permute.xlu0 %4628
      %4630 = vrot.lane.b32.xlu0 %v4569, 16
      %v4631 = vpop.permute.xlu0 %4630
      %4632 = vrot.lane.b32.xlu0 %v4572, 16
      %v4633 = vpop.permute.xlu0 %4632
      %4634 = vrot.lane.b32.xlu0 %v4574, 16
      %v4635 = vpop.permute.xlu0 %4634
      %4636 = vrot.lane.b32.xlu0 %v4577, 16
      %v4637 = vpop.permute.xlu0 %4636
      %4638 = vrot.lane.b32.xlu0 %v4579, 16
      %v4639 = vpop.permute.xlu0 %4638
      %4672 = vrot.lane.b32.xlu0 %v4277, 24
      %v4673 = vpop.permute.xlu0 %4672
      %4674 = vrot.lane.b32.xlu0 %v4182, 24
      %v4675 = vpop.permute.xlu0 %4674
      %4676 = vrot.lane.b32.xlu0 %v4278, 24
      %v4677 = vpop.permute.xlu0 %4676
      %4678 = vrot.lane.b32.xlu0 %v4185, 24
      %v4679 = vpop.permute.xlu0 %4678
      %4680 = vrot.lane.b32.xlu0 %v4279, 24
      %v4681 = vpop.permute.xlu0 %4680
      %4682 = vrot.lane.b32.xlu0 %v4188, 24
      %v4683 = vpop.permute.xlu0 %4682
      %4684 = vrot.lane.b32.xlu0 %v4280, 24
      %v4685 = vpop.permute.xlu0 %4684
      %4686 = vrot.lane.b32.xlu0 %v4191, 24
      %v4687 = vpop.permute.xlu0 %4686
      %4688 = vrot.lane.b32.xlu0 %v4281, 24
      %v4689 = vpop.permute.xlu0 %4688
      %4690 = vrot.lane.b32.xlu0 %v4194, 24
      %v4691 = vpop.permute.xlu0 %4690
      %4692 = vrot.lane.b32.xlu0 %v4282, 24
      %v4693 = vpop.permute.xlu0 %4692
      %4694 = vrot.lane.b32.xlu0 %v4197, 24
      %v4695 = vpop.permute.xlu0 %4694
      %4696 = vrot.lane.b32.xlu0 %v4283, 24
      %v4697 = vpop.permute.xlu0 %4696
      %4698 = vrot.lane.b32.xlu0 %v4200, 24
      %v4699 = vpop.permute.xlu0 %4698
      %4700 = vrot.lane.b32.xlu0 %v4284, 24
      %v4701 = vpop.permute.xlu0 %4700
      %4702 = vrot.lane.b32.xlu0 %v4203, 24
      %v4703 = vpop.permute.xlu0 %4702
      %4704 = vrot.lane.b32.xlu0 %v4285, 24
      %v4705 = vpop.permute.xlu0 %4704
      %4706 = vrot.lane.b32.xlu0 %v4206, 24
      %v4707 = vpop.permute.xlu0 %4706
      %4708 = vrot.lane.b32.xlu0 %v4286, 24
      %v4709 = vpop.permute.xlu0 %4708
      %4710 = vrot.lane.b32.xlu0 %v4209, 24
      %v4711 = vpop.permute.xlu0 %4710
      %4712 = vrot.lane.b32.xlu0 %v4287, 24
      %v4713 = vpop.permute.xlu0 %4712
      %4714 = vrot.lane.b32.xlu0 %v4212, 24
      %v4715 = vpop.permute.xlu0 %4714
      %4716 = vrot.lane.b32.xlu0 %v4288, 24
      %v4717 = vpop.permute.xlu0 %4716
      %4718 = vrot.lane.b32.xlu0 %v4215, 24
      %v4719 = vpop.permute.xlu0 %4718
      %4720 = vrot.lane.b32.xlu0 %v4289, 24
      %v4721 = vpop.permute.xlu0 %4720
      %4722 = vrot.lane.b32.xlu0 %v4218, 24
      %v4723 = vpop.permute.xlu0 %4722
      %4724 = vrot.lane.b32.xlu0 %v4290, 24
      %v4725 = vpop.permute.xlu0 %4724
      %4726 = vrot.lane.b32.xlu0 %v4221, 24
      %v4727 = vpop.permute.xlu0 %4726
      %4728 = vrot.lane.b32.xlu0 %v4291, 24
      %v4729 = vpop.permute.xlu0 %4728
      %4730 = vrot.lane.b32.xlu0 %v4224, 24
      %v4731 = vpop.permute.xlu0 %4730
      %4732 = vrot.lane.b32.xlu0 %v4292, 24
      %v4733 = vpop.permute.xlu0 %4732
      %4734 = vrot.lane.b32.xlu0 %v4227, 24
      %v4735 = vpop.permute.xlu0 %4734
      %v4770 = vrot.slane %v4291, 2
      %v4771 = vrot.slane %v4224, 2
      %v4772 = vsel %vm773, %v4770, %v4771
      %v4773 = vrot.slane %v4308, 2
      %v4774 = vsel %vm773, %v4771, %v4773
      %v4775 = vrot.slane %v4292, 2
      %v4776 = vrot.slane %v4227, 2
      %v4777 = vsel %vm773, %v4775, %v4776
      %v4778 = vrot.slane %v4309, 2
      %v4779 = vsel %vm773, %v4776, %v4778
      %4780 = vrot.lane.b32.xlu0 %v4347, 32
      %v4781 = vpop.permute.xlu0 %4780
      %4782 = vrot.lane.b32.xlu0 %v4349, 32
      %v4783 = vpop.permute.xlu0 %4782
      %4784 = vrot.lane.b32.xlu0 %v4352, 32
      %v4785 = vpop.permute.xlu0 %4784
      %4786 = vrot.lane.b32.xlu0 %v4354, 32
      %v4787 = vpop.permute.xlu0 %4786
      %4788 = vrot.lane.b32.xlu0 %v4357, 32
      %v4789 = vpop.permute.xlu0 %4788
      %4790 = vrot.lane.b32.xlu0 %v4359, 32
      %v4791 = vpop.permute.xlu0 %4790
      %4792 = vrot.lane.b32.xlu0 %v4362, 32
      %v4793 = vpop.permute.xlu0 %4792
      %4794 = vrot.lane.b32.xlu0 %v4364, 32
      %v4795 = vpop.permute.xlu0 %4794
      %4796 = vrot.lane.b32.xlu0 %v4367, 32
      %v4797 = vpop.permute.xlu0 %4796
      %4798 = vrot.lane.b32.xlu0 %v4369, 32
      %v4799 = vpop.permute.xlu0 %4798
      %4800 = vrot.lane.b32.xlu0 %v4372, 32
      %v4801 = vpop.permute.xlu0 %4800
      %4802 = vrot.lane.b32.xlu0 %v4374, 32
      %v4803 = vpop.permute.xlu0 %4802
      %4804 = vrot.lane.b32.xlu0 %v4377, 32
      %v4805 = vpop.permute.xlu0 %4804
      %4806 = vrot.lane.b32.xlu0 %v4379, 32
      %v4807 = vpop.permute.xlu0 %4806
      %4808 = vrot.lane.b32.xlu0 %v4382, 32
      %v4809 = vpop.permute.xlu0 %4808
      %4810 = vrot.lane.b32.xlu0 %v4384, 32
      %v4811 = vpop.permute.xlu0 %4810
      %4812 = vrot.lane.b32.xlu0 %v4387, 32
      %v4813 = vpop.permute.xlu0 %4812
      %4814 = vrot.lane.b32.xlu0 %v4389, 32
      %v4815 = vpop.permute.xlu0 %4814
      %4816 = vrot.lane.b32.xlu0 %v4392, 32
      %v4817 = vpop.permute.xlu0 %4816
      %4818 = vrot.lane.b32.xlu0 %v4394, 32
      %v4819 = vpop.permute.xlu0 %4818
      %4820 = vrot.lane.b32.xlu0 %v4397, 32
      %v4821 = vpop.permute.xlu0 %4820
      %4822 = vrot.lane.b32.xlu0 %v4399, 32
      %v4823 = vpop.permute.xlu0 %4822
      %4824 = vrot.lane.b32.xlu0 %v4402, 32
      %v4825 = vpop.permute.xlu0 %4824
      %4826 = vrot.lane.b32.xlu0 %v4404, 32
      %v4827 = vpop.permute.xlu0 %4826
      %4828 = vrot.lane.b32.xlu0 %v4407, 32
      %v4829 = vpop.permute.xlu0 %4828
      %4830 = vrot.lane.b32.xlu0 %v4409, 32
      %v4831 = vpop.permute.xlu0 %4830
      %4832 = vrot.lane.b32.xlu0 %v4412, 32
      %v4833 = vpop.permute.xlu0 %4832
      %4834 = vrot.lane.b32.xlu0 %v4414, 32
      %v4835 = vpop.permute.xlu0 %4834
      %4836 = vrot.lane.b32.xlu0 %v4772, 32
      %v4837 = vpop.permute.xlu0 %4836
      %4838 = vrot.lane.b32.xlu0 %v4774, 32
      %v4839 = vpop.permute.xlu0 %4838
      %4840 = vrot.lane.b32.xlu0 %v4777, 32
      %v4841 = vpop.permute.xlu0 %4840
      %4842 = vrot.lane.b32.xlu0 %v4779, 32
      %v4843 = vpop.permute.xlu0 %4842
      %v4876 = vrot.slane %v4291, 4
      %v4877 = vrot.slane %v4224, 4
      %v4878 = vsel %vm1899, %v4876, %v4877
      %v4879 = vrot.slane %v4308, 4
      %v4880 = vsel %vm1899, %v4877, %v4879
      %v4881 = vrot.slane %v4292, 4
      %v4882 = vrot.slane %v4227, 4
      %v4883 = vsel %vm1899, %v4881, %v4882
      %v4884 = vrot.slane %v4309, 4
      %v4885 = vsel %vm1899, %v4882, %v4884
      %4886 = vrot.lane.b32.xlu0 %v4512, 40
      %v4887 = vpop.permute.xlu0 %4886
      %4888 = vrot.lane.b32.xlu0 %v4514, 40
      %v4889 = vpop.permute.xlu0 %4888
      %4890 = vrot.lane.b32.xlu0 %v4517, 40
      %v4891 = vpop.permute.xlu0 %4890
      %4892 = vrot.lane.b32.xlu0 %v4519, 40
      %v4893 = vpop.permute.xlu0 %4892
      %4894 = vrot.lane.b32.xlu0 %v4522, 40
      %v4895 = vpop.permute.xlu0 %4894
      %4896 = vrot.lane.b32.xlu0 %v4524, 40
      %v4897 = vpop.permute.xlu0 %4896
      %4898 = vrot.lane.b32.xlu0 %v4527, 40
      %v4899 = vpop.permute.xlu0 %4898
      %4900 = vrot.lane.b32.xlu0 %v4529, 40
      %v4901 = vpop.permute.xlu0 %4900
      %4902 = vrot.lane.b32.xlu0 %v4532, 40
      %v4903 = vpop.permute.xlu0 %4902
      %4904 = vrot.lane.b32.xlu0 %v4534, 40
      %v4905 = vpop.permute.xlu0 %4904
      %4906 = vrot.lane.b32.xlu0 %v4537, 40
      %v4907 = vpop.permute.xlu0 %4906
      %4908 = vrot.lane.b32.xlu0 %v4539, 40
      %v4909 = vpop.permute.xlu0 %4908
      %4910 = vrot.lane.b32.xlu0 %v4542, 40
      %v4911 = vpop.permute.xlu0 %4910
      %4912 = vrot.lane.b32.xlu0 %v4544, 40
      %v4913 = vpop.permute.xlu0 %4912
      %4914 = vrot.lane.b32.xlu0 %v4547, 40
      %v4915 = vpop.permute.xlu0 %4914
      %4916 = vrot.lane.b32.xlu0 %v4549, 40
      %v4917 = vpop.permute.xlu0 %4916
      %4918 = vrot.lane.b32.xlu0 %v4552, 40
      %v4919 = vpop.permute.xlu0 %4918
      %4920 = vrot.lane.b32.xlu0 %v4554, 40
      %v4921 = vpop.permute.xlu0 %4920
      %4922 = vrot.lane.b32.xlu0 %v4557, 40
      %v4923 = vpop.permute.xlu0 %4922
      %4924 = vrot.lane.b32.xlu0 %v4559, 40
      %v4925 = vpop.permute.xlu0 %4924
      %4926 = vrot.lane.b32.xlu0 %v4562, 40
      %v4927 = vpop.permute.xlu0 %4926
      %4928 = vrot.lane.b32.xlu0 %v4564, 40
      %v4929 = vpop.permute.xlu0 %4928
      %4930 = vrot.lane.b32.xlu0 %v4567, 40
      %v4931 = vpop.permute.xlu0 %4930
      %4932 = vrot.lane.b32.xlu0 %v4569, 40
      %v4933 = vpop.permute.xlu0 %4932
      %4934 = vrot.lane.b32.xlu0 %v4572, 40
      %v4935 = vpop.permute.xlu0 %4934
      %4936 = vrot.lane.b32.xlu0 %v4574, 40
      %v4937 = vpop.permute.xlu0 %4936
      %4938 = vrot.lane.b32.xlu0 %v4577, 40
      %v4939 = vpop.permute.xlu0 %4938
      %4940 = vrot.lane.b32.xlu0 %v4579, 40
      %v4941 = vpop.permute.xlu0 %4940
      %4942 = vrot.lane.b32.xlu0 %v4878, 40
      %v4943 = vpop.permute.xlu0 %4942
      %4944 = vrot.lane.b32.xlu0 %v4880, 40
      %v4945 = vpop.permute.xlu0 %4944
      %4946 = vrot.lane.b32.xlu0 %v4883, 40
      %v4947 = vpop.permute.xlu0 %4946
      %4948 = vrot.lane.b32.xlu0 %v4885, 40
      %v4949 = vpop.permute.xlu0 %4948
      %4982 = vrot.lane.b32.xlu0 %v4279, 48
      %v4983 = vpop.permute.xlu0 %4982
      %4984 = vrot.lane.b32.xlu0 %v4188, 48
      %v4985 = vpop.permute.xlu0 %4984
      %4986 = vrot.lane.b32.xlu0 %v4280, 48
      %v4987 = vpop.permute.xlu0 %4986
      %4988 = vrot.lane.b32.xlu0 %v4191, 48
      %v4989 = vpop.permute.xlu0 %4988
      %4990 = vrot.lane.b32.xlu0 %v4281, 48
      %v4991 = vpop.permute.xlu0 %4990
      %4992 = vrot.lane.b32.xlu0 %v4194, 48
      %v4993 = vpop.permute.xlu0 %4992
      %4994 = vrot.lane.b32.xlu0 %v4282, 48
      %v4995 = vpop.permute.xlu0 %4994
      %4996 = vrot.lane.b32.xlu0 %v4197, 48
      %v4997 = vpop.permute.xlu0 %4996
      %4998 = vrot.lane.b32.xlu0 %v4283, 48
      %v4999 = vpop.permute.xlu0 %4998
      %5000 = vrot.lane.b32.xlu0 %v4200, 48
      %v5001 = vpop.permute.xlu0 %5000
      %5002 = vrot.lane.b32.xlu0 %v4284, 48
      %v5003 = vpop.permute.xlu0 %5002
      %5004 = vrot.lane.b32.xlu0 %v4203, 48
      %v5005 = vpop.permute.xlu0 %5004
      %5006 = vrot.lane.b32.xlu0 %v4285, 48
      %v5007 = vpop.permute.xlu0 %5006
      %5008 = vrot.lane.b32.xlu0 %v4206, 48
      %v5009 = vpop.permute.xlu0 %5008
      %5010 = vrot.lane.b32.xlu0 %v4286, 48
      %v5011 = vpop.permute.xlu0 %5010
      %5012 = vrot.lane.b32.xlu0 %v4209, 48
      %v5013 = vpop.permute.xlu0 %5012
      %5014 = vrot.lane.b32.xlu0 %v4287, 48
      %v5015 = vpop.permute.xlu0 %5014
      %5016 = vrot.lane.b32.xlu0 %v4212, 48
      %v5017 = vpop.permute.xlu0 %5016
      %5018 = vrot.lane.b32.xlu0 %v4288, 48
      %v5019 = vpop.permute.xlu0 %5018
      %5020 = vrot.lane.b32.xlu0 %v4215, 48
      %v5021 = vpop.permute.xlu0 %5020
      %5022 = vrot.lane.b32.xlu0 %v4289, 48
      %v5023 = vpop.permute.xlu0 %5022
      %5024 = vrot.lane.b32.xlu0 %v4218, 48
      %v5025 = vpop.permute.xlu0 %5024
      %5026 = vrot.lane.b32.xlu0 %v4290, 48
      %v5027 = vpop.permute.xlu0 %5026
      %5028 = vrot.lane.b32.xlu0 %v4221, 48
      %v5029 = vpop.permute.xlu0 %5028
      %5030 = vrot.lane.b32.xlu0 %v4291, 48
      %v5031 = vpop.permute.xlu0 %5030
      %5032 = vrot.lane.b32.xlu0 %v4224, 48
      %v5033 = vpop.permute.xlu0 %5032
      %5034 = vrot.lane.b32.xlu0 %v4292, 48
      %v5035 = vpop.permute.xlu0 %5034
      %5036 = vrot.lane.b32.xlu0 %v4227, 48
      %v5037 = vpop.permute.xlu0 %5036
      %5038 = vrot.lane.b32.xlu0 %v4276, 48
      %v5039 = vpop.permute.xlu0 %5038
      %5040 = vrot.lane.b32.xlu0 %v4179, 48
      %v5041 = vpop.permute.xlu0 %5040
      %5072 = vrot.lane.b32.xlu0 %v4357, 56
      %v5073 = vpop.permute.xlu0 %5072
      %5074 = vrot.lane.b32.xlu0 %v4359, 56
      %v5075 = vpop.permute.xlu0 %5074
      %5076 = vrot.lane.b32.xlu0 %v4362, 56
      %v5077 = vpop.permute.xlu0 %5076
      %5078 = vrot.lane.b32.xlu0 %v4364, 56
      %v5079 = vpop.permute.xlu0 %5078
      %5080 = vrot.lane.b32.xlu0 %v4367, 56
      %v5081 = vpop.permute.xlu0 %5080
      %5082 = vrot.lane.b32.xlu0 %v4369, 56
      %v5083 = vpop.permute.xlu0 %5082
      %5084 = vrot.lane.b32.xlu0 %v4372, 56
      %v5085 = vpop.permute.xlu0 %5084
      %5086 = vrot.lane.b32.xlu0 %v4374, 56
      %v5087 = vpop.permute.xlu0 %5086
      %5088 = vrot.lane.b32.xlu0 %v4377, 56
      %v5089 = vpop.permute.xlu0 %5088
      %5090 = vrot.lane.b32.xlu0 %v4379, 56
      %v5091 = vpop.permute.xlu0 %5090
      %5092 = vrot.lane.b32.xlu0 %v4382, 56
      %v5093 = vpop.permute.xlu0 %5092
      %5094 = vrot.lane.b32.xlu0 %v4384, 56
      %v5095 = vpop.permute.xlu0 %5094
      %5096 = vrot.lane.b32.xlu0 %v4387, 56
      %v5097 = vpop.permute.xlu0 %5096
      %5098 = vrot.lane.b32.xlu0 %v4389, 56
      %v5099 = vpop.permute.xlu0 %5098
      %5100 = vrot.lane.b32.xlu0 %v4392, 56
      %v5101 = vpop.permute.xlu0 %5100
      %5102 = vrot.lane.b32.xlu0 %v4394, 56
      %v5103 = vpop.permute.xlu0 %5102
      %5104 = vrot.lane.b32.xlu0 %v4397, 56
      %v5105 = vpop.permute.xlu0 %5104
      %5106 = vrot.lane.b32.xlu0 %v4399, 56
      %v5107 = vpop.permute.xlu0 %5106
      %5108 = vrot.lane.b32.xlu0 %v4402, 56
      %v5109 = vpop.permute.xlu0 %5108
      %5110 = vrot.lane.b32.xlu0 %v4404, 56
      %v5111 = vpop.permute.xlu0 %5110
      %5112 = vrot.lane.b32.xlu0 %v4407, 56
      %v5113 = vpop.permute.xlu0 %5112
      %5114 = vrot.lane.b32.xlu0 %v4409, 56
      %v5115 = vpop.permute.xlu0 %5114
      %5116 = vrot.lane.b32.xlu0 %v4412, 56
      %v5117 = vpop.permute.xlu0 %5116
      %5118 = vrot.lane.b32.xlu0 %v4414, 56
      %v5119 = vpop.permute.xlu0 %5118
      %5120 = vrot.lane.b32.xlu0 %v4772, 56
      %v5121 = vpop.permute.xlu0 %5120
      %5122 = vrot.lane.b32.xlu0 %v4774, 56
      %v5123 = vpop.permute.xlu0 %5122
      %5124 = vrot.lane.b32.xlu0 %v4777, 56
      %v5125 = vpop.permute.xlu0 %5124
      %5126 = vrot.lane.b32.xlu0 %v4779, 56
      %v5127 = vpop.permute.xlu0 %5126
      %5128 = vrot.lane.b32.xlu0 %v4342, 56
      %v5129 = vpop.permute.xlu0 %5128
      %5130 = vrot.lane.b32.xlu0 %v4344, 56
      %v5131 = vpop.permute.xlu0 %5130
      %5162 = vrot.lane.b32.xlu0 %v4522, 64
      %v5163 = vpop.permute.xlu0 %5162
      %5164 = vrot.lane.b32.xlu0 %v4524, 64
      %v5165 = vpop.permute.xlu0 %5164
      %5166 = vrot.lane.b32.xlu0 %v4527, 64
      %v5167 = vpop.permute.xlu0 %5166
      %5168 = vrot.lane.b32.xlu0 %v4529, 64
      %v5169 = vpop.permute.xlu0 %5168
      %5170 = vrot.lane.b32.xlu0 %v4532, 64
      %v5171 = vpop.permute.xlu0 %5170
      %5172 = vrot.lane.b32.xlu0 %v4534, 64
      %v5173 = vpop.permute.xlu0 %5172
      %5174 = vrot.lane.b32.xlu0 %v4537, 64
      %v5175 = vpop.permute.xlu0 %5174
      %5176 = vrot.lane.b32.xlu0 %v4539, 64
      %v5177 = vpop.permute.xlu0 %5176
      %5178 = vrot.lane.b32.xlu0 %v4542, 64
      %v5179 = vpop.permute.xlu0 %5178
      %5180 = vrot.lane.b32.xlu0 %v4544, 64
      %v5181 = vpop.permute.xlu0 %5180
      %5182 = vrot.lane.b32.xlu0 %v4547, 64
      %v5183 = vpop.permute.xlu0 %5182
      %5184 = vrot.lane.b32.xlu0 %v4549, 64
      %v5185 = vpop.permute.xlu0 %5184
      %5186 = vrot.lane.b32.xlu0 %v4552, 64
      %v5187 = vpop.permute.xlu0 %5186
      %5188 = vrot.lane.b32.xlu0 %v4554, 64
      %v5189 = vpop.permute.xlu0 %5188
      %5190 = vrot.lane.b32.xlu0 %v4557, 64
      %v5191 = vpop.permute.xlu0 %5190
      %5192 = vrot.lane.b32.xlu0 %v4559, 64
      %v5193 = vpop.permute.xlu0 %5192
      %5194 = vrot.lane.b32.xlu0 %v4562, 64
      %v5195 = vpop.permute.xlu0 %5194
      %5196 = vrot.lane.b32.xlu0 %v4564, 64
      %v5197 = vpop.permute.xlu0 %5196
      %5198 = vrot.lane.b32.xlu0 %v4567, 64
      %v5199 = vpop.permute.xlu0 %5198
      %5200 = vrot.lane.b32.xlu0 %v4569, 64
      %v5201 = vpop.permute.xlu0 %5200
      %5202 = vrot.lane.b32.xlu0 %v4572, 64
      %v5203 = vpop.permute.xlu0 %5202
      %5204 = vrot.lane.b32.xlu0 %v4574, 64
      %v5205 = vpop.permute.xlu0 %5204
      %5206 = vrot.lane.b32.xlu0 %v4577, 64
      %v5207 = vpop.permute.xlu0 %5206
      %5208 = vrot.lane.b32.xlu0 %v4579, 64
      %v5209 = vpop.permute.xlu0 %5208
      %5210 = vrot.lane.b32.xlu0 %v4878, 64
      %v5211 = vpop.permute.xlu0 %5210
      %5212 = vrot.lane.b32.xlu0 %v4880, 64
      %v5213 = vpop.permute.xlu0 %5212
      %5214 = vrot.lane.b32.xlu0 %v4883, 64
      %v5215 = vpop.permute.xlu0 %5214
      %5216 = vrot.lane.b32.xlu0 %v4885, 64
      %v5217 = vpop.permute.xlu0 %5216
      %5218 = vrot.lane.b32.xlu0 %v4507, 64
      %v5219 = vpop.permute.xlu0 %5218
      %5220 = vrot.lane.b32.xlu0 %v4509, 64
      %v5221 = vpop.permute.xlu0 %5220
      %v5252 = vsel %vm1571, %v4276, %v4416
      %v5253 = vsel %vm1571, %v4179, %v4418
      %v5254 = vsel %vm1571, %v4277, %v4420
      %v5255 = vsel %vm1571, %v4182, %v4422
      %v5256 = vsel %vm1571, %v4278, %v4424
      %v5257 = vsel %vm1571, %v4185, %v4426
      %v5258 = vsel %vm1571, %v4279, %v4428
      %v5259 = vsel %vm1571, %v4188, %v4430
      %v5260 = vsel %vm1571, %v4280, %v4432
      %v5261 = vsel %vm1571, %v4191, %v4434
      %v5262 = vsel %vm1571, %v4281, %v4436
      %v5263 = vsel %vm1571, %v4194, %v4438
      %v5264 = vsel %vm1571, %v4282, %v4440
      %v5265 = vsel %vm1571, %v4197, %v4442
      %v5266 = vsel %vm1571, %v4283, %v4444
      %v5267 = vsel %vm1571, %v4200, %v4446
      %v5268 = vsel %vm1571, %v4284, %v4448
      %v5269 = vsel %vm1571, %v4203, %v4450
      %v5270 = vsel %vm1571, %v4285, %v4452
      %v5271 = vsel %vm1571, %v4206, %v4454
      %v5272 = vsel %vm1571, %v4286, %v4456
      %v5273 = vsel %vm1571, %v4209, %v4458
      %v5274 = vsel %vm1571, %v4287, %v4460
      %v5275 = vsel %vm1571, %v4212, %v4462
      %v5276 = vsel %vm1571, %v4288, %v4464
      %v5277 = vsel %vm1571, %v4215, %v4466
      %v5278 = vsel %vm1571, %v4289, %v4468
      %v5279 = vsel %vm1571, %v4218, %v4470
      %v5280 = vsel %vm1571, %v4290, %v4472
      %v5281 = vsel %vm1571, %v4221, %v4474
      %v5282 = vsel %vm1637, %v5252, %v4581
      %v5283 = vsel %vm1637, %v5253, %v4583
      %v5284 = vsel %vm1637, %v5254, %v4585
      %v5285 = vsel %vm1637, %v5255, %v4587
      %v5286 = vsel %vm1637, %v5256, %v4589
      %v5287 = vsel %vm1637, %v5257, %v4591
      %v5288 = vsel %vm1637, %v5258, %v4593
      %v5289 = vsel %vm1637, %v5259, %v4595
      %v5290 = vsel %vm1637, %v5260, %v4597
      %v5291 = vsel %vm1637, %v5261, %v4599
      %v5292 = vsel %vm1637, %v5262, %v4601
      %v5293 = vsel %vm1637, %v5263, %v4603
      %v5294 = vsel %vm1637, %v5264, %v4605
      %v5295 = vsel %vm1637, %v5265, %v4607
      %v5296 = vsel %vm1637, %v5266, %v4609
      %v5297 = vsel %vm1637, %v5267, %v4611
      %v5298 = vsel %vm1637, %v5268, %v4613
      %v5299 = vsel %vm1637, %v5269, %v4615
      %v5300 = vsel %vm1637, %v5270, %v4617
      %v5301 = vsel %vm1637, %v5271, %v4619
      %v5302 = vsel %vm1637, %v5272, %v4621
      %v5303 = vsel %vm1637, %v5273, %v4623
      %v5304 = vsel %vm1637, %v5274, %v4625
      %v5305 = vsel %vm1637, %v5275, %v4627
      %v5306 = vsel %vm1637, %v5276, %v4629
      %v5307 = vsel %vm1637, %v5277, %v4631
      %v5308 = vsel %vm1637, %v5278, %v4633
      %v5309 = vsel %vm1637, %v5279, %v4635
      %v5310 = vsel %vm1637, %v5280, %v4637
      %v5311 = vsel %vm1637, %v5281, %v4639
      %v5312 = vsel %vm1703, %v5282, %v4673
      %v5313 = vsel %vm1703, %v5283, %v4675
      %v5314 = vsel %vm1703, %v5282, %v4677
      %v5315 = vsel %vm1703, %v5283, %v4679
      %v5316 = vsel %vm1703, %v5284, %v4681
      %v5317 = vsel %vm1703, %v5285, %v4683
      %v5318 = vsel %vm1703, %v5286, %v4685
      %v5319 = vsel %vm1703, %v5287, %v4687
      %v5320 = vsel %vm1703, %v5288, %v4689
      %v5321 = vsel %vm1703, %v5289, %v4691
      %v5322 = vsel %vm1703, %v5290, %v4693
      %v5323 = vsel %vm1703, %v5291, %v4695
      %v5324 = vsel %vm1703, %v5292, %v4697
      %v5325 = vsel %vm1703, %v5293, %v4699
      %v5326 = vsel %vm1703, %v5294, %v4701
      %v5327 = vsel %vm1703, %v5295, %v4703
      %v5328 = vsel %vm1703, %v5296, %v4705
      %v5329 = vsel %vm1703, %v5297, %v4707
      %v5330 = vsel %vm1703, %v5298, %v4709
      %v5331 = vsel %vm1703, %v5299, %v4711
      %v5332 = vsel %vm1703, %v5300, %v4713
      %v5333 = vsel %vm1703, %v5301, %v4715
      %v5334 = vsel %vm1703, %v5302, %v4717
      %v5335 = vsel %vm1703, %v5303, %v4719
      %v5336 = vsel %vm1703, %v5304, %v4721
      %v5337 = vsel %vm1703, %v5305, %v4723
      %v5338 = vsel %vm1703, %v5306, %v4725
      %v5339 = vsel %vm1703, %v5307, %v4727
      %v5340 = vsel %vm1703, %v5308, %v4729
      %v5341 = vsel %vm1703, %v5309, %v4731
      %v5342 = vsel %vm1703, %v5310, %v4733
      %v5343 = vsel %vm1703, %v5311, %v4735
      %v5344 = vsel %vm1769, %v5312, %v4781
      %v5345 = vsel %vm1769, %v5313, %v4783
      %v5346 = vsel %vm1769, %v5314, %v4785
      %v5347 = vsel %vm1769, %v5315, %v4787
      %v5348 = vsel %vm1769, %v5316, %v4789
      %v5349 = vsel %vm1769, %v5317, %v4791
      %v5350 = vsel %vm1769, %v5318, %v4793
      %v5351 = vsel %vm1769, %v5319, %v4795
      %v5352 = vsel %vm1769, %v5320, %v4797
      %v5353 = vsel %vm1769, %v5321, %v4799
      %v5354 = vsel %vm1769, %v5322, %v4801
      %v5355 = vsel %vm1769, %v5323, %v4803
      %v5356 = vsel %vm1769, %v5324, %v4805
      %v5357 = vsel %vm1769, %v5325, %v4807
      %v5358 = vsel %vm1769, %v5326, %v4809
      %v5359 = vsel %vm1769, %v5327, %v4811
      %v5360 = vsel %vm1769, %v5328, %v4813
      %v5361 = vsel %vm1769, %v5329, %v4815
      %v5362 = vsel %vm1769, %v5330, %v4817
      %v5363 = vsel %vm1769, %v5331, %v4819
      %v5364 = vsel %vm1769, %v5332, %v4821
      %v5365 = vsel %vm1769, %v5333, %v4823
      %v5366 = vsel %vm1769, %v5334, %v4825
      %v5367 = vsel %vm1769, %v5335, %v4827
      %v5368 = vsel %vm1769, %v5336, %v4829
      %v5369 = vsel %vm1769, %v5337, %v4831
      %v5370 = vsel %vm1769, %v5338, %v4833
      %v5371 = vsel %vm1769, %v5339, %v4835
      %v5372 = vsel %vm1769, %v5340, %v4837
      %v5373 = vsel %vm1769, %v5341, %v4839
      %v5374 = vsel %vm1769, %v5342, %v4841
      %v5375 = vsel %vm1769, %v5343, %v4843
      %vm5376 = vcmask 326656
      %v5377 = vsel %vm5376, %v5344, %v4887
      %v5378 = vsel %vm5376, %v5345, %v4889
      %v5379 = vsel %vm5376, %v5346, %v4891
      %v5380 = vsel %vm5376, %v5347, %v4893
      %v5381 = vsel %vm5376, %v5348, %v4895
      %v5382 = vsel %vm5376, %v5349, %v4897
      %v5383 = vsel %vm5376, %v5350, %v4899
      %v5384 = vsel %vm5376, %v5351, %v4901
      %v5385 = vsel %vm5376, %v5352, %v4903
      %v5386 = vsel %vm5376, %v5353, %v4905
      %v5387 = vsel %vm5376, %v5354, %v4907
      %v5388 = vsel %vm5376, %v5355, %v4909
      %v5389 = vsel %vm5376, %v5356, %v4911
      %v5390 = vsel %vm5376, %v5357, %v4913
      %v5391 = vsel %vm5376, %v5358, %v4915
      %v5392 = vsel %vm5376, %v5359, %v4917
      %v5393 = vsel %vm5376, %v5360, %v4919
      %v5394 = vsel %vm5376, %v5361, %v4921
      %v5395 = vsel %vm5376, %v5362, %v4923
      %v5396 = vsel %vm5376, %v5363, %v4925
      %v5397 = vsel %vm5376, %v5364, %v4927
      %v5398 = vsel %vm5376, %v5365, %v4929
      %v5399 = vsel %vm5376, %v5366, %v4931
      %v5400 = vsel %vm5376, %v5367, %v4933
      %v5401 = vsel %vm5376, %v5368, %v4935
      %v5402 = vsel %vm5376, %v5369, %v4937
      %v5403 = vsel %vm5376, %v5370, %v4939
      %v5404 = vsel %vm5376, %v5371, %v4941
      %v5405 = vsel %vm5376, %v5372, %v4943
      %v5406 = vsel %vm5376, %v5373, %v4945
      %v5407 = vsel %vm5376, %v5374, %v4947
      %v5408 = vsel %vm5376, %v5375, %v4949
      %vm5409 = vcmask 392192
      %v5410 = vsel %vm5409, %v5377, %v4983
      %v5411 = vsel %vm5409, %v5378, %v4985
      %v5412 = vsel %vm5409, %v5379, %v4987
      %v5413 = vsel %vm5409, %v5380, %v4989
      %v5414 = vsel %vm5409, %v5381, %v4991
      %v5415 = vsel %vm5409, %v5382, %v4993
      %v5416 = vsel %vm5409, %v5383, %v4995
      %v5417 = vsel %vm5409, %v5384, %v4997
      %v5418 = vsel %vm5409, %v5385, %v4999
      %v5419 = vsel %vm5409, %v5386, %v5001
      %v5420 = vsel %vm5409, %v5387, %v5003
      %v5421 = vsel %vm5409, %v5388, %v5005
      %v5422 = vsel %vm5409, %v5389, %v5007
      %v5423 = vsel %vm5409, %v5390, %v5009
      %v5424 = vsel %vm5409, %v5391, %v5011
      %v5425 = vsel %vm5409, %v5392, %v5013
      %v5426 = vsel %vm5409, %v5393, %v5015
      %v5427 = vsel %vm5409, %v5394, %v5017
      %v5428 = vsel %vm5409, %v5395, %v5019
      %v5429 = vsel %vm5409, %v5396, %v5021
      %v5430 = vsel %vm5409, %v5397, %v5023
      %v5431 = vsel %vm5409, %v5398, %v5025
      %v5432 = vsel %vm5409, %v5399, %v5027
      %v5433 = vsel %vm5409, %v5400, %v5029
      %v5434 = vsel %vm5409, %v5401, %v5031
      %v5435 = vsel %vm5409, %v5402, %v5033
      %v5436 = vsel %vm5409, %v5403, %v5035
      %v5437 = vsel %vm5409, %v5404, %v5037
      %v5438 = vsel %vm5409, %v5405, %v5039
      %v5439 = vsel %vm5409, %v5406, %v5041
      %v5440 = vsel %vm5409, %v5407, %v5039
      %v5441 = vsel %vm5409, %v5408, %v5041
      %vm5442 = vcmask 457728
      %v5443 = vsel %vm5442, %v5410, %v5073
      %v5444 = vsel %vm5442, %v5411, %v5075
      %v5445 = vsel %vm5442, %v5412, %v5077
      %v5446 = vsel %vm5442, %v5413, %v5079
      %v5447 = vsel %vm5442, %v5414, %v5081
      %v5448 = vsel %vm5442, %v5415, %v5083
      %v5449 = vsel %vm5442, %v5416, %v5085
      %v5450 = vsel %vm5442, %v5417, %v5087
      %v5451 = vsel %vm5442, %v5418, %v5089
      %v5452 = vsel %vm5442, %v5419, %v5091
      %v5453 = vsel %vm5442, %v5420, %v5093
      %v5454 = vsel %vm5442, %v5421, %v5095
      %v5455 = vsel %vm5442, %v5422, %v5097
      %v5456 = vsel %vm5442, %v5423, %v5099
      %v5457 = vsel %vm5442, %v5424, %v5101
      %v5458 = vsel %vm5442, %v5425, %v5103
      %v5459 = vsel %vm5442, %v5426, %v5105
      %v5460 = vsel %vm5442, %v5427, %v5107
      %v5461 = vsel %vm5442, %v5428, %v5109
      %v5462 = vsel %vm5442, %v5429, %v5111
      %v5463 = vsel %vm5442, %v5430, %v5113
      %v5464 = vsel %vm5442, %v5431, %v5115
      %v5465 = vsel %vm5442, %v5432, %v5117
      %v5466 = vsel %vm5442, %v5433, %v5119
      %v5467 = vsel %vm5442, %v5434, %v5121
      %v5468 = vsel %vm5442, %v5435, %v5123
      %v5469 = vsel %vm5442, %v5436, %v5125
      %v5470 = vsel %vm5442, %v5437, %v5127
      %v5471 = vsel %vm5442, %v5438, %v5129
      %v5472 = vsel %vm5442, %v5439, %v5131
      %v5473 = vsel %vm5442, %v5440, %v5129
      %v5474 = vsel %vm5442, %v5441, %v5131
      %vm5475 = vcmask 523264
      %v5476 = vsel %vm5475, %v5443, %v5163
      %v5477 = vsel %vm5475, %v5444, %v5165
      %v5478 = vsel %vm5475, %v5445, %v5167
      %v5479 = vsel %vm5475, %v5446, %v5169
      %v5480 = vsel %vm5475, %v5447, %v5171
      %v5481 = vsel %vm5475, %v5448, %v5173
      %v5482 = vsel %vm5475, %v5449, %v5175
      %v5483 = vsel %vm5475, %v5450, %v5177
      %v5484 = vsel %vm5475, %v5451, %v5179
      %v5485 = vsel %vm5475, %v5452, %v5181
      %v5486 = vsel %vm5475, %v5453, %v5183
      %v5487 = vsel %vm5475, %v5454, %v5185
      %v5488 = vsel %vm5475, %v5455, %v5187
      %v5489 = vsel %vm5475, %v5456, %v5189
      %v5490 = vsel %vm5475, %v5457, %v5191
      %v5491 = vsel %vm5475, %v5458, %v5193
      %v5492 = vsel %vm5475, %v5459, %v5195
      %v5493 = vsel %vm5475, %v5460, %v5197
      %v5494 = vsel %vm5475, %v5461, %v5199
      %v5495 = vsel %vm5475, %v5462, %v5201
      %v5496 = vsel %vm5475, %v5463, %v5203
      %v5497 = vsel %vm5475, %v5464, %v5205
      %v5498 = vsel %vm5475, %v5465, %v5207
      %v5499 = vsel %vm5475, %v5466, %v5209
      %v5500 = vsel %vm5475, %v5467, %v5211
      %v5501 = vsel %vm5475, %v5468, %v5213
      %v5502 = vsel %vm5475, %v5469, %v5215
      %v5503 = vsel %vm5475, %v5470, %v5217
      %v5504 = vsel %vm5475, %v5471, %v5219
      %v5505 = vsel %vm5475, %v5472, %v5221
      %v5506 = vsel %vm5475, %v5473, %v5219
      %v5507 = vsel %vm5475, %v5474, %v5221
      %vm5508 = vcmask 588800
      %v5510 = vsel %vm5508, %v5476, 0
      %v5513 = vsel %vm5508, %v5477, 0
      %v5516 = vsel %vm5508, %v5478, 0
      %v5519 = vsel %vm5508, %v5479, 0
      %v5522 = vsel %vm5508, %v5480, 0
      %v5525 = vsel %vm5508, %v5481, 0
      %v5528 = vsel %vm5508, %v5482, 0
      %v5531 = vsel %vm5508, %v5483, 0
      %v5534 = vsel %vm5508, %v5484, 0
      %v5537 = vsel %vm5508, %v5485, 0
      %v5540 = vsel %vm5508, %v5486, 0
      %v5543 = vsel %vm5508, %v5487, 0
      %v5546 = vsel %vm5508, %v5488, 0
      %v5549 = vsel %vm5508, %v5489, 0
      %v5552 = vsel %vm5508, %v5490, 0
      %v5555 = vsel %vm5508, %v5491, 0
      %v5558 = vsel %vm5508, %v5492, 0
      %v5561 = vsel %vm5508, %v5493, 0
      %v5564 = vsel %vm5508, %v5494, 0
      %v5567 = vsel %vm5508, %v5495, 0
      %v5570 = vsel %vm5508, %v5496, 0
      %v5573 = vsel %vm5508, %v5497, 0
      %v5576 = vsel %vm5508, %v5498, 0
      %v5579 = vsel %vm5508, %v5499, 0
      %v5582 = vsel %vm5508, %v5500, 0
      %v5585 = vsel %vm5508, %v5501, 0
      %v5588 = vsel %vm5508, %v5502, 0
      %v5591 = vsel %vm5508, %v5503, 0
      %v5594 = vsel %vm5508, %v5504, 0
      %v5597 = vsel %vm5508, %v5505, 0
      %v5600 = vsel %vm5508, %v5506, 0
      %v5603 = vsel %vm5508, %v5507, 0
      %5605 = vmatprep.subr.mxu0 0.0
      %5606 = vmatpush1.msra.mxu0 0.0
      %5607 = vmatprep.subr.mxu0 0.0
      %5608 = vmatpush1.msra.mxu0 0.0
      %5609 = vmatprep.subr.mxu0 0.0
      %5610 = vmatpush1.msra.mxu0 0.0
      %5611 = vmatprep.subr.mxu0 0.0
      %5612 = vmatpush1.msra.mxu0 0.0
      %5613 = vmatprep.subr.mxu0 0.0
      %5614 = vmatpush1.msra.mxu0 0.0
      %5615 = vmatprep.subr.mxu0 0.0
      %5616 = vmatpush1.msra.mxu0 0.0
      %5617 = vmatprep.subr.mxu0 0.0
      %5618 = vmatpush1.msra.mxu0 0.0
      %5619 = vmatprep.subr.mxu0 0.0
      %5620 = vmatpush1.msra.mxu0 %v4144
      %5621 = vmatprep.subr.mxu0 0.0
      %5622 = vmatpush1.msra.mxu0 %v4143
      %5623 = vmatprep.subr.mxu0 0.0
      %5624 = vmatpush1.msra.mxu0 %v4142
      %5625 = vmatprep.subr.mxu0 0.0
      %5626 = vmatpush1.msra.mxu0 %v4141
      %5627 = vmatprep.subr.mxu0 0.0
      %5628 = vmatpush1.msra.mxu0 %v4140
      %5629 = vmatprep.subr.mxu0 0.0
      %5630 = vmatpush1.msra.mxu0 %v4139
      %5631 = vmatprep.subr.mxu0 0.0
      %5632 = vmatpush1.msra.mxu0 %v4138
      %5633 = vmatprep.subr.mxu0 0.0
      %5634 = vmatpush1.msra.mxu0 %v4137
      %5635 = vmatprep.subr.mxu0 0.0
      %5636 = vmatpush1.msra.mxu0 %v4136
      %5637 = vmatprep.subr.mxu0 0.0
      %5638 = vmatpush2.msra.mxu0 0.0
      %5639 = vmatprep.subr.mxu0 0.0
      %5640 = vmatpush2.msra.mxu0 0.0
      %5641 = vmatprep.subr.mxu0 0.0
      %5642 = vmatpush2.msra.mxu0 0.0
      %5643 = vmatprep.subr.mxu0 0.0
      %5644 = vmatpush2.msra.mxu0 0.0
      %5645 = vmatprep.subr.mxu0 0.0
      %5646 = vmatpush2.msra.mxu0 0.0
      %5647 = vmatprep.subr.mxu0 0.0
      %5648 = vmatpush2.msra.mxu0 0.0
      %5649 = vmatprep.subr.mxu0 0.0
      %5650 = vmatpush2.msra.mxu0 0.0
      %5651 = vmatprep.subr.mxu0 0.0
      %5652 = vmatpush2.msra.mxu0 0.0
      %5653 = vmatprep.subr.mxu0 0.0
      %5654 = vmatpush2.msra.mxu0 0.0
      %5655 = vmatprep.subr.mxu0 0.0
      %5656 = vmatpush2.msra.mxu0 0.0
      %5657 = vmatprep.subr.mxu0 0.0
      %5658 = vmatpush2.msra.mxu0 0.0
      %5659 = vmatprep.subr.mxu0 0.0
      %5660 = vmatpush2.msra.mxu0 0.0
      %5661 = vmatprep.subr.mxu0 0.0
      %5662 = vmatpush2.msra.mxu0 0.0
      %5663 = vmatprep.subr.mxu0 0.0
      %5664 = vmatpush2.msra.mxu0 0.0
      %5665 = vmatprep.subr.mxu0 0.0
      %5666 = vmatpush2.msra.mxu0 0.0
      %5667 = vmatprep.subr.mxu0 0.0
      %5668 = vmatpush2.msra.mxu0 0.0
      %5669 = vmatprep.mubr.f32.mxu0 0.0
      %5670 = vmatmul.mubr.f32.gmra.mxu0 %v5510
      %v5671 = vpop.f32.mrf.mxu0
      %v5672 = vadd.f32 0.0, %v5671
      %v5673 = vpop.f32.mrf.mxu0
      %5674 = vmatprep.mubr.f32.mxu0 0.0
      %5675 = vmatmul.mubr.f32.gmra.mxu0 %v5513
      %v5676 = vpop.f32.mrf.mxu0
      %v5677 = vadd.f32 0.0, %v5676
      %v5678 = vpop.f32.mrf.mxu0
      %5679 = vmatprep.mubr.f32.mxu0 0.0
      %5680 = vmatmul.mubr.f32.gmra.mxu0 %v5516
      %v5681 = vpop.f32.mrf.mxu0
      %v5682 = vadd.f32 0.0, %v5681
      %v5683 = vpop.f32.mrf.mxu0
      %5684 = vmatprep.mubr.f32.mxu0 0.0
      %5685 = vmatmul.mubr.f32.gmra.mxu0 %v5519
      %v5686 = vpop.f32.mrf.mxu0
      %v5687 = vadd.f32 0.0, %v5686
      %v5688 = vpop.f32.mrf.mxu0
      %5689 = vmatprep.mubr.f32.mxu0 0.0
      %5690 = vmatmul.mubr.f32.gmra.mxu0 %v5522
      %v5691 = vpop.f32.mrf.mxu0
      %v5692 = vadd.f32 0.0, %v5691
      %v5693 = vpop.f32.mrf.mxu0
      %5694 = vmatprep.mubr.f32.mxu0 0.0
      %5695 = vmatmul.mubr.f32.gmra.mxu0 %v5525
      %v5696 = vpop.f32.mrf.mxu0
      %v5697 = vadd.f32 0.0, %v5696
      %v5698 = vpop.f32.mrf.mxu0
      %5699 = vmatprep.mubr.f32.mxu0 0.0
      %5700 = vmatmul.mubr.f32.gmra.mxu0 %v5528
      %v5701 = vpop.f32.mrf.mxu0
      %v5702 = vadd.f32 0.0, %v5701
      %v5703 = vpop.f32.mrf.mxu0
      %5704 = vmatprep.mubr.f32.mxu0 0.0
      %5705 = vmatmul.mubr.f32.gmra.mxu0 %v5531
      %v5706 = vpop.f32.mrf.mxu0
      %v5707 = vadd.f32 0.0, %v5706
      %v5708 = vpop.f32.mrf.mxu0
      %5709 = vmatprep.mubr.f32.mxu0 0.0
      %5710 = vmatmul.mubr.f32.gmra.mxu0 %v5534
      %v5711 = vpop.f32.mrf.mxu0
      %v5712 = vadd.f32 0.0, %v5711
      %v5713 = vpop.f32.mrf.mxu0
      %5714 = vmatprep.mubr.f32.mxu0 0.0
      %5715 = vmatmul.mubr.f32.gmra.mxu0 %v5537
      %v5716 = vpop.f32.mrf.mxu0
      %v5717 = vadd.f32 0.0, %v5716
      %v5718 = vpop.f32.mrf.mxu0
      %5719 = vmatprep.mubr.f32.mxu0 0.0
      %5720 = vmatmul.mubr.f32.gmra.mxu0 %v5540
      %v5721 = vpop.f32.mrf.mxu0
      %v5722 = vadd.f32 0.0, %v5721
      %v5723 = vpop.f32.mrf.mxu0
      %5724 = vmatprep.mubr.f32.mxu0 0.0
      %5725 = vmatmul.mubr.f32.gmra.mxu0 %v5543
      %v5726 = vpop.f32.mrf.mxu0
      %v5727 = vadd.f32 0.0, %v5726
      %v5728 = vpop.f32.mrf.mxu0
      %5729 = vmatprep.mubr.f32.mxu0 0.0
      %5730 = vmatmul.mubr.f32.gmra.mxu0 %v5546
      %v5731 = vpop.f32.mrf.mxu0
      %v5732 = vadd.f32 0.0, %v5731
      %v5733 = vpop.f32.mrf.mxu0
      %5734 = vmatprep.mubr.f32.mxu0 0.0
      %5735 = vmatmul.mubr.f32.gmra.mxu0 %v5549
      %v5736 = vpop.f32.mrf.mxu0
      %v5737 = vadd.f32 0.0, %v5736
      %v5738 = vpop.f32.mrf.mxu0
      %5739 = vmatprep.mubr.f32.mxu0 0.0
      %5740 = vmatmul.mubr.f32.gmra.mxu0 %v5552
      %v5741 = vpop.f32.mrf.mxu0
      %v5742 = vadd.f32 0.0, %v5741
      %v5743 = vpop.f32.mrf.mxu0
      %5744 = vmatprep.mubr.f32.mxu0 0.0
      %5745 = vmatmul.mubr.f32.gmra.mxu0 %v5555
      %v5746 = vpop.f32.mrf.mxu0
      %v5747 = vadd.f32 0.0, %v5746
      %v5748 = vpop.f32.mrf.mxu0
      %5749 = vmatprep.mubr.f32.mxu0 0.0
      %5750 = vmatmul.mubr.f32.gmra.mxu0 %v5558
      %v5751 = vpop.f32.mrf.mxu0
      %v5752 = vadd.f32 0.0, %v5751
      %v5753 = vpop.f32.mrf.mxu0
      %5754 = vmatprep.mubr.f32.mxu0 0.0
      %5755 = vmatmul.mubr.f32.gmra.mxu0 %v5561
      %v5756 = vpop.f32.mrf.mxu0
      %v5757 = vadd.f32 0.0, %v5756
      %v5758 = vpop.f32.mrf.mxu0
      %5759 = vmatprep.mubr.f32.mxu0 0.0
      %5760 = vmatmul.mubr.f32.gmra.mxu0 %v5564
      %v5761 = vpop.f32.mrf.mxu0
      %v5762 = vadd.f32 0.0, %v5761
      %v5763 = vpop.f32.mrf.mxu0
      %5764 = vmatprep.mubr.f32.mxu0 0.0
      %5765 = vmatmul.mubr.f32.gmra.mxu0 %v5567
      %v5766 = vpop.f32.mrf.mxu0
      %v5767 = vadd.f32 0.0, %v5766
      %v5768 = vpop.f32.mrf.mxu0
      %5769 = vmatprep.mubr.f32.mxu0 0.0
      %5770 = vmatmul.mubr.f32.gmra.mxu0 %v5570
      %v5771 = vpop.f32.mrf.mxu0
      %v5772 = vadd.f32 0.0, %v5771
      %v5773 = vpop.f32.mrf.mxu0
      %5774 = vmatprep.mubr.f32.mxu0 0.0
      %5775 = vmatmul.mubr.f32.gmra.mxu0 %v5573
      %v5776 = vpop.f32.mrf.mxu0
      %v5777 = vadd.f32 0.0, %v5776
      %v5778 = vpop.f32.mrf.mxu0
      %5779 = vmatprep.mubr.f32.mxu0 0.0
      %5780 = vmatmul.mubr.f32.gmra.mxu0 %v5576
      %v5781 = vpop.f32.mrf.mxu0
      %v5782 = vadd.f32 0.0, %v5781
      %v5783 = vpop.f32.mrf.mxu0
      %5784 = vmatprep.mubr.f32.mxu0 0.0
      %5785 = vmatmul.mubr.f32.gmra.mxu0 %v5579
      %v5786 = vpop.f32.mrf.mxu0
      %v5787 = vadd.f32 0.0, %v5786
      %v5788 = vpop.f32.mrf.mxu0
      %5789 = vmatprep.mubr.f32.mxu0 0.0
      %5790 = vmatmul.mubr.f32.gmra.mxu0 %v5582
      %v5791 = vpop.f32.mrf.mxu0
      %v5792 = vadd.f32 0.0, %v5791
      %v5793 = vpop.f32.mrf.mxu0
      %5794 = vmatprep.mubr.f32.mxu0 0.0
      %5795 = vmatmul.mubr.f32.gmra.mxu0 %v5585
      %v5796 = vpop.f32.mrf.mxu0
      %v5797 = vadd.f32 0.0, %v5796
      %v5798 = vpop.f32.mrf.mxu0
      %5799 = vmatprep.mubr.f32.mxu0 0.0
      %5800 = vmatmul.mubr.f32.gmra.mxu0 %v5588
      %v5801 = vpop.f32.mrf.mxu0
      %v5802 = vadd.f32 0.0, %v5801
      %v5803 = vpop.f32.mrf.mxu0
      %5804 = vmatprep.mubr.f32.mxu0 0.0
      %5805 = vmatmul.mubr.f32.gmra.mxu0 %v5591
      %v5806 = vpop.f32.mrf.mxu0
      %v5807 = vadd.f32 0.0, %v5806
      %v5808 = vpop.f32.mrf.mxu0
      %5809 = vmatprep.mubr.f32.mxu0 0.0
      %5810 = vmatmul.mubr.f32.gmra.mxu0 %v5594
      %v5811 = vpop.f32.mrf.mxu0
      %v5812 = vadd.f32 0.0, %v5811
      %v5813 = vpop.f32.mrf.mxu0
      %5814 = vmatprep.mubr.f32.mxu0 0.0
      %5815 = vmatmul.mubr.f32.gmra.mxu0 %v5597
      %v5816 = vpop.f32.mrf.mxu0
      %v5817 = vadd.f32 0.0, %v5816
      %v5818 = vpop.f32.mrf.mxu0
      %5819 = vmatprep.mubr.f32.mxu0 0.0
      %5820 = vmatmul.mubr.f32.gmra.mxu0 %v5600
      %v5821 = vpop.f32.mrf.mxu0
      %v5822 = vadd.f32 0.0, %v5821
      %v5823 = vpop.f32.mrf.mxu0
      %5824 = vmatprep.mubr.f32.mxu0 0.0
      %5825 = vmatmul.mubr.f32.gmra.mxu0 %v5603
      %v5826 = vpop.f32.mrf.mxu0
      %v5827 = vadd.f32 0.0, %v5826
      %v5828 = vpop.f32.mrf.mxu0
      %5829 = vdwg.mxu0
      %v5830 = vld [vmem:[%s6] sm:$0x3]
      %v5831 = vlaneseq
      %v5832 = vshrl.u32 %v5831, 7
      %v5833 = vsub.s32 0, %v5832
      %v5834 = vrot.slane %v5830, %v5833
      %v5835 = vmul.f32 %v5672, %v5834
      %v5836 = vmul.f32 %v5677, %v5834
      %v5837 = vmul.f32 %v5682, %v5834
      %v5838 = vmul.f32 %v5687, %v5834
      %v5839 = vmul.f32 %v5692, %v5834
      %v5840 = vmul.f32 %v5697, %v5834
      %v5841 = vmul.f32 %v5702, %v5834
      %v5842 = vmul.f32 %v5707, %v5834
      %v5843 = vmul.f32 %v5712, %v5834
      %v5844 = vmul.f32 %v5717, %v5834
      %v5845 = vmul.f32 %v5722, %v5834
      %v5846 = vmul.f32 %v5727, %v5834
      %v5847 = vmul.f32 %v5732, %v5834
      %v5848 = vmul.f32 %v5737, %v5834
      %v5849 = vmul.f32 %v5742, %v5834
      %v5850 = vmul.f32 %v5747, %v5834
      %v5851 = vmul.f32 %v5752, %v5834
      %v5852 = vmul.f32 %v5757, %v5834
      %v5853 = vmul.f32 %v5762, %v5834
      %v5854 = vmul.f32 %v5767, %v5834
      %v5855 = vmul.f32 %v5772, %v5834
      %v5856 = vmul.f32 %v5777, %v5834
      %v5857 = vmul.f32 %v5782, %v5834
      %v5858 = vmul.f32 %v5787, %v5834
      %v5859 = vmul.f32 %v5792, %v5834
      %v5860 = vmul.f32 %v5797, %v5834
      %v5861 = vmul.f32 %v5802, %v5834
      %v5862 = vmul.f32 %v5807, %v5834
      %v5863 = vmul.f32 %v5812, %v5834
      %v5864 = vmul.f32 %v5817, %v5834
      %v5865 = vmul.f32 %v5822, %v5834
      %v5866 = vmul.f32 %v5827, %v5834
      %v5867 = vlaneseq
      %v5868 = vshrl.u32 %v5867, 7
      %v5869 = vsub.s32 1, %v5868
      %v5870 = vrot.slane %v5830, %v5869
      %v5871 = vadd.f32 %v5835, %v5870
      %v5872 = vadd.f32 %v5836, %v5870
      %v5873 = vadd.f32 %v5837, %v5870
      %v5874 = vadd.f32 %v5838, %v5870
      %v5875 = vadd.f32 %v5839, %v5870
      %v5876 = vadd.f32 %v5840, %v5870
      %v5877 = vadd.f32 %v5841, %v5870
      %v5878 = vadd.f32 %v5842, %v5870
      %v5879 = vadd.f32 %v5843, %v5870
      %v5880 = vadd.f32 %v5844, %v5870
      %v5881 = vadd.f32 %v5845, %v5870
      %v5882 = vadd.f32 %v5846, %v5870
      %v5883 = vadd.f32 %v5847, %v5870
      %v5884 = vadd.f32 %v5848, %v5870
      %v5885 = vadd.f32 %v5849, %v5870
      %v5886 = vadd.f32 %v5850, %v5870
      %v5887 = vadd.f32 %v5851, %v5870
      %v5888 = vadd.f32 %v5852, %v5870
      %v5889 = vadd.f32 %v5853, %v5870
      %v5890 = vadd.f32 %v5854, %v5870
      %v5891 = vadd.f32 %v5855, %v5870
      %v5892 = vadd.f32 %v5856, %v5870
      %v5893 = vadd.f32 %v5857, %v5870
      %v5894 = vadd.f32 %v5858, %v5870
      %v5895 = vadd.f32 %v5859, %v5870
      %v5896 = vadd.f32 %v5860, %v5870
      %v5897 = vadd.f32 %v5861, %v5870
      %v5898 = vadd.f32 %v5862, %v5870
      %v5899 = vadd.f32 %v5863, %v5870
      %v5900 = vadd.f32 %v5864, %v5870
      %v5901 = vadd.f32 %v5865, %v5870
      %v5902 = vadd.f32 %v5866, %v5870
      %v5903 = vmax.f32 %v5871, 0.0
      %v5904 = vmax.f32 %v5872, 0.0
      %v5905 = vmax.f32 %v5873, 0.0
      %v5906 = vmax.f32 %v5874, 0.0
      %v5907 = vmax.f32 %v5875, 0.0
      %v5908 = vmax.f32 %v5876, 0.0
      %v5909 = vmax.f32 %v5877, 0.0
      %v5910 = vmax.f32 %v5878, 0.0
      %v5911 = vmax.f32 %v5879, 0.0
      %v5912 = vmax.f32 %v5880, 0.0
      %v5913 = vmax.f32 %v5881, 0.0
      %v5914 = vmax.f32 %v5882, 0.0
      %v5915 = vmax.f32 %v5883, 0.0
      %v5916 = vmax.f32 %v5884, 0.0
      %v5917 = vmax.f32 %v5885, 0.0
      %v5918 = vmax.f32 %v5886, 0.0
      %v5919 = vmax.f32 %v5887, 0.0
      %v5920 = vmax.f32 %v5888, 0.0
      %v5921 = vmax.f32 %v5889, 0.0
      %v5922 = vmax.f32 %v5890, 0.0
      %v5923 = vmax.f32 %v5891, 0.0
      %v5924 = vmax.f32 %v5892, 0.0
      %v5925 = vmax.f32 %v5893, 0.0
      %v5926 = vmax.f32 %v5894, 0.0
      %v5927 = vmax.f32 %v5895, 0.0
      %v5928 = vmax.f32 %v5896, 0.0
      %v5929 = vmax.f32 %v5897, 0.0
      %v5930 = vmax.f32 %v5898, 0.0
      %v5931 = vmax.f32 %v5899, 0.0
      %v5932 = vmax.f32 %v5900, 0.0
      %v5933 = vmax.f32 %v5901, 0.0
      %v5934 = vmax.f32 %v5902, 0.0
      %v5935 = vld [vmem:[%s7] sm:$0xff]
      %v5936 = vld [vmem:[%s7 + $0x8] sm:$0xff]
      %v5937 = vld [vmem:[%s7 + $0x10] sm:$0xff]
      %v5938 = vld [vmem:[%s7 + $0x18] sm:$0xff]
      %v5939 = vld [vmem:[%s7 + $0x20] sm:$0xff]
      %v5940 = vld [vmem:[%s7 + $0x28] sm:$0xff]
      %v5941 = vld [vmem:[%s7 + $0x30] sm:$0xff]
      %v5942 = vld [vmem:[%s7 + $0x38] sm:$0xff]
      %v5943 = vld [vmem:[%s7 + $0x40] sm:$0xff]
      %v5976 = vrot.slane %v5903, 7
      %v5977 = vrot.slane %v5904, 7
      %v5978 = vsel %vm430, %v5976, %v5977
      %v5979 = vrot.slane %v5905, 7
      %v5980 = vrot.slane %v5906, 7
      %v5981 = vsel %vm430, %v5979, %v5980
      %v5982 = vrot.slane %v5907, 7
      %v5983 = vrot.slane %v5908, 7
      %v5984 = vsel %vm430, %v5982, %v5983
      %v5985 = vrot.slane %v5909, 7
      %v5986 = vrot.slane %v5910, 7
      %v5987 = vsel %vm430, %v5985, %v5986
      %v5988 = vrot.slane %v5911, 7
      %v5989 = vrot.slane %v5912, 7
      %v5990 = vsel %vm430, %v5988, %v5989
      %v5991 = vrot.slane %v5913, 7
      %v5992 = vrot.slane %v5914, 7
      %v5993 = vsel %vm430, %v5991, %v5992
      %v5994 = vrot.slane %v5915, 7
      %v5995 = vrot.slane %v5916, 7
      %v5996 = vsel %vm430, %v5994, %v5995
      %v5997 = vrot.slane %v5917, 7
      %v5998 = vrot.slane %v5918, 7
      %v5999 = vsel %vm430, %v5997, %v5998
      %v6000 = vrot.slane %v5919, 7
      %v6001 = vrot.slane %v5920, 7
      %v6002 = vsel %vm430, %v6000, %v6001
      %v6003 = vrot.slane %v5921, 7
      %v6004 = vrot.slane %v5922, 7
      %v6005 = vsel %vm430, %v6003, %v6004
      %v6006 = vrot.slane %v5923, 7
      %v6007 = vrot.slane %v5924, 7
      %v6008 = vsel %vm430, %v6006, %v6007
      %v6009 = vrot.slane %v5925, 7
      %v6010 = vrot.slane %v5926, 7
      %v6011 = vsel %vm430, %v6009, %v6010
      %v6012 = vrot.slane %v5927, 7
      %v6013 = vrot.slane %v5928, 7
      %v6014 = vsel %vm430, %v6012, %v6013
      %v6015 = vrot.slane %v5929, 7
      %v6016 = vrot.slane %v5930, 7
      %v6017 = vsel %vm430, %v6015, %v6016
      %v6018 = vrot.slane %v5931, 7
      %v6019 = vrot.slane %v5932, 7
      %v6020 = vsel %vm430, %v6018, %v6019
      %v6021 = vrot.slane %v5933, 7
      %v6022 = vrot.slane %v5934, 7
      %v6023 = vsel %vm430, %v6021, %v6022
      %v6071 = vsel %vm430, 0.0, %v5976
      %v6072 = vsel %vm430, 0.0, %v5979
      %v6073 = vsel %vm430, 0.0, %v5982
      %v6074 = vsel %vm430, 0.0, %v5985
      %v6075 = vsel %vm430, 0.0, %v5988
      %v6076 = vsel %vm430, 0.0, %v5991
      %v6077 = vsel %vm430, 0.0, %v5994
      %v6078 = vsel %vm430, 0.0, %v5997
      %v6079 = vsel %vm430, 0.0, %v6000
      %v6080 = vsel %vm430, 0.0, %v6003
      %v6081 = vsel %vm430, 0.0, %v6006
      %v6082 = vsel %vm430, 0.0, %v6009
      %v6083 = vsel %vm430, 0.0, %v6012
      %v6084 = vsel %vm430, 0.0, %v6015
      %v6085 = vsel %vm430, 0.0, %v6018
      %v6086 = vsel %vm430, 0.0, %v6021
      %v6087 = vsel %vm430, %v5977, 0.0
      %v6088 = vsel %vm430, %v5980, 0.0
      %v6089 = vsel %vm430, %v5983, 0.0
      %v6090 = vsel %vm430, %v5986, 0.0
      %v6091 = vsel %vm430, %v5989, 0.0
      %v6092 = vsel %vm430, %v5992, 0.0
      %v6093 = vsel %vm430, %v5995, 0.0
      %v6094 = vsel %vm430, %v5998, 0.0
      %v6095 = vsel %vm430, %v6001, 0.0
      %v6096 = vsel %vm430, %v6004, 0.0
      %v6097 = vsel %vm430, %v6007, 0.0
      %v6098 = vsel %vm430, %v6010, 0.0
      %v6099 = vsel %vm430, %v6013, 0.0
      %v6100 = vsel %vm430, %v6016, 0.0
      %v6101 = vsel %vm430, %v6019, 0.0
      %v6102 = vsel %vm430, %v6022, 0.0
      %v6133 = vrot.slane %v6071, 1
      %v6134 = vrot.slane %v5978, 1
      %v6135 = vsel %vm596, %v6133, %v6134
      %v6136 = vrot.slane %v6087, 1
      %v6137 = vsel %vm596, %v6134, %v6136
      %v6138 = vrot.slane %v6072, 1
      %v6139 = vrot.slane %v5981, 1
      %v6140 = vsel %vm596, %v6138, %v6139
      %v6141 = vrot.slane %v6088, 1
      %v6142 = vsel %vm596, %v6139, %v6141
      %v6143 = vrot.slane %v6073, 1
      %v6144 = vrot.slane %v5984, 1
      %v6145 = vsel %vm596, %v6143, %v6144
      %v6146 = vrot.slane %v6089, 1
      %v6147 = vsel %vm596, %v6144, %v6146
      %v6148 = vrot.slane %v6074, 1
      %v6149 = vrot.slane %v5987, 1
      %v6150 = vsel %vm596, %v6148, %v6149
      %v6151 = vrot.slane %v6090, 1
      %v6152 = vsel %vm596, %v6149, %v6151
      %v6153 = vrot.slane %v6075, 1
      %v6154 = vrot.slane %v5990, 1
      %v6155 = vsel %vm596, %v6153, %v6154
      %v6156 = vrot.slane %v6091, 1
      %v6157 = vsel %vm596, %v6154, %v6156
      %v6158 = vrot.slane %v6076, 1
      %v6159 = vrot.slane %v5993, 1
      %v6160 = vsel %vm596, %v6158, %v6159
      %v6161 = vrot.slane %v6092, 1
      %v6162 = vsel %vm596, %v6159, %v6161
      %v6163 = vrot.slane %v6077, 1
      %v6164 = vrot.slane %v5996, 1
      %v6165 = vsel %vm596, %v6163, %v6164
      %v6166 = vrot.slane %v6093, 1
      %v6167 = vsel %vm596, %v6164, %v6166
      %v6168 = vrot.slane %v6078, 1
      %v6169 = vrot.slane %v5999, 1
      %v6170 = vsel %vm596, %v6168, %v6169
      %v6171 = vrot.slane %v6094, 1
      %v6172 = vsel %vm596, %v6169, %v6171
      %v6173 = vrot.slane %v6079, 1
      %v6174 = vrot.slane %v6002, 1
      %v6175 = vsel %vm596, %v6173, %v6174
      %v6176 = vrot.slane %v6095, 1
      %v6177 = vsel %vm596, %v6174, %v6176
      %v6178 = vrot.slane %v6080, 1
      %v6179 = vrot.slane %v6005, 1
      %v6180 = vsel %vm596, %v6178, %v6179
      %v6181 = vrot.slane %v6096, 1
      %v6182 = vsel %vm596, %v6179, %v6181
      %v6183 = vrot.slane %v6081, 1
      %v6184 = vrot.slane %v6008, 1
      %v6185 = vsel %vm596, %v6183, %v6184
      %v6186 = vrot.slane %v6097, 1
      %v6187 = vsel %vm596, %v6184, %v6186
      %v6188 = vrot.slane %v6082, 1
      %v6189 = vrot.slane %v6011, 1
      %v6190 = vsel %vm596, %v6188, %v6189
      %v6191 = vrot.slane %v6098, 1
      %v6192 = vsel %vm596, %v6189, %v6191
      %v6193 = vrot.slane %v6083, 1
      %v6194 = vrot.slane %v6014, 1
      %v6195 = vsel %vm596, %v6193, %v6194
      %v6196 = vrot.slane %v6099, 1
      %v6197 = vsel %vm596, %v6194, %v6196
      %v6198 = vrot.slane %v6084, 1
      %v6199 = vrot.slane %v6017, 1
      %v6200 = vsel %vm596, %v6198, %v6199
      %v6201 = vrot.slane %v6100, 1
      %v6202 = vsel %vm596, %v6199, %v6201
      %v6203 = vrot.slane %v6085, 1
      %v6204 = vrot.slane %v6020, 1
      %v6205 = vsel %vm596, %v6203, %v6204
      %v6206 = vrot.slane %v6101, 1
      %v6207 = vsel %vm596, %v6204, %v6206
      %6208 = vrot.lane.b32.xlu0 %v599, 8
      %v6209 = vpop.permute.xlu0 %6208
      %6210 = vrot.lane.b32.xlu0 %v601, 8
      %v6211 = vpop.permute.xlu0 %6210
      %6212 = vrot.lane.b32.xlu0 %v6135, 8
      %v6213 = vpop.permute.xlu0 %6212
      %6214 = vrot.lane.b32.xlu0 %v6137, 8
      %v6215 = vpop.permute.xlu0 %6214
      %6216 = vrot.lane.b32.xlu0 %v6140, 8
      %v6217 = vpop.permute.xlu0 %6216
      %6218 = vrot.lane.b32.xlu0 %v6142, 8
      %v6219 = vpop.permute.xlu0 %6218
      %6220 = vrot.lane.b32.xlu0 %v6145, 8
      %v6221 = vpop.permute.xlu0 %6220
      %6222 = vrot.lane.b32.xlu0 %v6147, 8
      %v6223 = vpop.permute.xlu0 %6222
      %6224 = vrot.lane.b32.xlu0 %v6150, 8
      %v6225 = vpop.permute.xlu0 %6224
      %6226 = vrot.lane.b32.xlu0 %v6152, 8
      %v6227 = vpop.permute.xlu0 %6226
      %6228 = vrot.lane.b32.xlu0 %v6155, 8
      %v6229 = vpop.permute.xlu0 %6228
      %6230 = vrot.lane.b32.xlu0 %v6157, 8
      %v6231 = vpop.permute.xlu0 %6230
      %6232 = vrot.lane.b32.xlu0 %v6160, 8
      %v6233 = vpop.permute.xlu0 %6232
      %6234 = vrot.lane.b32.xlu0 %v6162, 8
      %v6235 = vpop.permute.xlu0 %6234
      %6236 = vrot.lane.b32.xlu0 %v6165, 8
      %v6237 = vpop.permute.xlu0 %6236
      %6238 = vrot.lane.b32.xlu0 %v6167, 8
      %v6239 = vpop.permute.xlu0 %6238
      %6240 = vrot.lane.b32.xlu0 %v6170, 8
      %v6241 = vpop.permute.xlu0 %6240
      %6242 = vrot.lane.b32.xlu0 %v6172, 8
      %v6243 = vpop.permute.xlu0 %6242
      %6244 = vrot.lane.b32.xlu0 %v6175, 8
      %v6245 = vpop.permute.xlu0 %6244
      %6246 = vrot.lane.b32.xlu0 %v6177, 8
      %v6247 = vpop.permute.xlu0 %6246
      %6248 = vrot.lane.b32.xlu0 %v6180, 8
      %v6249 = vpop.permute.xlu0 %6248
      %6250 = vrot.lane.b32.xlu0 %v6182, 8
      %v6251 = vpop.permute.xlu0 %6250
      %6252 = vrot.lane.b32.xlu0 %v6185, 8
      %v6253 = vpop.permute.xlu0 %6252
      %6254 = vrot.lane.b32.xlu0 %v6187, 8
      %v6255 = vpop.permute.xlu0 %6254
      %6256 = vrot.lane.b32.xlu0 %v6190, 8
      %v6257 = vpop.permute.xlu0 %6256
      %6258 = vrot.lane.b32.xlu0 %v6192, 8
      %v6259 = vpop.permute.xlu0 %6258
      %6260 = vrot.lane.b32.xlu0 %v6195, 8
      %v6261 = vpop.permute.xlu0 %6260
      %6262 = vrot.lane.b32.xlu0 %v6197, 8
      %v6263 = vpop.permute.xlu0 %6262
      %6264 = vrot.lane.b32.xlu0 %v6200, 8
      %v6265 = vpop.permute.xlu0 %6264
      %6266 = vrot.lane.b32.xlu0 %v6202, 8
      %v6267 = vpop.permute.xlu0 %6266
      %6268 = vrot.lane.b32.xlu0 %v6205, 8
      %v6269 = vpop.permute.xlu0 %6268
      %6270 = vrot.lane.b32.xlu0 %v6207, 8
      %v6271 = vpop.permute.xlu0 %6270
      %v6304 = vrot.slane %v6071, 2
      %v6305 = vrot.slane %v5978, 2
      %v6306 = vsel %vm773, %v6304, %v6305
      %v6307 = vrot.slane %v6087, 2
      %v6308 = vsel %vm773, %v6305, %v6307
      %v6309 = vrot.slane %v6072, 2
      %v6310 = vrot.slane %v5981, 2
      %v6311 = vsel %vm773, %v6309, %v6310
      %v6312 = vrot.slane %v6088, 2
      %v6313 = vsel %vm773, %v6310, %v6312
      %v6314 = vrot.slane %v6073, 2
      %v6315 = vrot.slane %v5984, 2
      %v6316 = vsel %vm773, %v6314, %v6315
      %v6317 = vrot.slane %v6089, 2
      %v6318 = vsel %vm773, %v6315, %v6317
      %v6319 = vrot.slane %v6074, 2
      %v6320 = vrot.slane %v5987, 2
      %v6321 = vsel %vm773, %v6319, %v6320
      %v6322 = vrot.slane %v6090, 2
      %v6323 = vsel %vm773, %v6320, %v6322
      %v6324 = vrot.slane %v6075, 2
      %v6325 = vrot.slane %v5990, 2
      %v6326 = vsel %vm773, %v6324, %v6325
      %v6327 = vrot.slane %v6091, 2
      %v6328 = vsel %vm773, %v6325, %v6327
      %v6329 = vrot.slane %v6076, 2
      %v6330 = vrot.slane %v5993, 2
      %v6331 = vsel %vm773, %v6329, %v6330
      %v6332 = vrot.slane %v6092, 2
      %v6333 = vsel %vm773, %v6330, %v6332
      %v6334 = vrot.slane %v6077, 2
      %v6335 = vrot.slane %v5996, 2
      %v6336 = vsel %vm773, %v6334, %v6335
      %v6337 = vrot.slane %v6093, 2
      %v6338 = vsel %vm773, %v6335, %v6337
      %v6339 = vrot.slane %v6078, 2
      %v6340 = vrot.slane %v5999, 2
      %v6341 = vsel %vm773, %v6339, %v6340
      %v6342 = vrot.slane %v6094, 2
      %v6343 = vsel %vm773, %v6340, %v6342
      %v6344 = vrot.slane %v6079, 2
      %v6345 = vrot.slane %v6002, 2
      %v6346 = vsel %vm773, %v6344, %v6345
      %v6347 = vrot.slane %v6095, 2
      %v6348 = vsel %vm773, %v6345, %v6347
      %v6349 = vrot.slane %v6080, 2
      %v6350 = vrot.slane %v6005, 2
      %v6351 = vsel %vm773, %v6349, %v6350
      %v6352 = vrot.slane %v6096, 2
      %v6353 = vsel %vm773, %v6350, %v6352
      %v6354 = vrot.slane %v6081, 2
      %v6355 = vrot.slane %v6008, 2
      %v6356 = vsel %vm773, %v6354, %v6355
      %v6357 = vrot.slane %v6097, 2
      %v6358 = vsel %vm773, %v6355, %v6357
      %v6359 = vrot.slane %v6082, 2
      %v6360 = vrot.slane %v6011, 2
      %v6361 = vsel %vm773, %v6359, %v6360
      %v6362 = vrot.slane %v6098, 2
      %v6363 = vsel %vm773, %v6360, %v6362
      %v6364 = vrot.slane %v6083, 2
      %v6365 = vrot.slane %v6014, 2
      %v6366 = vsel %vm773, %v6364, %v6365
      %v6367 = vrot.slane %v6099, 2
      %v6368 = vsel %vm773, %v6365, %v6367
      %v6369 = vrot.slane %v6084, 2
      %v6370 = vrot.slane %v6017, 2
      %v6371 = vsel %vm773, %v6369, %v6370
      %v6372 = vrot.slane %v6100, 2
      %v6373 = vsel %vm773, %v6370, %v6372
      %v6374 = vrot.slane %v6085, 2
      %v6375 = vrot.slane %v6020, 2
      %v6376 = vsel %vm773, %v6374, %v6375
      %v6377 = vrot.slane %v6101, 2
      %v6378 = vsel %vm773, %v6375, %v6377
      %6379 = vrot.lane.b32.xlu0 %v776, 16
      %v6380 = vpop.permute.xlu0 %6379
      %6381 = vrot.lane.b32.xlu0 %v778, 16
      %v6382 = vpop.permute.xlu0 %6381
      %6383 = vrot.lane.b32.xlu0 %v6306, 16
      %v6384 = vpop.permute.xlu0 %6383
      %6385 = vrot.lane.b32.xlu0 %v6308, 16
      %v6386 = vpop.permute.xlu0 %6385
      %6387 = vrot.lane.b32.xlu0 %v6311, 16
      %v6388 = vpop.permute.xlu0 %6387
      %6389 = vrot.lane.b32.xlu0 %v6313, 16
      %v6390 = vpop.permute.xlu0 %6389
      %6391 = vrot.lane.b32.xlu0 %v6316, 16
      %v6392 = vpop.permute.xlu0 %6391
      %6393 = vrot.lane.b32.xlu0 %v6318, 16
      %v6394 = vpop.permute.xlu0 %6393
      %6395 = vrot.lane.b32.xlu0 %v6321, 16
      %v6396 = vpop.permute.xlu0 %6395
      %6397 = vrot.lane.b32.xlu0 %v6323, 16
      %v6398 = vpop.permute.xlu0 %6397
      %6399 = vrot.lane.b32.xlu0 %v6326, 16
      %v6400 = vpop.permute.xlu0 %6399
      %6401 = vrot.lane.b32.xlu0 %v6328, 16
      %v6402 = vpop.permute.xlu0 %6401
      %6403 = vrot.lane.b32.xlu0 %v6331, 16
      %v6404 = vpop.permute.xlu0 %6403
      %6405 = vrot.lane.b32.xlu0 %v6333, 16
      %v6406 = vpop.permute.xlu0 %6405
      %6407 = vrot.lane.b32.xlu0 %v6336, 16
      %v6408 = vpop.permute.xlu0 %6407
      %6409 = vrot.lane.b32.xlu0 %v6338, 16
      %v6410 = vpop.permute.xlu0 %6409
      %6411 = vrot.lane.b32.xlu0 %v6341, 16
      %v6412 = vpop.permute.xlu0 %6411
      %6413 = vrot.lane.b32.xlu0 %v6343, 16
      %v6414 = vpop.permute.xlu0 %6413
      %6415 = vrot.lane.b32.xlu0 %v6346, 16
      %v6416 = vpop.permute.xlu0 %6415
      %6417 = vrot.lane.b32.xlu0 %v6348, 16
      %v6418 = vpop.permute.xlu0 %6417
      %6419 = vrot.lane.b32.xlu0 %v6351, 16
      %v6420 = vpop.permute.xlu0 %6419
      %6421 = vrot.lane.b32.xlu0 %v6353, 16
      %v6422 = vpop.permute.xlu0 %6421
      %6423 = vrot.lane.b32.xlu0 %v6356, 16
      %v6424 = vpop.permute.xlu0 %6423
      %6425 = vrot.lane.b32.xlu0 %v6358, 16
      %v6426 = vpop.permute.xlu0 %6425
      %6427 = vrot.lane.b32.xlu0 %v6361, 16
      %v6428 = vpop.permute.xlu0 %6427
      %6429 = vrot.lane.b32.xlu0 %v6363, 16
      %v6430 = vpop.permute.xlu0 %6429
      %6431 = vrot.lane.b32.xlu0 %v6366, 16
      %v6432 = vpop.permute.xlu0 %6431
      %6433 = vrot.lane.b32.xlu0 %v6368, 16
      %v6434 = vpop.permute.xlu0 %6433
      %6435 = vrot.lane.b32.xlu0 %v6371, 16
      %v6436 = vpop.permute.xlu0 %6435
      %6437 = vrot.lane.b32.xlu0 %v6373, 16
      %v6438 = vpop.permute.xlu0 %6437
      %6439 = vrot.lane.b32.xlu0 %v6376, 16
      %v6440 = vpop.permute.xlu0 %6439
      %6441 = vrot.lane.b32.xlu0 %v6378, 16
      %v6442 = vpop.permute.xlu0 %6441
      %6476 = vrot.lane.b32.xlu0 %v6071, 24
      %v6477 = vpop.permute.xlu0 %6476
      %6478 = vrot.lane.b32.xlu0 %v5978, 24
      %v6479 = vpop.permute.xlu0 %6478
      %6480 = vrot.lane.b32.xlu0 %v6072, 24
      %v6481 = vpop.permute.xlu0 %6480
      %6482 = vrot.lane.b32.xlu0 %v5981, 24
      %v6483 = vpop.permute.xlu0 %6482
      %6484 = vrot.lane.b32.xlu0 %v6073, 24
      %v6485 = vpop.permute.xlu0 %6484
      %6486 = vrot.lane.b32.xlu0 %v5984, 24
      %v6487 = vpop.permute.xlu0 %6486
      %6488 = vrot.lane.b32.xlu0 %v6074, 24
      %v6489 = vpop.permute.xlu0 %6488
      %6490 = vrot.lane.b32.xlu0 %v5987, 24
      %v6491 = vpop.permute.xlu0 %6490
      %6492 = vrot.lane.b32.xlu0 %v6075, 24
      %v6493 = vpop.permute.xlu0 %6492
      %6494 = vrot.lane.b32.xlu0 %v5990, 24
      %v6495 = vpop.permute.xlu0 %6494
      %6496 = vrot.lane.b32.xlu0 %v6076, 24
      %v6497 = vpop.permute.xlu0 %6496
      %6498 = vrot.lane.b32.xlu0 %v5993, 24
      %v6499 = vpop.permute.xlu0 %6498
      %6500 = vrot.lane.b32.xlu0 %v6077, 24
      %v6501 = vpop.permute.xlu0 %6500
      %6502 = vrot.lane.b32.xlu0 %v5996, 24
      %v6503 = vpop.permute.xlu0 %6502
      %6504 = vrot.lane.b32.xlu0 %v6078, 24
      %v6505 = vpop.permute.xlu0 %6504
      %6506 = vrot.lane.b32.xlu0 %v5999, 24
      %v6507 = vpop.permute.xlu0 %6506
      %6508 = vrot.lane.b32.xlu0 %v6079, 24
      %v6509 = vpop.permute.xlu0 %6508
      %6510 = vrot.lane.b32.xlu0 %v6002, 24
      %v6511 = vpop.permute.xlu0 %6510
      %6512 = vrot.lane.b32.xlu0 %v6080, 24
      %v6513 = vpop.permute.xlu0 %6512
      %6514 = vrot.lane.b32.xlu0 %v6005, 24
      %v6515 = vpop.permute.xlu0 %6514
      %6516 = vrot.lane.b32.xlu0 %v6081, 24
      %v6517 = vpop.permute.xlu0 %6516
      %6518 = vrot.lane.b32.xlu0 %v6008, 24
      %v6519 = vpop.permute.xlu0 %6518
      %6520 = vrot.lane.b32.xlu0 %v6082, 24
      %v6521 = vpop.permute.xlu0 %6520
      %6522 = vrot.lane.b32.xlu0 %v6011, 24
      %v6523 = vpop.permute.xlu0 %6522
      %6524 = vrot.lane.b32.xlu0 %v6083, 24
      %v6525 = vpop.permute.xlu0 %6524
      %6526 = vrot.lane.b32.xlu0 %v6014, 24
      %v6527 = vpop.permute.xlu0 %6526
      %6528 = vrot.lane.b32.xlu0 %v6084, 24
      %v6529 = vpop.permute.xlu0 %6528
      %6530 = vrot.lane.b32.xlu0 %v6017, 24
      %v6531 = vpop.permute.xlu0 %6530
      %6532 = vrot.lane.b32.xlu0 %v6085, 24
      %v6533 = vpop.permute.xlu0 %6532
      %6534 = vrot.lane.b32.xlu0 %v6020, 24
      %v6535 = vpop.permute.xlu0 %6534
      %6536 = vrot.lane.b32.xlu0 %v6086, 24
      %v6537 = vpop.permute.xlu0 %6536
      %6538 = vrot.lane.b32.xlu0 %v6023, 24
      %v6539 = vpop.permute.xlu0 %6538
      %v6573 = vrot.slane %v6086, 1
      %v6574 = vrot.slane %v6023, 1
      %v6575 = vsel %vm596, %v6573, %v6574
      %v6576 = vrot.slane %v6102, 1
      %v6577 = vsel %vm596, %v6574, %v6576
      %6578 = vrot.lane.b32.xlu0 %v6135, 32
      %v6579 = vpop.permute.xlu0 %6578
      %6580 = vrot.lane.b32.xlu0 %v6137, 32
      %v6581 = vpop.permute.xlu0 %6580
      %6582 = vrot.lane.b32.xlu0 %v6140, 32
      %v6583 = vpop.permute.xlu0 %6582
      %6584 = vrot.lane.b32.xlu0 %v6142, 32
      %v6585 = vpop.permute.xlu0 %6584
      %6586 = vrot.lane.b32.xlu0 %v6145, 32
      %v6587 = vpop.permute.xlu0 %6586
      %6588 = vrot.lane.b32.xlu0 %v6147, 32
      %v6589 = vpop.permute.xlu0 %6588
      %6590 = vrot.lane.b32.xlu0 %v6150, 32
      %v6591 = vpop.permute.xlu0 %6590
      %6592 = vrot.lane.b32.xlu0 %v6152, 32
      %v6593 = vpop.permute.xlu0 %6592
      %6594 = vrot.lane.b32.xlu0 %v6155, 32
      %v6595 = vpop.permute.xlu0 %6594
      %6596 = vrot.lane.b32.xlu0 %v6157, 32
      %v6597 = vpop.permute.xlu0 %6596
      %6598 = vrot.lane.b32.xlu0 %v6160, 32
      %v6599 = vpop.permute.xlu0 %6598
      %6600 = vrot.lane.b32.xlu0 %v6162, 32
      %v6601 = vpop.permute.xlu0 %6600
      %6602 = vrot.lane.b32.xlu0 %v6165, 32
      %v6603 = vpop.permute.xlu0 %6602
      %6604 = vrot.lane.b32.xlu0 %v6167, 32
      %v6605 = vpop.permute.xlu0 %6604
      %6606 = vrot.lane.b32.xlu0 %v6170, 32
      %v6607 = vpop.permute.xlu0 %6606
      %6608 = vrot.lane.b32.xlu0 %v6172, 32
      %v6609 = vpop.permute.xlu0 %6608
      %6610 = vrot.lane.b32.xlu0 %v6175, 32
      %v6611 = vpop.permute.xlu0 %6610
      %6612 = vrot.lane.b32.xlu0 %v6177, 32
      %v6613 = vpop.permute.xlu0 %6612
      %6614 = vrot.lane.b32.xlu0 %v6180, 32
      %v6615 = vpop.permute.xlu0 %6614
      %6616 = vrot.lane.b32.xlu0 %v6182, 32
      %v6617 = vpop.permute.xlu0 %6616
      %6618 = vrot.lane.b32.xlu0 %v6185, 32
      %v6619 = vpop.permute.xlu0 %6618
      %6620 = vrot.lane.b32.xlu0 %v6187, 32
      %v6621 = vpop.permute.xlu0 %6620
      %6622 = vrot.lane.b32.xlu0 %v6190, 32
      %v6623 = vpop.permute.xlu0 %6622
      %6624 = vrot.lane.b32.xlu0 %v6192, 32
      %v6625 = vpop.permute.xlu0 %6624
      %6626 = vrot.lane.b32.xlu0 %v6195, 32
      %v6627 = vpop.permute.xlu0 %6626
      %6628 = vrot.lane.b32.xlu0 %v6197, 32
      %v6629 = vpop.permute.xlu0 %6628
      %6630 = vrot.lane.b32.xlu0 %v6200, 32
      %v6631 = vpop.permute.xlu0 %6630
      %6632 = vrot.lane.b32.xlu0 %v6202, 32
      %v6633 = vpop.permute.xlu0 %6632
      %6634 = vrot.lane.b32.xlu0 %v6205, 32
      %v6635 = vpop.permute.xlu0 %6634
      %6636 = vrot.lane.b32.xlu0 %v6207, 32
      %v6637 = vpop.permute.xlu0 %6636
      %6638 = vrot.lane.b32.xlu0 %v6575, 32
      %v6639 = vpop.permute.xlu0 %6638
      %6640 = vrot.lane.b32.xlu0 %v6577, 32
      %v6641 = vpop.permute.xlu0 %6640
      %v6674 = vrot.slane %v6086, 2
      %v6675 = vrot.slane %v6023, 2
      %v6676 = vsel %vm773, %v6674, %v6675
      %v6677 = vrot.slane %v6102, 2
      %v6678 = vsel %vm773, %v6675, %v6677
      %6679 = vrot.lane.b32.xlu0 %v6306, 40
      %v6680 = vpop.permute.xlu0 %6679
      %6681 = vrot.lane.b32.xlu0 %v6308, 40
      %v6682 = vpop.permute.xlu0 %6681
      %6683 = vrot.lane.b32.xlu0 %v6311, 40
      %v6684 = vpop.permute.xlu0 %6683
      %6685 = vrot.lane.b32.xlu0 %v6313, 40
      %v6686 = vpop.permute.xlu0 %6685
      %6687 = vrot.lane.b32.xlu0 %v6316, 40
      %v6688 = vpop.permute.xlu0 %6687
      %6689 = vrot.lane.b32.xlu0 %v6318, 40
      %v6690 = vpop.permute.xlu0 %6689
      %6691 = vrot.lane.b32.xlu0 %v6321, 40
      %v6692 = vpop.permute.xlu0 %6691
      %6693 = vrot.lane.b32.xlu0 %v6323, 40
      %v6694 = vpop.permute.xlu0 %6693
      %6695 = vrot.lane.b32.xlu0 %v6326, 40
      %v6696 = vpop.permute.xlu0 %6695
      %6697 = vrot.lane.b32.xlu0 %v6328, 40
      %v6698 = vpop.permute.xlu0 %6697
      %6699 = vrot.lane.b32.xlu0 %v6331, 40
      %v6700 = vpop.permute.xlu0 %6699
      %6701 = vrot.lane.b32.xlu0 %v6333, 40
      %v6702 = vpop.permute.xlu0 %6701
      %6703 = vrot.lane.b32.xlu0 %v6336, 40
      %v6704 = vpop.permute.xlu0 %6703
      %6705 = vrot.lane.b32.xlu0 %v6338, 40
      %v6706 = vpop.permute.xlu0 %6705
      %6707 = vrot.lane.b32.xlu0 %v6341, 40
      %v6708 = vpop.permute.xlu0 %6707
      %6709 = vrot.lane.b32.xlu0 %v6343, 40
      %v6710 = vpop.permute.xlu0 %6709
      %6711 = vrot.lane.b32.xlu0 %v6346, 40
      %v6712 = vpop.permute.xlu0 %6711
      %6713 = vrot.lane.b32.xlu0 %v6348, 40
      %v6714 = vpop.permute.xlu0 %6713
      %6715 = vrot.lane.b32.xlu0 %v6351, 40
      %v6716 = vpop.permute.xlu0 %6715
      %6717 = vrot.lane.b32.xlu0 %v6353, 40
      %v6718 = vpop.permute.xlu0 %6717
      %6719 = vrot.lane.b32.xlu0 %v6356, 40
      %v6720 = vpop.permute.xlu0 %6719
      %6721 = vrot.lane.b32.xlu0 %v6358, 40
      %v6722 = vpop.permute.xlu0 %6721
      %6723 = vrot.lane.b32.xlu0 %v6361, 40
      %v6724 = vpop.permute.xlu0 %6723
      %6725 = vrot.lane.b32.xlu0 %v6363, 40
      %v6726 = vpop.permute.xlu0 %6725
      %6727 = vrot.lane.b32.xlu0 %v6366, 40
      %v6728 = vpop.permute.xlu0 %6727
      %6729 = vrot.lane.b32.xlu0 %v6368, 40
      %v6730 = vpop.permute.xlu0 %6729
      %6731 = vrot.lane.b32.xlu0 %v6371, 40
      %v6732 = vpop.permute.xlu0 %6731
      %6733 = vrot.lane.b32.xlu0 %v6373, 40
      %v6734 = vpop.permute.xlu0 %6733
      %6735 = vrot.lane.b32.xlu0 %v6376, 40
      %v6736 = vpop.permute.xlu0 %6735
      %6737 = vrot.lane.b32.xlu0 %v6378, 40
      %v6738 = vpop.permute.xlu0 %6737
      %6739 = vrot.lane.b32.xlu0 %v6676, 40
      %v6740 = vpop.permute.xlu0 %6739
      %6741 = vrot.lane.b32.xlu0 %v6678, 40
      %v6742 = vpop.permute.xlu0 %6741
      %6775 = vrot.lane.b32.xlu0 %v6072, 48
      %v6776 = vpop.permute.xlu0 %6775
      %6777 = vrot.lane.b32.xlu0 %v5981, 48
      %v6778 = vpop.permute.xlu0 %6777
      %6779 = vrot.lane.b32.xlu0 %v6073, 48
      %v6780 = vpop.permute.xlu0 %6779
      %6781 = vrot.lane.b32.xlu0 %v5984, 48
      %v6782 = vpop.permute.xlu0 %6781
      %6783 = vrot.lane.b32.xlu0 %v6074, 48
      %v6784 = vpop.permute.xlu0 %6783
      %6785 = vrot.lane.b32.xlu0 %v5987, 48
      %v6786 = vpop.permute.xlu0 %6785
      %6787 = vrot.lane.b32.xlu0 %v6075, 48
      %v6788 = vpop.permute.xlu0 %6787
      %6789 = vrot.lane.b32.xlu0 %v5990, 48
      %v6790 = vpop.permute.xlu0 %6789
      %6791 = vrot.lane.b32.xlu0 %v6076, 48
      %v6792 = vpop.permute.xlu0 %6791
      %6793 = vrot.lane.b32.xlu0 %v5993, 48
      %v6794 = vpop.permute.xlu0 %6793
      %6795 = vrot.lane.b32.xlu0 %v6077, 48
      %v6796 = vpop.permute.xlu0 %6795
      %6797 = vrot.lane.b32.xlu0 %v5996, 48
      %v6798 = vpop.permute.xlu0 %6797
      %6799 = vrot.lane.b32.xlu0 %v6078, 48
      %v6800 = vpop.permute.xlu0 %6799
      %6801 = vrot.lane.b32.xlu0 %v5999, 48
      %v6802 = vpop.permute.xlu0 %6801
      %6803 = vrot.lane.b32.xlu0 %v6079, 48
      %v6804 = vpop.permute.xlu0 %6803
      %6805 = vrot.lane.b32.xlu0 %v6002, 48
      %v6806 = vpop.permute.xlu0 %6805
      %6807 = vrot.lane.b32.xlu0 %v6080, 48
      %v6808 = vpop.permute.xlu0 %6807
      %6809 = vrot.lane.b32.xlu0 %v6005, 48
      %v6810 = vpop.permute.xlu0 %6809
      %6811 = vrot.lane.b32.xlu0 %v6081, 48
      %v6812 = vpop.permute.xlu0 %6811
      %6813 = vrot.lane.b32.xlu0 %v6008, 48
      %v6814 = vpop.permute.xlu0 %6813
      %6815 = vrot.lane.b32.xlu0 %v6082, 48
      %v6816 = vpop.permute.xlu0 %6815
      %6817 = vrot.lane.b32.xlu0 %v6011, 48
      %v6818 = vpop.permute.xlu0 %6817
      %6819 = vrot.lane.b32.xlu0 %v6083, 48
      %v6820 = vpop.permute.xlu0 %6819
      %6821 = vrot.lane.b32.xlu0 %v6014, 48
      %v6822 = vpop.permute.xlu0 %6821
      %6823 = vrot.lane.b32.xlu0 %v6084, 48
      %v6824 = vpop.permute.xlu0 %6823
      %6825 = vrot.lane.b32.xlu0 %v6017, 48
      %v6826 = vpop.permute.xlu0 %6825
      %6827 = vrot.lane.b32.xlu0 %v6085, 48
      %v6828 = vpop.permute.xlu0 %6827
      %6829 = vrot.lane.b32.xlu0 %v6020, 48
      %v6830 = vpop.permute.xlu0 %6829
      %6831 = vrot.lane.b32.xlu0 %v6086, 48
      %v6832 = vpop.permute.xlu0 %6831
      %6833 = vrot.lane.b32.xlu0 %v6023, 48
      %v6834 = vpop.permute.xlu0 %6833
      %6835 = vrot.lane.b32.xlu0 %v530, 48
      %v6836 = vpop.permute.xlu0 %6835
      %6837 = vrot.lane.b32.xlu0 %v432, 48
      %v6838 = vpop.permute.xlu0 %6837
      %6871 = vrot.lane.b32.xlu0 %v6140, 56
      %v6872 = vpop.permute.xlu0 %6871
      %6873 = vrot.lane.b32.xlu0 %v6142, 56
      %v6874 = vpop.permute.xlu0 %6873
      %6875 = vrot.lane.b32.xlu0 %v6145, 56
      %v6876 = vpop.permute.xlu0 %6875
      %6877 = vrot.lane.b32.xlu0 %v6147, 56
      %v6878 = vpop.permute.xlu0 %6877
      %6879 = vrot.lane.b32.xlu0 %v6150, 56
      %v6880 = vpop.permute.xlu0 %6879
      %6881 = vrot.lane.b32.xlu0 %v6152, 56
      %v6882 = vpop.permute.xlu0 %6881
      %6883 = vrot.lane.b32.xlu0 %v6155, 56
      %v6884 = vpop.permute.xlu0 %6883
      %6885 = vrot.lane.b32.xlu0 %v6157, 56
      %v6886 = vpop.permute.xlu0 %6885
      %6887 = vrot.lane.b32.xlu0 %v6160, 56
      %v6888 = vpop.permute.xlu0 %6887
      %6889 = vrot.lane.b32.xlu0 %v6162, 56
      %v6890 = vpop.permute.xlu0 %6889
      %6891 = vrot.lane.b32.xlu0 %v6165, 56
      %v6892 = vpop.permute.xlu0 %6891
      %6893 = vrot.lane.b32.xlu0 %v6167, 56
      %v6894 = vpop.permute.xlu0 %6893
      %6895 = vrot.lane.b32.xlu0 %v6170, 56
      %v6896 = vpop.permute.xlu0 %6895
      %6897 = vrot.lane.b32.xlu0 %v6172, 56
      %v6898 = vpop.permute.xlu0 %6897
      %6899 = vrot.lane.b32.xlu0 %v6175, 56
      %v6900 = vpop.permute.xlu0 %6899
      %6901 = vrot.lane.b32.xlu0 %v6177, 56
      %v6902 = vpop.permute.xlu0 %6901
      %6903 = vrot.lane.b32.xlu0 %v6180, 56
      %v6904 = vpop.permute.xlu0 %6903
      %6905 = vrot.lane.b32.xlu0 %v6182, 56
      %v6906 = vpop.permute.xlu0 %6905
      %6907 = vrot.lane.b32.xlu0 %v6185, 56
      %v6908 = vpop.permute.xlu0 %6907
      %6909 = vrot.lane.b32.xlu0 %v6187, 56
      %v6910 = vpop.permute.xlu0 %6909
      %6911 = vrot.lane.b32.xlu0 %v6190, 56
      %v6912 = vpop.permute.xlu0 %6911
      %6913 = vrot.lane.b32.xlu0 %v6192, 56
      %v6914 = vpop.permute.xlu0 %6913
      %6915 = vrot.lane.b32.xlu0 %v6195, 56
      %v6916 = vpop.permute.xlu0 %6915
      %6917 = vrot.lane.b32.xlu0 %v6197, 56
      %v6918 = vpop.permute.xlu0 %6917
      %6919 = vrot.lane.b32.xlu0 %v6200, 56
      %v6920 = vpop.permute.xlu0 %6919
      %6921 = vrot.lane.b32.xlu0 %v6202, 56
      %v6922 = vpop.permute.xlu0 %6921
      %6923 = vrot.lane.b32.xlu0 %v6205, 56
      %v6924 = vpop.permute.xlu0 %6923
      %6925 = vrot.lane.b32.xlu0 %v6207, 56
      %v6926 = vpop.permute.xlu0 %6925
      %6927 = vrot.lane.b32.xlu0 %v6575, 56
      %v6928 = vpop.permute.xlu0 %6927
      %6929 = vrot.lane.b32.xlu0 %v6577, 56
      %v6930 = vpop.permute.xlu0 %6929
      %6931 = vrot.lane.b32.xlu0 %v599, 56
      %v6932 = vpop.permute.xlu0 %6931
      %6933 = vrot.lane.b32.xlu0 %v601, 56
      %v6934 = vpop.permute.xlu0 %6933
      %6967 = vrot.lane.b32.xlu0 %v6311, 64
      %v6968 = vpop.permute.xlu0 %6967
      %6969 = vrot.lane.b32.xlu0 %v6313, 64
      %v6970 = vpop.permute.xlu0 %6969
      %6971 = vrot.lane.b32.xlu0 %v6316, 64
      %v6972 = vpop.permute.xlu0 %6971
      %6973 = vrot.lane.b32.xlu0 %v6318, 64
      %v6974 = vpop.permute.xlu0 %6973
      %6975 = vrot.lane.b32.xlu0 %v6321, 64
      %v6976 = vpop.permute.xlu0 %6975
      %6977 = vrot.lane.b32.xlu0 %v6323, 64
      %v6978 = vpop.permute.xlu0 %6977
      %6979 = vrot.lane.b32.xlu0 %v6326, 64
      %v6980 = vpop.permute.xlu0 %6979
      %6981 = vrot.lane.b32.xlu0 %v6328, 64
      %v6982 = vpop.permute.xlu0 %6981
      %6983 = vrot.lane.b32.xlu0 %v6331, 64
      %v6984 = vpop.permute.xlu0 %6983
      %6985 = vrot.lane.b32.xlu0 %v6333, 64
      %v6986 = vpop.permute.xlu0 %6985
      %6987 = vrot.lane.b32.xlu0 %v6336, 64
      %v6988 = vpop.permute.xlu0 %6987
      %6989 = vrot.lane.b32.xlu0 %v6338, 64
      %v6990 = vpop.permute.xlu0 %6989
      %6991 = vrot.lane.b32.xlu0 %v6341, 64
      %v6992 = vpop.permute.xlu0 %6991
      %6993 = vrot.lane.b32.xlu0 %v6343, 64
      %v6994 = vpop.permute.xlu0 %6993
      %6995 = vrot.lane.b32.xlu0 %v6346, 64
      %v6996 = vpop.permute.xlu0 %6995
      %6997 = vrot.lane.b32.xlu0 %v6348, 64
      %v6998 = vpop.permute.xlu0 %6997
      %6999 = vrot.lane.b32.xlu0 %v6351, 64
      %v7000 = vpop.permute.xlu0 %6999
      %7001 = vrot.lane.b32.xlu0 %v6353, 64
      %v7002 = vpop.permute.xlu0 %7001
      %7003 = vrot.lane.b32.xlu0 %v6356, 64
      %v7004 = vpop.permute.xlu0 %7003
      %7005 = vrot.lane.b32.xlu0 %v6358, 64
      %v7006 = vpop.permute.xlu0 %7005
      %7007 = vrot.lane.b32.xlu0 %v6361, 64
      %v7008 = vpop.permute.xlu0 %7007
      %7009 = vrot.lane.b32.xlu0 %v6363, 64
      %v7010 = vpop.permute.xlu0 %7009
      %7011 = vrot.lane.b32.xlu0 %v6366, 64
      %v7012 = vpop.permute.xlu0 %7011
      %7013 = vrot.lane.b32.xlu0 %v6368, 64
      %v7014 = vpop.permute.xlu0 %7013
      %7015 = vrot.lane.b32.xlu0 %v6371, 64
      %v7016 = vpop.permute.xlu0 %7015
      %7017 = vrot.lane.b32.xlu0 %v6373, 64
      %v7018 = vpop.permute.xlu0 %7017
      %7019 = vrot.lane.b32.xlu0 %v6376, 64
      %v7020 = vpop.permute.xlu0 %7019
      %7021 = vrot.lane.b32.xlu0 %v6378, 64
      %v7022 = vpop.permute.xlu0 %7021
      %7023 = vrot.lane.b32.xlu0 %v6676, 64
      %v7024 = vpop.permute.xlu0 %7023
      %7025 = vrot.lane.b32.xlu0 %v6678, 64
      %v7026 = vpop.permute.xlu0 %7025
      %7027 = vrot.lane.b32.xlu0 %v776, 64
      %v7028 = vpop.permute.xlu0 %7027
      %7029 = vrot.lane.b32.xlu0 %v778, 64
      %v7030 = vpop.permute.xlu0 %7029
      %v7063 = vsel %vm1571, %v530, %v6209
      %v7064 = vsel %vm1571, %v432, %v6211
      %v7065 = vsel %vm1571, %v6071, %v6213
      %v7066 = vsel %vm1571, %v5978, %v6215
      %v7067 = vsel %vm1571, %v6072, %v6217
      %v7068 = vsel %vm1571, %v5981, %v6219
      %v7069 = vsel %vm1571, %v6073, %v6221
      %v7070 = vsel %vm1571, %v5984, %v6223
      %v7071 = vsel %vm1571, %v6074, %v6225
      %v7072 = vsel %vm1571, %v5987, %v6227
      %v7073 = vsel %vm1571, %v6075, %v6229
      %v7074 = vsel %vm1571, %v5990, %v6231
      %v7075 = vsel %vm1571, %v6076, %v6233
      %v7076 = vsel %vm1571, %v5993, %v6235
      %v7077 = vsel %vm1571, %v6077, %v6237
      %v7078 = vsel %vm1571, %v5996, %v6239
      %v7079 = vsel %vm1571, %v6078, %v6241
      %v7080 = vsel %vm1571, %v5999, %v6243
      %v7081 = vsel %vm1571, %v6079, %v6245
      %v7082 = vsel %vm1571, %v6002, %v6247
      %v7083 = vsel %vm1571, %v6080, %v6249
      %v7084 = vsel %vm1571, %v6005, %v6251
      %v7085 = vsel %vm1571, %v6081, %v6253
      %v7086 = vsel %vm1571, %v6008, %v6255
      %v7087 = vsel %vm1571, %v6082, %v6257
      %v7088 = vsel %vm1571, %v6011, %v6259
      %v7089 = vsel %vm1571, %v6083, %v6261
      %v7090 = vsel %vm1571, %v6014, %v6263
      %v7091 = vsel %vm1571, %v6084, %v6265
      %v7092 = vsel %vm1571, %v6017, %v6267
      %v7093 = vsel %vm1571, %v6085, %v6269
      %v7094 = vsel %vm1571, %v6020, %v6271
      %v7095 = vsel %vm1637, %v7063, %v6380
      %v7096 = vsel %vm1637, %v7064, %v6382
      %v7097 = vsel %vm1637, %v7065, %v6384
      %v7098 = vsel %vm1637, %v7066, %v6386
      %v7099 = vsel %vm1637, %v7067, %v6388
      %v7100 = vsel %vm1637, %v7068, %v6390
      %v7101 = vsel %vm1637, %v7069, %v6392
      %v7102 = vsel %vm1637, %v7070, %v6394
      %v7103 = vsel %vm1637, %v7071, %v6396
      %v7104 = vsel %vm1637, %v7072, %v6398
      %v7105 = vsel %vm1637, %v7073, %v6400
      %v7106 = vsel %vm1637, %v7074, %v6402
      %v7107 = vsel %vm1637, %v7075, %v6404
      %v7108 = vsel %vm1637, %v7076, %v6406
      %v7109 = vsel %vm1637, %v7077, %v6408
      %v7110 = vsel %vm1637, %v7078, %v6410
      %v7111 = vsel %vm1637, %v7079, %v6412
      %v7112 = vsel %vm1637, %v7080, %v6414
      %v7113 = vsel %vm1637, %v7081, %v6416
      %v7114 = vsel %vm1637, %v7082, %v6418
      %v7115 = vsel %vm1637, %v7083, %v6420
      %v7116 = vsel %vm1637, %v7084, %v6422
      %v7117 = vsel %vm1637, %v7085, %v6424
      %v7118 = vsel %vm1637, %v7086, %v6426
      %v7119 = vsel %vm1637, %v7087, %v6428
      %v7120 = vsel %vm1637, %v7088, %v6430
      %v7121 = vsel %vm1637, %v7089, %v6432
      %v7122 = vsel %vm1637, %v7090, %v6434
      %v7123 = vsel %vm1637, %v7091, %v6436
      %v7124 = vsel %vm1637, %v7092, %v6438
      %v7125 = vsel %vm1637, %v7093, %v6440
      %v7126 = vsel %vm1637, %v7094, %v6442
      %v7127 = vsel %vm1703, %v7095, %v6477
      %v7128 = vsel %vm1703, %v7096, %v6479
      %v7129 = vsel %vm1703, %v7097, %v6481
      %v7130 = vsel %vm1703, %v7098, %v6483
      %v7131 = vsel %vm1703, %v7099, %v6485
      %v7132 = vsel %vm1703, %v7100, %v6487
      %v7133 = vsel %vm1703, %v7101, %v6489
      %v7134 = vsel %vm1703, %v7102, %v6491
      %v7135 = vsel %vm1703, %v7103, %v6493
      %v7136 = vsel %vm1703, %v7104, %v6495
      %v7137 = vsel %vm1703, %v7105, %v6497
      %v7138 = vsel %vm1703, %v7106, %v6499
      %v7139 = vsel %vm1703, %v7107, %v6501
      %v7140 = vsel %vm1703, %v7108, %v6503
      %v7141 = vsel %vm1703, %v7109, %v6505
      %v7142 = vsel %vm1703, %v7110, %v6507
      %v7143 = vsel %vm1703, %v7111, %v6509
      %v7144 = vsel %vm1703, %v7112, %v6511
      %v7145 = vsel %vm1703, %v7113, %v6513
      %v7146 = vsel %vm1703, %v7114, %v6515
      %v7147 = vsel %vm1703, %v7115, %v6517
      %v7148 = vsel %vm1703, %v7116, %v6519
      %v7149 = vsel %vm1703, %v7117, %v6521
      %v7150 = vsel %vm1703, %v7118, %v6523
      %v7151 = vsel %vm1703, %v7119, %v6525
      %v7152 = vsel %vm1703, %v7120, %v6527
      %v7153 = vsel %vm1703, %v7121, %v6529
      %v7154 = vsel %vm1703, %v7122, %v6531
      %v7155 = vsel %vm1703, %v7123, %v6533
      %v7156 = vsel %vm1703, %v7124, %v6535
      %v7157 = vsel %vm1703, %v7125, %v6537
      %v7158 = vsel %vm1703, %v7126, %v6539
      %v7159 = vsel %vm1769, %v7127, %v6579
      %v7160 = vsel %vm1769, %v7128, %v6581
      %v7161 = vsel %vm1769, %v7129, %v6583
      %v7162 = vsel %vm1769, %v7130, %v6585
      %v7163 = vsel %vm1769, %v7131, %v6587
      %v7164 = vsel %vm1769, %v7132, %v6589
      %v7165 = vsel %vm1769, %v7133, %v6591
      %v7166 = vsel %vm1769, %v7134, %v6593
      %v7167 = vsel %vm1769, %v7135, %v6595
      %v7168 = vsel %vm1769, %v7136, %v6597
      %v7169 = vsel %vm1769, %v7137, %v6599
      %v7170 = vsel %vm1769, %v7138, %v6601
      %v7171 = vsel %vm1769, %v7139, %v6603
      %v7172 = vsel %vm1769, %v7140, %v6605
      %v7173 = vsel %vm1769, %v7141, %v6607
      %v7174 = vsel %vm1769, %v7142, %v6609
      %v7175 = vsel %vm1769, %v7143, %v6611
      %v7176 = vsel %vm1769, %v7144, %v6613
      %v7177 = vsel %vm1769, %v7145, %v6615
      %v7178 = vsel %vm1769, %v7146, %v6617
      %v7179 = vsel %vm1769, %v7147, %v6619
      %v7180 = vsel %vm1769, %v7148, %v6621
      %v7181 = vsel %vm1769, %v7149, %v6623
      %v7182 = vsel %vm1769, %v7150, %v6625
      %v7183 = vsel %vm1769, %v7151, %v6627
      %v7184 = vsel %vm1769, %v7152, %v6629
      %v7185 = vsel %vm1769, %v7153, %v6631
      %v7186 = vsel %vm1769, %v7154, %v6633
      %v7187 = vsel %vm1769, %v7155, %v6635
      %v7188 = vsel %vm1769, %v7156, %v6637
      %v7189 = vsel %vm1769, %v7157, %v6639
      %v7190 = vsel %vm1769, %v7158, %v6641
      %v7191 = vsel %vm5376, %v7159, %v6680
      %v7192 = vsel %vm5376, %v7160, %v6682
      %v7193 = vsel %vm5376, %v7161, %v6684
      %v7194 = vsel %vm5376, %v7162, %v6686
      %v7195 = vsel %vm5376, %v7163, %v6688
      %v7196 = vsel %vm5376, %v7164, %v6690
      %v7197 = vsel %vm5376, %v7165, %v6692
      %v7198 = vsel %vm5376, %v7166, %v6694
      %v7199 = vsel %vm5376, %v7167, %v6696
      %v7200 = vsel %vm5376, %v7168, %v6698
      %v7201 = vsel %vm5376, %v7169, %v6700
      %v7202 = vsel %vm5376, %v7170, %v6702
      %v7203 = vsel %vm5376, %v7171, %v6704
      %v7204 = vsel %vm5376, %v7172, %v6706
      %v7205 = vsel %vm5376, %v7173, %v6708
      %v7206 = vsel %vm5376, %v7174, %v6710
      %v7207 = vsel %vm5376, %v7175, %v6712
      %v7208 = vsel %vm5376, %v7176, %v6714
      %v7209 = vsel %vm5376, %v7177, %v6716
      %v7210 = vsel %vm5376, %v7178, %v6718
      %v7211 = vsel %vm5376, %v7179, %v6720
      %v7212 = vsel %vm5376, %v7180, %v6722
      %v7213 = vsel %vm5376, %v7181, %v6724
      %v7214 = vsel %vm5376, %v7182, %v6726
      %v7215 = vsel %vm5376, %v7183, %v6728
      %v7216 = vsel %vm5376, %v7184, %v6730
      %v7217 = vsel %vm5376, %v7185, %v6732
      %v7218 = vsel %vm5376, %v7186, %v6734
      %v7219 = vsel %vm5376, %v7187, %v6736
      %v7220 = vsel %vm5376, %v7188, %v6738
      %v7221 = vsel %vm5376, %v7189, %v6740
      %v7222 = vsel %vm5376, %v7190, %v6742
      %v7223 = vsel %vm5409, %v7191, %v6776
      %v7224 = vsel %vm5409, %v7192, %v6778
      %v7225 = vsel %vm5409, %v7193, %v6780
      %v7226 = vsel %vm5409, %v7194, %v6782
      %v7227 = vsel %vm5409, %v7195, %v6784
      %v7228 = vsel %vm5409, %v7196, %v6786
      %v7229 = vsel %vm5409, %v7197, %v6788
      %v7230 = vsel %vm5409, %v7198, %v6790
      %v7231 = vsel %vm5409, %v7199, %v6792
      %v7232 = vsel %vm5409, %v7200, %v6794
      %v7233 = vsel %vm5409, %v7201, %v6796
      %v7234 = vsel %vm5409, %v7202, %v6798
      %v7235 = vsel %vm5409, %v7203, %v6800
      %v7236 = vsel %vm5409, %v7204, %v6802
      %v7237 = vsel %vm5409, %v7205, %v6804
      %v7238 = vsel %vm5409, %v7206, %v6806
      %v7239 = vsel %vm5409, %v7207, %v6808
      %v7240 = vsel %vm5409, %v7208, %v6810
      %v7241 = vsel %vm5409, %v7209, %v6812
      %v7242 = vsel %vm5409, %v7210, %v6814
      %v7243 = vsel %vm5409, %v7211, %v6816
      %v7244 = vsel %vm5409, %v7212, %v6818
      %v7245 = vsel %vm5409, %v7213, %v6820
      %v7246 = vsel %vm5409, %v7214, %v6822
      %v7247 = vsel %vm5409, %v7215, %v6824
      %v7248 = vsel %vm5409, %v7216, %v6826
      %v7249 = vsel %vm5409, %v7217, %v6828
      %v7250 = vsel %vm5409, %v7218, %v6830
      %v7251 = vsel %vm5409, %v7219, %v6832
      %v7252 = vsel %vm5409, %v7220, %v6834
      %v7253 = vsel %vm5409, %v7221, %v6836
      %v7254 = vsel %vm5409, %v7222, %v6838
      %v7255 = vsel %vm5442, %v7223, %v6872
      %v7256 = vsel %vm5442, %v7224, %v6874
      %v7257 = vsel %vm5442, %v7225, %v6876
      %v7258 = vsel %vm5442, %v7226, %v6878
      %v7259 = vsel %vm5442, %v7227, %v6880
      %v7260 = vsel %vm5442, %v7228, %v6882
      %v7261 = vsel %vm5442, %v7229, %v6884
      %v7262 = vsel %vm5442, %v7230, %v6886
      %v7263 = vsel %vm5442, %v7231, %v6888
      %v7264 = vsel %vm5442, %v7232, %v6890
      %v7265 = vsel %vm5442, %v7233, %v6892
      %v7266 = vsel %vm5442, %v7234, %v6894
      %v7267 = vsel %vm5442, %v7235, %v6896
      %v7268 = vsel %vm5442, %v7236, %v6898
      %v7269 = vsel %vm5442, %v7237, %v6900
      %v7270 = vsel %vm5442, %v7238, %v6902
      %v7271 = vsel %vm5442, %v7239, %v6904
      %v7272 = vsel %vm5442, %v7240, %v6906
      %v7273 = vsel %vm5442, %v7241, %v6908
      %v7274 = vsel %vm5442, %v7242, %v6910
      %v7275 = vsel %vm5442, %v7243, %v6912
      %v7276 = vsel %vm5442, %v7244, %v6914
      %v7277 = vsel %vm5442, %v7245, %v6916
      %v7278 = vsel %vm5442, %v7246, %v6918
      %v7279 = vsel %vm5442, %v7247, %v6920
      %v7280 = vsel %vm5442, %v7248, %v6922
      %v7281 = vsel %vm5442, %v7249, %v6924
      %v7282 = vsel %vm5442, %v7250, %v6926
      %v7283 = vsel %vm5442, %v7251, %v6928
      %v7284 = vsel %vm5442, %v7252, %v6930
      %v7285 = vsel %vm5442, %v7253, %v6932
      %v7286 = vsel %vm5442, %v7254, %v6934
      %v7287 = vsel %vm5475, %v7255, %v6968
      %v7288 = vsel %vm5475, %v7256, %v6970
      %v7289 = vsel %vm5475, %v7257, %v6972
      %v7290 = vsel %vm5475, %v7258, %v6974
      %v7291 = vsel %vm5475, %v7259, %v6976
      %v7292 = vsel %vm5475, %v7260, %v6978
      %v7293 = vsel %vm5475, %v7261, %v6980
      %v7294 = vsel %vm5475, %v7262, %v6982
      %v7295 = vsel %vm5475, %v7263, %v6984
      %v7296 = vsel %vm5475, %v7264, %v6986
      %v7297 = vsel %vm5475, %v7265, %v6988
      %v7298 = vsel %vm5475, %v7266, %v6990
      %v7299 = vsel %vm5475, %v7267, %v6992
      %v7300 = vsel %vm5475, %v7268, %v6994
      %v7301 = vsel %vm5475, %v7269, %v6996
      %v7302 = vsel %vm5475, %v7270, %v6998
      %v7303 = vsel %vm5475, %v7271, %v7000
      %v7304 = vsel %vm5475, %v7272, %v7002
      %v7305 = vsel %vm5475, %v7273, %v7004
      %v7306 = vsel %vm5475, %v7274, %v7006
      %v7307 = vsel %vm5475, %v7275, %v7008
      %v7308 = vsel %vm5475, %v7276, %v7010
      %v7309 = vsel %vm5475, %v7277, %v7012
      %v7310 = vsel %vm5475, %v7278, %v7014
      %v7311 = vsel %vm5475, %v7279, %v7016
      %v7312 = vsel %vm5475, %v7280, %v7018
      %v7313 = vsel %vm5475, %v7281, %v7020
      %v7314 = vsel %vm5475, %v7282, %v7022
      %v7315 = vsel %vm5475, %v7283, %v7024
      %v7316 = vsel %vm5475, %v7284, %v7026
      %v7317 = vsel %vm5475, %v7285, %v7028
      %v7318 = vsel %vm5475, %v7286, %v7030
      %v7319 = vld [vmem:[%s8] sm:$0xff]
      %v7320 = vld [vmem:[%s8 + $0x8] sm:$0xff]
      %v7321 = vld [vmem:[%s8 + $0x10] sm:$0xff]
      %v7322 = vld [vmem:[%s8 + $0x18] sm:$0xff]
      %v7323 = vld [vmem:[%s8 + $0x20] sm:$0xff]
      %v7324 = vld [vmem:[%s8 + $0x28] sm:$0xff]
      %v7325 = vld [vmem:[%s8 + $0x30] sm:$0xff]
      %v7326 = vld [vmem:[%s8 + $0x38] sm:$0xff]
      %v7327 = vld [vmem:[%s8 + $0x40] sm:$0xff]
      %v7328 = vrot.slane %v4104, 7
      %v7329 = vrot.slane %v4105, 7
      %v7330 = vsel %vm430, %v7328, %v7329
      %v7331 = vrot.slane %v4106, 7
      %v7332 = vrot.slane %v4107, 7
      %v7333 = vsel %vm430, %v7331, %v7332
      %v7334 = vrot.slane %v4108, 7
      %v7335 = vrot.slane %v4109, 7
      %v7336 = vsel %vm430, %v7334, %v7335
      %v7337 = vrot.slane %v4110, 7
      %v7338 = vrot.slane %v4111, 7
      %v7339 = vsel %vm430, %v7337, %v7338
      %v7340 = vrot.slane %v4112, 7
      %v7341 = vrot.slane %v4113, 7
      %v7342 = vsel %vm430, %v7340, %v7341
      %v7343 = vrot.slane %v4114, 7
      %v7344 = vrot.slane %v4115, 7
      %v7345 = vsel %vm430, %v7343, %v7344
      %v7346 = vrot.slane %v4116, 7
      %v7347 = vrot.slane %v4117, 7
      %v7348 = vsel %vm430, %v7346, %v7347
      %v7349 = vrot.slane %v4118, 7
      %v7350 = vrot.slane %v4119, 7
      %v7351 = vsel %vm430, %v7349, %v7350
      %v7352 = vrot.slane %v4120, 7
      %v7353 = vrot.slane %v4121, 7
      %v7354 = vsel %vm430, %v7352, %v7353
      %v7355 = vrot.slane %v4122, 7
      %v7356 = vrot.slane %v4123, 7
      %v7357 = vsel %vm430, %v7355, %v7356
      %v7358 = vrot.slane %v4124, 7
      %v7359 = vrot.slane %v4125, 7
      %v7360 = vsel %vm430, %v7358, %v7359
      %v7361 = vrot.slane %v4126, 7
      %v7362 = vrot.slane %v4127, 7
      %v7363 = vsel %vm430, %v7361, %v7362
      %v7364 = vrot.slane %v4128, 7
      %v7365 = vrot.slane %v4129, 7
      %v7366 = vsel %vm430, %v7364, %v7365
      %v7367 = vrot.slane %v4130, 7
      %v7368 = vrot.slane %v4131, 7
      %v7369 = vsel %vm430, %v7367, %v7368
      %v7370 = vrot.slane %v4132, 7
      %v7371 = vrot.slane %v4133, 7
      %v7372 = vsel %vm430, %v7370, %v7371
      %v7373 = vrot.slane %v4134, 7
      %v7374 = vrot.slane %v4135, 7
      %v7375 = vsel %vm430, %v7373, %v7374
      %v7423 = vsel %vm430, 0.0, %v7328
      %v7424 = vsel %vm430, 0.0, %v7331
      %v7425 = vsel %vm430, 0.0, %v7334
      %v7426 = vsel %vm430, 0.0, %v7337
      %v7427 = vsel %vm430, 0.0, %v7340
      %v7428 = vsel %vm430, 0.0, %v7343
      %v7429 = vsel %vm430, 0.0, %v7346
      %v7430 = vsel %vm430, 0.0, %v7349
      %v7431 = vsel %vm430, 0.0, %v7352
      %v7432 = vsel %vm430, 0.0, %v7355
      %v7433 = vsel %vm430, 0.0, %v7358
      %v7434 = vsel %vm430, 0.0, %v7361
      %v7435 = vsel %vm430, 0.0, %v7364
      %v7436 = vsel %vm430, 0.0, %v7367
      %v7437 = vsel %vm430, 0.0, %v7370
      %v7438 = vsel %vm430, 0.0, %v7373
      %v7439 = vsel %vm430, %v7329, 0.0
      %v7440 = vsel %vm430, %v7332, 0.0
      %v7441 = vsel %vm430, %v7335, 0.0
      %v7442 = vsel %vm430, %v7338, 0.0
      %v7443 = vsel %vm430, %v7341, 0.0
      %v7444 = vsel %vm430, %v7344, 0.0
      %v7445 = vsel %vm430, %v7347, 0.0
      %v7446 = vsel %vm430, %v7350, 0.0
      %v7447 = vsel %vm430, %v7353, 0.0
      %v7448 = vsel %vm430, %v7356, 0.0
      %v7449 = vsel %vm430, %v7359, 0.0
      %v7450 = vsel %vm430, %v7362, 0.0
      %v7451 = vsel %vm430, %v7365, 0.0
      %v7452 = vsel %vm430, %v7368, 0.0
      %v7453 = vsel %vm430, %v7371, 0.0
      %v7454 = vsel %vm430, %v7374, 0.0
      %v7485 = vrot.slane %v7423, 1
      %v7486 = vrot.slane %v7330, 1
      %v7487 = vsel %vm596, %v7485, %v7486
      %v7488 = vrot.slane %v7439, 1
      %v7489 = vsel %vm596, %v7486, %v7488
      %v7490 = vrot.slane %v7424, 1
      %v7491 = vrot.slane %v7333, 1
      %v7492 = vsel %vm596, %v7490, %v7491
      %v7493 = vrot.slane %v7440, 1
      %v7494 = vsel %vm596, %v7491, %v7493
      %v7495 = vrot.slane %v7425, 1
      %v7496 = vrot.slane %v7336, 1
      %v7497 = vsel %vm596, %v7495, %v7496
      %v7498 = vrot.slane %v7441, 1
      %v7499 = vsel %vm596, %v7496, %v7498
      %v7500 = vrot.slane %v7426, 1
      %v7501 = vrot.slane %v7339, 1
      %v7502 = vsel %vm596, %v7500, %v7501
      %v7503 = vrot.slane %v7442, 1
      %v7504 = vsel %vm596, %v7501, %v7503
      %v7505 = vrot.slane %v7427, 1
      %v7506 = vrot.slane %v7342, 1
      %v7507 = vsel %vm596, %v7505, %v7506
      %v7508 = vrot.slane %v7443, 1
      %v7509 = vsel %vm596, %v7506, %v7508
      %v7510 = vrot.slane %v7428, 1
      %v7511 = vrot.slane %v7345, 1
      %v7512 = vsel %vm596, %v7510, %v7511
      %v7513 = vrot.slane %v7444, 1
      %v7514 = vsel %vm596, %v7511, %v7513
      %v7515 = vrot.slane %v7429, 1
      %v7516 = vrot.slane %v7348, 1
      %v7517 = vsel %vm596, %v7515, %v7516
      %v7518 = vrot.slane %v7445, 1
      %v7519 = vsel %vm596, %v7516, %v7518
      %v7520 = vrot.slane %v7430, 1
      %v7521 = vrot.slane %v7351, 1
      %v7522 = vsel %vm596, %v7520, %v7521
      %v7523 = vrot.slane %v7446, 1
      %v7524 = vsel %vm596, %v7521, %v7523
      %v7525 = vrot.slane %v7431, 1
      %v7526 = vrot.slane %v7354, 1
      %v7527 = vsel %vm596, %v7525, %v7526
      %v7528 = vrot.slane %v7447, 1
      %v7529 = vsel %vm596, %v7526, %v7528
      %v7530 = vrot.slane %v7432, 1
      %v7531 = vrot.slane %v7357, 1
      %v7532 = vsel %vm596, %v7530, %v7531
      %v7533 = vrot.slane %v7448, 1
      %v7534 = vsel %vm596, %v7531, %v7533
      %v7535 = vrot.slane %v7433, 1
      %v7536 = vrot.slane %v7360, 1
      %v7537 = vsel %vm596, %v7535, %v7536
      %v7538 = vrot.slane %v7449, 1
      %v7539 = vsel %vm596, %v7536, %v7538
      %v7540 = vrot.slane %v7434, 1
      %v7541 = vrot.slane %v7363, 1
      %v7542 = vsel %vm596, %v7540, %v7541
      %v7543 = vrot.slane %v7450, 1
      %v7544 = vsel %vm596, %v7541, %v7543
      %v7545 = vrot.slane %v7435, 1
      %v7546 = vrot.slane %v7366, 1
      %v7547 = vsel %vm596, %v7545, %v7546
      %v7548 = vrot.slane %v7451, 1
      %v7549 = vsel %vm596, %v7546, %v7548
      %v7550 = vrot.slane %v7436, 1
      %v7551 = vrot.slane %v7369, 1
      %v7552 = vsel %vm596, %v7550, %v7551
      %v7553 = vrot.slane %v7452, 1
      %v7554 = vsel %vm596, %v7551, %v7553
      %v7555 = vrot.slane %v7437, 1
      %v7556 = vrot.slane %v7372, 1
      %v7557 = vsel %vm596, %v7555, %v7556
      %v7558 = vrot.slane %v7453, 1
      %v7559 = vsel %vm596, %v7556, %v7558
      %7560 = vrot.lane.b32.xlu0 %v7487, 8
      %v7561 = vpop.permute.xlu0 %7560
      %7562 = vrot.lane.b32.xlu0 %v7489, 8
      %v7563 = vpop.permute.xlu0 %7562
      %7564 = vrot.lane.b32.xlu0 %v7492, 8
      %v7565 = vpop.permute.xlu0 %7564
      %7566 = vrot.lane.b32.xlu0 %v7494, 8
      %v7567 = vpop.permute.xlu0 %7566
      %7568 = vrot.lane.b32.xlu0 %v7497, 8
      %v7569 = vpop.permute.xlu0 %7568
      %7570 = vrot.lane.b32.xlu0 %v7499, 8
      %v7571 = vpop.permute.xlu0 %7570
      %7572 = vrot.lane.b32.xlu0 %v7502, 8
      %v7573 = vpop.permute.xlu0 %7572
      %7574 = vrot.lane.b32.xlu0 %v7504, 8
      %v7575 = vpop.permute.xlu0 %7574
      %7576 = vrot.lane.b32.xlu0 %v7507, 8
      %v7577 = vpop.permute.xlu0 %7576
      %7578 = vrot.lane.b32.xlu0 %v7509, 8
      %v7579 = vpop.permute.xlu0 %7578
      %7580 = vrot.lane.b32.xlu0 %v7512, 8
      %v7581 = vpop.permute.xlu0 %7580
      %7582 = vrot.lane.b32.xlu0 %v7514, 8
      %v7583 = vpop.permute.xlu0 %7582
      %7584 = vrot.lane.b32.xlu0 %v7517, 8
      %v7585 = vpop.permute.xlu0 %7584
      %7586 = vrot.lane.b32.xlu0 %v7519, 8
      %v7587 = vpop.permute.xlu0 %7586
      %7588 = vrot.lane.b32.xlu0 %v7522, 8
      %v7589 = vpop.permute.xlu0 %7588
      %7590 = vrot.lane.b32.xlu0 %v7524, 8
      %v7591 = vpop.permute.xlu0 %7590
      %7592 = vrot.lane.b32.xlu0 %v7527, 8
      %v7593 = vpop.permute.xlu0 %7592
      %7594 = vrot.lane.b32.xlu0 %v7529, 8
      %v7595 = vpop.permute.xlu0 %7594
      %7596 = vrot.lane.b32.xlu0 %v7532, 8
      %v7597 = vpop.permute.xlu0 %7596
      %7598 = vrot.lane.b32.xlu0 %v7534, 8
      %v7599 = vpop.permute.xlu0 %7598
      %7600 = vrot.lane.b32.xlu0 %v7537, 8
      %v7601 = vpop.permute.xlu0 %7600
      %7602 = vrot.lane.b32.xlu0 %v7539, 8
      %v7603 = vpop.permute.xlu0 %7602
      %7604 = vrot.lane.b32.xlu0 %v7542, 8
      %v7605 = vpop.permute.xlu0 %7604
      %7606 = vrot.lane.b32.xlu0 %v7544, 8
      %v7607 = vpop.permute.xlu0 %7606
      %7608 = vrot.lane.b32.xlu0 %v7547, 8
      %v7609 = vpop.permute.xlu0 %7608
      %7610 = vrot.lane.b32.xlu0 %v7549, 8
      %v7611 = vpop.permute.xlu0 %7610
      %7612 = vrot.lane.b32.xlu0 %v7552, 8
      %v7613 = vpop.permute.xlu0 %7612
      %7614 = vrot.lane.b32.xlu0 %v7554, 8
      %v7615 = vpop.permute.xlu0 %7614
      %7616 = vrot.lane.b32.xlu0 %v7557, 8
      %v7617 = vpop.permute.xlu0 %7616
      %7618 = vrot.lane.b32.xlu0 %v7559, 8
      %v7619 = vpop.permute.xlu0 %7618
      %v7650 = vrot.slane %v7423, 2
      %v7651 = vrot.slane %v7330, 2
      %v7652 = vsel %vm773, %v7650, %v7651
      %v7653 = vrot.slane %v7439, 2
      %v7654 = vsel %vm773, %v7651, %v7653
      %v7655 = vrot.slane %v7424, 2
      %v7656 = vrot.slane %v7333, 2
      %v7657 = vsel %vm773, %v7655, %v7656
      %v7658 = vrot.slane %v7440, 2
      %v7659 = vsel %vm773, %v7656, %v7658
      %v7660 = vrot.slane %v7425, 2
      %v7661 = vrot.slane %v7336, 2
      %v7662 = vsel %vm773, %v7660, %v7661
      %v7663 = vrot.slane %v7441, 2
      %v7664 = vsel %vm773, %v7661, %v7663
      %v7665 = vrot.slane %v7426, 2
      %v7666 = vrot.slane %v7339, 2
      %v7667 = vsel %vm773, %v7665, %v7666
      %v7668 = vrot.slane %v7442, 2
      %v7669 = vsel %vm773, %v7666, %v7668
      %v7670 = vrot.slane %v7427, 2
      %v7671 = vrot.slane %v7342, 2
      %v7672 = vsel %vm773, %v7670, %v7671
      %v7673 = vrot.slane %v7443, 2
      %v7674 = vsel %vm773, %v7671, %v7673
      %v7675 = vrot.slane %v7428, 2
      %v7676 = vrot.slane %v7345, 2
      %v7677 = vsel %vm773, %v7675, %v7676
      %v7678 = vrot.slane %v7444, 2
      %v7679 = vsel %vm773, %v7676, %v7678
      %v7680 = vrot.slane %v7429, 2
      %v7681 = vrot.slane %v7348, 2
      %v7682 = vsel %vm773, %v7680, %v7681
      %v7683 = vrot.slane %v7445, 2
      %v7684 = vsel %vm773, %v7681, %v7683
      %v7685 = vrot.slane %v7430, 2
      %v7686 = vrot.slane %v7351, 2
      %v7687 = vsel %vm773, %v7685, %v7686
      %v7688 = vrot.slane %v7446, 2
      %v7689 = vsel %vm773, %v7686, %v7688
      %v7690 = vrot.slane %v7431, 2
      %v7691 = vrot.slane %v7354, 2
      %v7692 = vsel %vm773, %v7690, %v7691
      %v7693 = vrot.slane %v7447, 2
      %v7694 = vsel %vm773, %v7691, %v7693
      %v7695 = vrot.slane %v7432, 2
      %v7696 = vrot.slane %v7357, 2
      %v7697 = vsel %vm773, %v7695, %v7696
      %v7698 = vrot.slane %v7448, 2
      %v7699 = vsel %vm773, %v7696, %v7698
      %v7700 = vrot.slane %v7433, 2
      %v7701 = vrot.slane %v7360, 2
      %v7702 = vsel %vm773, %v7700, %v7701
      %v7703 = vrot.slane %v7449, 2
      %v7704 = vsel %vm773, %v7701, %v7703
      %v7705 = vrot.slane %v7434, 2
      %v7706 = vrot.slane %v7363, 2
      %v7707 = vsel %vm773, %v7705, %v7706
      %v7708 = vrot.slane %v7450, 2
      %v7709 = vsel %vm773, %v7706, %v7708
      %v7710 = vrot.slane %v7435, 2
      %v7711 = vrot.slane %v7366, 2
      %v7712 = vsel %vm773, %v7710, %v7711
      %v7713 = vrot.slane %v7451, 2
      %v7714 = vsel %vm773, %v7711, %v7713
      %v7715 = vrot.slane %v7436, 2
      %v7716 = vrot.slane %v7369, 2
      %v7717 = vsel %vm773, %v7715, %v7716
      %v7718 = vrot.slane %v7452, 2
      %v7719 = vsel %vm773, %v7716, %v7718
      %v7720 = vrot.slane %v7437, 2
      %v7721 = vrot.slane %v7372, 2
      %v7722 = vsel %vm773, %v7720, %v7721
      %v7723 = vrot.slane %v7453, 2
      %v7724 = vsel %vm773, %v7721, %v7723
      %7725 = vrot.lane.b32.xlu0 %v7652, 16
      %v7726 = vpop.permute.xlu0 %7725
      %7727 = vrot.lane.b32.xlu0 %v7654, 16
      %v7728 = vpop.permute.xlu0 %7727
      %7729 = vrot.lane.b32.xlu0 %v7657, 16
      %v7730 = vpop.permute.xlu0 %7729
      %7731 = vrot.lane.b32.xlu0 %v7659, 16
      %v7732 = vpop.permute.xlu0 %7731
      %7733 = vrot.lane.b32.xlu0 %v7662, 16
      %v7734 = vpop.permute.xlu0 %7733
      %7735 = vrot.lane.b32.xlu0 %v7664, 16
      %v7736 = vpop.permute.xlu0 %7735
      %7737 = vrot.lane.b32.xlu0 %v7667, 16
      %v7738 = vpop.permute.xlu0 %7737
      %7739 = vrot.lane.b32.xlu0 %v7669, 16
      %v7740 = vpop.permute.xlu0 %7739
      %7741 = vrot.lane.b32.xlu0 %v7672, 16
      %v7742 = vpop.permute.xlu0 %7741
      %7743 = vrot.lane.b32.xlu0 %v7674, 16
      %v7744 = vpop.permute.xlu0 %7743
      %7745 = vrot.lane.b32.xlu0 %v7677, 16
      %v7746 = vpop.permute.xlu0 %7745
      %7747 = vrot.lane.b32.xlu0 %v7679, 16
      %v7748 = vpop.permute.xlu0 %7747
      %7749 = vrot.lane.b32.xlu0 %v7682, 16
      %v7750 = vpop.permute.xlu0 %7749
      %7751 = vrot.lane.b32.xlu0 %v7684, 16
      %v7752 = vpop.permute.xlu0 %7751
      %7753 = vrot.lane.b32.xlu0 %v7687, 16
      %v7754 = vpop.permute.xlu0 %7753
      %7755 = vrot.lane.b32.xlu0 %v7689, 16
      %v7756 = vpop.permute.xlu0 %7755
      %7757 = vrot.lane.b32.xlu0 %v7692, 16
      %v7758 = vpop.permute.xlu0 %7757
      %7759 = vrot.lane.b32.xlu0 %v7694, 16
      %v7760 = vpop.permute.xlu0 %7759
      %7761 = vrot.lane.b32.xlu0 %v7697, 16
      %v7762 = vpop.permute.xlu0 %7761
      %7763 = vrot.lane.b32.xlu0 %v7699, 16
      %v7764 = vpop.permute.xlu0 %7763
      %7765 = vrot.lane.b32.xlu0 %v7702, 16
      %v7766 = vpop.permute.xlu0 %7765
      %7767 = vrot.lane.b32.xlu0 %v7704, 16
      %v7768 = vpop.permute.xlu0 %7767
      %7769 = vrot.lane.b32.xlu0 %v7707, 16
      %v7770 = vpop.permute.xlu0 %7769
      %7771 = vrot.lane.b32.xlu0 %v7709, 16
      %v7772 = vpop.permute.xlu0 %7771
      %7773 = vrot.lane.b32.xlu0 %v7712, 16
      %v7774 = vpop.permute.xlu0 %7773
      %7775 = vrot.lane.b32.xlu0 %v7714, 16
      %v7776 = vpop.permute.xlu0 %7775
      %7777 = vrot.lane.b32.xlu0 %v7717, 16
      %v7778 = vpop.permute.xlu0 %7777
      %7779 = vrot.lane.b32.xlu0 %v7719, 16
      %v7780 = vpop.permute.xlu0 %7779
      %7781 = vrot.lane.b32.xlu0 %v7722, 16
      %v7782 = vpop.permute.xlu0 %7781
      %7783 = vrot.lane.b32.xlu0 %v7724, 16
      %v7784 = vpop.permute.xlu0 %7783
      %7816 = vrot.lane.b32.xlu0 %v7423, 24
      %v7817 = vpop.permute.xlu0 %7816
      %7818 = vrot.lane.b32.xlu0 %v7330, 24
      %v7819 = vpop.permute.xlu0 %7818
      %7820 = vrot.lane.b32.xlu0 %v7424, 24
      %v7821 = vpop.permute.xlu0 %7820
      %7822 = vrot.lane.b32.xlu0 %v7333, 24
      %v7823 = vpop.permute.xlu0 %7822
      %7824 = vrot.lane.b32.xlu0 %v7425, 24
      %v7825 = vpop.permute.xlu0 %7824
      %7826 = vrot.lane.b32.xlu0 %v7336, 24
      %v7827 = vpop.permute.xlu0 %7826
      %7828 = vrot.lane.b32.xlu0 %v7426, 24
      %v7829 = vpop.permute.xlu0 %7828
      %7830 = vrot.lane.b32.xlu0 %v7339, 24
      %v7831 = vpop.permute.xlu0 %7830
      %7832 = vrot.lane.b32.xlu0 %v7427, 24
      %v7833 = vpop.permute.xlu0 %7832
      %7834 = vrot.lane.b32.xlu0 %v7342, 24
      %v7835 = vpop.permute.xlu0 %7834
      %7836 = vrot.lane.b32.xlu0 %v7428, 24
      %v7837 = vpop.permute.xlu0 %7836
      %7838 = vrot.lane.b32.xlu0 %v7345, 24
      %v7839 = vpop.permute.xlu0 %7838
      %7840 = vrot.lane.b32.xlu0 %v7429, 24
      %v7841 = vpop.permute.xlu0 %7840
      %7842 = vrot.lane.b32.xlu0 %v7348, 24
      %v7843 = vpop.permute.xlu0 %7842
      %7844 = vrot.lane.b32.xlu0 %v7430, 24
      %v7845 = vpop.permute.xlu0 %7844
      %7846 = vrot.lane.b32.xlu0 %v7351, 24
      %v7847 = vpop.permute.xlu0 %7846
      %7848 = vrot.lane.b32.xlu0 %v7431, 24
      %v7849 = vpop.permute.xlu0 %7848
      %7850 = vrot.lane.b32.xlu0 %v7354, 24
      %v7851 = vpop.permute.xlu0 %7850
      %7852 = vrot.lane.b32.xlu0 %v7432, 24
      %v7853 = vpop.permute.xlu0 %7852
      %7854 = vrot.lane.b32.xlu0 %v7357, 24
      %v7855 = vpop.permute.xlu0 %7854
      %7856 = vrot.lane.b32.xlu0 %v7433, 24
      %v7857 = vpop.permute.xlu0 %7856
      %7858 = vrot.lane.b32.xlu0 %v7360, 24
      %v7859 = vpop.permute.xlu0 %7858
      %7860 = vrot.lane.b32.xlu0 %v7434, 24
      %v7861 = vpop.permute.xlu0 %7860
      %7862 = vrot.lane.b32.xlu0 %v7363, 24
      %v7863 = vpop.permute.xlu0 %7862
      %7864 = vrot.lane.b32.xlu0 %v7435, 24
      %v7865 = vpop.permute.xlu0 %7864
      %7866 = vrot.lane.b32.xlu0 %v7366, 24
      %v7867 = vpop.permute.xlu0 %7866
      %7868 = vrot.lane.b32.xlu0 %v7436, 24
      %v7869 = vpop.permute.xlu0 %7868
      %7870 = vrot.lane.b32.xlu0 %v7369, 24
      %v7871 = vpop.permute.xlu0 %7870
      %7872 = vrot.lane.b32.xlu0 %v7437, 24
      %v7873 = vpop.permute.xlu0 %7872
      %7874 = vrot.lane.b32.xlu0 %v7372, 24
      %v7875 = vpop.permute.xlu0 %7874
      %7876 = vrot.lane.b32.xlu0 %v7438, 24
      %v7877 = vpop.permute.xlu0 %7876
      %7878 = vrot.lane.b32.xlu0 %v7375, 24
      %v7879 = vpop.permute.xlu0 %7878
      %v7913 = vrot.slane %v7438, 1
      %v7914 = vrot.slane %v7375, 1
      %v7915 = vsel %vm596, %v7913, %v7914
      %v7916 = vrot.slane %v7454, 1
      %v7917 = vsel %vm596, %v7914, %v7916
      %7918 = vrot.lane.b32.xlu0 %v7487, 32
      %v7919 = vpop.permute.xlu0 %7918
      %7920 = vrot.lane.b32.xlu0 %v7489, 32
      %v7921 = vpop.permute.xlu0 %7920
      %7922 = vrot.lane.b32.xlu0 %v7492, 32
      %v7923 = vpop.permute.xlu0 %7922
      %7924 = vrot.lane.b32.xlu0 %v7494, 32
      %v7925 = vpop.permute.xlu0 %7924
      %7926 = vrot.lane.b32.xlu0 %v7497, 32
      %v7927 = vpop.permute.xlu0 %7926
      %7928 = vrot.lane.b32.xlu0 %v7499, 32
      %v7929 = vpop.permute.xlu0 %7928
      %7930 = vrot.lane.b32.xlu0 %v7502, 32
      %v7931 = vpop.permute.xlu0 %7930
      %7932 = vrot.lane.b32.xlu0 %v7504, 32
      %v7933 = vpop.permute.xlu0 %7932
      %7934 = vrot.lane.b32.xlu0 %v7507, 32
      %v7935 = vpop.permute.xlu0 %7934
      %7936 = vrot.lane.b32.xlu0 %v7509, 32
      %v7937 = vpop.permute.xlu0 %7936
      %7938 = vrot.lane.b32.xlu0 %v7512, 32
      %v7939 = vpop.permute.xlu0 %7938
      %7940 = vrot.lane.b32.xlu0 %v7514, 32
      %v7941 = vpop.permute.xlu0 %7940
      %7942 = vrot.lane.b32.xlu0 %v7517, 32
      %v7943 = vpop.permute.xlu0 %7942
      %7944 = vrot.lane.b32.xlu0 %v7519, 32
      %v7945 = vpop.permute.xlu0 %7944
      %7946 = vrot.lane.b32.xlu0 %v7522, 32
      %v7947 = vpop.permute.xlu0 %7946
      %7948 = vrot.lane.b32.xlu0 %v7524, 32
      %v7949 = vpop.permute.xlu0 %7948
      %7950 = vrot.lane.b32.xlu0 %v7527, 32
      %v7951 = vpop.permute.xlu0 %7950
      %7952 = vrot.lane.b32.xlu0 %v7529, 32
      %v7953 = vpop.permute.xlu0 %7952
      %7954 = vrot.lane.b32.xlu0 %v7532, 32
      %v7955 = vpop.permute.xlu0 %7954
      %7956 = vrot.lane.b32.xlu0 %v7534, 32
      %v7957 = vpop.permute.xlu0 %7956
      %7958 = vrot.lane.b32.xlu0 %v7537, 32
      %v7959 = vpop.permute.xlu0 %7958
      %7960 = vrot.lane.b32.xlu0 %v7539, 32
      %v7961 = vpop.permute.xlu0 %7960
      %7962 = vrot.lane.b32.xlu0 %v7542, 32
      %v7963 = vpop.permute.xlu0 %7962
      %7964 = vrot.lane.b32.xlu0 %v7544, 32
      %v7965 = vpop.permute.xlu0 %7964
      %7966 = vrot.lane.b32.xlu0 %v7547, 32
      %v7967 = vpop.permute.xlu0 %7966
      %7968 = vrot.lane.b32.xlu0 %v7549, 32
      %v7969 = vpop.permute.xlu0 %7968
      %7970 = vrot.lane.b32.xlu0 %v7552, 32
      %v7971 = vpop.permute.xlu0 %7970
      %7972 = vrot.lane.b32.xlu0 %v7554, 32
      %v7973 = vpop.permute.xlu0 %7972
      %7974 = vrot.lane.b32.xlu0 %v7557, 32
      %v7975 = vpop.permute.xlu0 %7974
      %7976 = vrot.lane.b32.xlu0 %v7559, 32
      %v7977 = vpop.permute.xlu0 %7976
      %7978 = vrot.lane.b32.xlu0 %v7915, 32
      %v7979 = vpop.permute.xlu0 %7978
      %7980 = vrot.lane.b32.xlu0 %v7917, 32
      %v7981 = vpop.permute.xlu0 %7980
      %v8014 = vrot.slane %v7438, 2
      %v8015 = vrot.slane %v7375, 2
      %v8016 = vsel %vm773, %v8014, %v8015
      %v8017 = vrot.slane %v7454, 2
      %v8018 = vsel %vm773, %v8015, %v8017
      %8019 = vrot.lane.b32.xlu0 %v7652, 40
      %v8020 = vpop.permute.xlu0 %8019
      %8021 = vrot.lane.b32.xlu0 %v7654, 40
      %v8022 = vpop.permute.xlu0 %8021
      %8023 = vrot.lane.b32.xlu0 %v7657, 40
      %v8024 = vpop.permute.xlu0 %8023
      %8025 = vrot.lane.b32.xlu0 %v7659, 40
      %v8026 = vpop.permute.xlu0 %8025
      %8027 = vrot.lane.b32.xlu0 %v7662, 40
      %v8028 = vpop.permute.xlu0 %8027
      %8029 = vrot.lane.b32.xlu0 %v7664, 40
      %v8030 = vpop.permute.xlu0 %8029
      %8031 = vrot.lane.b32.xlu0 %v7667, 40
      %v8032 = vpop.permute.xlu0 %8031
      %8033 = vrot.lane.b32.xlu0 %v7669, 40
      %v8034 = vpop.permute.xlu0 %8033
      %8035 = vrot.lane.b32.xlu0 %v7672, 40
      %v8036 = vpop.permute.xlu0 %8035
      %8037 = vrot.lane.b32.xlu0 %v7674, 40
      %v8038 = vpop.permute.xlu0 %8037
      %8039 = vrot.lane.b32.xlu0 %v7677, 40
      %v8040 = vpop.permute.xlu0 %8039
      %8041 = vrot.lane.b32.xlu0 %v7679, 40
      %v8042 = vpop.permute.xlu0 %8041
      %8043 = vrot.lane.b32.xlu0 %v7682, 40
      %v8044 = vpop.permute.xlu0 %8043
      %8045 = vrot.lane.b32.xlu0 %v7684, 40
      %v8046 = vpop.permute.xlu0 %8045
      %8047 = vrot.lane.b32.xlu0 %v7687, 40
      %v8048 = vpop.permute.xlu0 %8047
      %8049 = vrot.lane.b32.xlu0 %v7689, 40
      %v8050 = vpop.permute.xlu0 %8049
      %8051 = vrot.lane.b32.xlu0 %v7692, 40
      %v8052 = vpop.permute.xlu0 %8051
      %8053 = vrot.lane.b32.xlu0 %v7694, 40
      %v8054 = vpop.permute.xlu0 %8053
      %8055 = vrot.lane.b32.xlu0 %v7697, 40
      %v8056 = vpop.permute.xlu0 %8055
      %8057 = vrot.lane.b32.xlu0 %v7699, 40
      %v8058 = vpop.permute.xlu0 %8057
      %8059 = vrot.lane.b32.xlu0 %v7702, 40
      %v8060 = vpop.permute.xlu0 %8059
      %8061 = vrot.lane.b32.xlu0 %v7704, 40
      %v8062 = vpop.permute.xlu0 %8061
      %8063 = vrot.lane.b32.xlu0 %v7707, 40
      %v8064 = vpop.permute.xlu0 %8063
      %8065 = vrot.lane.b32.xlu0 %v7709, 40
      %v8066 = vpop.permute.xlu0 %8065
      %8067 = vrot.lane.b32.xlu0 %v7712, 40
      %v8068 = vpop.permute.xlu0 %8067
      %8069 = vrot.lane.b32.xlu0 %v7714, 40
      %v8070 = vpop.permute.xlu0 %8069
      %8071 = vrot.lane.b32.xlu0 %v7717, 40
      %v8072 = vpop.permute.xlu0 %8071
      %8073 = vrot.lane.b32.xlu0 %v7719, 40
      %v8074 = vpop.permute.xlu0 %8073
      %8075 = vrot.lane.b32.xlu0 %v7722, 40
      %v8076 = vpop.permute.xlu0 %8075
      %8077 = vrot.lane.b32.xlu0 %v7724, 40
      %v8078 = vpop.permute.xlu0 %8077
      %8079 = vrot.lane.b32.xlu0 %v8016, 40
      %v8080 = vpop.permute.xlu0 %8079
      %8081 = vrot.lane.b32.xlu0 %v8018, 40
      %v8082 = vpop.permute.xlu0 %8081
      %8115 = vrot.lane.b32.xlu0 %v7424, 48
      %v8116 = vpop.permute.xlu0 %8115
      %8117 = vrot.lane.b32.xlu0 %v7333, 48
      %v8118 = vpop.permute.xlu0 %8117
      %8119 = vrot.lane.b32.xlu0 %v7425, 48
      %v8120 = vpop.permute.xlu0 %8119
      %8121 = vrot.lane.b32.xlu0 %v7336, 48
      %v8122 = vpop.permute.xlu0 %8121
      %8123 = vrot.lane.b32.xlu0 %v7426, 48
      %v8124 = vpop.permute.xlu0 %8123
      %8125 = vrot.lane.b32.xlu0 %v7339, 48
      %v8126 = vpop.permute.xlu0 %8125
      %8127 = vrot.lane.b32.xlu0 %v7427, 48
      %v8128 = vpop.permute.xlu0 %8127
      %8129 = vrot.lane.b32.xlu0 %v7342, 48
      %v8130 = vpop.permute.xlu0 %8129
      %8131 = vrot.lane.b32.xlu0 %v7428, 48
      %v8132 = vpop.permute.xlu0 %8131
      %8133 = vrot.lane.b32.xlu0 %v7345, 48
      %v8134 = vpop.permute.xlu0 %8133
      %8135 = vrot.lane.b32.xlu0 %v7429, 48
      %v8136 = vpop.permute.xlu0 %8135
      %8137 = vrot.lane.b32.xlu0 %v7348, 48
      %v8138 = vpop.permute.xlu0 %8137
      %8139 = vrot.lane.b32.xlu0 %v7430, 48
      %v8140 = vpop.permute.xlu0 %8139
      %8141 = vrot.lane.b32.xlu0 %v7351, 48
      %v8142 = vpop.permute.xlu0 %8141
      %8143 = vrot.lane.b32.xlu0 %v7431, 48
      %v8144 = vpop.permute.xlu0 %8143
      %8145 = vrot.lane.b32.xlu0 %v7354, 48
      %v8146 = vpop.permute.xlu0 %8145
      %8147 = vrot.lane.b32.xlu0 %v7432, 48
      %v8148 = vpop.permute.xlu0 %8147
      %8149 = vrot.lane.b32.xlu0 %v7357, 48
      %v8150 = vpop.permute.xlu0 %8149
      %8151 = vrot.lane.b32.xlu0 %v7433, 48
      %v8152 = vpop.permute.xlu0 %8151
      %8153 = vrot.lane.b32.xlu0 %v7360, 48
      %v8154 = vpop.permute.xlu0 %8153
      %8155 = vrot.lane.b32.xlu0 %v7434, 48
      %v8156 = vpop.permute.xlu0 %8155
      %8157 = vrot.lane.b32.xlu0 %v7363, 48
      %v8158 = vpop.permute.xlu0 %8157
      %8159 = vrot.lane.b32.xlu0 %v7435, 48
      %v8160 = vpop.permute.xlu0 %8159
      %8161 = vrot.lane.b32.xlu0 %v7366, 48
      %v8162 = vpop.permute.xlu0 %8161
      %8163 = vrot.lane.b32.xlu0 %v7436, 48
      %v8164 = vpop.permute.xlu0 %8163
      %8165 = vrot.lane.b32.xlu0 %v7369, 48
      %v8166 = vpop.permute.xlu0 %8165
      %8167 = vrot.lane.b32.xlu0 %v7437, 48
      %v8168 = vpop.permute.xlu0 %8167
      %8169 = vrot.lane.b32.xlu0 %v7372, 48
      %v8170 = vpop.permute.xlu0 %8169
      %8171 = vrot.lane.b32.xlu0 %v7438, 48
      %v8172 = vpop.permute.xlu0 %8171
      %8173 = vrot.lane.b32.xlu0 %v7375, 48
      %v8174 = vpop.permute.xlu0 %8173
      %8205 = vrot.lane.b32.xlu0 %v7492, 56
      %v8206 = vpop.permute.xlu0 %8205
      %8207 = vrot.lane.b32.xlu0 %v7494, 56
      %v8208 = vpop.permute.xlu0 %8207
      %8209 = vrot.lane.b32.xlu0 %v7497, 56
      %v8210 = vpop.permute.xlu0 %8209
      %8211 = vrot.lane.b32.xlu0 %v7499, 56
      %v8212 = vpop.permute.xlu0 %8211
      %8213 = vrot.lane.b32.xlu0 %v7502, 56
      %v8214 = vpop.permute.xlu0 %8213
      %8215 = vrot.lane.b32.xlu0 %v7504, 56
      %v8216 = vpop.permute.xlu0 %8215
      %8217 = vrot.lane.b32.xlu0 %v7507, 56
      %v8218 = vpop.permute.xlu0 %8217
      %8219 = vrot.lane.b32.xlu0 %v7509, 56
      %v8220 = vpop.permute.xlu0 %8219
      %8221 = vrot.lane.b32.xlu0 %v7512, 56
      %v8222 = vpop.permute.xlu0 %8221
      %8223 = vrot.lane.b32.xlu0 %v7514, 56
      %v8224 = vpop.permute.xlu0 %8223
      %8225 = vrot.lane.b32.xlu0 %v7517, 56
      %v8226 = vpop.permute.xlu0 %8225
      %8227 = vrot.lane.b32.xlu0 %v7519, 56
      %v8228 = vpop.permute.xlu0 %8227
      %8229 = vrot.lane.b32.xlu0 %v7522, 56
      %v8230 = vpop.permute.xlu0 %8229
      %8231 = vrot.lane.b32.xlu0 %v7524, 56
      %v8232 = vpop.permute.xlu0 %8231
      %8233 = vrot.lane.b32.xlu0 %v7527, 56
      %v8234 = vpop.permute.xlu0 %8233
      %8235 = vrot.lane.b32.xlu0 %v7529, 56
      %v8236 = vpop.permute.xlu0 %8235
      %8237 = vrot.lane.b32.xlu0 %v7532, 56
      %v8238 = vpop.permute.xlu0 %8237
      %8239 = vrot.lane.b32.xlu0 %v7534, 56
      %v8240 = vpop.permute.xlu0 %8239
      %8241 = vrot.lane.b32.xlu0 %v7537, 56
      %v8242 = vpop.permute.xlu0 %8241
      %8243 = vrot.lane.b32.xlu0 %v7539, 56
      %v8244 = vpop.permute.xlu0 %8243
      %8245 = vrot.lane.b32.xlu0 %v7542, 56
      %v8246 = vpop.permute.xlu0 %8245
      %8247 = vrot.lane.b32.xlu0 %v7544, 56
      %v8248 = vpop.permute.xlu0 %8247
      %8249 = vrot.lane.b32.xlu0 %v7547, 56
      %v8250 = vpop.permute.xlu0 %8249
      %8251 = vrot.lane.b32.xlu0 %v7549, 56
      %v8252 = vpop.permute.xlu0 %8251
      %8253 = vrot.lane.b32.xlu0 %v7552, 56
      %v8254 = vpop.permute.xlu0 %8253
      %8255 = vrot.lane.b32.xlu0 %v7554, 56
      %v8256 = vpop.permute.xlu0 %8255
      %8257 = vrot.lane.b32.xlu0 %v7557, 56
      %v8258 = vpop.permute.xlu0 %8257
      %8259 = vrot.lane.b32.xlu0 %v7559, 56
      %v8260 = vpop.permute.xlu0 %8259
      %8261 = vrot.lane.b32.xlu0 %v7915, 56
      %v8262 = vpop.permute.xlu0 %8261
      %8263 = vrot.lane.b32.xlu0 %v7917, 56
      %v8264 = vpop.permute.xlu0 %8263
      %8295 = vrot.lane.b32.xlu0 %v7657, 64
      %v8296 = vpop.permute.xlu0 %8295
      %8297 = vrot.lane.b32.xlu0 %v7659, 64
      %v8298 = vpop.permute.xlu0 %8297
      %8299 = vrot.lane.b32.xlu0 %v7662, 64
      %v8300 = vpop.permute.xlu0 %8299
      %8301 = vrot.lane.b32.xlu0 %v7664, 64
      %v8302 = vpop.permute.xlu0 %8301
      %8303 = vrot.lane.b32.xlu0 %v7667, 64
      %v8304 = vpop.permute.xlu0 %8303
      %8305 = vrot.lane.b32.xlu0 %v7669, 64
      %v8306 = vpop.permute.xlu0 %8305
      %8307 = vrot.lane.b32.xlu0 %v7672, 64
      %v8308 = vpop.permute.xlu0 %8307
      %8309 = vrot.lane.b32.xlu0 %v7674, 64
      %v8310 = vpop.permute.xlu0 %8309
      %8311 = vrot.lane.b32.xlu0 %v7677, 64
      %v8312 = vpop.permute.xlu0 %8311
      %8313 = vrot.lane.b32.xlu0 %v7679, 64
      %v8314 = vpop.permute.xlu0 %8313
      %8315 = vrot.lane.b32.xlu0 %v7682, 64
      %v8316 = vpop.permute.xlu0 %8315
      %8317 = vrot.lane.b32.xlu0 %v7684, 64
      %v8318 = vpop.permute.xlu0 %8317
      %8319 = vrot.lane.b32.xlu0 %v7687, 64
      %v8320 = vpop.permute.xlu0 %8319
      %8321 = vrot.lane.b32.xlu0 %v7689, 64
      %v8322 = vpop.permute.xlu0 %8321
      %8323 = vrot.lane.b32.xlu0 %v7692, 64
      %v8324 = vpop.permute.xlu0 %8323
      %8325 = vrot.lane.b32.xlu0 %v7694, 64
      %v8326 = vpop.permute.xlu0 %8325
      %8327 = vrot.lane.b32.xlu0 %v7697, 64
      %v8328 = vpop.permute.xlu0 %8327
      %8329 = vrot.lane.b32.xlu0 %v7699, 64
      %v8330 = vpop.permute.xlu0 %8329
      %8331 = vrot.lane.b32.xlu0 %v7702, 64
      %v8332 = vpop.permute.xlu0 %8331
      %8333 = vrot.lane.b32.xlu0 %v7704, 64
      %v8334 = vpop.permute.xlu0 %8333
      %8335 = vrot.lane.b32.xlu0 %v7707, 64
      %v8336 = vpop.permute.xlu0 %8335
      %8337 = vrot.lane.b32.xlu0 %v7709, 64
      %v8338 = vpop.permute.xlu0 %8337
      %8339 = vrot.lane.b32.xlu0 %v7712, 64
      %v8340 = vpop.permute.xlu0 %8339
      %8341 = vrot.lane.b32.xlu0 %v7714, 64
      %v8342 = vpop.permute.xlu0 %8341
      %8343 = vrot.lane.b32.xlu0 %v7717, 64
      %v8344 = vpop.permute.xlu0 %8343
      %8345 = vrot.lane.b32.xlu0 %v7719, 64
      %v8346 = vpop.permute.xlu0 %8345
      %8347 = vrot.lane.b32.xlu0 %v7722, 64
      %v8348 = vpop.permute.xlu0 %8347
      %8349 = vrot.lane.b32.xlu0 %v7724, 64
      %v8350 = vpop.permute.xlu0 %8349
      %8351 = vrot.lane.b32.xlu0 %v8016, 64
      %v8352 = vpop.permute.xlu0 %8351
      %8353 = vrot.lane.b32.xlu0 %v8018, 64
      %v8354 = vpop.permute.xlu0 %8353
      %v8385 = vsel %vm1571, %v7423, %v7561
      %v8386 = vsel %vm1571, %v7330, %v7563
      %v8387 = vsel %vm1571, %v7424, %v7565
      %v8388 = vsel %vm1571, %v7333, %v7567
      %v8389 = vsel %vm1571, %v7425, %v7569
      %v8390 = vsel %vm1571, %v7336, %v7571
      %v8391 = vsel %vm1571, %v7426, %v7573
      %v8392 = vsel %vm1571, %v7339, %v7575
      %v8393 = vsel %vm1571, %v7427, %v7577
      %v8394 = vsel %vm1571, %v7342, %v7579
      %v8395 = vsel %vm1571, %v7428, %v7581
      %v8396 = vsel %vm1571, %v7345, %v7583
      %v8397 = vsel %vm1571, %v7429, %v7585
      %v8398 = vsel %vm1571, %v7348, %v7587
      %v8399 = vsel %vm1571, %v7430, %v7589
      %v8400 = vsel %vm1571, %v7351, %v7591
      %v8401 = vsel %vm1571, %v7431, %v7593
      %v8402 = vsel %vm1571, %v7354, %v7595
      %v8403 = vsel %vm1571, %v7432, %v7597
      %v8404 = vsel %vm1571, %v7357, %v7599
      %v8405 = vsel %vm1571, %v7433, %v7601
      %v8406 = vsel %vm1571, %v7360, %v7603
      %v8407 = vsel %vm1571, %v7434, %v7605
      %v8408 = vsel %vm1571, %v7363, %v7607
      %v8409 = vsel %vm1571, %v7435, %v7609
      %v8410 = vsel %vm1571, %v7366, %v7611
      %v8411 = vsel %vm1571, %v7436, %v7613
      %v8412 = vsel %vm1571, %v7369, %v7615
      %v8413 = vsel %vm1571, %v7437, %v7617
      %v8414 = vsel %vm1571, %v7372, %v7619
      %v8415 = vsel %vm1637, %v8385, %v7726
      %v8416 = vsel %vm1637, %v8386, %v7728
      %v8417 = vsel %vm1637, %v8387, %v7730
      %v8418 = vsel %vm1637, %v8388, %v7732
      %v8419 = vsel %vm1637, %v8389, %v7734
      %v8420 = vsel %vm1637, %v8390, %v7736
      %v8421 = vsel %vm1637, %v8391, %v7738
      %v8422 = vsel %vm1637, %v8392, %v7740
      %v8423 = vsel %vm1637, %v8393, %v7742
      %v8424 = vsel %vm1637, %v8394, %v7744
      %v8425 = vsel %vm1637, %v8395, %v7746
      %v8426 = vsel %vm1637, %v8396, %v7748
      %v8427 = vsel %vm1637, %v8397, %v7750
      %v8428 = vsel %vm1637, %v8398, %v7752
      %v8429 = vsel %vm1637, %v8399, %v7754
      %v8430 = vsel %vm1637, %v8400, %v7756
      %v8431 = vsel %vm1637, %v8401, %v7758
      %v8432 = vsel %vm1637, %v8402, %v7760
      %v8433 = vsel %vm1637, %v8403, %v7762
      %v8434 = vsel %vm1637, %v8404, %v7764
      %v8435 = vsel %vm1637, %v8405, %v7766
      %v8436 = vsel %vm1637, %v8406, %v7768
      %v8437 = vsel %vm1637, %v8407, %v7770
      %v8438 = vsel %vm1637, %v8408, %v7772
      %v8439 = vsel %vm1637, %v8409, %v7774
      %v8440 = vsel %vm1637, %v8410, %v7776
      %v8441 = vsel %vm1637, %v8411, %v7778
      %v8442 = vsel %vm1637, %v8412, %v7780
      %v8443 = vsel %vm1637, %v8413, %v7782
      %v8444 = vsel %vm1637, %v8414, %v7784
      %v8445 = vsel %vm1703, %v7095, %v7817
      %v8446 = vsel %vm1703, %v7096, %v7819
      %v8447 = vsel %vm1703, %v8415, %v7821
      %v8448 = vsel %vm1703, %v8416, %v7823
      %v8449 = vsel %vm1703, %v8417, %v7825
      %v8450 = vsel %vm1703, %v8418, %v7827
      %v8451 = vsel %vm1703, %v8419, %v7829
      %v8452 = vsel %vm1703, %v8420, %v7831
      %v8453 = vsel %vm1703, %v8421, %v7833
      %v8454 = vsel %vm1703, %v8422, %v7835
      %v8455 = vsel %vm1703, %v8423, %v7837
      %v8456 = vsel %vm1703, %v8424, %v7839
      %v8457 = vsel %vm1703, %v8425, %v7841
      %v8458 = vsel %vm1703, %v8426, %v7843
      %v8459 = vsel %vm1703, %v8427, %v7845
      %v8460 = vsel %vm1703, %v8428, %v7847
      %v8461 = vsel %vm1703, %v8429, %v7849
      %v8462 = vsel %vm1703, %v8430, %v7851
      %v8463 = vsel %vm1703, %v8431, %v7853
      %v8464 = vsel %vm1703, %v8432, %v7855
      %v8465 = vsel %vm1703, %v8433, %v7857
      %v8466 = vsel %vm1703, %v8434, %v7859
      %v8467 = vsel %vm1703, %v8435, %v7861
      %v8468 = vsel %vm1703, %v8436, %v7863
      %v8469 = vsel %vm1703, %v8437, %v7865
      %v8470 = vsel %vm1703, %v8438, %v7867
      %v8471 = vsel %vm1703, %v8439, %v7869
      %v8472 = vsel %vm1703, %v8440, %v7871
      %v8473 = vsel %vm1703, %v8441, %v7873
      %v8474 = vsel %vm1703, %v8442, %v7875
      %v8475 = vsel %vm1703, %v8443, %v7877
      %v8476 = vsel %vm1703, %v8444, %v7879
      %v8477 = vsel %vm1769, %v8445, %v7919
      %v8478 = vsel %vm1769, %v8446, %v7921
      %v8479 = vsel %vm1769, %v8447, %v7923
      %v8480 = vsel %vm1769, %v8448, %v7925
      %v8481 = vsel %vm1769, %v8449, %v7927
      %v8482 = vsel %vm1769, %v8450, %v7929
      %v8483 = vsel %vm1769, %v8451, %v7931
      %v8484 = vsel %vm1769, %v8452, %v7933
      %v8485 = vsel %vm1769, %v8453, %v7935
      %v8486 = vsel %vm1769, %v8454, %v7937
      %v8487 = vsel %vm1769, %v8455, %v7939
      %v8488 = vsel %vm1769, %v8456, %v7941
      %v8489 = vsel %vm1769, %v8457, %v7943
      %v8490 = vsel %vm1769, %v8458, %v7945
      %v8491 = vsel %vm1769, %v8459, %v7947
      %v8492 = vsel %vm1769, %v8460, %v7949
      %v8493 = vsel %vm1769, %v8461, %v7951
      %v8494 = vsel %vm1769, %v8462, %v7953
      %v8495 = vsel %vm1769, %v8463, %v7955
      %v8496 = vsel %vm1769, %v8464, %v7957
      %v8497 = vsel %vm1769, %v8465, %v7959
      %v8498 = vsel %vm1769, %v8466, %v7961
      %v8499 = vsel %vm1769, %v8467, %v7963
      %v8500 = vsel %vm1769, %v8468, %v7965
      %v8501 = vsel %vm1769, %v8469, %v7967
      %v8502 = vsel %vm1769, %v8470, %v7969
      %v8503 = vsel %vm1769, %v8471, %v7971
      %v8504 = vsel %vm1769, %v8472, %v7973
      %v8505 = vsel %vm1769, %v8473, %v7975
      %v8506 = vsel %vm1769, %v8474, %v7977
      %v8507 = vsel %vm1769, %v8475, %v7979
      %v8508 = vsel %vm1769, %v8476, %v7981
      %v8509 = vsel %vm5376, %v8477, %v8020
      %v8510 = vsel %vm5376, %v8478, %v8022
      %v8511 = vsel %vm5376, %v8479, %v8024
      %v8512 = vsel %vm5376, %v8480, %v8026
      %v8513 = vsel %vm5376, %v8481, %v8028
      %v8514 = vsel %vm5376, %v8482, %v8030
      %v8515 = vsel %vm5376, %v8483, %v8032
      %v8516 = vsel %vm5376, %v8484, %v8034
      %v8517 = vsel %vm5376, %v8485, %v8036
      %v8518 = vsel %vm5376, %v8486, %v8038
      %v8519 = vsel %vm5376, %v8487, %v8040
      %v8520 = vsel %vm5376, %v8488, %v8042
      %v8521 = vsel %vm5376, %v8489, %v8044
      %v8522 = vsel %vm5376, %v8490, %v8046
      %v8523 = vsel %vm5376, %v8491, %v8048
      %v8524 = vsel %vm5376, %v8492, %v8050
      %v8525 = vsel %vm5376, %v8493, %v8052
      %v8526 = vsel %vm5376, %v8494, %v8054
      %v8527 = vsel %vm5376, %v8495, %v8056
      %v8528 = vsel %vm5376, %v8496, %v8058
      %v8529 = vsel %vm5376, %v8497, %v8060
      %v8530 = vsel %vm5376, %v8498, %v8062
      %v8531 = vsel %vm5376, %v8499, %v8064
      %v8532 = vsel %vm5376, %v8500, %v8066
      %v8533 = vsel %vm5376, %v8501, %v8068
      %v8534 = vsel %vm5376, %v8502, %v8070
      %v8535 = vsel %vm5376, %v8503, %v8072
      %v8536 = vsel %vm5376, %v8504, %v8074
      %v8537 = vsel %vm5376, %v8505, %v8076
      %v8538 = vsel %vm5376, %v8506, %v8078
      %v8539 = vsel %vm5376, %v8507, %v8080
      %v8540 = vsel %vm5376, %v8508, %v8082
      %v8541 = vsel %vm5409, %v8509, %v8116
      %v8542 = vsel %vm5409, %v8510, %v8118
      %v8543 = vsel %vm5409, %v8511, %v8120
      %v8544 = vsel %vm5409, %v8512, %v8122
      %v8545 = vsel %vm5409, %v8513, %v8124
      %v8546 = vsel %vm5409, %v8514, %v8126
      %v8547 = vsel %vm5409, %v8515, %v8128
      %v8548 = vsel %vm5409, %v8516, %v8130
      %v8549 = vsel %vm5409, %v8517, %v8132
      %v8550 = vsel %vm5409, %v8518, %v8134
      %v8551 = vsel %vm5409, %v8519, %v8136
      %v8552 = vsel %vm5409, %v8520, %v8138
      %v8553 = vsel %vm5409, %v8521, %v8140
      %v8554 = vsel %vm5409, %v8522, %v8142
      %v8555 = vsel %vm5409, %v8523, %v8144
      %v8556 = vsel %vm5409, %v8524, %v8146
      %v8557 = vsel %vm5409, %v8525, %v8148
      %v8558 = vsel %vm5409, %v8526, %v8150
      %v8559 = vsel %vm5409, %v8527, %v8152
      %v8560 = vsel %vm5409, %v8528, %v8154
      %v8561 = vsel %vm5409, %v8529, %v8156
      %v8562 = vsel %vm5409, %v8530, %v8158
      %v8563 = vsel %vm5409, %v8531, %v8160
      %v8564 = vsel %vm5409, %v8532, %v8162
      %v8565 = vsel %vm5409, %v8533, %v8164
      %v8566 = vsel %vm5409, %v8534, %v8166
      %v8567 = vsel %vm5409, %v8535, %v8168
      %v8568 = vsel %vm5409, %v8536, %v8170
      %v8569 = vsel %vm5409, %v8537, %v8172
      %v8570 = vsel %vm5409, %v8538, %v8174
      %v8571 = vsel %vm5409, %v8539, %v6836
      %v8572 = vsel %vm5409, %v8540, %v6838
      %v8573 = vsel %vm5442, %v8541, %v8206
      %v8574 = vsel %vm5442, %v8542, %v8208
      %v8575 = vsel %vm5442, %v8543, %v8210
      %v8576 = vsel %vm5442, %v8544, %v8212
      %v8577 = vsel %vm5442, %v8545, %v8214
      %v8578 = vsel %vm5442, %v8546, %v8216
      %v8579 = vsel %vm5442, %v8547, %v8218
      %v8580 = vsel %vm5442, %v8548, %v8220
      %v8581 = vsel %vm5442, %v8549, %v8222
      %v8582 = vsel %vm5442, %v8550, %v8224
      %v8583 = vsel %vm5442, %v8551, %v8226
      %v8584 = vsel %vm5442, %v8552, %v8228
      %v8585 = vsel %vm5442, %v8553, %v8230
      %v8586 = vsel %vm5442, %v8554, %v8232
      %v8587 = vsel %vm5442, %v8555, %v8234
      %v8588 = vsel %vm5442, %v8556, %v8236
      %v8589 = vsel %vm5442, %v8557, %v8238
      %v8590 = vsel %vm5442, %v8558, %v8240
      %v8591 = vsel %vm5442, %v8559, %v8242
      %v8592 = vsel %vm5442, %v8560, %v8244
      %v8593 = vsel %vm5442, %v8561, %v8246
      %v8594 = vsel %vm5442, %v8562, %v8248
      %v8595 = vsel %vm5442, %v8563, %v8250
      %v8596 = vsel %vm5442, %v8564, %v8252
      %v8597 = vsel %vm5442, %v8565, %v8254
      %v8598 = vsel %vm5442, %v8566, %v8256
      %v8599 = vsel %vm5442, %v8567, %v8258
      %v8600 = vsel %vm5442, %v8568, %v8260
      %v8601 = vsel %vm5442, %v8569, %v8262
      %v8602 = vsel %vm5442, %v8570, %v8264
      %v8603 = vsel %vm5442, %v8571, %v6932
      %v8604 = vsel %vm5442, %v8572, %v6934
      %v8605 = vsel %vm5475, %v8573, %v8296
      %v8606 = vsel %vm5475, %v8574, %v8298
      %v8607 = vsel %vm5475, %v8575, %v8300
      %v8608 = vsel %vm5475, %v8576, %v8302
      %v8609 = vsel %vm5475, %v8577, %v8304
      %v8610 = vsel %vm5475, %v8578, %v8306
      %v8611 = vsel %vm5475, %v8579, %v8308
      %v8612 = vsel %vm5475, %v8580, %v8310
      %v8613 = vsel %vm5475, %v8581, %v8312
      %v8614 = vsel %vm5475, %v8582, %v8314
      %v8615 = vsel %vm5475, %v8583, %v8316
      %v8616 = vsel %vm5475, %v8584, %v8318
      %v8617 = vsel %vm5475, %v8585, %v8320
      %v8618 = vsel %vm5475, %v8586, %v8322
      %v8619 = vsel %vm5475, %v8587, %v8324
      %v8620 = vsel %vm5475, %v8588, %v8326
      %v8621 = vsel %vm5475, %v8589, %v8328
      %v8622 = vsel %vm5475, %v8590, %v8330
      %v8623 = vsel %vm5475, %v8591, %v8332
      %v8624 = vsel %vm5475, %v8592, %v8334
      %v8625 = vsel %vm5475, %v8593, %v8336
      %v8626 = vsel %vm5475, %v8594, %v8338
      %v8627 = vsel %vm5475, %v8595, %v8340
      %v8628 = vsel %vm5475, %v8596, %v8342
      %v8629 = vsel %vm5475, %v8597, %v8344
      %v8630 = vsel %vm5475, %v8598, %v8346
      %v8631 = vsel %vm5475, %v8599, %v8348
      %v8632 = vsel %vm5475, %v8600, %v8350
      %v8633 = vsel %vm5475, %v8601, %v8352
      %v8634 = vsel %vm5475, %v8602, %v8354
      %v8635 = vsel %vm5475, %v8603, %v7028
      %v8636 = vsel %vm5475, %v8604, %v7030
      %v8638 = vsel %vm5508, %v8605, 0
      %v8641 = vsel %vm5508, %v8606, 0
      %v8644 = vsel %vm5508, %v8607, 0
      %v8647 = vsel %vm5508, %v8608, 0
      %v8650 = vsel %vm5508, %v8609, 0
      %v8653 = vsel %vm5508, %v8610, 0
      %v8656 = vsel %vm5508, %v8611, 0
      %v8659 = vsel %vm5508, %v8612, 0
      %v8662 = vsel %vm5508, %v8613, 0
      %v8665 = vsel %vm5508, %v8614, 0
      %v8668 = vsel %vm5508, %v8615, 0
      %v8671 = vsel %vm5508, %v8616, 0
      %v8674 = vsel %vm5508, %v8617, 0
      %v8677 = vsel %vm5508, %v8618, 0
      %v8680 = vsel %vm5508, %v8619, 0
      %v8683 = vsel %vm5508, %v8620, 0
      %v8686 = vsel %vm5508, %v8621, 0
      %v8689 = vsel %vm5508, %v8622, 0
      %v8692 = vsel %vm5508, %v8623, 0
      %v8695 = vsel %vm5508, %v8624, 0
      %v8698 = vsel %vm5508, %v8625, 0
      %v8701 = vsel %vm5508, %v8626, 0
      %v8704 = vsel %vm5508, %v8627, 0
      %v8707 = vsel %vm5508, %v8628, 0
      %v8710 = vsel %vm5508, %v8629, 0
      %v8713 = vsel %vm5508, %v8630, 0
      %v8716 = vsel %vm5508, %v8631, 0
      %v8719 = vsel %vm5508, %v8632, 0
      %v8722 = vsel %vm5508, %v8633, 0
      %v8725 = vsel %vm5508, %v8634, 0
      %v8728 = vsel %vm5508, %v8635, 0
      %v8731 = vsel %vm5508, %v8636, 0
      %8733 = vmatprep.subr.mxu0 0.0
      %8734 = vmatpush1.msra.mxu0 0.0
      %8735 = vmatprep.subr.mxu0 0.0
      %8736 = vmatpush1.msra.mxu0 0.0
      %8737 = vmatprep.subr.mxu0 0.0
      %8738 = vmatpush1.msra.mxu0 0.0
      %8739 = vmatprep.subr.mxu0 0.0
      %8740 = vmatpush1.msra.mxu0 0.0
      %8741 = vmatprep.subr.mxu0 0.0
      %8742 = vmatpush1.msra.mxu0 0.0
      %8743 = vmatprep.subr.mxu0 0.0
      %8744 = vmatpush1.msra.mxu0 0.0
      %8745 = vmatprep.subr.mxu0 0.0
      %8746 = vmatpush1.msra.mxu0 0.0
      %8747 = vmatprep.subr.mxu0 0.0
      %8748 = vmatpush1.msra.mxu0 %v7327
      %8749 = vmatprep.subr.mxu0 0.0
      %8750 = vmatpush1.msra.mxu0 %v7326
      %8751 = vmatprep.subr.mxu0 0.0
      %8752 = vmatpush1.msra.mxu0 %v7325
      %8753 = vmatprep.subr.mxu0 0.0
      %8754 = vmatpush1.msra.mxu0 %v7324
      %8755 = vmatprep.subr.mxu0 0.0
      %8756 = vmatpush1.msra.mxu0 %v7323
      %8757 = vmatprep.subr.mxu0 0.0
      %8758 = vmatpush1.msra.mxu0 %v7322
      %8759 = vmatprep.subr.mxu0 0.0
      %8760 = vmatpush1.msra.mxu0 %v7321
      %8761 = vmatprep.subr.mxu0 0.0
      %8762 = vmatpush1.msra.mxu0 %v7320
      %8763 = vmatprep.subr.mxu0 0.0
      %8764 = vmatpush1.msra.mxu0 %v7319
      %8765 = vmatprep.subr.mxu0 0.0
      %8766 = vmatpush2.msra.mxu0 0.0
      %8767 = vmatprep.subr.mxu0 0.0
      %8768 = vmatpush2.msra.mxu0 0.0
      %8769 = vmatprep.subr.mxu0 0.0
      %8770 = vmatpush2.msra.mxu0 0.0
      %8771 = vmatprep.subr.mxu0 0.0
      %8772 = vmatpush2.msra.mxu0 0.0
      %8773 = vmatprep.subr.mxu0 0.0
      %8774 = vmatpush2.msra.mxu0 0.0
      %8775 = vmatprep.subr.mxu0 0.0
      %8776 = vmatpush2.msra.mxu0 0.0
      %8777 = vmatprep.subr.mxu0 0.0
      %8778 = vmatpush2.msra.mxu0 0.0
      %8779 = vmatprep.subr.mxu0 0.0
      %8780 = vmatpush2.msra.mxu0 0.0
      %8781 = vmatprep.subr.mxu0 0.0
      %8782 = vmatpush2.msra.mxu0 0.0
      %8783 = vmatprep.subr.mxu0 0.0
      %8784 = vmatpush2.msra.mxu0 0.0
      %8785 = vmatprep.subr.mxu0 0.0
      %8786 = vmatpush2.msra.mxu0 0.0
      %8787 = vmatprep.subr.mxu0 0.0
      %8788 = vmatpush2.msra.mxu0 0.0
      %8789 = vmatprep.subr.mxu0 0.0
      %8790 = vmatpush2.msra.mxu0 0.0
      %8791 = vmatprep.subr.mxu0 0.0
      %8792 = vmatpush2.msra.mxu0 0.0
      %8793 = vmatprep.subr.mxu0 0.0
      %8794 = vmatpush2.msra.mxu0 0.0
      %8795 = vmatprep.subr.mxu0 0.0
      %8796 = vmatpush2.msra.mxu0 0.0
      %8797 = vmatprep.mubr.f32.mxu0 0.0
      %8798 = vmatmul.mubr.f32.gmra.mxu0 %v8638
      %v8799 = vpop.f32.mrf.mxu0
      %v8800 = vadd.f32 0.0, %v8799
      %v8801 = vpop.f32.mrf.mxu0
      %8802 = vmatprep.mubr.f32.mxu0 0.0
      %8803 = vmatmul.mubr.f32.gmra.mxu0 %v8641
      %v8804 = vpop.f32.mrf.mxu0
      %v8805 = vadd.f32 0.0, %v8804
      %v8806 = vpop.f32.mrf.mxu0
      %8807 = vmatprep.mubr.f32.mxu0 0.0
      %8808 = vmatmul.mubr.f32.gmra.mxu0 %v8644
      %v8809 = vpop.f32.mrf.mxu0
      %v8810 = vadd.f32 0.0, %v8809
      %v8811 = vpop.f32.mrf.mxu0
      %8812 = vmatprep.mubr.f32.mxu0 0.0
      %8813 = vmatmul.mubr.f32.gmra.mxu0 %v8647
      %v8814 = vpop.f32.mrf.mxu0
      %v8815 = vadd.f32 0.0, %v8814
      %v8816 = vpop.f32.mrf.mxu0
      %8817 = vmatprep.mubr.f32.mxu0 0.0
      %8818 = vmatmul.mubr.f32.gmra.mxu0 %v8650
      %v8819 = vpop.f32.mrf.mxu0
      %v8820 = vadd.f32 0.0, %v8819
      %v8821 = vpop.f32.mrf.mxu0
      %8822 = vmatprep.mubr.f32.mxu0 0.0
      %8823 = vmatmul.mubr.f32.gmra.mxu0 %v8653
      %v8824 = vpop.f32.mrf.mxu0
      %v8825 = vadd.f32 0.0, %v8824
      %v8826 = vpop.f32.mrf.mxu0
      %8827 = vmatprep.mubr.f32.mxu0 0.0
      %8828 = vmatmul.mubr.f32.gmra.mxu0 %v8656
      %v8829 = vpop.f32.mrf.mxu0
      %v8830 = vadd.f32 0.0, %v8829
      %v8831 = vpop.f32.mrf.mxu0
      %8832 = vmatprep.mubr.f32.mxu0 0.0
      %8833 = vmatmul.mubr.f32.gmra.mxu0 %v8659
      %v8834 = vpop.f32.mrf.mxu0
      %v8835 = vadd.f32 0.0, %v8834
      %v8836 = vpop.f32.mrf.mxu0
      %8837 = vmatprep.mubr.f32.mxu0 0.0
      %8838 = vmatmul.mubr.f32.gmra.mxu0 %v8662
      %v8839 = vpop.f32.mrf.mxu0
      %v8840 = vadd.f32 0.0, %v8839
      %v8841 = vpop.f32.mrf.mxu0
      %8842 = vmatprep.mubr.f32.mxu0 0.0
      %8843 = vmatmul.mubr.f32.gmra.mxu0 %v8665
      %v8844 = vpop.f32.mrf.mxu0
      %v8845 = vadd.f32 0.0, %v8844
      %v8846 = vpop.f32.mrf.mxu0
      %8847 = vmatprep.mubr.f32.mxu0 0.0
      %8848 = vmatmul.mubr.f32.gmra.mxu0 %v8668
      %v8849 = vpop.f32.mrf.mxu0
      %v8850 = vadd.f32 0.0, %v8849
      %v8851 = vpop.f32.mrf.mxu0
      %8852 = vmatprep.mubr.f32.mxu0 0.0
      %8853 = vmatmul.mubr.f32.gmra.mxu0 %v8671
      %v8854 = vpop.f32.mrf.mxu0
      %v8855 = vadd.f32 0.0, %v8854
      %v8856 = vpop.f32.mrf.mxu0
      %8857 = vmatprep.mubr.f32.mxu0 0.0
      %8858 = vmatmul.mubr.f32.gmra.mxu0 %v8674
      %v8859 = vpop.f32.mrf.mxu0
      %v8860 = vadd.f32 0.0, %v8859
      %v8861 = vpop.f32.mrf.mxu0
      %8862 = vmatprep.mubr.f32.mxu0 0.0
      %8863 = vmatmul.mubr.f32.gmra.mxu0 %v8677
      %v8864 = vpop.f32.mrf.mxu0
      %v8865 = vadd.f32 0.0, %v8864
      %v8866 = vpop.f32.mrf.mxu0
      %8867 = vmatprep.mubr.f32.mxu0 0.0
      %8868 = vmatmul.mubr.f32.gmra.mxu0 %v8680
      %v8869 = vpop.f32.mrf.mxu0
      %v8870 = vadd.f32 0.0, %v8869
      %v8871 = vpop.f32.mrf.mxu0
      %8872 = vmatprep.mubr.f32.mxu0 0.0
      %8873 = vmatmul.mubr.f32.gmra.mxu0 %v8683
      %v8874 = vpop.f32.mrf.mxu0
      %v8875 = vadd.f32 0.0, %v8874
      %v8876 = vpop.f32.mrf.mxu0
      %8877 = vmatprep.mubr.f32.mxu0 0.0
      %8878 = vmatmul.mubr.f32.gmra.mxu0 %v8686
      %v8879 = vpop.f32.mrf.mxu0
      %v8880 = vadd.f32 0.0, %v8879
      %v8881 = vpop.f32.mrf.mxu0
      %8882 = vmatprep.mubr.f32.mxu0 0.0
      %8883 = vmatmul.mubr.f32.gmra.mxu0 %v8689
      %v8884 = vpop.f32.mrf.mxu0
      %v8885 = vadd.f32 0.0, %v8884
      %v8886 = vpop.f32.mrf.mxu0
      %8887 = vmatprep.mubr.f32.mxu0 0.0
      %8888 = vmatmul.mubr.f32.gmra.mxu0 %v8692
      %v8889 = vpop.f32.mrf.mxu0
      %v8890 = vadd.f32 0.0, %v8889
      %v8891 = vpop.f32.mrf.mxu0
      %8892 = vmatprep.mubr.f32.mxu0 0.0
      %8893 = vmatmul.mubr.f32.gmra.mxu0 %v8695
      %v8894 = vpop.f32.mrf.mxu0
      %v8895 = vadd.f32 0.0, %v8894
      %v8896 = vpop.f32.mrf.mxu0
      %8897 = vmatprep.mubr.f32.mxu0 0.0
      %8898 = vmatmul.mubr.f32.gmra.mxu0 %v8698
      %v8899 = vpop.f32.mrf.mxu0
      %v8900 = vadd.f32 0.0, %v8899
      %v8901 = vpop.f32.mrf.mxu0
      %8902 = vmatprep.mubr.f32.mxu0 0.0
      %8903 = vmatmul.mubr.f32.gmra.mxu0 %v8701
      %v8904 = vpop.f32.mrf.mxu0
      %v8905 = vadd.f32 0.0, %v8904
      %v8906 = vpop.f32.mrf.mxu0
      %8907 = vmatprep.mubr.f32.mxu0 0.0
      %8908 = vmatmul.mubr.f32.gmra.mxu0 %v8704
      %v8909 = vpop.f32.mrf.mxu0
      %v8910 = vadd.f32 0.0, %v8909
      %v8911 = vpop.f32.mrf.mxu0
      %8912 = vmatprep.mubr.f32.mxu0 0.0
      %8913 = vmatmul.mubr.f32.gmra.mxu0 %v8707
      %v8914 = vpop.f32.mrf.mxu0
      %v8915 = vadd.f32 0.0, %v8914
      %v8916 = vpop.f32.mrf.mxu0
      %8917 = vmatprep.mubr.f32.mxu0 0.0
      %8918 = vmatmul.mubr.f32.gmra.mxu0 %v8710
      %v8919 = vpop.f32.mrf.mxu0
      %v8920 = vadd.f32 0.0, %v8919
      %v8921 = vpop.f32.mrf.mxu0
      %8922 = vmatprep.mubr.f32.mxu0 0.0
      %8923 = vmatmul.mubr.f32.gmra.mxu0 %v8713
      %v8924 = vpop.f32.mrf.mxu0
      %v8925 = vadd.f32 0.0, %v8924
      %v8926 = vpop.f32.mrf.mxu0
      %8927 = vmatprep.mubr.f32.mxu0 0.0
      %8928 = vmatmul.mubr.f32.gmra.mxu0 %v8716
      %v8929 = vpop.f32.mrf.mxu0
      %v8930 = vadd.f32 0.0, %v8929
      %v8931 = vpop.f32.mrf.mxu0
      %8932 = vmatprep.mubr.f32.mxu0 0.0
      %8933 = vmatmul.mubr.f32.gmra.mxu0 %v8719
      %v8934 = vpop.f32.mrf.mxu0
      %v8935 = vadd.f32 0.0, %v8934
      %v8936 = vpop.f32.mrf.mxu0
      %8937 = vmatprep.mubr.f32.mxu0 0.0
      %8938 = vmatmul.mubr.f32.gmra.mxu0 %v8722
      %v8939 = vpop.f32.mrf.mxu0
      %v8940 = vadd.f32 0.0, %v8939
      %v8941 = vpop.f32.mrf.mxu0
      %8942 = vmatprep.mubr.f32.mxu0 0.0
      %8943 = vmatmul.mubr.f32.gmra.mxu0 %v8725
      %v8944 = vpop.f32.mrf.mxu0
      %v8945 = vadd.f32 0.0, %v8944
      %v8946 = vpop.f32.mrf.mxu0
      %8947 = vmatprep.mubr.f32.mxu0 0.0
      %8948 = vmatmul.mubr.f32.gmra.mxu0 %v8728
      %v8949 = vpop.f32.mrf.mxu0
      %v8950 = vadd.f32 0.0, %v8949
      %v8951 = vpop.f32.mrf.mxu0
      %8952 = vmatprep.mubr.f32.mxu0 0.0
      %8953 = vmatmul.mubr.f32.gmra.mxu0 %v8731
      %v8954 = vpop.f32.mrf.mxu0
      %v8955 = vadd.f32 0.0, %v8954
      %v8956 = vpop.f32.mrf.mxu0
      %8957 = vdwg.mxu0
      %v8959 = vsel %vm5508, %v7287, 0
      %v8962 = vsel %vm5508, %v7288, 0
      %v8965 = vsel %vm5508, %v7289, 0
      %v8968 = vsel %vm5508, %v7290, 0
      %v8971 = vsel %vm5508, %v7291, 0
      %v8974 = vsel %vm5508, %v7292, 0
      %v8977 = vsel %vm5508, %v7293, 0
      %v8980 = vsel %vm5508, %v7294, 0
      %v8983 = vsel %vm5508, %v7295, 0
      %v8986 = vsel %vm5508, %v7296, 0
      %v8989 = vsel %vm5508, %v7297, 0
      %v8992 = vsel %vm5508, %v7298, 0
      %v8995 = vsel %vm5508, %v7299, 0
      %v8998 = vsel %vm5508, %v7300, 0
      %v9001 = vsel %vm5508, %v7301, 0
      %v9004 = vsel %vm5508, %v7302, 0
      %v9007 = vsel %vm5508, %v7303, 0
      %v9010 = vsel %vm5508, %v7304, 0
      %v9013 = vsel %vm5508, %v7305, 0
      %v9016 = vsel %vm5508, %v7306, 0
      %v9019 = vsel %vm5508, %v7307, 0
      %v9022 = vsel %vm5508, %v7308, 0
      %v9025 = vsel %vm5508, %v7309, 0
      %v9028 = vsel %vm5508, %v7310, 0
      %v9031 = vsel %vm5508, %v7311, 0
      %v9034 = vsel %vm5508, %v7312, 0
      %v9037 = vsel %vm5508, %v7313, 0
      %v9040 = vsel %vm5508, %v7314, 0
      %v9043 = vsel %vm5508, %v7315, 0
      %v9046 = vsel %vm5508, %v7316, 0
      %v9049 = vsel %vm5508, %v7317, 0
      %v9052 = vsel %vm5508, %v7318, 0
      %9054 = vmatprep.subr.mxu0 0.0
      %9055 = vmatpush1.msra.mxu0 0.0
      %9056 = vmatprep.subr.mxu0 0.0
      %9057 = vmatpush1.msra.mxu0 0.0
      %9058 = vmatprep.subr.mxu0 0.0
      %9059 = vmatpush1.msra.mxu0 0.0
      %9060 = vmatprep.subr.mxu0 0.0
      %9061 = vmatpush1.msra.mxu0 0.0
      %9062 = vmatprep.subr.mxu0 0.0
      %9063 = vmatpush1.msra.mxu0 0.0
      %9064 = vmatprep.subr.mxu0 0.0
      %9065 = vmatpush1.msra.mxu0 0.0
      %9066 = vmatprep.subr.mxu0 0.0
      %9067 = vmatpush1.msra.mxu0 0.0
      %9068 = vmatprep.subr.mxu0 0.0
      %9069 = vmatpush1.msra.mxu0 %v5943
      %9070 = vmatprep.subr.mxu0 0.0
      %9071 = vmatpush1.msra.mxu0 %v5942
      %9072 = vmatprep.subr.mxu0 0.0
      %9073 = vmatpush1.msra.mxu0 %v5941
      %9074 = vmatprep.subr.mxu0 0.0
      %9075 = vmatpush1.msra.mxu0 %v5940
      %9076 = vmatprep.subr.mxu0 0.0
      %9077 = vmatpush1.msra.mxu0 %v5939
      %9078 = vmatprep.subr.mxu0 0.0
      %9079 = vmatpush1.msra.mxu0 %v5938
      %9080 = vmatprep.subr.mxu0 0.0
      %9081 = vmatpush1.msra.mxu0 %v5937
      %9082 = vmatprep.subr.mxu0 0.0
      %9083 = vmatpush1.msra.mxu0 %v5936
      %9084 = vmatprep.subr.mxu0 0.0
      %9085 = vmatpush1.msra.mxu0 %v5935
      %9086 = vmatprep.subr.mxu0 0.0
      %9087 = vmatpush2.msra.mxu0 0.0
      %9088 = vmatprep.subr.mxu0 0.0
      %9089 = vmatpush2.msra.mxu0 0.0
      %9090 = vmatprep.subr.mxu0 0.0
      %9091 = vmatpush2.msra.mxu0 0.0
      %9092 = vmatprep.subr.mxu0 0.0
      %9093 = vmatpush2.msra.mxu0 0.0
      %9094 = vmatprep.subr.mxu0 0.0
      %9095 = vmatpush2.msra.mxu0 0.0
      %9096 = vmatprep.subr.mxu0 0.0
      %9097 = vmatpush2.msra.mxu0 0.0
      %9098 = vmatprep.subr.mxu0 0.0
      %9099 = vmatpush2.msra.mxu0 0.0
      %9100 = vmatprep.subr.mxu0 0.0
      %9101 = vmatpush2.msra.mxu0 0.0
      %9102 = vmatprep.subr.mxu0 0.0
      %9103 = vmatpush2.msra.mxu0 0.0
      %9104 = vmatprep.subr.mxu0 0.0
      %9105 = vmatpush2.msra.mxu0 0.0
      %9106 = vmatprep.subr.mxu0 0.0
      %9107 = vmatpush2.msra.mxu0 0.0
      %9108 = vmatprep.subr.mxu0 0.0
      %9109 = vmatpush2.msra.mxu0 0.0
      %9110 = vmatprep.subr.mxu0 0.0
      %9111 = vmatpush2.msra.mxu0 0.0
      %9112 = vmatprep.subr.mxu0 0.0
      %9113 = vmatpush2.msra.mxu0 0.0
      %9114 = vmatprep.subr.mxu0 0.0
      %9115 = vmatpush2.msra.mxu0 0.0
      %9116 = vmatprep.subr.mxu0 0.0
      %9117 = vmatpush2.msra.mxu0 0.0
      %9118 = vmatprep.mubr.f32.mxu0 0.0
      %9119 = vmatmul.mubr.f32.gmra.mxu0 %v8959
      %v9120 = vpop.f32.mrf.mxu0
      %v9121 = vadd.f32 %v8800, %v9120
      %v9122 = vpop.f32.mrf.mxu0
      %9123 = vmatprep.mubr.f32.mxu0 0.0
      %9124 = vmatmul.mubr.f32.gmra.mxu0 %v8962
      %v9125 = vpop.f32.mrf.mxu0
      %v9126 = vadd.f32 %v8805, %v9125
      %v9127 = vpop.f32.mrf.mxu0
      %9128 = vmatprep.mubr.f32.mxu0 0.0
      %9129 = vmatmul.mubr.f32.gmra.mxu0 %v8965
      %v9130 = vpop.f32.mrf.mxu0
      %v9131 = vadd.f32 %v8810, %v9130
      %v9132 = vpop.f32.mrf.mxu0
      %9133 = vmatprep.mubr.f32.mxu0 0.0
      %9134 = vmatmul.mubr.f32.gmra.mxu0 %v8968
      %v9135 = vpop.f32.mrf.mxu0
      %v9136 = vadd.f32 %v8815, %v9135
      %v9137 = vpop.f32.mrf.mxu0
      %9138 = vmatprep.mubr.f32.mxu0 0.0
      %9139 = vmatmul.mubr.f32.gmra.mxu0 %v8971
      %v9140 = vpop.f32.mrf.mxu0
      %v9141 = vadd.f32 %v8820, %v9140
      %v9142 = vpop.f32.mrf.mxu0
      %9143 = vmatprep.mubr.f32.mxu0 0.0
      %9144 = vmatmul.mubr.f32.gmra.mxu0 %v8974
      %v9145 = vpop.f32.mrf.mxu0
      %v9146 = vadd.f32 %v8825, %v9145
      %v9147 = vpop.f32.mrf.mxu0
      %9148 = vmatprep.mubr.f32.mxu0 0.0
      %9149 = vmatmul.mubr.f32.gmra.mxu0 %v8977
      %v9150 = vpop.f32.mrf.mxu0
      %v9151 = vadd.f32 %v8830, %v9150
      %v9152 = vpop.f32.mrf.mxu0
      %9153 = vmatprep.mubr.f32.mxu0 0.0
      %9154 = vmatmul.mubr.f32.gmra.mxu0 %v8980
      %v9155 = vpop.f32.mrf.mxu0
      %v9156 = vadd.f32 %v8835, %v9155
      %v9157 = vpop.f32.mrf.mxu0
      %9158 = vmatprep.mubr.f32.mxu0 0.0
      %9159 = vmatmul.mubr.f32.gmra.mxu0 %v8983
      %v9160 = vpop.f32.mrf.mxu0
      %v9161 = vadd.f32 %v8840, %v9160
      %v9162 = vpop.f32.mrf.mxu0
      %9163 = vmatprep.mubr.f32.mxu0 0.0
      %9164 = vmatmul.mubr.f32.gmra.mxu0 %v8986
      %v9165 = vpop.f32.mrf.mxu0
      %v9166 = vadd.f32 %v8845, %v9165
      %v9167 = vpop.f32.mrf.mxu0
      %9168 = vmatprep.mubr.f32.mxu0 0.0
      %9169 = vmatmul.mubr.f32.gmra.mxu0 %v8989
      %v9170 = vpop.f32.mrf.mxu0
      %v9171 = vadd.f32 %v8850, %v9170
      %v9172 = vpop.f32.mrf.mxu0
      %9173 = vmatprep.mubr.f32.mxu0 0.0
      %9174 = vmatmul.mubr.f32.gmra.mxu0 %v8992
      %v9175 = vpop.f32.mrf.mxu0
      %v9176 = vadd.f32 %v8855, %v9175
      %v9177 = vpop.f32.mrf.mxu0
      %9178 = vmatprep.mubr.f32.mxu0 0.0
      %9179 = vmatmul.mubr.f32.gmra.mxu0 %v8995
      %v9180 = vpop.f32.mrf.mxu0
      %v9181 = vadd.f32 %v8860, %v9180
      %v9182 = vpop.f32.mrf.mxu0
      %9183 = vmatprep.mubr.f32.mxu0 0.0
      %9184 = vmatmul.mubr.f32.gmra.mxu0 %v8998
      %v9185 = vpop.f32.mrf.mxu0
      %v9186 = vadd.f32 %v8865, %v9185
      %v9187 = vpop.f32.mrf.mxu0
      %9188 = vmatprep.mubr.f32.mxu0 0.0
      %9189 = vmatmul.mubr.f32.gmra.mxu0 %v9001
      %v9190 = vpop.f32.mrf.mxu0
      %v9191 = vadd.f32 %v8870, %v9190
      %v9192 = vpop.f32.mrf.mxu0
      %9193 = vmatprep.mubr.f32.mxu0 0.0
      %9194 = vmatmul.mubr.f32.gmra.mxu0 %v9004
      %v9195 = vpop.f32.mrf.mxu0
      %v9196 = vadd.f32 %v8875, %v9195
      %v9197 = vpop.f32.mrf.mxu0
      %9198 = vmatprep.mubr.f32.mxu0 0.0
      %9199 = vmatmul.mubr.f32.gmra.mxu0 %v9007
      %v9200 = vpop.f32.mrf.mxu0
      %v9201 = vadd.f32 %v8880, %v9200
      %v9202 = vpop.f32.mrf.mxu0
      %9203 = vmatprep.mubr.f32.mxu0 0.0
      %9204 = vmatmul.mubr.f32.gmra.mxu0 %v9010
      %v9205 = vpop.f32.mrf.mxu0
      %v9206 = vadd.f32 %v8885, %v9205
      %v9207 = vpop.f32.mrf.mxu0
      %9208 = vmatprep.mubr.f32.mxu0 0.0
      %9209 = vmatmul.mubr.f32.gmra.mxu0 %v9013
      %v9210 = vpop.f32.mrf.mxu0
      %v9211 = vadd.f32 %v8890, %v9210
      %v9212 = vpop.f32.mrf.mxu0
      %9213 = vmatprep.mubr.f32.mxu0 0.0
      %9214 = vmatmul.mubr.f32.gmra.mxu0 %v9016
      %v9215 = vpop.f32.mrf.mxu0
      %v9216 = vadd.f32 %v8895, %v9215
      %v9217 = vpop.f32.mrf.mxu0
      %9218 = vmatprep.mubr.f32.mxu0 0.0
      %9219 = vmatmul.mubr.f32.gmra.mxu0 %v9019
      %v9220 = vpop.f32.mrf.mxu0
      %v9221 = vadd.f32 %v8900, %v9220
      %v9222 = vpop.f32.mrf.mxu0
      %9223 = vmatprep.mubr.f32.mxu0 0.0
      %9224 = vmatmul.mubr.f32.gmra.mxu0 %v9022
      %v9225 = vpop.f32.mrf.mxu0
      %v9226 = vadd.f32 %v8905, %v9225
      %v9227 = vpop.f32.mrf.mxu0
      %9228 = vmatprep.mubr.f32.mxu0 0.0
      %9229 = vmatmul.mubr.f32.gmra.mxu0 %v9025
      %v9230 = vpop.f32.mrf.mxu0
      %v9231 = vadd.f32 %v8910, %v9230
      %v9232 = vpop.f32.mrf.mxu0
      %9233 = vmatprep.mubr.f32.mxu0 0.0
      %9234 = vmatmul.mubr.f32.gmra.mxu0 %v9028
      %v9235 = vpop.f32.mrf.mxu0
      %v9236 = vadd.f32 %v8915, %v9235
      %v9237 = vpop.f32.mrf.mxu0
      %9238 = vmatprep.mubr.f32.mxu0 0.0
      %9239 = vmatmul.mubr.f32.gmra.mxu0 %v9031
      %v9240 = vpop.f32.mrf.mxu0
      %v9241 = vadd.f32 %v8920, %v9240
      %v9242 = vpop.f32.mrf.mxu0
      %9243 = vmatprep.mubr.f32.mxu0 0.0
      %9244 = vmatmul.mubr.f32.gmra.mxu0 %v9034
      %v9245 = vpop.f32.mrf.mxu0
      %v9246 = vadd.f32 %v8925, %v9245
      %v9247 = vpop.f32.mrf.mxu0
      %9248 = vmatprep.mubr.f32.mxu0 0.0
      %9249 = vmatmul.mubr.f32.gmra.mxu0 %v9037
      %v9250 = vpop.f32.mrf.mxu0
      %v9251 = vadd.f32 %v8930, %v9250
      %v9252 = vpop.f32.mrf.mxu0
      %9253 = vmatprep.mubr.f32.mxu0 0.0
      %9254 = vmatmul.mubr.f32.gmra.mxu0 %v9040
      %v9255 = vpop.f32.mrf.mxu0
      %v9256 = vadd.f32 %v8935, %v9255
      %v9257 = vpop.f32.mrf.mxu0
      %9258 = vmatprep.mubr.f32.mxu0 0.0
      %9259 = vmatmul.mubr.f32.gmra.mxu0 %v9043
      %v9260 = vpop.f32.mrf.mxu0
      %v9261 = vadd.f32 %v8940, %v9260
      %v9262 = vpop.f32.mrf.mxu0
      %9263 = vmatprep.mubr.f32.mxu0 0.0
      %9264 = vmatmul.mubr.f32.gmra.mxu0 %v9046
      %v9265 = vpop.f32.mrf.mxu0
      %v9266 = vadd.f32 %v8945, %v9265
      %v9267 = vpop.f32.mrf.mxu0
      %9268 = vmatprep.mubr.f32.mxu0 0.0
      %9269 = vmatmul.mubr.f32.gmra.mxu0 %v9049
      %v9270 = vpop.f32.mrf.mxu0
      %v9271 = vadd.f32 %v8950, %v9270
      %v9272 = vpop.f32.mrf.mxu0
      %9273 = vmatprep.mubr.f32.mxu0 0.0
      %9274 = vmatmul.mubr.f32.gmra.mxu0 %v9052
      %v9275 = vpop.f32.mrf.mxu0
      %v9276 = vadd.f32 %v8955, %v9275
      %v9277 = vpop.f32.mrf.mxu0
      %9278 = vdwg.mxu0
      %v9279 = vld [vmem:[%s9] sm:$0x3]
      %v9280 = vlaneseq
      %v9281 = vshrl.u32 %v9280, 7
      %v9282 = vsub.s32 0, %v9281
      %v9283 = vrot.slane %v9279, %v9282
      %v9284 = vmul.f32 %v9121, %v9283
      %v9285 = vmul.f32 %v9126, %v9283
      %v9286 = vmul.f32 %v9131, %v9283
      %v9287 = vmul.f32 %v9136, %v9283
      %v9288 = vmul.f32 %v9141, %v9283
      %v9289 = vmul.f32 %v9146, %v9283
      %v9290 = vmul.f32 %v9151, %v9283
      %v9291 = vmul.f32 %v9156, %v9283
      %v9292 = vmul.f32 %v9161, %v9283
      %v9293 = vmul.f32 %v9166, %v9283
      %v9294 = vmul.f32 %v9171, %v9283
      %v9295 = vmul.f32 %v9176, %v9283
      %v9296 = vmul.f32 %v9181, %v9283
      %v9297 = vmul.f32 %v9186, %v9283
      %v9298 = vmul.f32 %v9191, %v9283
      %v9299 = vmul.f32 %v9196, %v9283
      %v9300 = vmul.f32 %v9201, %v9283
      %v9301 = vmul.f32 %v9206, %v9283
      %v9302 = vmul.f32 %v9211, %v9283
      %v9303 = vmul.f32 %v9216, %v9283
      %v9304 = vmul.f32 %v9221, %v9283
      %v9305 = vmul.f32 %v9226, %v9283
      %v9306 = vmul.f32 %v9231, %v9283
      %v9307 = vmul.f32 %v9236, %v9283
      %v9308 = vmul.f32 %v9241, %v9283
      %v9309 = vmul.f32 %v9246, %v9283
      %v9310 = vmul.f32 %v9251, %v9283
      %v9311 = vmul.f32 %v9256, %v9283
      %v9312 = vmul.f32 %v9261, %v9283
      %v9313 = vmul.f32 %v9266, %v9283
      %v9314 = vmul.f32 %v9271, %v9283
      %v9315 = vmul.f32 %v9276, %v9283
      %v9316 = vlaneseq
      %v9317 = vshrl.u32 %v9316, 7
      %v9318 = vsub.s32 1, %v9317
      %v9319 = vrot.slane %v9279, %v9318
      %v9320 = vadd.f32 %v9284, %v9319
      %v9321 = vadd.f32 %v9285, %v9319
      %v9322 = vadd.f32 %v9286, %v9319
      %v9323 = vadd.f32 %v9287, %v9319
      %v9324 = vadd.f32 %v9288, %v9319
      %v9325 = vadd.f32 %v9289, %v9319
      %v9326 = vadd.f32 %v9290, %v9319
      %v9327 = vadd.f32 %v9291, %v9319
      %v9328 = vadd.f32 %v9292, %v9319
      %v9329 = vadd.f32 %v9293, %v9319
      %v9330 = vadd.f32 %v9294, %v9319
      %v9331 = vadd.f32 %v9295, %v9319
      %v9332 = vadd.f32 %v9296, %v9319
      %v9333 = vadd.f32 %v9297, %v9319
      %v9334 = vadd.f32 %v9298, %v9319
      %v9335 = vadd.f32 %v9299, %v9319
      %v9336 = vadd.f32 %v9300, %v9319
      %v9337 = vadd.f32 %v9301, %v9319
      %v9338 = vadd.f32 %v9302, %v9319
      %v9339 = vadd.f32 %v9303, %v9319
      %v9340 = vadd.f32 %v9304, %v9319
      %v9341 = vadd.f32 %v9305, %v9319
      %v9342 = vadd.f32 %v9306, %v9319
      %v9343 = vadd.f32 %v9307, %v9319
      %v9344 = vadd.f32 %v9308, %v9319
      %v9345 = vadd.f32 %v9309, %v9319
      %v9346 = vadd.f32 %v9310, %v9319
      %v9347 = vadd.f32 %v9311, %v9319
      %v9348 = vadd.f32 %v9312, %v9319
      %v9349 = vadd.f32 %v9313, %v9319
      %v9350 = vadd.f32 %v9314, %v9319
      %v9351 = vadd.f32 %v9315, %v9319
      %v9352 = vmax.f32 %v9320, 0.0
      %v9353 = vmax.f32 %v9321, 0.0
      %v9354 = vmax.f32 %v9322, 0.0
      %v9355 = vmax.f32 %v9323, 0.0
      %v9356 = vmax.f32 %v9324, 0.0
      %v9357 = vmax.f32 %v9325, 0.0
      %v9358 = vmax.f32 %v9326, 0.0
      %v9359 = vmax.f32 %v9327, 0.0
      %v9360 = vmax.f32 %v9328, 0.0
      %v9361 = vmax.f32 %v9329, 0.0
      %v9362 = vmax.f32 %v9330, 0.0
      %v9363 = vmax.f32 %v9331, 0.0
      %v9364 = vmax.f32 %v9332, 0.0
      %v9365 = vmax.f32 %v9333, 0.0
      %v9366 = vmax.f32 %v9334, 0.0
      %v9367 = vmax.f32 %v9335, 0.0
      %v9368 = vmax.f32 %v9336, 0.0
      %v9369 = vmax.f32 %v9337, 0.0
      %v9370 = vmax.f32 %v9338, 0.0
      %v9371 = vmax.f32 %v9339, 0.0
      %v9372 = vmax.f32 %v9340, 0.0
      %v9373 = vmax.f32 %v9341, 0.0
      %v9374 = vmax.f32 %v9342, 0.0
      %v9375 = vmax.f32 %v9343, 0.0
      %v9376 = vmax.f32 %v9344, 0.0
      %v9377 = vmax.f32 %v9345, 0.0
      %v9378 = vmax.f32 %v9346, 0.0
      %v9379 = vmax.f32 %v9347, 0.0
      %v9380 = vmax.f32 %v9348, 0.0
      %v9381 = vmax.f32 %v9349, 0.0
      %v9382 = vmax.f32 %v9350, 0.0
      %v9383 = vmax.f32 %v9351, 0.0
      %v9384 = vld [vmem:[#allocation2] sm:$0xff]
      %v9385 = vld [vmem:[#allocation2 + $0x8] sm:$0xff]
      %v9386 = vld [vmem:[#allocation2 + $0x10] sm:$0xff]
      %v9387 = vld [vmem:[#allocation2 + $0x18] sm:$0xff]
      %v9388 = vld [vmem:[#allocation2 + $0x20] sm:$0xff]
      %v9389 = vld [vmem:[#allocation2 + $0x28] sm:$0xff]
      %v9390 = vld [vmem:[#allocation2 + $0x30] sm:$0xff]
      %v9391 = vld [vmem:[#allocation2 + $0x38] sm:$0xff]
      %v9392 = vld [vmem:[#allocation2 + $0x40] sm:$0xff]
      %v9393 = vld [vmem:[#allocation2 + $0x48] sm:$0xff]
      %v9394 = vld [vmem:[#allocation2 + $0x50] sm:$0xff]
      %v9395 = vld [vmem:[#allocation2 + $0x58] sm:$0xff]
      %v9396 = vld [vmem:[#allocation2 + $0x60] sm:$0xff]
      %v9397 = vld [vmem:[#allocation2 + $0x68] sm:$0xff]
      %v9398 = vld [vmem:[#allocation2 + $0x70] sm:$0xff]
      %v9399 = vld [vmem:[#allocation2 + $0x78] sm:$0xff]
      %v9400 = vld [vmem:[#allocation2 + $0x80] sm:$0xff]
      %v9401 = vld [vmem:[#allocation2 + $0x88] sm:$0xff]
      %v9402 = vld [vmem:[#allocation2 + $0x90] sm:$0xff]
      %v9403 = vld [vmem:[#allocation2 + $0x98] sm:$0xff]
      %v9404 = vld [vmem:[#allocation2 + $0xa0] sm:$0xff]
      %v9405 = vld [vmem:[#allocation2 + $0xa8] sm:$0xff]
      %v9406 = vld [vmem:[#allocation2 + $0xb0] sm:$0xff]
      %v9407 = vld [vmem:[#allocation2 + $0xb8] sm:$0xff]
      %v9408 = vld [vmem:[#allocation2 + $0xc0] sm:$0xff]
      %v9409 = vld [vmem:[#allocation2 + $0xc8] sm:$0xff]
      %v9410 = vld [vmem:[#allocation2 + $0xd0] sm:$0xff]
      %v9411 = vld [vmem:[#allocation2 + $0xd8] sm:$0xff]
      %v9412 = vld [vmem:[#allocation2 + $0xe0] sm:$0xff]
      %v9413 = vld [vmem:[#allocation2 + $0xe8] sm:$0xff]
      %v9414 = vld [vmem:[#allocation2 + $0xf0] sm:$0xff]
      %v9415 = vld [vmem:[#allocation2 + $0xf8] sm:$0xff]
      %v9416 = vadd.f32 %v9352, %v9384
      %v9417 = vadd.f32 %v9353, %v9385
      %v9418 = vadd.f32 %v9354, %v9386
      %v9419 = vadd.f32 %v9355, %v9387
      %v9420 = vadd.f32 %v9356, %v9388
      %v9421 = vadd.f32 %v9357, %v9389
      %v9422 = vadd.f32 %v9358, %v9390
      %v9423 = vadd.f32 %v9359, %v9391
      %v9424 = vadd.f32 %v9360, %v9392
      %v9425 = vadd.f32 %v9361, %v9393
      %v9426 = vadd.f32 %v9362, %v9394
      %v9427 = vadd.f32 %v9363, %v9395
      %v9428 = vadd.f32 %v9364, %v9396
      %v9429 = vadd.f32 %v9365, %v9397
      %v9430 = vadd.f32 %v9366, %v9398
      %v9431 = vadd.f32 %v9367, %v9399
      %v9432 = vadd.f32 %v9368, %v9400
      %v9433 = vadd.f32 %v9369, %v9401
      %v9434 = vadd.f32 %v9370, %v9402
      %v9435 = vadd.f32 %v9371, %v9403
      %v9436 = vadd.f32 %v9372, %v9404
      %v9437 = vadd.f32 %v9373, %v9405
      %v9438 = vadd.f32 %v9374, %v9406
      %v9439 = vadd.f32 %v9375, %v9407
      %v9440 = vadd.f32 %v9376, %v9408
      %v9441 = vadd.f32 %v9377, %v9409
      %v9442 = vadd.f32 %v9378, %v9410
      %v9443 = vadd.f32 %v9379, %v9411
      %v9444 = vadd.f32 %v9380, %v9412
      %v9445 = vadd.f32 %v9381, %v9413
      %v9446 = vadd.f32 %v9382, %v9414
      %v9447 = vadd.f32 %v9383, %v9415
      %9448 = vst.msk [vmem:[%s359] sm:$0xff] %vm1538, %v9416
      %9449 = vst.msk [vmem:[%s359 + $0x8] sm:$0xff] %vm1538, %v9417
      %9450 = vst.msk [vmem:[%s359 + $0x10] sm:$0xff] %vm1538, %v9418
      %9451 = vst.msk [vmem:[%s359 + $0x18] sm:$0xff] %vm1538, %v9419
      %9452 = vst.msk [vmem:[%s359 + $0x20] sm:$0xff] %vm1538, %v9420
      %9453 = vst.msk [vmem:[%s359 + $0x28] sm:$0xff] %vm1538, %v9421
      %9454 = vst.msk [vmem:[%s359 + $0x30] sm:$0xff] %vm1538, %v9422
      %9455 = vst.msk [vmem:[%s359 + $0x38] sm:$0xff] %vm1538, %v9423
      %9456 = vst.msk [vmem:[%s359 + $0x40] sm:$0xff] %vm1538, %v9424
      %9457 = vst.msk [vmem:[%s359 + $0x48] sm:$0xff] %vm1538, %v9425
      %9458 = vst.msk [vmem:[%s359 + $0x50] sm:$0xff] %vm1538, %v9426
      %9459 = vst.msk [vmem:[%s359 + $0x58] sm:$0xff] %vm1538, %v9427
      %9460 = vst.msk [vmem:[%s359 + $0x60] sm:$0xff] %vm1538, %v9428
      %9461 = vst.msk [vmem:[%s359 + $0x68] sm:$0xff] %vm1538, %v9429
      %9462 = vst.msk [vmem:[%s359 + $0x70] sm:$0xff] %vm1538, %v9430
      %9463 = vst.msk [vmem:[%s359 + $0x78] sm:$0xff] %vm1538, %v9431
      %9464 = vst.msk [vmem:[%s359 + $0x80] sm:$0xff] %vm1538, %v9432
      %9465 = vst.msk [vmem:[%s359 + $0x88] sm:$0xff] %vm1538, %v9433
      %9466 = vst.msk [vmem:[%s359 + $0x90] sm:$0xff] %vm1538, %v9434
      %9467 = vst.msk [vmem:[%s359 + $0x98] sm:$0xff] %vm1538, %v9435
      %9468 = vst.msk [vmem:[%s359 + $0xa0] sm:$0xff] %vm1538, %v9436
      %9469 = vst.msk [vmem:[%s359 + $0xa8] sm:$0xff] %vm1538, %v9437
      %9470 = vst.msk [vmem:[%s359 + $0xb0] sm:$0xff] %vm1538, %v9438
      %9471 = vst.msk [vmem:[%s359 + $0xb8] sm:$0xff] %vm1538, %v9439
      %9472 = vst.msk [vmem:[%s359 + $0xc0] sm:$0xff] %vm1538, %v9440
      %9473 = vst.msk [vmem:[%s359 + $0xc8] sm:$0xff] %vm1538, %v9441
      %9474 = vst.msk [vmem:[%s359 + $0xd0] sm:$0xff] %vm1538, %v9442
      %9475 = vst.msk [vmem:[%s359 + $0xd8] sm:$0xff] %vm1538, %v9443
      %9476 = vst.msk [vmem:[%s359 + $0xe0] sm:$0xff] %vm1538, %v9444
      %9477 = vst.msk [vmem:[%s359 + $0xe8] sm:$0xff] %vm1538, %v9445
      %9478 = vst.msk [vmem:[%s359 + $0xf0] sm:$0xff] %vm1538, %v9446
      %9479 = vst.msk [vmem:[%s359 + $0xf8] sm:$0xff] %vm1538, %v9447
      %p9480 = scmp.lt.s32.totalorder %s21, 1
      %s9481 = scalar_select %p9480, %s21, 1
      %s9482 = smul.addr %s9481, 32
      %s9483 = smul.addr %s9482, 8
      %s9484 = scalar_lea.vmem %s10, %s9483
      // Predicated region
      $region61: #{tpu_custom_call.1} parent=59 // pred_check
        %p9485 = pneg %p254
      $region62: #{tpu_custom_call.1} parent=59 // pred_check_branch
        %9487 = sbr.rel (%p9485) target = $region64
      $region63: #{tpu_custom_call.1} parent=59 // pred_region
        _
      $region64: #{tpu_custom_call.1} parent=59 // pred_fallthru
        _
    $region60: #{tpu_custom_call.1} parent=5 // pred_fallthru
      _
    %p9488 = scmp.le.s32.totalorder 2, %s16
    // Predicated region
    $region65: #{tpu_custom_call.1} parent=5 // pred_check
      %p9489 = pneg %p9488
    $region66: #{tpu_custom_call.1} parent=5 // pred_check_branch
      %9491 = sbr.rel (%p9489) target = $region68
    $region67: #{tpu_custom_call.1} parent=5 // pred_region
      %s9492 = ssub.s32 %s16, 2
      // Predicated region
      $region69: #{tpu_custom_call.1} parent=67 // pred_check
        %p9493 = pneg %p260
      $region70: #{tpu_custom_call.1} parent=67 // pred_check_branch
        %9495 = sbr.rel (%p9493) target = $region72
      $region71: #{tpu_custom_call.1} parent=67 // pred_region
        %p9496 = scmp.lt.s32.totalorder %s22, 1
        %s9497 = scalar_select %p9496, %s22, 1
        %s9498 = smul.addr %s9497, 32
        %s9499 = smul.addr %s9498, 8
        %s9500 = scalar_lea.vmem %s10, %s9499
      $region72: #{tpu_custom_call.1} parent=67 // pred_fallthru
        _
    $region68: #{tpu_custom_call.1} parent=5 // pred_fallthru
      _
  $region6: #{tpu_custom_call.1} parent=0 // loop_footer
    %s20 = sadd.s32 1, %s16
  $region7: #{tpu_custom_call.1} parent=0 // loop_footer_branch
    %15 = sbr.rel target = $region3
  $region8: #{tpu_custom_call.1} parent=0 // loop_exit
    _

</llo_original>
